<compile_context>
chip_gen: v7x
topology: tpu7x:2x2x1
jax: 0.10.0
libtpu: 0.0.40
codegen_flags: <defaults>
</compile_context>

<pallas_src>
import functools

import numpy as np
import jax
import jax.numpy as jnp
from jax.experimental import pallas as pl
from jax.experimental.pallas import tpu as pltpu

EPS = 1e-5                      # PyTorch nn.LayerNorm default
_INV_SQRT2 = 0.7071067811865476
_NEG_INF = -1e9                 # structural (cross-window) mask

PARAM_ORDER = ("g1", "b1", "qkv_w", "qkv_b", "proj_w", "proj_b",
               "g2", "b2", "fc1_w", "fc1_b", "fc2_w", "fc2_b")


# ----------------------------------------------------------------------------
# host-side helpers (static precompute + pure-JAX reference) -----------------
# ----------------------------------------------------------------------------
def window_partition(x, ws):
    B, H, W, C = x.shape
    x = x.reshape(B, H // ws, ws, W // ws, ws, C)
    x = jnp.transpose(x, (0, 1, 3, 2, 4, 5))
    return x.reshape(-1, ws, ws, C)


def window_reverse(windows, ws, H, W):
    B = windows.shape[0] // (H * W // ws // ws)
    x = windows.reshape(B, H // ws, W // ws, ws, ws, -1)
    x = jnp.transpose(x, (0, 1, 3, 2, 4, 5))
    return x.reshape(B, H, W, -1)


def compute_rel_pos_index(ws):
    coords = np.stack(np.meshgrid(np.arange(ws), np.arange(ws), indexing="ij"))
    coords_flat = coords.reshape(2, -1)
    rel = coords_flat[:, :, None] - coords_flat[:, None, :]
    rel = rel.transpose(1, 2, 0).astype(np.int64)
    rel[:, :, 0] += ws - 1
    rel[:, :, 1] += ws - 1
    rel[:, :, 0] *= 2 * ws - 1
    return rel.sum(-1)  # (N, N)


def compute_attn_mask(H, W, ws, shift):
    img_mask = np.zeros((1, H, W, 1), np.float32)
    slices = (slice(0, -ws), slice(-ws, -shift), slice(-shift, None))
    cnt = 0
    for hs in slices:
        for wss in slices:
            img_mask[:, hs, wss, :] = cnt
            cnt += 1
    mw = (img_mask.reshape(1, H // ws, ws, W // ws, ws, 1)
                  .transpose(0, 1, 3, 2, 4, 5)
                  .reshape(-1, ws * ws))
    am = mw[:, None, :] - mw[:, :, None]          # (nW, N, N)
    return np.where(am != 0, -100.0, 0.0).astype(np.float32)


def build_full_bias(rel_table, H, W, wsz, shift, num_heads):
    """Fold window structure + shift mask + rel-pos bias into one additive
    (num_heads, L, L) bias over the un-rolled token ordering."""
    L = H * W
    rel_idx = compute_rel_pos_index(wsz)                            # (N, N)
    hh, ww = np.meshgrid(np.arange(H), np.arange(W), indexing="ij")
    hs, ws_ = (hh - shift) % H, (ww - shift) % W                    # shifted coords
    win = ((hs // wsz) * (W // wsz) + ws_ // wsz).reshape(L)        # window id
    intra = ((hs % wsz) * wsz + (ws_ % wsz)).reshape(L)             # intra-window pos
    same_win = win[:, None] == win[None, :]                         # (L, L)
    # every query row must keep at least one unmasked key, or the fold is not
    # equivalent to windowed softmax (trivially true: the diagonal is same-win)
    assert bool(np.all(same_win.any(axis=1))), "row fully masked in folded bias"

    pair_rel = rel_idx[intra[:, None], intra[None, :]]              # (L, L)
    bias = rel_table[jnp.asarray(pair_rel.reshape(-1))]             # (L*L, nh)
    bias = jnp.transpose(bias.reshape(L, L, num_heads), (2, 0, 1))  # (nh, L, L)

    add = np.where(same_win, 0.0, _NEG_INF).astype(np.float32)
    if shift > 0:
        am = compute_attn_mask(H, W, wsz, shift)                    # (nW, N, N)
        add = add + np.where(
            same_win, am[win[:, None], intra[:, None], intra[None, :]], 0.0
        ).astype(np.float32)
    return bias + jnp.asarray(add)[None]                            # (nh, L, L)


def _layernorm(x, gamma, beta):
    mu = jnp.mean(x, axis=-1, keepdims=True)
    var = jnp.mean(jnp.square(x - mu), axis=-1, keepdims=True)
    return (x - mu) * jax.lax.rsqrt(var + EPS) * gamma + beta


# ----------------------------------------------------------------------------
# fused Pallas kernel: whole BasicLayer (all blocks) per Bb-image slab --------
# ----------------------------------------------------------------------------
def _basic_layer_kernel(x_ref, bias_ref, g1_ref, b1_ref, qkvw_ref, qkvb_ref,
                        pw_ref, pb_ref, g2_ref, b2_ref, f1w_ref, f1b_ref,
                        f2w_ref, f2b_ref, o_ref, *, depth, num_heads):
    Bb, L, C = x_ref.shape
    hd = C // num_heads
    bf16 = jnp.bfloat16

    x = x_ref[...].reshape(Bb * L, C)            # (M, C) f32 residual stream

    for blk in range(depth):                     # static unroll over blocks
        # ------------- norm1 + (S)W-MSA (shift/windows folded into bias) -------
        xn = _layernorm(x, g1_ref[blk], b1_ref[blk])                 # f32
        # bf16 operands, f32 accumulation; attention scale pre-folded into the
        # q columns of qkv_w / qkv_b at prepare time.
        qkv = jnp.dot(xn.astype(bf16), qkvw_ref[blk],
                      preferred_element_type=jnp.float32) + qkvb_ref[blk]  # (M,3C)
        qkv16 = qkv.astype(bf16)
        bias_blk = bias_ref[blk]                                     # (nh, L, L) bf16

        head_outs = []
        for h in range(num_heads):               # static unroll over heads
            q_h = qkv16[:, h * hd:(h + 1) * hd].reshape(Bb, L, hd)
            k_h = qkv16[:, C + h * hd:C + (h + 1) * hd].reshape(Bb, L, hd)
            v_h = qkv16[:, 2 * C + h * hd:2 * C + (h + 1) * hd].reshape(Bb, L, hd)
            # scores in f32; in-place softmax to keep live ranges tight
            s = jnp.einsum("bqd,bkd->bqk", q_h, k_h,
                           preferred_element_type=jnp.float32)       # (Bb, L, L)
            s = s + bias_blk[h].astype(jnp.float32)
            s = s - jnp.max(s, axis=-1, keepdims=True)
            s = jnp.exp(s)
            s = s * pl.reciprocal(jnp.sum(s, axis=-1, keepdims=True), approx=True)
            head_outs.append(
                jnp.einsum("bqk,bkd->bqd", s.astype(bf16), v_h,
                           preferred_element_type=jnp.float32))      # (Bb, L, hd)

        # re-join heads along lanes -> one (M, C) x (C, C) projection matmul
        attn = jnp.concatenate(head_outs, axis=-1).reshape(Bb * L, C)
        y = jnp.dot(attn.astype(bf16), pw_ref[blk],
                    preferred_element_type=jnp.float32) + pb_ref[blk]
        x = x + y                                                    # residual

        # ------------- norm2 + MLP (exact erf GELU) + residual ------------------
        xn2 = _layernorm(x, g2_ref[blk], b2_ref[blk])
        h1 = jnp.dot(xn2.astype(bf16), f1w_ref[blk],
                     preferred_element_type=jnp.float32) + f1b_ref[blk]
        h1 = 0.5 * h1 * (1.0 + jax.lax.erf(h1 * _INV_SQRT2))
        x = x + jnp.dot(h1.astype(bf16), f2w_ref[blk],
                        preferred_element_type=jnp.float32) + f2b_ref[blk]

    o_ref[...] = x.reshape(Bb, L, C)


def _choose_batch_block(B, L, target_rows=512):
    """Largest image-count per grid step with Bb*L <= target_rows while keeping
    the grid >= 2 steps (so both v7x TensorCores get work)."""
    best = 1
    for bb in range(1, B + 1):
        if B % bb:
            continue
        if bb * L > max(L, target_rows):
            continue
        if B >= 2 and B // bb < 2:
            continue
        best = bb
    return best


@jax.jit
def basic_layer_forward(x, params, bias_all):
    B, L, C = x.shape
    depth, num_heads = bias_all.shape[0], bias_all.shape[1]
    hidden = params["fc1_w"].shape[-1]
    Bb = _choose_batch_block(B, L)

    kernel = functools.partial(_basic_layer_kernel, depth=depth,
                               num_heads=num_heads)

    def const_spec(a):
        nd = a.ndim
        return pl.BlockSpec(a.shape, lambda b, nd=nd: (0,) * nd)   # DMA'd once

    in_specs = [pl.BlockSpec((Bb, L, C), lambda b: (b, 0, 0)), const_spec(bias_all)]
    in_specs += [const_spec(params[k]) for k in PARAM_ORDER]

    grid_spec = pltpu.PrefetchScalarGridSpec(
        num_scalar_prefetch=0,
        grid=(B // Bb,),                 # Bb images / step; >= 2 steps for v7x TCs
        in_specs=in_specs,
        out_specs=pl.BlockSpec((Bb, L, C), lambda b: (b, 0, 0)),
    )

    # advisory cost estimate so XLA schedules/overlaps this custom call sensibly
    mm_flops = 2 * B * depth * L * C * (3 * C + 2 * L + C + 2 * hidden)
    transc = B * depth * (num_heads * L * L + L * hidden)
    bytes_accessed = (2 * x.size * x.dtype.itemsize
                      + bias_all.size * bias_all.dtype.itemsize
                      + sum(params[k].size * params[k].dtype.itemsize
                            for k in PARAM_ORDER))
    cost = pl.CostEstimate(flops=mm_flops, transcendentals=transc,
                           bytes_accessed=bytes_accessed)

    return pl.pallas_call(
        kernel,
        out_shape=jax.ShapeDtypeStruct((B, L, C), jnp.float32),
        grid_spec=grid_spec,
        compiler_params=pltpu.CompilerParams(dimension_semantics=("parallel",)),
        cost_estimate=cost,
    )(x, bias_all, *[params[k] for k in PARAM_ORDER])


def prepare_basic_layer(block_params, *, input_resolution, num_heads, window_size):
    """Stack per-block params along a depth axis, fold the attention scale into
    the q weights/bias, cast matmul weights + fused bias to bf16, and
    precompute the folded window/shift/rel-pos bias."""
    H, W = input_resolution
    depth = len(block_params)
    C = block_params[0]["qkv_w"].shape[0]
    hd = C // num_heads
    scale = hd ** -0.5
    if min(input_resolution) <= window_size:           # same adjustment as PyTorch
        ws_eff, shifts = min(input_resolution), [0] * depth
    else:
        ws_eff = window_size
        shifts = [0 if i % 2 == 0 else window_size // 2 for i in range(depth)]

    bf16 = jnp.bfloat16
    stacked = {}
    for key in PARAM_ORDER:
        vals = []
        for p in block_params:
            v = p[key]
            if key == "qkv_w":                          # fold q scale into weights
                v = v.at[:, :C].multiply(scale)
            elif key == "qkv_b":                        # ... and into the q bias
                v = v.at[..., :C].multiply(scale)
            if key in ("qkv_w", "proj_w", "fc1_w", "fc2_w"):
                v = v.astype(bf16)                      # bf16 MXU operands
            vals.append(v)
        stacked[key] = jnp.stack(vals, axis=0)

    bias_all = jnp.stack(
        [build_full_bias(p["rel_table"], H, W, ws_eff, shifts[i], num_heads)
         for i, p in enumerate(block_params)], axis=0).astype(bf16)  # (d,nh,L,L)
    return stacked, bias_all


# ----------------------------------------------------------------------------
# pure-JAX mirror of the PyTorch module (correctness reference) ---------------
# ----------------------------------------------------------------------------
def reference_basic_layer(x, block_params, *, input_resolution, num_heads, window_size):
    HIGH = jax.lax.Precision.HIGHEST
    B, L, C = x.shape
    H, W = input_resolution
    nh, hd = num_heads, C // num_heads
    scale = (C // num_heads) ** -0.5
    for i, p in enumerate(block_params):
        shift, ws = (0 if i % 2 == 0 else window_size // 2), window_size
        if min(input_resolution) <= ws:
            shift, ws = 0, min(input_resolution)
        N = ws * ws
        shortcut = x
        xn = _layernorm(x, p["g1"], p["b1"]).reshape(B, H, W, C)
        if shift > 0:
            xn = jnp.roll(xn, (-shift, -shift), axis=(1, 2))
        xw = window_partition(xn, ws).reshape(-1, N, C)
        qkv = jnp.einsum("bnc,cd->bnd", xw, p["qkv_w"], precision=HIGH) + p["qkv_b"]
        qkv = qkv.reshape(-1, N, 3, nh, hd).transpose(2, 0, 3, 1, 4)
        q, k, v = qkv[0] * scale, qkv[1], qkv[2]
        attn = jnp.einsum("bhnd,bhmd->bhnm", q, k, precision=HIGH)
        rel_idx = compute_rel_pos_index(ws)
        rb = p["rel_table"][jnp.asarray(rel_idx.reshape(-1))].reshape(N, N, nh)
        attn = attn + jnp.transpose(rb, (2, 0, 1))[None]
        if shift > 0:
            mask = jnp.asarray(compute_attn_mask(H, W, ws, shift))
            nW = mask.shape[0]
            attn = (attn.reshape(B, nW, nh, N, N) + mask[None, :, None]
                    ).reshape(-1, nh, N, N)
        attn = jax.nn.softmax(attn, axis=-1)
        out = jnp.einsum("bhnm,bhmd->bhnd", attn, v, precision=HIGH)
        out = jnp.transpose(out, (0, 2, 1, 3)).reshape(-1, N, C)
        out = jnp.einsum("bnc,cd->bnd", out, p["proj_w"], precision=HIGH) + p["proj_b"]
        xi = window_reverse(out.reshape(-1, ws, ws, C), ws, H, W)
        if shift > 0:
            xi = jnp.roll(xi, (shift, shift), axis=(1, 2))
        x = shortcut + xi.reshape(B, L, C)
        xn2 = _layernorm(x, p["g2"], p["b2"])
        h1 = jnp.einsum("blc,ch->blh", xn2, p["fc1_w"], precision=HIGH) + p["fc1_b"]
        h1 = 0.5 * h1 * (1.0 + jax.lax.erf(h1 * _INV_SQRT2))
        x = x + jnp.einsum("blh,hc->blc", h1, p["fc2_w"], precision=HIGH) + p["fc2_b"]
    return x


# ----------------------------------------------------------------------------
# deterministic synthetic parameters ------------------------------------------
# ----------------------------------------------------------------------------
def init_block_params(key, dim, hidden, num_heads, ws, w_std=0.1):
    ks = jax.random.split(key, 6)
    f32 = jnp.float32
    return {
        "g1": jnp.ones((1, dim), f32), "b1": jnp.zeros((1, dim), f32),
        "qkv_w": jax.random.normal(ks[0], (dim, 3 * dim), f32) * w_std,
        "qkv_b": jax.random.normal(ks[1], (1, 3 * dim), f32) * 0.02,
        "proj_w": jax.random.normal(ks[2], (dim, dim), f32) * w_std,
        "proj_b": jnp.zeros((1, dim), f32),
        "rel_table": jax.random.normal(ks[3], ((2 * ws - 1) ** 2, num_heads), f32) * 0.02,
        "g2": jnp.ones((1, dim), f32), "b2": jnp.zeros((1, dim), f32),
        "fc1_w": jax.random.normal(ks[4], (dim, hidden), f32) * w_std,
        "fc1_b": jnp.zeros((1, hidden), f32),
        "fc2_w": jax.random.normal(ks[5], (hidden, dim), f32) * w_std,
        "fc2_b": jnp.zeros((1, dim), f32),
    }


if __name__ == "__main__":
    # BasicLayer(dim=32, input_resolution=(8,8), depth=2, num_heads=4,
    #            window_size=4, mlp_ratio=4.0, downsample=None)
    dim, H, W = 32, 8, 8
    depth, num_heads, window_size = 2, 4, 4
    mlp_hidden = int(dim * 4.0)
    B = 4                        # batch-blocked: 2 images/step -> 2 grid steps

    key = jax.random.PRNGKey(0)
    kx, kp = jax.random.split(key)
    x = jax.random.normal(kx, (B, H * W, dim), jnp.float32)

    ws_eff = min(H, W) if min(H, W) <= window_size else window_size
    block_params = []
    for _ in range(depth):
        kp, kb = jax.random.split(kp)
        block_params.append(init_block_params(kb, dim, mlp_hidden, num_heads, ws_eff))

    params, bias_all = prepare_basic_layer(
        block_params, input_resolution=(H, W),
        num_heads=num_heads, window_size=window_size)

    out = basic_layer_forward(x, params, bias_all)
    out = jax.block_until_ready(out)
    assert out.shape == (B, H * W, dim) and out.dtype == jnp.float32
    assert bool(jnp.all(jnp.isfinite(out)))

    # sanity-check the fused kernel against a pure-JAX mirror of the PyTorch module
    ref = reference_basic_layer(x, block_params, input_resolution=(H, W),
                                num_heads=num_heads, window_size=window_size)
    err = float(jnp.max(jnp.abs(out - ref)))
    assert err < 5e-2, f"mismatch vs reference: max abs err {err}"

    print("KERNEL_OK")
</pallas_src>

<mosaic_0001>
module attributes {stable_mosaic.version = 11 : i64} {
  func.func @_basic_layer_kernel(%arg0: i32, %arg1: memref<2x64x32xf32, #tpu.memory_space<vmem>>, %arg2: memref<2x4x64x64xbf16, #tpu.memory_space<vmem>>, %arg3: memref<2x1x32xf32, #tpu.memory_space<vmem>>, %arg4: memref<2x1x32xf32, #tpu.memory_space<vmem>>, %arg5: memref<2x32x96xbf16, #tpu.memory_space<vmem>>, %arg6: memref<2x1x96xf32, #tpu.memory_space<vmem>>, %arg7: memref<2x32x32xbf16, #tpu.memory_space<vmem>>, %arg8: memref<2x1x32xf32, #tpu.memory_space<vmem>>, %arg9: memref<2x1x32xf32, #tpu.memory_space<vmem>>, %arg10: memref<2x1x32xf32, #tpu.memory_space<vmem>>, %arg11: memref<2x32x128xbf16, #tpu.memory_space<vmem>>, %arg12: memref<2x1x128xf32, #tpu.memory_space<vmem>>, %arg13: memref<2x128x32xbf16, #tpu.memory_space<vmem>>, %arg14: memref<2x1x32xf32, #tpu.memory_space<vmem>>, %arg15: memref<2x64x32xf32, #tpu.memory_space<vmem>>) attributes {dimension_semantics = [#tpu.dimension_semantics<parallel>], iteration_bounds = array<i64: 2>, scalar_prefetch = 0 : i64, scratch_operands = 0 : i64, tpu.core_type = #tpu.core_type<tc>, window_params = [{transform_indices = @transform_0, window_bounds = array<i64: 2, 64, 32>}, {pipeline_mode = #tpu.pipeline_mode<synchronous>, transform_indices = @transform_1, window_bounds = array<i64: 2, 4, 64, 64>}, {pipeline_mode = #tpu.pipeline_mode<synchronous>, transform_indices = @transform_2, window_bounds = array<i64: 2, 1, 32>}, {pipeline_mode = #tpu.pipeline_mode<synchronous>, transform_indices = @transform_3, window_bounds = array<i64: 2, 1, 32>}, {pipeline_mode = #tpu.pipeline_mode<synchronous>, transform_indices = @transform_4, window_bounds = array<i64: 2, 32, 96>}, {pipeline_mode = #tpu.pipeline_mode<synchronous>, transform_indices = @transform_5, window_bounds = array<i64: 2, 1, 96>}, {pipeline_mode = #tpu.pipeline_mode<synchronous>, transform_indices = @transform_6, window_bounds = array<i64: 2, 32, 32>}, {pipeline_mode = #tpu.pipeline_mode<synchronous>, transform_indices = @transform_7, window_bounds = array<i64: 2, 1, 32>}, {pipeline_mode = #tpu.pipeline_mode<synchronous>, transform_indices = @transform_8, window_bounds = array<i64: 2, 1, 32>}, {pipeline_mode = #tpu.pipeline_mode<synchronous>, transform_indices = @transform_9, window_bounds = array<i64: 2, 1, 32>}, {pipeline_mode = #tpu.pipeline_mode<synchronous>, transform_indices = @transform_10, window_bounds = array<i64: 2, 32, 128>}, {pipeline_mode = #tpu.pipeline_mode<synchronous>, transform_indices = @transform_11, window_bounds = array<i64: 2, 1, 128>}, {pipeline_mode = #tpu.pipeline_mode<synchronous>, transform_indices = @transform_12, window_bounds = array<i64: 2, 128, 32>}, {pipeline_mode = #tpu.pipeline_mode<synchronous>, transform_indices = @transform_13, window_bounds = array<i64: 2, 1, 32>}, {transform_indices = @transform_14, window_bounds = array<i64: 2, 64, 32>}]} {
    %c0 = arith.constant 0 : index
    %c0_0 = arith.constant 0 : index
    %c0_1 = arith.constant 0 : index
    %0 = vector.load %arg1[%c0, %c0_0, %c0_1] : memref<2x64x32xf32, #tpu.memory_space<vmem>>, vector<2x64x32xf32>
    %1 = vector.shape_cast %0 : vector<2x64x32xf32> to vector<128x32xf32>
    %c0_2 = arith.constant 0 : index
    %c0_3 = arith.constant 0 : index
    %c0_4 = arith.constant 0 : index
    %2 = vector.load %arg3[%c0_2, %c0_3, %c0_4] : memref<2x1x32xf32, #tpu.memory_space<vmem>>, vector<1x1x32xf32>
    %3 = vector.shape_cast %2 : vector<1x1x32xf32> to vector<1x32xf32>
    %c0_5 = arith.constant 0 : index
    %c0_6 = arith.constant 0 : index
    %c0_7 = arith.constant 0 : index
    %4 = vector.load %arg4[%c0_5, %c0_6, %c0_7] : memref<2x1x32xf32, #tpu.memory_space<vmem>>, vector<1x1x32xf32>
    %5 = vector.shape_cast %4 : vector<1x1x32xf32> to vector<1x32xf32>
    %cst = arith.constant dense<0.000000e+00> : vector<128xf32>
    %6 = vector.multi_reduction <add>, %1, %cst [1] : vector<128x32xf32> to vector<128xf32>
    %7 = vector.shape_cast %6 : vector<128xf32> to vector<128x1xf32>
    %cst_8 = arith.constant 3.200000e+01 : f32
    %8 = vector.broadcast %cst_8 : f32 to vector<128x1xf32>
    %9 = arith.divf %7, %8 : vector<128x1xf32>
    %10 = vector.broadcast %9 : vector<128x1xf32> to vector<128x32xf32>
    %11 = arith.subf %1, %10 : vector<128x32xf32>
    %12 = arith.mulf %11, %11 : vector<128x32xf32>
    %cst_9 = arith.constant dense<0.000000e+00> : vector<128xf32>
    %13 = vector.multi_reduction <add>, %12, %cst_9 [1] : vector<128x32xf32> to vector<128xf32>
    %14 = vector.shape_cast %13 : vector<128xf32> to vector<128x1xf32>
    %cst_10 = arith.constant 3.200000e+01 : f32
    %15 = vector.broadcast %cst_10 : f32 to vector<128x1xf32>
    %16 = arith.divf %14, %15 : vector<128x1xf32>
    %17 = vector.broadcast %9 : vector<128x1xf32> to vector<128x32xf32>
    %18 = arith.subf %1, %17 : vector<128x32xf32>
    %cst_11 = arith.constant 9.99999974E-6 : f32
    %19 = vector.broadcast %cst_11 : f32 to vector<128x1xf32>
    %20 = arith.addf %16, %19 : vector<128x1xf32>
    %21 = math.rsqrt %20 : vector<128x1xf32>
    %22 = vector.broadcast %21 : vector<128x1xf32> to vector<128x32xf32>
    %23 = arith.mulf %18, %22 : vector<128x32xf32>
    %24 = vector.broadcast %3 : vector<1x32xf32> to vector<128x32xf32>
    %25 = arith.mulf %23, %24 : vector<128x32xf32>
    %26 = vector.broadcast %5 : vector<1x32xf32> to vector<128x32xf32>
    %27 = arith.addf %25, %26 : vector<128x32xf32>
    %28 = arith.truncf %27 : vector<128x32xf32> to vector<128x32xbf16>
    %c0_12 = arith.constant 0 : index
    %c0_13 = arith.constant 0 : index
    %c0_14 = arith.constant 0 : index
    %29 = vector.load %arg5[%c0_12, %c0_13, %c0_14] : memref<2x32x96xbf16, #tpu.memory_space<vmem>>, vector<1x32x96xbf16>
    %30 = vector.shape_cast %29 : vector<1x32x96xbf16> to vector<32x96xbf16>
    %cst_15 = arith.constant dense<0.000000e+00> : vector<128x96xf32>
    %31 = tpu.matmul %28, %30, %cst_15 {dimension_numbers = #tpu.dot_dimension_numbers<[1], [0], [0], [1], [0, 0, 1, 1], [], []>} : vector<128x32xbf16>, vector<32x96xbf16>, vector<128x96xf32> -> vector<128x96xf32>
    %c0_16 = arith.constant 0 : index
    %c0_17 = arith.constant 0 : index
    %c0_18 = arith.constant 0 : index
    %32 = vector.load %arg6[%c0_16, %c0_17, %c0_18] : memref<2x1x96xf32, #tpu.memory_space<vmem>>, vector<1x1x96xf32>
    %33 = vector.shape_cast %32 : vector<1x1x96xf32> to vector<1x96xf32>
    %34 = vector.broadcast %33 : vector<1x96xf32> to vector<128x96xf32>
    %35 = arith.addf %31, %34 : vector<128x96xf32>
    %36 = arith.truncf %35 : vector<128x96xf32> to vector<128x96xbf16>
    %c0_19 = arith.constant 0 : index
    %c0_20 = arith.constant 0 : index
    %c0_21 = arith.constant 0 : index
    %c0_22 = arith.constant 0 : index
    %37 = vector.load %arg2[%c0_19, %c0_20, %c0_21, %c0_22] : memref<2x4x64x64xbf16, #tpu.memory_space<vmem>>, vector<1x4x64x64xbf16>
    %38 = vector.shape_cast %37 : vector<1x4x64x64xbf16> to vector<4x64x64xbf16>
    %39 = vector.extract_strided_slice %36 {offsets = [0, 0], sizes = [128, 8], strides = [1, 1]} : vector<128x96xbf16> to vector<128x8xbf16>
    %40 = vector.shape_cast %39 : vector<128x8xbf16> to vector<2x64x8xbf16>
    %41 = vector.extract_strided_slice %36 {offsets = [0, 32], sizes = [128, 8], strides = [1, 1]} : vector<128x96xbf16> to vector<128x8xbf16>
    %42 = vector.shape_cast %41 : vector<128x8xbf16> to vector<2x64x8xbf16>
    %43 = vector.extract_strided_slice %36 {offsets = [0, 64], sizes = [128, 8], strides = [1, 1]} : vector<128x96xbf16> to vector<128x8xbf16>
    %44 = vector.shape_cast %43 : vector<128x8xbf16> to vector<2x64x8xbf16>
    "tpu.trace_start"() <{level = 10 : i32, message = "bqd,bkd->bqk"}> : () -> ()
    %cst_23 = arith.constant dense<0.000000e+00> : vector<2x64x64xf32>
    %45 = tpu.matmul %40, %42, %cst_23 {dimension_numbers = #tpu.dot_dimension_numbers<[2], [2], [1], [1], [0, 0, 0, 1, 1, 1], [0], [0]>} : vector<2x64x8xbf16>, vector<2x64x8xbf16>, vector<2x64x64xf32> -> vector<2x64x64xf32>
    "tpu.trace_stop"() : () -> ()
    %46 = vector.extract_strided_slice %38 {offsets = [0, 0, 0], sizes = [1, 64, 64], strides = [1, 1, 1]} : vector<4x64x64xbf16> to vector<1x64x64xbf16>
    %47 = vector.shape_cast %46 : vector<1x64x64xbf16> to vector<64x64xbf16>
    %48 = arith.extf %47 : vector<64x64xbf16> to vector<64x64xf32>
    %49 = vector.shape_cast %48 : vector<64x64xf32> to vector<1x64x64xf32>
    %50 = vector.broadcast %49 : vector<1x64x64xf32> to vector<2x64x64xf32>
    %51 = arith.addf %45, %50 : vector<2x64x64xf32>
    %cst_24 = arith.constant dense<0xFF800000> : vector<2x64xf32>
    %52 = vector.multi_reduction <maximumf>, %51, %cst_24 [2] : vector<2x64x64xf32> to vector<2x64xf32>
    %53 = vector.shape_cast %52 : vector<2x64xf32> to vector<2x64x1xf32>
    %54 = vector.broadcast %53 : vector<2x64x1xf32> to vector<2x64x64xf32>
    %55 = arith.subf %51, %54 : vector<2x64x64xf32>
    %56 = math.exp %55 : vector<2x64x64xf32>
    %cst_25 = arith.constant dense<0.000000e+00> : vector<2x64xf32>
    %57 = vector.multi_reduction <add>, %56, %cst_25 [2] : vector<2x64x64xf32> to vector<2x64xf32>
    %58 = vector.shape_cast %57 : vector<2x64xf32> to vector<2x64x1xf32>
    %59 = tpu.reciprocal %58 {approx = true} : vector<2x64x1xf32> -> vector<2x64x1xf32>
    %60 = vector.broadcast %59 : vector<2x64x1xf32> to vector<2x64x64xf32>
    %61 = arith.mulf %56, %60 : vector<2x64x64xf32>
    %62 = arith.truncf %61 : vector<2x64x64xf32> to vector<2x64x64xbf16>
    "tpu.trace_start"() <{level = 10 : i32, message = "bqk,bkd->bqd"}> : () -> ()
    %cst_26 = arith.constant dense<0.000000e+00> : vector<2x64x8xf32>
    %63 = tpu.matmul %62, %44, %cst_26 {dimension_numbers = #tpu.dot_dimension_numbers<[2], [1], [1], [2], [0, 0, 0, 1, 1, 2], [0], [0]>} : vector<2x64x64xbf16>, vector<2x64x8xbf16>, vector<2x64x8xf32> -> vector<2x64x8xf32>
    "tpu.trace_stop"() : () -> ()
    %64 = vector.extract_strided_slice %36 {offsets = [0, 8], sizes = [128, 8], strides = [1, 1]} : vector<128x96xbf16> to vector<128x8xbf16>
    %65 = vector.shape_cast %64 : vector<128x8xbf16> to vector<2x64x8xbf16>
    %66 = vector.extract_strided_slice %36 {offsets = [0, 40], sizes = [128, 8], strides = [1, 1]} : vector<128x96xbf16> to vector<128x8xbf16>
    %67 = vector.shape_cast %66 : vector<128x8xbf16> to vector<2x64x8xbf16>
    %68 = vector.extract_strided_slice %36 {offsets = [0, 72], sizes = [128, 8], strides = [1, 1]} : vector<128x96xbf16> to vector<128x8xbf16>
    %69 = vector.shape_cast %68 : vector<128x8xbf16> to vector<2x64x8xbf16>
    "tpu.trace_start"() <{level = 10 : i32, message = "bqd,bkd->bqk"}> : () -> ()
    %cst_27 = arith.constant dense<0.000000e+00> : vector<2x64x64xf32>
    %70 = tpu.matmul %65, %67, %cst_27 {dimension_numbers = #tpu.dot_dimension_numbers<[2], [2], [1], [1], [0, 0, 0, 1, 1, 1], [0], [0]>} : vector<2x64x8xbf16>, vector<2x64x8xbf16>, vector<2x64x64xf32> -> vector<2x64x64xf32>
    "tpu.trace_stop"() : () -> ()
    %71 = vector.extract_strided_slice %38 {offsets = [1, 0, 0], sizes = [1, 64, 64], strides = [1, 1, 1]} : vector<4x64x64xbf16> to vector<1x64x64xbf16>
    %72 = vector.shape_cast %71 : vector<1x64x64xbf16> to vector<64x64xbf16>
    %73 = arith.extf %72 : vector<64x64xbf16> to vector<64x64xf32>
    %74 = vector.shape_cast %73 : vector<64x64xf32> to vector<1x64x64xf32>
    %75 = vector.broadcast %74 : vector<1x64x64xf32> to vector<2x64x64xf32>
    %76 = arith.addf %70, %75 : vector<2x64x64xf32>
    %cst_28 = arith.constant dense<0xFF800000> : vector<2x64xf32>
    %77 = vector.multi_reduction <maximumf>, %76, %cst_28 [2] : vector<2x64x64xf32> to vector<2x64xf32>
    %78 = vector.shape_cast %77 : vector<2x64xf32> to vector<2x64x1xf32>
    %79 = vector.broadcast %78 : vector<2x64x1xf32> to vector<2x64x64xf32>
    %80 = arith.subf %76, %79 : vector<2x64x64xf32>
    %81 = math.exp %80 : vector<2x64x64xf32>
    %cst_29 = arith.constant dense<0.000000e+00> : vector<2x64xf32>
    %82 = vector.multi_reduction <add>, %81, %cst_29 [2] : vector<2x64x64xf32> to vector<2x64xf32>
    %83 = vector.shape_cast %82 : vector<2x64xf32> to vector<2x64x1xf32>
    %84 = tpu.reciprocal %83 {approx = true} : vector<2x64x1xf32> -> vector<2x64x1xf32>
    %85 = vector.broadcast %84 : vector<2x64x1xf32> to vector<2x64x64xf32>
    %86 = arith.mulf %81, %85 : vector<2x64x64xf32>
    %87 = arith.truncf %86 : vector<2x64x64xf32> to vector<2x64x64xbf16>
    "tpu.trace_start"() <{level = 10 : i32, message = "bqk,bkd->bqd"}> : () -> ()
    %cst_30 = arith.constant dense<0.000000e+00> : vector<2x64x8xf32>
    %88 = tpu.matmul %87, %69, %cst_30 {dimension_numbers = #tpu.dot_dimension_numbers<[2], [1], [1], [2], [0, 0, 0, 1, 1, 2], [0], [0]>} : vector<2x64x64xbf16>, vector<2x64x8xbf16>, vector<2x64x8xf32> -> vector<2x64x8xf32>
    "tpu.trace_stop"() : () -> ()
    %89 = vector.extract_strided_slice %36 {offsets = [0, 16], sizes = [128, 8], strides = [1, 1]} : vector<128x96xbf16> to vector<128x8xbf16>
    %90 = vector.shape_cast %89 : vector<128x8xbf16> to vector<2x64x8xbf16>
    %91 = vector.extract_strided_slice %36 {offsets = [0, 48], sizes = [128, 8], strides = [1, 1]} : vector<128x96xbf16> to vector<128x8xbf16>
    %92 = vector.shape_cast %91 : vector<128x8xbf16> to vector<2x64x8xbf16>
    %93 = vector.extract_strided_slice %36 {offsets = [0, 80], sizes = [128, 8], strides = [1, 1]} : vector<128x96xbf16> to vector<128x8xbf16>
    %94 = vector.shape_cast %93 : vector<128x8xbf16> to vector<2x64x8xbf16>
    "tpu.trace_start"() <{level = 10 : i32, message = "bqd,bkd->bqk"}> : () -> ()
    %cst_31 = arith.constant dense<0.000000e+00> : vector<2x64x64xf32>
    %95 = tpu.matmul %90, %92, %cst_31 {dimension_numbers = #tpu.dot_dimension_numbers<[2], [2], [1], [1], [0, 0, 0, 1, 1, 1], [0], [0]>} : vector<2x64x8xbf16>, vector<2x64x8xbf16>, vector<2x64x64xf32> -> vector<2x64x64xf32>
    "tpu.trace_stop"() : () -> ()
    %96 = vector.extract_strided_slice %38 {offsets = [2, 0, 0], sizes = [1, 64, 64], strides = [1, 1, 1]} : vector<4x64x64xbf16> to vector<1x64x64xbf16>
    %97 = vector.shape_cast %96 : vector<1x64x64xbf16> to vector<64x64xbf16>
    %98 = arith.extf %97 : vector<64x64xbf16> to vector<64x64xf32>
    %99 = vector.shape_cast %98 : vector<64x64xf32> to vector<1x64x64xf32>
    %100 = vector.broadcast %99 : vector<1x64x64xf32> to vector<2x64x64xf32>
    %101 = arith.addf %95, %100 : vector<2x64x64xf32>
    %cst_32 = arith.constant dense<0xFF800000> : vector<2x64xf32>
    %102 = vector.multi_reduction <maximumf>, %101, %cst_32 [2] : vector<2x64x64xf32> to vector<2x64xf32>
    %103 = vector.shape_cast %102 : vector<2x64xf32> to vector<2x64x1xf32>
    %104 = vector.broadcast %103 : vector<2x64x1xf32> to vector<2x64x64xf32>
    %105 = arith.subf %101, %104 : vector<2x64x64xf32>
    %106 = math.exp %105 : vector<2x64x64xf32>
    %cst_33 = arith.constant dense<0.000000e+00> : vector<2x64xf32>
    %107 = vector.multi_reduction <add>, %106, %cst_33 [2] : vector<2x64x64xf32> to vector<2x64xf32>
    %108 = vector.shape_cast %107 : vector<2x64xf32> to vector<2x64x1xf32>
    %109 = tpu.reciprocal %108 {approx = true} : vector<2x64x1xf32> -> vector<2x64x1xf32>
    %110 = vector.broadcast %109 : vector<2x64x1xf32> to vector<2x64x64xf32>
    %111 = arith.mulf %106, %110 : vector<2x64x64xf32>
    %112 = arith.truncf %111 : vector<2x64x64xf32> to vector<2x64x64xbf16>
    "tpu.trace_start"() <{level = 10 : i32, message = "bqk,bkd->bqd"}> : () -> ()
    %cst_34 = arith.constant dense<0.000000e+00> : vector<2x64x8xf32>
    %113 = tpu.matmul %112, %94, %cst_34 {dimension_numbers = #tpu.dot_dimension_numbers<[2], [1], [1], [2], [0, 0, 0, 1, 1, 2], [0], [0]>} : vector<2x64x64xbf16>, vector<2x64x8xbf16>, vector<2x64x8xf32> -> vector<2x64x8xf32>
    "tpu.trace_stop"() : () -> ()
    %114 = vector.extract_strided_slice %36 {offsets = [0, 24], sizes = [128, 8], strides = [1, 1]} : vector<128x96xbf16> to vector<128x8xbf16>
    %115 = vector.shape_cast %114 : vector<128x8xbf16> to vector<2x64x8xbf16>
    %116 = vector.extract_strided_slice %36 {offsets = [0, 56], sizes = [128, 8], strides = [1, 1]} : vector<128x96xbf16> to vector<128x8xbf16>
    %117 = vector.shape_cast %116 : vector<128x8xbf16> to vector<2x64x8xbf16>
    %118 = vector.extract_strided_slice %36 {offsets = [0, 88], sizes = [128, 8], strides = [1, 1]} : vector<128x96xbf16> to vector<128x8xbf16>
    %119 = vector.shape_cast %118 : vector<128x8xbf16> to vector<2x64x8xbf16>
    "tpu.trace_start"() <{level = 10 : i32, message = "bqd,bkd->bqk"}> : () -> ()
    %cst_35 = arith.constant dense<0.000000e+00> : vector<2x64x64xf32>
    %120 = tpu.matmul %115, %117, %cst_35 {dimension_numbers = #tpu.dot_dimension_numbers<[2], [2], [1], [1], [0, 0, 0, 1, 1, 1], [0], [0]>} : vector<2x64x8xbf16>, vector<2x64x8xbf16>, vector<2x64x64xf32> -> vector<2x64x64xf32>
    "tpu.trace_stop"() : () -> ()
    %121 = vector.extract_strided_slice %38 {offsets = [3, 0, 0], sizes = [1, 64, 64], strides = [1, 1, 1]} : vector<4x64x64xbf16> to vector<1x64x64xbf16>
    %122 = vector.shape_cast %121 : vector<1x64x64xbf16> to vector<64x64xbf16>
    %123 = arith.extf %122 : vector<64x64xbf16> to vector<64x64xf32>
    %124 = vector.shape_cast %123 : vector<64x64xf32> to vector<1x64x64xf32>
    %125 = vector.broadcast %124 : vector<1x64x64xf32> to vector<2x64x64xf32>
    %126 = arith.addf %120, %125 : vector<2x64x64xf32>
    %cst_36 = arith.constant dense<0xFF800000> : vector<2x64xf32>
    %127 = vector.multi_reduction <maximumf>, %126, %cst_36 [2] : vector<2x64x64xf32> to vector<2x64xf32>
    %128 = vector.shape_cast %127 : vector<2x64xf32> to vector<2x64x1xf32>
    %129 = vector.broadcast %128 : vector<2x64x1xf32> to vector<2x64x64xf32>
    %130 = arith.subf %126, %129 : vector<2x64x64xf32>
    %131 = math.exp %130 : vector<2x64x64xf32>
    %cst_37 = arith.constant dense<0.000000e+00> : vector<2x64xf32>
    %132 = vector.multi_reduction <add>, %131, %cst_37 [2] : vector<2x64x64xf32> to vector<2x64xf32>
    %133 = vector.shape_cast %132 : vector<2x64xf32> to vector<2x64x1xf32>
    %134 = tpu.reciprocal %133 {approx = true} : vector<2x64x1xf32> -> vector<2x64x1xf32>
    %135 = vector.broadcast %134 : vector<2x64x1xf32> to vector<2x64x64xf32>
    %136 = arith.mulf %131, %135 : vector<2x64x64xf32>
    %137 = arith.truncf %136 : vector<2x64x64xf32> to vector<2x64x64xbf16>
    "tpu.trace_start"() <{level = 10 : i32, message = "bqk,bkd->bqd"}> : () -> ()
    %cst_38 = arith.constant dense<0.000000e+00> : vector<2x64x8xf32>
    %138 = tpu.matmul %137, %119, %cst_38 {dimension_numbers = #tpu.dot_dimension_numbers<[2], [1], [1], [2], [0, 0, 0, 1, 1, 2], [0], [0]>} : vector<2x64x64xbf16>, vector<2x64x8xbf16>, vector<2x64x8xf32> -> vector<2x64x8xf32>
    "tpu.trace_stop"() : () -> ()
    %139 = tpu.concatenate %63, %88, %113, %138 in 2 : vector<2x64x8xf32>, vector<2x64x8xf32>, vector<2x64x8xf32>, vector<2x64x8xf32> -> vector<2x64x32xf32>
    %140 = vector.shape_cast %139 : vector<2x64x32xf32> to vector<128x32xf32>
    %141 = arith.truncf %140 : vector<128x32xf32> to vector<128x32xbf16>
    %c0_39 = arith.constant 0 : index
    %c0_40 = arith.constant 0 : index
    %c0_41 = arith.constant 0 : index
    %142 = vector.load %arg7[%c0_39, %c0_40, %c0_41] : memref<2x32x32xbf16, #tpu.memory_space<vmem>>, vector<1x32x32xbf16>
    %143 = vector.shape_cast %142 : vector<1x32x32xbf16> to vector<32x32xbf16>
    %cst_42 = arith.constant dense<0.000000e+00> : vector<128x32xf32>
    %144 = tpu.matmul %141, %143, %cst_42 {dimension_numbers = #tpu.dot_dimension_numbers<[1], [0], [0], [1], [0, 0, 1, 1], [], []>} : vector<128x32xbf16>, vector<32x32xbf16>, vector<128x32xf32> -> vector<128x32xf32>
    %c0_43 = arith.constant 0 : index
    %c0_44 = arith.constant 0 : index
    %c0_45 = arith.constant 0 : index
    %145 = vector.load %arg8[%c0_43, %c0_44, %c0_45] : memref<2x1x32xf32, #tpu.memory_space<vmem>>, vector<1x1x32xf32>
    %146 = vector.shape_cast %145 : vector<1x1x32xf32> to vector<1x32xf32>
    %147 = vector.broadcast %146 : vector<1x32xf32> to vector<128x32xf32>
    %148 = arith.addf %144, %147 : vector<128x32xf32>
    %149 = arith.addf %1, %148 : vector<128x32xf32>
    %c0_46 = arith.constant 0 : index
    %c0_47 = arith.constant 0 : index
    %c0_48 = arith.constant 0 : index
    %150 = vector.load %arg9[%c0_46, %c0_47, %c0_48] : memref<2x1x32xf32, #tpu.memory_space<vmem>>, vector<1x1x32xf32>
    %151 = vector.shape_cast %150 : vector<1x1x32xf32> to vector<1x32xf32>
    %c0_49 = arith.constant 0 : index
    %c0_50 = arith.constant 0 : index
    %c0_51 = arith.constant 0 : index
    %152 = vector.load %arg10[%c0_49, %c0_50, %c0_51] : memref<2x1x32xf32, #tpu.memory_space<vmem>>, vector<1x1x32xf32>
    %153 = vector.shape_cast %152 : vector<1x1x32xf32> to vector<1x32xf32>
    %cst_52 = arith.constant dense<0.000000e+00> : vector<128xf32>
    %154 = vector.multi_reduction <add>, %149, %cst_52 [1] : vector<128x32xf32> to vector<128xf32>
    %155 = vector.shape_cast %154 : vector<128xf32> to vector<128x1xf32>
    %cst_53 = arith.constant 3.200000e+01 : f32
    %156 = vector.broadcast %cst_53 : f32 to vector<128x1xf32>
    %157 = arith.divf %155, %156 : vector<128x1xf32>
    %158 = vector.broadcast %157 : vector<128x1xf32> to vector<128x32xf32>
    %159 = arith.subf %149, %158 : vector<128x32xf32>
    %160 = arith.mulf %159, %159 : vector<128x32xf32>
    %cst_54 = arith.constant dense<0.000000e+00> : vector<128xf32>
    %161 = vector.multi_reduction <add>, %160, %cst_54 [1] : vector<128x32xf32> to vector<128xf32>
    %162 = vector.shape_cast %161 : vector<128xf32> to vector<128x1xf32>
    %cst_55 = arith.constant 3.200000e+01 : f32
    %163 = vector.broadcast %cst_55 : f32 to vector<128x1xf32>
    %164 = arith.divf %162, %163 : vector<128x1xf32>
    %165 = vector.broadcast %157 : vector<128x1xf32> to vector<128x32xf32>
    %166 = arith.subf %149, %165 : vector<128x32xf32>
    %cst_56 = arith.constant 9.99999974E-6 : f32
    %167 = vector.broadcast %cst_56 : f32 to vector<128x1xf32>
    %168 = arith.addf %164, %167 : vector<128x1xf32>
    %169 = math.rsqrt %168 : vector<128x1xf32>
    %170 = vector.broadcast %169 : vector<128x1xf32> to vector<128x32xf32>
    %171 = arith.mulf %166, %170 : vector<128x32xf32>
    %172 = vector.broadcast %151 : vector<1x32xf32> to vector<128x32xf32>
    %173 = arith.mulf %171, %172 : vector<128x32xf32>
    %174 = vector.broadcast %153 : vector<1x32xf32> to vector<128x32xf32>
    %175 = arith.addf %173, %174 : vector<128x32xf32>
    %176 = arith.truncf %175 : vector<128x32xf32> to vector<128x32xbf16>
    %c0_57 = arith.constant 0 : index
    %c0_58 = arith.constant 0 : index
    %c0_59 = arith.constant 0 : index
    %177 = vector.load %arg11[%c0_57, %c0_58, %c0_59] : memref<2x32x128xbf16, #tpu.memory_space<vmem>>, vector<1x32x128xbf16>
    %178 = vector.shape_cast %177 : vector<1x32x128xbf16> to vector<32x128xbf16>
    %cst_60 = arith.constant dense<0.000000e+00> : vector<128x128xf32>
    %179 = tpu.matmul %176, %178, %cst_60 {dimension_numbers = #tpu.dot_dimension_numbers<[1], [0], [0], [1], [0, 0, 1, 1], [], []>} : vector<128x32xbf16>, vector<32x128xbf16>, vector<128x128xf32> -> vector<128x128xf32>
    %c0_61 = arith.constant 0 : index
    %c0_62 = arith.constant 0 : index
    %c0_63 = arith.constant 0 : index
    %180 = vector.load %arg12[%c0_61, %c0_62, %c0_63] : memref<2x1x128xf32, #tpu.memory_space<vmem>>, vector<1x1x128xf32>
    %181 = vector.shape_cast %180 : vector<1x1x128xf32> to vector<1x128xf32>
    %182 = vector.broadcast %181 : vector<1x128xf32> to vector<128x128xf32>
    %183 = arith.addf %179, %182 : vector<128x128xf32>
    %cst_64 = arith.constant 5.000000e-01 : f32
    %184 = vector.broadcast %cst_64 : f32 to vector<128x128xf32>
    %185 = arith.mulf %184, %183 : vector<128x128xf32>
    %cst_65 = arith.constant 0.707106769 : f32
    %186 = vector.broadcast %cst_65 : f32 to vector<128x128xf32>
    %187 = arith.mulf %183, %186 : vector<128x128xf32>
    %188 = math.erf %187 : vector<128x128xf32>
    %cst_66 = arith.constant 1.000000e+00 : f32
    %189 = vector.broadcast %cst_66 : f32 to vector<128x128xf32>
    %190 = arith.addf %189, %188 : vector<128x128xf32>
    %191 = arith.mulf %185, %190 : vector<128x128xf32>
    %192 = arith.truncf %191 : vector<128x128xf32> to vector<128x128xbf16>
    %c0_67 = arith.constant 0 : index
    %c0_68 = arith.constant 0 : index
    %c0_69 = arith.constant 0 : index
    %193 = vector.load %arg13[%c0_67, %c0_68, %c0_69] : memref<2x128x32xbf16, #tpu.memory_space<vmem>>, vector<1x128x32xbf16>
    %194 = vector.shape_cast %193 : vector<1x128x32xbf16> to vector<128x32xbf16>
    %cst_70 = arith.constant dense<0.000000e+00> : vector<128x32xf32>
    %195 = tpu.matmul %192, %194, %cst_70 {dimension_numbers = #tpu.dot_dimension_numbers<[1], [0], [0], [1], [0, 0, 1, 1], [], []>} : vector<128x128xbf16>, vector<128x32xbf16>, vector<128x32xf32> -> vector<128x32xf32>
    %196 = arith.addf %149, %195 : vector<128x32xf32>
    %c0_71 = arith.constant 0 : index
    %c0_72 = arith.constant 0 : index
    %c0_73 = arith.constant 0 : index
    %197 = vector.load %arg14[%c0_71, %c0_72, %c0_73] : memref<2x1x32xf32, #tpu.memory_space<vmem>>, vector<1x1x32xf32>
    %198 = vector.shape_cast %197 : vector<1x1x32xf32> to vector<1x32xf32>
    %199 = vector.broadcast %198 : vector<1x32xf32> to vector<128x32xf32>
    %200 = arith.addf %196, %199 : vector<128x32xf32>
    %c1 = arith.constant 1 : index
    %c0_74 = arith.constant 0 : index
    %c0_75 = arith.constant 0 : index
    %201 = vector.load %arg3[%c1, %c0_74, %c0_75] : memref<2x1x32xf32, #tpu.memory_space<vmem>>, vector<1x1x32xf32>
    %202 = vector.shape_cast %201 : vector<1x1x32xf32> to vector<1x32xf32>
    %c1_76 = arith.constant 1 : index
    %c0_77 = arith.constant 0 : index
    %c0_78 = arith.constant 0 : index
    %203 = vector.load %arg4[%c1_76, %c0_77, %c0_78] : memref<2x1x32xf32, #tpu.memory_space<vmem>>, vector<1x1x32xf32>
    %204 = vector.shape_cast %203 : vector<1x1x32xf32> to vector<1x32xf32>
    %cst_79 = arith.constant dense<0.000000e+00> : vector<128xf32>
    %205 = vector.multi_reduction <add>, %200, %cst_79 [1] : vector<128x32xf32> to vector<128xf32>
    %206 = vector.shape_cast %205 : vector<128xf32> to vector<128x1xf32>
    %cst_80 = arith.constant 3.200000e+01 : f32
    %207 = vector.broadcast %cst_80 : f32 to vector<128x1xf32>
    %208 = arith.divf %206, %207 : vector<128x1xf32>
    %209 = vector.broadcast %208 : vector<128x1xf32> to vector<128x32xf32>
    %210 = arith.subf %200, %209 : vector<128x32xf32>
    %211 = arith.mulf %210, %210 : vector<128x32xf32>
    %cst_81 = arith.constant dense<0.000000e+00> : vector<128xf32>
    %212 = vector.multi_reduction <add>, %211, %cst_81 [1] : vector<128x32xf32> to vector<128xf32>
    %213 = vector.shape_cast %212 : vector<128xf32> to vector<128x1xf32>
    %cst_82 = arith.constant 3.200000e+01 : f32
    %214 = vector.broadcast %cst_82 : f32 to vector<128x1xf32>
    %215 = arith.divf %213, %214 : vector<128x1xf32>
    %216 = vector.broadcast %208 : vector<128x1xf32> to vector<128x32xf32>
    %217 = arith.subf %200, %216 : vector<128x32xf32>
    %cst_83 = arith.constant 9.99999974E-6 : f32
    %218 = vector.broadcast %cst_83 : f32 to vector<128x1xf32>
    %219 = arith.addf %215, %218 : vector<128x1xf32>
    %220 = math.rsqrt %219 : vector<128x1xf32>
    %221 = vector.broadcast %220 : vector<128x1xf32> to vector<128x32xf32>
    %222 = arith.mulf %217, %221 : vector<128x32xf32>
    %223 = vector.broadcast %202 : vector<1x32xf32> to vector<128x32xf32>
    %224 = arith.mulf %222, %223 : vector<128x32xf32>
    %225 = vector.broadcast %204 : vector<1x32xf32> to vector<128x32xf32>
    %226 = arith.addf %224, %225 : vector<128x32xf32>
    %227 = arith.truncf %226 : vector<128x32xf32> to vector<128x32xbf16>
    %c1_84 = arith.constant 1 : index
    %c0_85 = arith.constant 0 : index
    %c0_86 = arith.constant 0 : index
    %228 = vector.load %arg5[%c1_84, %c0_85, %c0_86] : memref<2x32x96xbf16, #tpu.memory_space<vmem>>, vector<1x32x96xbf16>
    %229 = vector.shape_cast %228 : vector<1x32x96xbf16> to vector<32x96xbf16>
    %cst_87 = arith.constant dense<0.000000e+00> : vector<128x96xf32>
    %230 = tpu.matmul %227, %229, %cst_87 {dimension_numbers = #tpu.dot_dimension_numbers<[1], [0], [0], [1], [0, 0, 1, 1], [], []>} : vector<128x32xbf16>, vector<32x96xbf16>, vector<128x96xf32> -> vector<128x96xf32>
    %c1_88 = arith.constant 1 : index
    %c0_89 = arith.constant 0 : index
    %c0_90 = arith.constant 0 : index
    %231 = vector.load %arg6[%c1_88, %c0_89, %c0_90] : memref<2x1x96xf32, #tpu.memory_space<vmem>>, vector<1x1x96xf32>
    %232 = vector.shape_cast %231 : vector<1x1x96xf32> to vector<1x96xf32>
    %233 = vector.broadcast %232 : vector<1x96xf32> to vector<128x96xf32>
    %234 = arith.addf %230, %233 : vector<128x96xf32>
    %235 = arith.truncf %234 : vector<128x96xf32> to vector<128x96xbf16>
    %c1_91 = arith.constant 1 : index
    %c0_92 = arith.constant 0 : index
    %c0_93 = arith.constant 0 : index
    %c0_94 = arith.constant 0 : index
    %236 = vector.load %arg2[%c1_91, %c0_92, %c0_93, %c0_94] : memref<2x4x64x64xbf16, #tpu.memory_space<vmem>>, vector<1x4x64x64xbf16>
    %237 = vector.shape_cast %236 : vector<1x4x64x64xbf16> to vector<4x64x64xbf16>
    %238 = vector.extract_strided_slice %235 {offsets = [0, 0], sizes = [128, 8], strides = [1, 1]} : vector<128x96xbf16> to vector<128x8xbf16>
    %239 = vector.shape_cast %238 : vector<128x8xbf16> to vector<2x64x8xbf16>
    %240 = vector.extract_strided_slice %235 {offsets = [0, 32], sizes = [128, 8], strides = [1, 1]} : vector<128x96xbf16> to vector<128x8xbf16>
    %241 = vector.shape_cast %240 : vector<128x8xbf16> to vector<2x64x8xbf16>
    %242 = vector.extract_strided_slice %235 {offsets = [0, 64], sizes = [128, 8], strides = [1, 1]} : vector<128x96xbf16> to vector<128x8xbf16>
    %243 = vector.shape_cast %242 : vector<128x8xbf16> to vector<2x64x8xbf16>
    "tpu.trace_start"() <{level = 10 : i32, message = "bqd,bkd->bqk"}> : () -> ()
    %cst_95 = arith.constant dense<0.000000e+00> : vector<2x64x64xf32>
    %244 = tpu.matmul %239, %241, %cst_95 {dimension_numbers = #tpu.dot_dimension_numbers<[2], [2], [1], [1], [0, 0, 0, 1, 1, 1], [0], [0]>} : vector<2x64x8xbf16>, vector<2x64x8xbf16>, vector<2x64x64xf32> -> vector<2x64x64xf32>
    "tpu.trace_stop"() : () -> ()
    %245 = vector.extract_strided_slice %237 {offsets = [0, 0, 0], sizes = [1, 64, 64], strides = [1, 1, 1]} : vector<4x64x64xbf16> to vector<1x64x64xbf16>
    %246 = vector.shape_cast %245 : vector<1x64x64xbf16> to vector<64x64xbf16>
    %247 = arith.extf %246 : vector<64x64xbf16> to vector<64x64xf32>
    %248 = vector.shape_cast %247 : vector<64x64xf32> to vector<1x64x64xf32>
    %249 = vector.broadcast %248 : vector<1x64x64xf32> to vector<2x64x64xf32>
    %250 = arith.addf %244, %249 : vector<2x64x64xf32>
    %cst_96 = arith.constant dense<0xFF800000> : vector<2x64xf32>
    %251 = vector.multi_reduction <maximumf>, %250, %cst_96 [2] : vector<2x64x64xf32> to vector<2x64xf32>
    %252 = vector.shape_cast %251 : vector<2x64xf32> to vector<2x64x1xf32>
    %253 = vector.broadcast %252 : vector<2x64x1xf32> to vector<2x64x64xf32>
    %254 = arith.subf %250, %253 : vector<2x64x64xf32>
    %255 = math.exp %254 : vector<2x64x64xf32>
    %cst_97 = arith.constant dense<0.000000e+00> : vector<2x64xf32>
    %256 = vector.multi_reduction <add>, %255, %cst_97 [2] : vector<2x64x64xf32> to vector<2x64xf32>
    %257 = vector.shape_cast %256 : vector<2x64xf32> to vector<2x64x1xf32>
    %258 = tpu.reciprocal %257 {approx = true} : vector<2x64x1xf32> -> vector<2x64x1xf32>
    %259 = vector.broadcast %258 : vector<2x64x1xf32> to vector<2x64x64xf32>
    %260 = arith.mulf %255, %259 : vector<2x64x64xf32>
    %261 = arith.truncf %260 : vector<2x64x64xf32> to vector<2x64x64xbf16>
    "tpu.trace_start"() <{level = 10 : i32, message = "bqk,bkd->bqd"}> : () -> ()
    %cst_98 = arith.constant dense<0.000000e+00> : vector<2x64x8xf32>
    %262 = tpu.matmul %261, %243, %cst_98 {dimension_numbers = #tpu.dot_dimension_numbers<[2], [1], [1], [2], [0, 0, 0, 1, 1, 2], [0], [0]>} : vector<2x64x64xbf16>, vector<2x64x8xbf16>, vector<2x64x8xf32> -> vector<2x64x8xf32>
    "tpu.trace_stop"() : () -> ()
    %263 = vector.extract_strided_slice %235 {offsets = [0, 8], sizes = [128, 8], strides = [1, 1]} : vector<128x96xbf16> to vector<128x8xbf16>
    %264 = vector.shape_cast %263 : vector<128x8xbf16> to vector<2x64x8xbf16>
    %265 = vector.extract_strided_slice %235 {offsets = [0, 40], sizes = [128, 8], strides = [1, 1]} : vector<128x96xbf16> to vector<128x8xbf16>
    %266 = vector.shape_cast %265 : vector<128x8xbf16> to vector<2x64x8xbf16>
    %267 = vector.extract_strided_slice %235 {offsets = [0, 72], sizes = [128, 8], strides = [1, 1]} : vector<128x96xbf16> to vector<128x8xbf16>
    %268 = vector.shape_cast %267 : vector<128x8xbf16> to vector<2x64x8xbf16>
    "tpu.trace_start"() <{level = 10 : i32, message = "bqd,bkd->bqk"}> : () -> ()
    %cst_99 = arith.constant dense<0.000000e+00> : vector<2x64x64xf32>
    %269 = tpu.matmul %264, %266, %cst_99 {dimension_numbers = #tpu.dot_dimension_numbers<[2], [2], [1], [1], [0, 0, 0, 1, 1, 1], [0], [0]>} : vector<2x64x8xbf16>, vector<2x64x8xbf16>, vector<2x64x64xf32> -> vector<2x64x64xf32>
    "tpu.trace_stop"() : () -> ()
    %270 = vector.extract_strided_slice %237 {offsets = [1, 0, 0], sizes = [1, 64, 64], strides = [1, 1, 1]} : vector<4x64x64xbf16> to vector<1x64x64xbf16>
    %271 = vector.shape_cast %270 : vector<1x64x64xbf16> to vector<64x64xbf16>
    %272 = arith.extf %271 : vector<64x64xbf16> to vector<64x64xf32>
    %273 = vector.shape_cast %272 : vector<64x64xf32> to vector<1x64x64xf32>
    %274 = vector.broadcast %273 : vector<1x64x64xf32> to vector<2x64x64xf32>
    %275 = arith.addf %269, %274 : vector<2x64x64xf32>
    %cst_100 = arith.constant dense<0xFF800000> : vector<2x64xf32>
    %276 = vector.multi_reduction <maximumf>, %275, %cst_100 [2] : vector<2x64x64xf32> to vector<2x64xf32>
    %277 = vector.shape_cast %276 : vector<2x64xf32> to vector<2x64x1xf32>
    %278 = vector.broadcast %277 : vector<2x64x1xf32> to vector<2x64x64xf32>
    %279 = arith.subf %275, %278 : vector<2x64x64xf32>
    %280 = math.exp %279 : vector<2x64x64xf32>
    %cst_101 = arith.constant dense<0.000000e+00> : vector<2x64xf32>
    %281 = vector.multi_reduction <add>, %280, %cst_101 [2] : vector<2x64x64xf32> to vector<2x64xf32>
    %282 = vector.shape_cast %281 : vector<2x64xf32> to vector<2x64x1xf32>
    %283 = tpu.reciprocal %282 {approx = true} : vector<2x64x1xf32> -> vector<2x64x1xf32>
    %284 = vector.broadcast %283 : vector<2x64x1xf32> to vector<2x64x64xf32>
    %285 = arith.mulf %280, %284 : vector<2x64x64xf32>
    %286 = arith.truncf %285 : vector<2x64x64xf32> to vector<2x64x64xbf16>
    "tpu.trace_start"() <{level = 10 : i32, message = "bqk,bkd->bqd"}> : () -> ()
    %cst_102 = arith.constant dense<0.000000e+00> : vector<2x64x8xf32>
    %287 = tpu.matmul %286, %268, %cst_102 {dimension_numbers = #tpu.dot_dimension_numbers<[2], [1], [1], [2], [0, 0, 0, 1, 1, 2], [0], [0]>} : vector<2x64x64xbf16>, vector<2x64x8xbf16>, vector<2x64x8xf32> -> vector<2x64x8xf32>
    "tpu.trace_stop"() : () -> ()
    %288 = vector.extract_strided_slice %235 {offsets = [0, 16], sizes = [128, 8], strides = [1, 1]} : vector<128x96xbf16> to vector<128x8xbf16>
    %289 = vector.shape_cast %288 : vector<128x8xbf16> to vector<2x64x8xbf16>
    %290 = vector.extract_strided_slice %235 {offsets = [0, 48], sizes = [128, 8], strides = [1, 1]} : vector<128x96xbf16> to vector<128x8xbf16>
    %291 = vector.shape_cast %290 : vector<128x8xbf16> to vector<2x64x8xbf16>
    %292 = vector.extract_strided_slice %235 {offsets = [0, 80], sizes = [128, 8], strides = [1, 1]} : vector<128x96xbf16> to vector<128x8xbf16>
    %293 = vector.shape_cast %292 : vector<128x8xbf16> to vector<2x64x8xbf16>
    "tpu.trace_start"() <{level = 10 : i32, message = "bqd,bkd->bqk"}> : () -> ()
    %cst_103 = arith.constant dense<0.000000e+00> : vector<2x64x64xf32>
    %294 = tpu.matmul %289, %291, %cst_103 {dimension_numbers = #tpu.dot_dimension_numbers<[2], [2], [1], [1], [0, 0, 0, 1, 1, 1], [0], [0]>} : vector<2x64x8xbf16>, vector<2x64x8xbf16>, vector<2x64x64xf32> -> vector<2x64x64xf32>
    "tpu.trace_stop"() : () -> ()
    %295 = vector.extract_strided_slice %237 {offsets = [2, 0, 0], sizes = [1, 64, 64], strides = [1, 1, 1]} : vector<4x64x64xbf16> to vector<1x64x64xbf16>
    %296 = vector.shape_cast %295 : vector<1x64x64xbf16> to vector<64x64xbf16>
    %297 = arith.extf %296 : vector<64x64xbf16> to vector<64x64xf32>
    %298 = vector.shape_cast %297 : vector<64x64xf32> to vector<1x64x64xf32>
    %299 = vector.broadcast %298 : vector<1x64x64xf32> to vector<2x64x64xf32>
    %300 = arith.addf %294, %299 : vector<2x64x64xf32>
    %cst_104 = arith.constant dense<0xFF800000> : vector<2x64xf32>
    %301 = vector.multi_reduction <maximumf>, %300, %cst_104 [2] : vector<2x64x64xf32> to vector<2x64xf32>
    %302 = vector.shape_cast %301 : vector<2x64xf32> to vector<2x64x1xf32>
    %303 = vector.broadcast %302 : vector<2x64x1xf32> to vector<2x64x64xf32>
    %304 = arith.subf %300, %303 : vector<2x64x64xf32>
    %305 = math.exp %304 : vector<2x64x64xf32>
    %cst_105 = arith.constant dense<0.000000e+00> : vector<2x64xf32>
    %306 = vector.multi_reduction <add>, %305, %cst_105 [2] : vector<2x64x64xf32> to vector<2x64xf32>
    %307 = vector.shape_cast %306 : vector<2x64xf32> to vector<2x64x1xf32>
    %308 = tpu.reciprocal %307 {approx = true} : vector<2x64x1xf32> -> vector<2x64x1xf32>
    %309 = vector.broadcast %308 : vector<2x64x1xf32> to vector<2x64x64xf32>
    %310 = arith.mulf %305, %309 : vector<2x64x64xf32>
    %311 = arith.truncf %310 : vector<2x64x64xf32> to vector<2x64x64xbf16>
    "tpu.trace_start"() <{level = 10 : i32, message = "bqk,bkd->bqd"}> : () -> ()
    %cst_106 = arith.constant dense<0.000000e+00> : vector<2x64x8xf32>
    %312 = tpu.matmul %311, %293, %cst_106 {dimension_numbers = #tpu.dot_dimension_numbers<[2], [1], [1], [2], [0, 0, 0, 1, 1, 2], [0], [0]>} : vector<2x64x64xbf16>, vector<2x64x8xbf16>, vector<2x64x8xf32> -> vector<2x64x8xf32>
    "tpu.trace_stop"() : () -> ()
    %313 = vector.extract_strided_slice %235 {offsets = [0, 24], sizes = [128, 8], strides = [1, 1]} : vector<128x96xbf16> to vector<128x8xbf16>
    %314 = vector.shape_cast %313 : vector<128x8xbf16> to vector<2x64x8xbf16>
    %315 = vector.extract_strided_slice %235 {offsets = [0, 56], sizes = [128, 8], strides = [1, 1]} : vector<128x96xbf16> to vector<128x8xbf16>
    %316 = vector.shape_cast %315 : vector<128x8xbf16> to vector<2x64x8xbf16>
    %317 = vector.extract_strided_slice %235 {offsets = [0, 88], sizes = [128, 8], strides = [1, 1]} : vector<128x96xbf16> to vector<128x8xbf16>
    %318 = vector.shape_cast %317 : vector<128x8xbf16> to vector<2x64x8xbf16>
    "tpu.trace_start"() <{level = 10 : i32, message = "bqd,bkd->bqk"}> : () -> ()
    %cst_107 = arith.constant dense<0.000000e+00> : vector<2x64x64xf32>
    %319 = tpu.matmul %314, %316, %cst_107 {dimension_numbers = #tpu.dot_dimension_numbers<[2], [2], [1], [1], [0, 0, 0, 1, 1, 1], [0], [0]>} : vector<2x64x8xbf16>, vector<2x64x8xbf16>, vector<2x64x64xf32> -> vector<2x64x64xf32>
    "tpu.trace_stop"() : () -> ()
    %320 = vector.extract_strided_slice %237 {offsets = [3, 0, 0], sizes = [1, 64, 64], strides = [1, 1, 1]} : vector<4x64x64xbf16> to vector<1x64x64xbf16>
    %321 = vector.shape_cast %320 : vector<1x64x64xbf16> to vector<64x64xbf16>
    %322 = arith.extf %321 : vector<64x64xbf16> to vector<64x64xf32>
    %323 = vector.shape_cast %322 : vector<64x64xf32> to vector<1x64x64xf32>
    %324 = vector.broadcast %323 : vector<1x64x64xf32> to vector<2x64x64xf32>
    %325 = arith.addf %319, %324 : vector<2x64x64xf32>
    %cst_108 = arith.constant dense<0xFF800000> : vector<2x64xf32>
    %326 = vector.multi_reduction <maximumf>, %325, %cst_108 [2] : vector<2x64x64xf32> to vector<2x64xf32>
    %327 = vector.shape_cast %326 : vector<2x64xf32> to vector<2x64x1xf32>
    %328 = vector.broadcast %327 : vector<2x64x1xf32> to vector<2x64x64xf32>
    %329 = arith.subf %325, %328 : vector<2x64x64xf32>
    %330 = math.exp %329 : vector<2x64x64xf32>
    %cst_109 = arith.constant dense<0.000000e+00> : vector<2x64xf32>
    %331 = vector.multi_reduction <add>, %330, %cst_109 [2] : vector<2x64x64xf32> to vector<2x64xf32>
    %332 = vector.shape_cast %331 : vector<2x64xf32> to vector<2x64x1xf32>
    %333 = tpu.reciprocal %332 {approx = true} : vector<2x64x1xf32> -> vector<2x64x1xf32>
    %334 = vector.broadcast %333 : vector<2x64x1xf32> to vector<2x64x64xf32>
    %335 = arith.mulf %330, %334 : vector<2x64x64xf32>
    %336 = arith.truncf %335 : vector<2x64x64xf32> to vector<2x64x64xbf16>
    "tpu.trace_start"() <{level = 10 : i32, message = "bqk,bkd->bqd"}> : () -> ()
    %cst_110 = arith.constant dense<0.000000e+00> : vector<2x64x8xf32>
    %337 = tpu.matmul %336, %318, %cst_110 {dimension_numbers = #tpu.dot_dimension_numbers<[2], [1], [1], [2], [0, 0, 0, 1, 1, 2], [0], [0]>} : vector<2x64x64xbf16>, vector<2x64x8xbf16>, vector<2x64x8xf32> -> vector<2x64x8xf32>
    "tpu.trace_stop"() : () -> ()
    %338 = tpu.concatenate %262, %287, %312, %337 in 2 : vector<2x64x8xf32>, vector<2x64x8xf32>, vector<2x64x8xf32>, vector<2x64x8xf32> -> vector<2x64x32xf32>
    %339 = vector.shape_cast %338 : vector<2x64x32xf32> to vector<128x32xf32>
    %340 = arith.truncf %339 : vector<128x32xf32> to vector<128x32xbf16>
    %c1_111 = arith.constant 1 : index
    %c0_112 = arith.constant 0 : index
    %c0_113 = arith.constant 0 : index
    %341 = vector.load %arg7[%c1_111, %c0_112, %c0_113] : memref<2x32x32xbf16, #tpu.memory_space<vmem>>, vector<1x32x32xbf16>
    %342 = vector.shape_cast %341 : vector<1x32x32xbf16> to vector<32x32xbf16>
    %cst_114 = arith.constant dense<0.000000e+00> : vector<128x32xf32>
    %343 = tpu.matmul %340, %342, %cst_114 {dimension_numbers = #tpu.dot_dimension_numbers<[1], [0], [0], [1], [0, 0, 1, 1], [], []>} : vector<128x32xbf16>, vector<32x32xbf16>, vector<128x32xf32> -> vector<128x32xf32>
    %c1_115 = arith.constant 1 : index
    %c0_116 = arith.constant 0 : index
    %c0_117 = arith.constant 0 : index
    %344 = vector.load %arg8[%c1_115, %c0_116, %c0_117] : memref<2x1x32xf32, #tpu.memory_space<vmem>>, vector<1x1x32xf32>
    %345 = vector.shape_cast %344 : vector<1x1x32xf32> to vector<1x32xf32>
    %346 = vector.broadcast %345 : vector<1x32xf32> to vector<128x32xf32>
    %347 = arith.addf %343, %346 : vector<128x32xf32>
    %348 = arith.addf %200, %347 : vector<128x32xf32>
    %c1_118 = arith.constant 1 : index
    %c0_119 = arith.constant 0 : index
    %c0_120 = arith.constant 0 : index
    %349 = vector.load %arg9[%c1_118, %c0_119, %c0_120] : memref<2x1x32xf32, #tpu.memory_space<vmem>>, vector<1x1x32xf32>
    %350 = vector.shape_cast %349 : vector<1x1x32xf32> to vector<1x32xf32>
    %c1_121 = arith.constant 1 : index
    %c0_122 = arith.constant 0 : index
    %c0_123 = arith.constant 0 : index
    %351 = vector.load %arg10[%c1_121, %c0_122, %c0_123] : memref<2x1x32xf32, #tpu.memory_space<vmem>>, vector<1x1x32xf32>
    %352 = vector.shape_cast %351 : vector<1x1x32xf32> to vector<1x32xf32>
    %cst_124 = arith.constant dense<0.000000e+00> : vector<128xf32>
    %353 = vector.multi_reduction <add>, %348, %cst_124 [1] : vector<128x32xf32> to vector<128xf32>
    %354 = vector.shape_cast %353 : vector<128xf32> to vector<128x1xf32>
    %cst_125 = arith.constant 3.200000e+01 : f32
    %355 = vector.broadcast %cst_125 : f32 to vector<128x1xf32>
    %356 = arith.divf %354, %355 : vector<128x1xf32>
    %357 = vector.broadcast %356 : vector<128x1xf32> to vector<128x32xf32>
    %358 = arith.subf %348, %357 : vector<128x32xf32>
    %359 = arith.mulf %358, %358 : vector<128x32xf32>
    %cst_126 = arith.constant dense<0.000000e+00> : vector<128xf32>
    %360 = vector.multi_reduction <add>, %359, %cst_126 [1] : vector<128x32xf32> to vector<128xf32>
    %361 = vector.shape_cast %360 : vector<128xf32> to vector<128x1xf32>
    %cst_127 = arith.constant 3.200000e+01 : f32
    %362 = vector.broadcast %cst_127 : f32 to vector<128x1xf32>
    %363 = arith.divf %361, %362 : vector<128x1xf32>
    %364 = vector.broadcast %356 : vector<128x1xf32> to vector<128x32xf32>
    %365 = arith.subf %348, %364 : vector<128x32xf32>
    %cst_128 = arith.constant 9.99999974E-6 : f32
    %366 = vector.broadcast %cst_128 : f32 to vector<128x1xf32>
    %367 = arith.addf %363, %366 : vector<128x1xf32>
    %368 = math.rsqrt %367 : vector<128x1xf32>
    %369 = vector.broadcast %368 : vector<128x1xf32> to vector<128x32xf32>
    %370 = arith.mulf %365, %369 : vector<128x32xf32>
    %371 = vector.broadcast %350 : vector<1x32xf32> to vector<128x32xf32>
    %372 = arith.mulf %370, %371 : vector<128x32xf32>
    %373 = vector.broadcast %352 : vector<1x32xf32> to vector<128x32xf32>
    %374 = arith.addf %372, %373 : vector<128x32xf32>
    %375 = arith.truncf %374 : vector<128x32xf32> to vector<128x32xbf16>
    %c1_129 = arith.constant 1 : index
    %c0_130 = arith.constant 0 : index
    %c0_131 = arith.constant 0 : index
    %376 = vector.load %arg11[%c1_129, %c0_130, %c0_131] : memref<2x32x128xbf16, #tpu.memory_space<vmem>>, vector<1x32x128xbf16>
    %377 = vector.shape_cast %376 : vector<1x32x128xbf16> to vector<32x128xbf16>
    %cst_132 = arith.constant dense<0.000000e+00> : vector<128x128xf32>
    %378 = tpu.matmul %375, %377, %cst_132 {dimension_numbers = #tpu.dot_dimension_numbers<[1], [0], [0], [1], [0, 0, 1, 1], [], []>} : vector<128x32xbf16>, vector<32x128xbf16>, vector<128x128xf32> -> vector<128x128xf32>
    %c1_133 = arith.constant 1 : index
    %c0_134 = arith.constant 0 : index
    %c0_135 = arith.constant 0 : index
    %379 = vector.load %arg12[%c1_133, %c0_134, %c0_135] : memref<2x1x128xf32, #tpu.memory_space<vmem>>, vector<1x1x128xf32>
    %380 = vector.shape_cast %379 : vector<1x1x128xf32> to vector<1x128xf32>
    %381 = vector.broadcast %380 : vector<1x128xf32> to vector<128x128xf32>
    %382 = arith.addf %378, %381 : vector<128x128xf32>
    %cst_136 = arith.constant 5.000000e-01 : f32
    %383 = vector.broadcast %cst_136 : f32 to vector<128x128xf32>
    %384 = arith.mulf %383, %382 : vector<128x128xf32>
    %cst_137 = arith.constant 0.707106769 : f32
    %385 = vector.broadcast %cst_137 : f32 to vector<128x128xf32>
    %386 = arith.mulf %382, %385 : vector<128x128xf32>
    %387 = math.erf %386 : vector<128x128xf32>
    %cst_138 = arith.constant 1.000000e+00 : f32
    %388 = vector.broadcast %cst_138 : f32 to vector<128x128xf32>
    %389 = arith.addf %388, %387 : vector<128x128xf32>
    %390 = arith.mulf %384, %389 : vector<128x128xf32>
    %391 = arith.truncf %390 : vector<128x128xf32> to vector<128x128xbf16>
    %c1_139 = arith.constant 1 : index
    %c0_140 = arith.constant 0 : index
    %c0_141 = arith.constant 0 : index
    %392 = vector.load %arg13[%c1_139, %c0_140, %c0_141] : memref<2x128x32xbf16, #tpu.memory_space<vmem>>, vector<1x128x32xbf16>
    %393 = vector.shape_cast %392 : vector<1x128x32xbf16> to vector<128x32xbf16>
    %cst_142 = arith.constant dense<0.000000e+00> : vector<128x32xf32>
    %394 = tpu.matmul %391, %393, %cst_142 {dimension_numbers = #tpu.dot_dimension_numbers<[1], [0], [0], [1], [0, 0, 1, 1], [], []>} : vector<128x128xbf16>, vector<128x32xbf16>, vector<128x32xf32> -> vector<128x32xf32>
    %395 = arith.addf %348, %394 : vector<128x32xf32>
    %c1_143 = arith.constant 1 : index
    %c0_144 = arith.constant 0 : index
    %c0_145 = arith.constant 0 : index
    %396 = vector.load %arg14[%c1_143, %c0_144, %c0_145] : memref<2x1x32xf32, #tpu.memory_space<vmem>>, vector<1x1x32xf32>
    %397 = vector.shape_cast %396 : vector<1x1x32xf32> to vector<1x32xf32>
    %398 = vector.broadcast %397 : vector<1x32xf32> to vector<128x32xf32>
    %399 = arith.addf %395, %398 : vector<128x32xf32>
    %400 = vector.shape_cast %399 : vector<128x32xf32> to vector<2x64x32xf32>
    %c0_146 = arith.constant 0 : index
    %c0_147 = arith.constant 0 : index
    %c0_148 = arith.constant 0 : index
    %401 = vector.load %arg15[%c0_146, %c0_147, %c0_148] : memref<2x64x32xf32, #tpu.memory_space<vmem>>, vector<2x64x32xf32>
    tpu.vector_store %arg15[%c0_146, %c0_147, %c0_148], %400 {strides = array<i32>} : memref<2x64x32xf32, #tpu.memory_space<vmem>>, vector<2x64x32xf32>,
    return
  }
  func.func @transform_0(%arg0: i32) -> (i32, i32, i32) {
    %c0_i32 = arith.constant 0 : i32
    %c0_i32_0 = arith.constant 0 : i32
    %c0_i32_1 = arith.constant 0 : i32
    return %arg0, %c0_i32, %c0_i32_0 : i32, i32, i32
  }
  func.func @transform_1(%arg0: i32) -> (i32, i32, i32, i32) {
    %c0_i32 = arith.constant 0 : i32
    %c0_i32_0 = arith.constant 0 : i32
    %c0_i32_1 = arith.constant 0 : i32
    %c0_i32_2 = arith.constant 0 : i32
    %c0_i32_3 = arith.constant 0 : i32
    return %c0_i32, %c0_i32_0, %c0_i32_1, %c0_i32_2 : i32, i32, i32, i32
  }
  func.func @transform_2(%arg0: i32) -> (i32, i32, i32) {
    %c0_i32 = arith.constant 0 : i32
    %c0_i32_0 = arith.constant 0 : i32
    %c0_i32_1 = arith.constant 0 : i32
    %c0_i32_2 = arith.constant 0 : i32
    return %c0_i32, %c0_i32_0, %c0_i32_1 : i32, i32, i32
  }
  func.func @transform_3(%arg0: i32) -> (i32, i32, i32) {
    %c0_i32 = arith.constant 0 : i32
    %c0_i32_0 = arith.constant 0 : i32
    %c0_i32_1 = arith.constant 0 : i32
    %c0_i32_2 = arith.constant 0 : i32
    return %c0_i32, %c0_i32_0, %c0_i32_1 : i32, i32, i32
  }
  func.func @transform_4(%arg0: i32) -> (i32, i32, i32) {
    %c0_i32 = arith.constant 0 : i32
    %c0_i32_0 = arith.constant 0 : i32
    %c0_i32_1 = arith.constant 0 : i32
    %c0_i32_2 = arith.constant 0 : i32
    return %c0_i32, %c0_i32_0, %c0_i32_1 : i32, i32, i32
  }
  func.func @transform_5(%arg0: i32) -> (i32, i32, i32) {
    %c0_i32 = arith.constant 0 : i32
    %c0_i32_0 = arith.constant 0 : i32
    %c0_i32_1 = arith.constant 0 : i32
    %c0_i32_2 = arith.constant 0 : i32
    return %c0_i32, %c0_i32_0, %c0_i32_1 : i32, i32, i32
  }
  func.func @transform_6(%arg0: i32) -> (i32, i32, i32) {
    %c0_i32 = arith.constant 0 : i32
    %c0_i32_0 = arith.constant 0 : i32
    %c0_i32_1 = arith.constant 0 : i32
    %c0_i32_2 = arith.constant 0 : i32
    return %c0_i32, %c0_i32_0, %c0_i32_1 : i32, i32, i32
  }
  func.func @transform_7(%arg0: i32) -> (i32, i32, i32) {
    %c0_i32 = arith.constant 0 : i32
    %c0_i32_0 = arith.constant 0 : i32
    %c0_i32_1 = arith.constant 0 : i32
    %c0_i32_2 = arith.constant 0 : i32
    return %c0_i32, %c0_i32_0, %c0_i32_1 : i32, i32, i32
  }
  func.func @transform_8(%arg0: i32) -> (i32, i32, i32) {
    %c0_i32 = arith.constant 0 : i32
    %c0_i32_0 = arith.constant 0 : i32
    %c0_i32_1 = arith.constant 0 : i32
    %c0_i32_2 = arith.constant 0 : i32
    return %c0_i32, %c0_i32_0, %c0_i32_1 : i32, i32, i32
  }
  func.func @transform_9(%arg0: i32) -> (i32, i32, i32) {
    %c0_i32 = arith.constant 0 : i32
    %c0_i32_0 = arith.constant 0 : i32
    %c0_i32_1 = arith.constant 0 : i32
    %c0_i32_2 = arith.constant 0 : i32
    return %c0_i32, %c0_i32_0, %c0_i32_1 : i32, i32, i32
  }
  func.func @transform_10(%arg0: i32) -> (i32, i32, i32) {
    %c0_i32 = arith.constant 0 : i32
    %c0_i32_0 = arith.constant 0 : i32
    %c0_i32_1 = arith.constant 0 : i32
    %c0_i32_2 = arith.constant 0 : i32
    return %c0_i32, %c0_i32_0, %c0_i32_1 : i32, i32, i32
  }
  func.func @transform_11(%arg0: i32) -> (i32, i32, i32) {
    %c0_i32 = arith.constant 0 : i32
    %c0_i32_0 = arith.constant 0 : i32
    %c0_i32_1 = arith.constant 0 : i32
    %c0_i32_2 = arith.constant 0 : i32
    return %c0_i32, %c0_i32_0, %c0_i32_1 : i32, i32, i32
  }
  func.func @transform_12(%arg0: i32) -> (i32, i32, i32) {
    %c0_i32 = arith.constant 0 : i32
    %c0_i32_0 = arith.constant 0 : i32
    %c0_i32_1 = arith.constant 0 : i32
    %c0_i32_2 = arith.constant 0 : i32
    return %c0_i32, %c0_i32_0, %c0_i32_1 : i32, i32, i32
  }
  func.func @transform_13(%arg0: i32) -> (i32, i32, i32) {
    %c0_i32 = arith.constant 0 : i32
    %c0_i32_0 = arith.constant 0 : i32
    %c0_i32_1 = arith.constant 0 : i32
    %c0_i32_2 = arith.constant 0 : i32
    return %c0_i32, %c0_i32_0, %c0_i32_1 : i32, i32, i32
  }
  func.func @transform_14(%arg0: i32) -> (i32, i32, i32) {
    %c0_i32 = arith.constant 0 : i32
    %c0_i32_0 = arith.constant 0 : i32
    %c0_i32_1 = arith.constant 0 : i32
    return %arg0, %c0_i32, %c0_i32_0 : i32, i32, i32
  }
}

</mosaic_0001>

<llo_original>
// kernel: basic_layer_forward.1
$region0: #{basic_layer_forward.1}
  #allocation0 [shape = 'u32[]', space=smem, size = 0x4, offset = 0x4, fixed_abs, tag = 'smem constant byte address 0x4 - core index']
  #allocation1 [shape = 'u32[144,128]{1,0:T(1,128)}', space=vmem, size = 0x12000, scoped, tag = 'internal scratch']
  %s0 = inlined_call_operand.vmem [shape: f32[4,64,32], index: 0, kind: input, shape index: {}]
  %s1 = inlined_call_operand.vmem [shape: bf16[2,4,64,64], index: 1, kind: input, shape index: {}]
  %s2 = inlined_call_operand.vmem [shape: f32[2,1,32], index: 2, kind: input, shape index: {}]
  %s3 = inlined_call_operand.vmem [shape: f32[2,1,32], index: 3, kind: input, shape index: {}]
  %s4 = inlined_call_operand.vmem [shape: bf16[2,32,96], index: 4, kind: input, shape index: {}]
  %s5 = inlined_call_operand.vmem [shape: f32[2,1,96], index: 5, kind: input, shape index: {}]
  %s6 = inlined_call_operand.vmem [shape: bf16[2,32,32], index: 6, kind: input, shape index: {}]
  %s7 = inlined_call_operand.vmem [shape: f32[2,1,32], index: 7, kind: input, shape index: {}]
  %s8 = inlined_call_operand.vmem [shape: f32[2,1,32], index: 8, kind: input, shape index: {}]
  %s9 = inlined_call_operand.vmem [shape: f32[2,1,32], index: 9, kind: input, shape index: {}]
  %s10 = inlined_call_operand.vmem [shape: bf16[2,32,128], index: 10, kind: input, shape index: {}]
  %s11 = inlined_call_operand.vmem [shape: f32[2,1,128], index: 11, kind: input, shape index: {}]
  %s12 = inlined_call_operand.vmem [shape: bf16[2,128,32], index: 12, kind: input, shape index: {}]
  %s13 = inlined_call_operand.vmem [shape: f32[2,1,32], index: 13, kind: input, shape index: {}]
  %s14 = inlined_call_operand.vmem [shape: f32[4,64,32], index: 14, kind: output, shape index: {}]
  %s15 = sld [smem:[#allocation0]]
  $region89: #{basic_layer_forward.1} parent=0
    _
  %s17 = ssub.s32 1, %s15
  %s18 = scalar_select 0, %s17, %s15
  loop: start=0, step=1, limit=4
  $region2: #{basic_layer_forward.1} parent=0 // loop_pre_header
    _
  $region3: #{basic_layer_forward.1} parent=0 // loop_header
    %s20 = sphi 0, %s24
    %p21 = scmp.ge.s32.totalorder %s20, 4
    %s30 = sphi 0, %s32
    %s33 = sphi 0, %s30
    %s34 = sphi 0, %s33
    %s50 = sphi 0, %s34
    %s54 = sphi 0, %s54
    %s56 = sphi 0, %s54
    %s57 = sphi 0, %s56
    %s71 = sphi 0, %s57
    %s75 = sphi 0, %s75
    %s77 = sphi 0, %s75
    %s78 = sphi 0, %s77
    %s92 = sphi 0, %s78
    %s96 = sphi 0, %s96
    %s98 = sphi 0, %s96
    %s99 = sphi 0, %s98
    %s113 = sphi 0, %s99
    %s117 = sphi 0, %s117
    %s119 = sphi 0, %s117
    %s120 = sphi 0, %s119
    %s134 = sphi 0, %s120
    %s138 = sphi 0, %s138
    %s140 = sphi 0, %s138
    %s141 = sphi 0, %s140
    %s155 = sphi 0, %s141
    %s159 = sphi 0, %s159
    %s161 = sphi 0, %s159
    %s162 = sphi 0, %s161
    %s176 = sphi 0, %s162
    %s180 = sphi 0, %s180
    %s182 = sphi 0, %s180
    %s183 = sphi 0, %s182
    %s197 = sphi 0, %s183
    %s201 = sphi 0, %s201
    %s203 = sphi 0, %s201
    %s204 = sphi 0, %s203
    %s218 = sphi 0, %s204
    %s222 = sphi 0, %s222
    %s224 = sphi 0, %s222
    %s225 = sphi 0, %s224
    %s239 = sphi 0, %s225
    %s243 = sphi 0, %s243
    %s245 = sphi 0, %s243
    %s246 = sphi 0, %s245
    %s260 = sphi 0, %s246
    %s264 = sphi 0, %s264
    %s266 = sphi 0, %s264
    %s267 = sphi 0, %s266
    %s281 = sphi 0, %s267
    %s285 = sphi 0, %s285
    %s287 = sphi 0, %s285
    %s288 = sphi 0, %s287
    %s302 = sphi 0, %s288
    %s306 = sphi 0, %s306
    %s308 = sphi 0, %s306
    %s309 = sphi 0, %s308
    %s323 = sphi 0, %s309
    %s329 = sphi 0, %s331
    %s332 = sphi 0, %s329
    %s333 = sphi 0, %s332
    %s349 = sphi 0, %s333
  $region4: #{basic_layer_forward.1} parent=0 // loop_header_branch
    %23 = sbr.rel (%p21) target = $region8
  $region5: #{basic_layer_forward.1} parent=0 // loop_body
    %s25 = ssub.s32 %s20, 1
    %s26 = ssub.s32 %s20, 2
    %s27 = sadd.s32 %s20, 1
    %s28 = ssub.s32 %s20, %s27
    %p29 = scmp.eq.s32.totalorder %s28, 0
    %s31 = sadd.s32 %s30, 1
    %s32 = scalar_select %p29, %s30, %s31
    %p35 = pneg %p29
    %p36 = scmp.eq.s32.totalorder %s20, 1
    %p37 = por %p35, %p36
    %p38 = scmp.ne.s32.totalorder %s30, %s33
    %p39 = scmp.eq.s32.totalorder %s20, 0
    %p40 = por %p38, %p39
    %p41 = scmp.ne.s32.totalorder %s30, %s33
    %p42 = scmp.eq.s32.totalorder %s25, 1
    %p43 = por %p41, %p42
    %p44 = scmp.ne.s32.totalorder %s33, %s34
    %p45 = scmp.eq.s32.totalorder %s25, 0
    %p46 = por %p44, %p45
    %p47 = scmp.ne.s32.totalorder %s33, %s34
    %p48 = scmp.eq.s32.totalorder %s26, 1
    %p49 = por %p47, %p48
    %p51 = scmp.ne.s32.totalorder %s34, %s50
    %p52 = scmp.eq.s32.totalorder %s26, 0
    %p53 = por %p51, %p52
    %s55 = sadd.s32 %s54, 1
    %p58 = scmp.eq.s32.totalorder %s20, 1
    %p59 = scmp.ne.s32.totalorder %s54, %s56
    %p60 = scmp.eq.s32.totalorder %s20, 0
    %p61 = por %p59, %p60
    %p62 = scmp.ne.s32.totalorder %s54, %s56
    %p63 = scmp.eq.s32.totalorder %s25, 1
    %p64 = por %p62, %p63
    %p65 = scmp.ne.s32.totalorder %s56, %s57
    %p66 = scmp.eq.s32.totalorder %s25, 0
    %p67 = por %p65, %p66
    %p68 = scmp.ne.s32.totalorder %s56, %s57
    %p69 = scmp.eq.s32.totalorder %s26, 1
    %p70 = por %p68, %p69
    %p72 = scmp.ne.s32.totalorder %s57, %s71
    %p73 = scmp.eq.s32.totalorder %s26, 0
    %p74 = por %p72, %p73
    %s76 = sadd.s32 %s75, 1
    %p79 = scmp.eq.s32.totalorder %s20, 1
    %p80 = scmp.ne.s32.totalorder %s75, %s77
    %p81 = scmp.eq.s32.totalorder %s20, 0
    %p82 = por %p80, %p81
    %p83 = scmp.ne.s32.totalorder %s75, %s77
    %p84 = scmp.eq.s32.totalorder %s25, 1
    %p85 = por %p83, %p84
    %p86 = scmp.ne.s32.totalorder %s77, %s78
    %p87 = scmp.eq.s32.totalorder %s25, 0
    %p88 = por %p86, %p87
    %p89 = scmp.ne.s32.totalorder %s77, %s78
    %p90 = scmp.eq.s32.totalorder %s26, 1
    %p91 = por %p89, %p90
    %p93 = scmp.ne.s32.totalorder %s78, %s92
    %p94 = scmp.eq.s32.totalorder %s26, 0
    %p95 = por %p93, %p94
    %s97 = sadd.s32 %s96, 1
    %p100 = scmp.eq.s32.totalorder %s20, 1
    %p101 = scmp.ne.s32.totalorder %s96, %s98
    %p102 = scmp.eq.s32.totalorder %s20, 0
    %p103 = por %p101, %p102
    %p104 = scmp.ne.s32.totalorder %s96, %s98
    %p105 = scmp.eq.s32.totalorder %s25, 1
    %p106 = por %p104, %p105
    %p107 = scmp.ne.s32.totalorder %s98, %s99
    %p108 = scmp.eq.s32.totalorder %s25, 0
    %p109 = por %p107, %p108
    %p110 = scmp.ne.s32.totalorder %s98, %s99
    %p111 = scmp.eq.s32.totalorder %s26, 1
    %p112 = por %p110, %p111
    %p114 = scmp.ne.s32.totalorder %s99, %s113
    %p115 = scmp.eq.s32.totalorder %s26, 0
    %p116 = por %p114, %p115
    %s118 = sadd.s32 %s117, 1
    %p121 = scmp.eq.s32.totalorder %s20, 1
    %p122 = scmp.ne.s32.totalorder %s117, %s119
    %p123 = scmp.eq.s32.totalorder %s20, 0
    %p124 = por %p122, %p123
    %p125 = scmp.ne.s32.totalorder %s117, %s119
    %p126 = scmp.eq.s32.totalorder %s25, 1
    %p127 = por %p125, %p126
    %p128 = scmp.ne.s32.totalorder %s119, %s120
    %p129 = scmp.eq.s32.totalorder %s25, 0
    %p130 = por %p128, %p129
    %p131 = scmp.ne.s32.totalorder %s119, %s120
    %p132 = scmp.eq.s32.totalorder %s26, 1
    %p133 = por %p131, %p132
    %p135 = scmp.ne.s32.totalorder %s120, %s134
    %p136 = scmp.eq.s32.totalorder %s26, 0
    %p137 = por %p135, %p136
    %s139 = sadd.s32 %s138, 1
    %p142 = scmp.eq.s32.totalorder %s20, 1
    %p143 = scmp.ne.s32.totalorder %s138, %s140
    %p144 = scmp.eq.s32.totalorder %s20, 0
    %p145 = por %p143, %p144
    %p146 = scmp.ne.s32.totalorder %s138, %s140
    %p147 = scmp.eq.s32.totalorder %s25, 1
    %p148 = por %p146, %p147
    %p149 = scmp.ne.s32.totalorder %s140, %s141
    %p150 = scmp.eq.s32.totalorder %s25, 0
    %p151 = por %p149, %p150
    %p152 = scmp.ne.s32.totalorder %s140, %s141
    %p153 = scmp.eq.s32.totalorder %s26, 1
    %p154 = por %p152, %p153
    %p156 = scmp.ne.s32.totalorder %s141, %s155
    %p157 = scmp.eq.s32.totalorder %s26, 0
    %p158 = por %p156, %p157
    %s160 = sadd.s32 %s159, 1
    %p163 = scmp.eq.s32.totalorder %s20, 1
    %p164 = scmp.ne.s32.totalorder %s159, %s161
    %p165 = scmp.eq.s32.totalorder %s20, 0
    %p166 = por %p164, %p165
    %p167 = scmp.ne.s32.totalorder %s159, %s161
    %p168 = scmp.eq.s32.totalorder %s25, 1
    %p169 = por %p167, %p168
    %p170 = scmp.ne.s32.totalorder %s161, %s162
    %p171 = scmp.eq.s32.totalorder %s25, 0
    %p172 = por %p170, %p171
    %p173 = scmp.ne.s32.totalorder %s161, %s162
    %p174 = scmp.eq.s32.totalorder %s26, 1
    %p175 = por %p173, %p174
    %p177 = scmp.ne.s32.totalorder %s162, %s176
    %p178 = scmp.eq.s32.totalorder %s26, 0
    %p179 = por %p177, %p178
    %s181 = sadd.s32 %s180, 1
    %p184 = scmp.eq.s32.totalorder %s20, 1
    %p185 = scmp.ne.s32.totalorder %s180, %s182
    %p186 = scmp.eq.s32.totalorder %s20, 0
    %p187 = por %p185, %p186
    %p188 = scmp.ne.s32.totalorder %s180, %s182
    %p189 = scmp.eq.s32.totalorder %s25, 1
    %p190 = por %p188, %p189
    %p191 = scmp.ne.s32.totalorder %s182, %s183
    %p192 = scmp.eq.s32.totalorder %s25, 0
    %p193 = por %p191, %p192
    %p194 = scmp.ne.s32.totalorder %s182, %s183
    %p195 = scmp.eq.s32.totalorder %s26, 1
    %p196 = por %p194, %p195
    %p198 = scmp.ne.s32.totalorder %s183, %s197
    %p199 = scmp.eq.s32.totalorder %s26, 0
    %p200 = por %p198, %p199
    %s202 = sadd.s32 %s201, 1
    %p205 = scmp.eq.s32.totalorder %s20, 1
    %p206 = scmp.ne.s32.totalorder %s201, %s203
    %p207 = scmp.eq.s32.totalorder %s20, 0
    %p208 = por %p206, %p207
    %p209 = scmp.ne.s32.totalorder %s201, %s203
    %p210 = scmp.eq.s32.totalorder %s25, 1
    %p211 = por %p209, %p210
    %p212 = scmp.ne.s32.totalorder %s203, %s204
    %p213 = scmp.eq.s32.totalorder %s25, 0
    %p214 = por %p212, %p213
    %p215 = scmp.ne.s32.totalorder %s203, %s204
    %p216 = scmp.eq.s32.totalorder %s26, 1
    %p217 = por %p215, %p216
    %p219 = scmp.ne.s32.totalorder %s204, %s218
    %p220 = scmp.eq.s32.totalorder %s26, 0
    %p221 = por %p219, %p220
    %s223 = sadd.s32 %s222, 1
    %p226 = scmp.eq.s32.totalorder %s20, 1
    %p227 = scmp.ne.s32.totalorder %s222, %s224
    %p228 = scmp.eq.s32.totalorder %s20, 0
    %p229 = por %p227, %p228
    %p230 = scmp.ne.s32.totalorder %s222, %s224
    %p231 = scmp.eq.s32.totalorder %s25, 1
    %p232 = por %p230, %p231
    %p233 = scmp.ne.s32.totalorder %s224, %s225
    %p234 = scmp.eq.s32.totalorder %s25, 0
    %p235 = por %p233, %p234
    %p236 = scmp.ne.s32.totalorder %s224, %s225
    %p237 = scmp.eq.s32.totalorder %s26, 1
    %p238 = por %p236, %p237
    %p240 = scmp.ne.s32.totalorder %s225, %s239
    %p241 = scmp.eq.s32.totalorder %s26, 0
    %p242 = por %p240, %p241
    %s244 = sadd.s32 %s243, 1
    %p247 = scmp.eq.s32.totalorder %s20, 1
    %p248 = scmp.ne.s32.totalorder %s243, %s245
    %p249 = scmp.eq.s32.totalorder %s20, 0
    %p250 = por %p248, %p249
    %p251 = scmp.ne.s32.totalorder %s243, %s245
    %p252 = scmp.eq.s32.totalorder %s25, 1
    %p253 = por %p251, %p252
    %p254 = scmp.ne.s32.totalorder %s245, %s246
    %p255 = scmp.eq.s32.totalorder %s25, 0
    %p256 = por %p254, %p255
    %p257 = scmp.ne.s32.totalorder %s245, %s246
    %p258 = scmp.eq.s32.totalorder %s26, 1
    %p259 = por %p257, %p258
    %p261 = scmp.ne.s32.totalorder %s246, %s260
    %p262 = scmp.eq.s32.totalorder %s26, 0
    %p263 = por %p261, %p262
    %s265 = sadd.s32 %s264, 1
    %p268 = scmp.eq.s32.totalorder %s20, 1
    %p269 = scmp.ne.s32.totalorder %s264, %s266
    %p270 = scmp.eq.s32.totalorder %s20, 0
    %p271 = por %p269, %p270
    %p272 = scmp.ne.s32.totalorder %s264, %s266
    %p273 = scmp.eq.s32.totalorder %s25, 1
    %p274 = por %p272, %p273
    %p275 = scmp.ne.s32.totalorder %s266, %s267
    %p276 = scmp.eq.s32.totalorder %s25, 0
    %p277 = por %p275, %p276
    %p278 = scmp.ne.s32.totalorder %s266, %s267
    %p279 = scmp.eq.s32.totalorder %s26, 1
    %p280 = por %p278, %p279
    %p282 = scmp.ne.s32.totalorder %s267, %s281
    %p283 = scmp.eq.s32.totalorder %s26, 0
    %p284 = por %p282, %p283
    %s286 = sadd.s32 %s285, 1
    %p289 = scmp.eq.s32.totalorder %s20, 1
    %p290 = scmp.ne.s32.totalorder %s285, %s287
    %p291 = scmp.eq.s32.totalorder %s20, 0
    %p292 = por %p290, %p291
    %p293 = scmp.ne.s32.totalorder %s285, %s287
    %p294 = scmp.eq.s32.totalorder %s25, 1
    %p295 = por %p293, %p294
    %p296 = scmp.ne.s32.totalorder %s287, %s288
    %p297 = scmp.eq.s32.totalorder %s25, 0
    %p298 = por %p296, %p297
    %p299 = scmp.ne.s32.totalorder %s287, %s288
    %p300 = scmp.eq.s32.totalorder %s26, 1
    %p301 = por %p299, %p300
    %p303 = scmp.ne.s32.totalorder %s288, %s302
    %p304 = scmp.eq.s32.totalorder %s26, 0
    %p305 = por %p303, %p304
    %s307 = sadd.s32 %s306, 1
    %p310 = scmp.eq.s32.totalorder %s20, 1
    %p311 = scmp.ne.s32.totalorder %s306, %s308
    %p312 = scmp.eq.s32.totalorder %s20, 0
    %p313 = por %p311, %p312
    %p314 = scmp.ne.s32.totalorder %s306, %s308
    %p315 = scmp.eq.s32.totalorder %s25, 1
    %p316 = por %p314, %p315
    %p317 = scmp.ne.s32.totalorder %s308, %s309
    %p318 = scmp.eq.s32.totalorder %s25, 0
    %p319 = por %p317, %p318
    %p320 = scmp.ne.s32.totalorder %s308, %s309
    %p321 = scmp.eq.s32.totalorder %s26, 1
    %p322 = por %p320, %p321
    %p324 = scmp.ne.s32.totalorder %s309, %s323
    %p325 = scmp.eq.s32.totalorder %s26, 0
    %p326 = por %p324, %p325
    %s327 = ssub.s32 %s20, %s27
    %p328 = scmp.eq.s32.totalorder %s327, 0
    %s330 = sadd.s32 %s329, 1
    %s331 = scalar_select %p328, %s329, %s330
    %p334 = pneg %p328
    %p335 = scmp.eq.s32.totalorder %s20, 1
    %p336 = por %p334, %p335
    %p337 = scmp.ne.s32.totalorder %s329, %s332
    %p338 = scmp.eq.s32.totalorder %s20, 0
    %p339 = por %p337, %p338
    %p340 = scmp.ne.s32.totalorder %s329, %s332
    %p341 = scmp.eq.s32.totalorder %s25, 1
    %p342 = por %p340, %p341
    %p343 = scmp.ne.s32.totalorder %s332, %s333
    %p344 = scmp.eq.s32.totalorder %s25, 0
    %p345 = por %p343, %p344
    %p346 = scmp.ne.s32.totalorder %s332, %s333
    %p347 = scmp.eq.s32.totalorder %s26, 1
    %p348 = por %p346, %p347
    %p350 = scmp.ne.s32.totalorder %s333, %s349
    %p351 = scmp.eq.s32.totalorder %s26, 0
    %p352 = por %p350, %p351
    %p353 = scmp.le.s32.totalorder 1, %s20
    %p354 = scmp.lt.s32.totalorder %s20, 3
    %p355 = pnand %p353, %p354
    %p356 = pneg %p355
    // Predicated region
    $region9: #{basic_layer_forward.1} parent=5 // pred_check
      _
    $region10: #{basic_layer_forward.1} parent=5 // pred_check_branch
      %358 = sbr.rel (%p355) target = $region12
    $region11: #{basic_layer_forward.1} parent=5 // pred_region
      %s359 = ssub.s32 %s20, 1
      // Predicated region
      $region13: #{basic_layer_forward.1} parent=11 // pred_check
        %p360 = pneg %p67
      $region14: #{basic_layer_forward.1} parent=11 // pred_check_branch
        %362 = sbr.rel (%p360) target = $region16
      $region15: #{basic_layer_forward.1} parent=11 // pred_region
        _
      $region16: #{basic_layer_forward.1} parent=11 // pred_fallthru
        _
      // Predicated region
      $region17: #{basic_layer_forward.1} parent=11 // pred_check
        %p363 = pneg %p88
      $region18: #{basic_layer_forward.1} parent=11 // pred_check_branch
        %365 = sbr.rel (%p363) target = $region20
      $region19: #{basic_layer_forward.1} parent=11 // pred_region
        _
      $region20: #{basic_layer_forward.1} parent=11 // pred_fallthru
        _
      // Predicated region
      $region21: #{basic_layer_forward.1} parent=11 // pred_check
        %p366 = pneg %p109
      $region22: #{basic_layer_forward.1} parent=11 // pred_check_branch
        %368 = sbr.rel (%p366) target = $region24
      $region23: #{basic_layer_forward.1} parent=11 // pred_region
        _
      $region24: #{basic_layer_forward.1} parent=11 // pred_fallthru
        _
      // Predicated region
      $region25: #{basic_layer_forward.1} parent=11 // pred_check
        %p369 = pneg %p130
      $region26: #{basic_layer_forward.1} parent=11 // pred_check_branch
        %371 = sbr.rel (%p369) target = $region28
      $region27: #{basic_layer_forward.1} parent=11 // pred_region
        _
      $region28: #{basic_layer_forward.1} parent=11 // pred_fallthru
        _
      // Predicated region
      $region29: #{basic_layer_forward.1} parent=11 // pred_check
        %p372 = pneg %p151
      $region30: #{basic_layer_forward.1} parent=11 // pred_check_branch
        %374 = sbr.rel (%p372) target = $region32
      $region31: #{basic_layer_forward.1} parent=11 // pred_region
        _
      $region32: #{basic_layer_forward.1} parent=11 // pred_fallthru
        _
      // Predicated region
      $region33: #{basic_layer_forward.1} parent=11 // pred_check
        %p375 = pneg %p172
      $region34: #{basic_layer_forward.1} parent=11 // pred_check_branch
        %377 = sbr.rel (%p375) target = $region36
      $region35: #{basic_layer_forward.1} parent=11 // pred_region
        _
      $region36: #{basic_layer_forward.1} parent=11 // pred_fallthru
        _
      // Predicated region
      $region37: #{basic_layer_forward.1} parent=11 // pred_check
        %p378 = pneg %p193
      $region38: #{basic_layer_forward.1} parent=11 // pred_check_branch
        %380 = sbr.rel (%p378) target = $region40
      $region39: #{basic_layer_forward.1} parent=11 // pred_region
        _
      $region40: #{basic_layer_forward.1} parent=11 // pred_fallthru
        _
      // Predicated region
      $region41: #{basic_layer_forward.1} parent=11 // pred_check
        %p381 = pneg %p214
      $region42: #{basic_layer_forward.1} parent=11 // pred_check_branch
        %383 = sbr.rel (%p381) target = $region44
      $region43: #{basic_layer_forward.1} parent=11 // pred_region
        _
      $region44: #{basic_layer_forward.1} parent=11 // pred_fallthru
        _
      // Predicated region
      $region45: #{basic_layer_forward.1} parent=11 // pred_check
        %p384 = pneg %p235
      $region46: #{basic_layer_forward.1} parent=11 // pred_check_branch
        %386 = sbr.rel (%p384) target = $region48
      $region47: #{basic_layer_forward.1} parent=11 // pred_region
        _
      $region48: #{basic_layer_forward.1} parent=11 // pred_fallthru
        _
      // Predicated region
      $region49: #{basic_layer_forward.1} parent=11 // pred_check
        %p387 = pneg %p256
      $region50: #{basic_layer_forward.1} parent=11 // pred_check_branch
        %389 = sbr.rel (%p387) target = $region52
      $region51: #{basic_layer_forward.1} parent=11 // pred_region
        _
      $region52: #{basic_layer_forward.1} parent=11 // pred_fallthru
        _
      // Predicated region
      $region53: #{basic_layer_forward.1} parent=11 // pred_check
        %p390 = pneg %p277
      $region54: #{basic_layer_forward.1} parent=11 // pred_check_branch
        %392 = sbr.rel (%p390) target = $region56
      $region55: #{basic_layer_forward.1} parent=11 // pred_region
        _
      $region56: #{basic_layer_forward.1} parent=11 // pred_fallthru
        _
      // Predicated region
      $region57: #{basic_layer_forward.1} parent=11 // pred_check
        %p393 = pneg %p298
      $region58: #{basic_layer_forward.1} parent=11 // pred_check_branch
        %395 = sbr.rel (%p393) target = $region60
      $region59: #{basic_layer_forward.1} parent=11 // pred_region
        _
      $region60: #{basic_layer_forward.1} parent=11 // pred_fallthru
        _
      // Predicated region
      $region61: #{basic_layer_forward.1} parent=11 // pred_check
        %p396 = pneg %p319
      $region62: #{basic_layer_forward.1} parent=11 // pred_check_branch
        %398 = sbr.rel (%p396) target = $region64
      $region63: #{basic_layer_forward.1} parent=11 // pred_region
        _
      $region64: #{basic_layer_forward.1} parent=11 // pred_fallthru
        _
    $region12: #{basic_layer_forward.1} parent=5 // pred_fallthru
      _
    %p399 = scmp.lt.s32.totalorder %s20, 2
    // Predicated region
    $region65: #{basic_layer_forward.1} parent=5 // pred_check
      %p400 = pneg %p399
    $region66: #{basic_layer_forward.1} parent=5 // pred_check_branch
      %402 = sbr.rel (%p400) target = $region68
    $region67: #{basic_layer_forward.1} parent=5 // pred_region
      // Predicated region
      $region69: #{basic_layer_forward.1} parent=67 // pred_check
        %p403 = pneg %p40
      $region70: #{basic_layer_forward.1} parent=67 // pred_check_branch
        %405 = sbr.rel (%p403) target = $region72
      $region71: #{basic_layer_forward.1} parent=67 // pred_region
        %s406 = smul.u32 2, %s20
        %p407 = scmp.lt.s32.totalorder %s406, 3
        %s408 = scalar_select %p407, %s406, 3
        %s409 = smul.addr %s408, 8
        %s410 = smul.addr %s409, 8
        %s411 = scalar_lea.vmem %s0, %s410
        %s412 = smul.u32 2, %s20
      $region72: #{basic_layer_forward.1} parent=67 // pred_fallthru
        _
    $region68: #{basic_layer_forward.1} parent=5 // pred_fallthru
      _
    %p413 = scmp.le.s32.totalorder 1, %s20
    %p414 = scmp.lt.s32.totalorder %s20, 3
    %p415 = pnand %p413, %p414
    %p416 = pneg %p415
    // Predicated region
    $region73: #{basic_layer_forward.1} parent=5 // pred_check
      _
    $region74: #{basic_layer_forward.1} parent=5 // pred_check_branch
      %418 = sbr.rel (%p415) target = $region76
    $region75: #{basic_layer_forward.1} parent=5 // pred_region
      %s419 = ssub.s32 %s20, 1
      %s420 = smul.u32 2, %s25
      %p421 = scmp.lt.s32.totalorder %s420, 3
      %s422 = scalar_select %p421, %s420, 3
      %s423 = smul.addr %s422, 8
      %s424 = smul.addr %s423, 8
      %s425 = scalar_lea.vmem %s0, %s424
      %p426 = pneg %p46
      %p427 = pneg %p43
      %p428 = pneg %p67
      %p429 = pneg %p64
      %p430 = pneg %p88
      %p431 = pneg %p85
      %p432 = pneg %p109
      %p433 = pneg %p106
      %p434 = pneg %p130
      %p435 = pneg %p127
      %p436 = pneg %p151
      %p437 = pneg %p148
      %p438 = pneg %p172
      %p439 = pneg %p169
      %p440 = pneg %p193
      %p441 = pneg %p190
      %p442 = pneg %p214
      %p443 = pneg %p211
      %p444 = pneg %p235
      %p445 = pneg %p232
      %p446 = pneg %p256
      %p447 = pneg %p253
      %p448 = pneg %p277
      %p449 = pneg %p274
      %p450 = pneg %p298
      %p451 = pneg %p295
      %p452 = pneg %p319
      %p453 = pneg %p316
      %p454 = pneg %p345
      %p455 = pneg %p342
      %s456 = smul.u32 2, %s25
      %p457 = scmp.lt.s32.totalorder %s456, 3
      %s458 = scalar_select %p457, %s456, 3
      %s459 = smul.addr %s458, 8
      %s460 = smul.addr %s459, 8
      %s461 = scalar_lea.vmem %s14, %s460
      %s462 = smul.u32 2, %s25
      %p463 = scmp.lt.s32.totalorder %s462, 3
      %s464 = scalar_select %p463, %s462, 3
      %s465 = smul.addr %s464, 8
      %s466 = smul.addr %s465, 8
      %s467 = scalar_lea.vmem %s0, %s466
      %s468 = smul.u32 2, %s25
      %s469 = smul.u32 2, %s25
      %p470 = scmp.lt.s32.totalorder %s469, 3
      %s471 = scalar_select %p470, %s469, 3
      %s472 = smul.addr %s471, 8
      %s473 = smul.addr %s472, 8
      %s474 = scalar_lea.vmem %s14, %s473
      %s475 = smul.u32 2, %s25
      %v477 = vld [vmem:[%s467] sm:$0xff]
      %v478 = vld [vmem:[%s467 + $0x8] sm:$0xff]
      %v479 = vld [vmem:[%s467 + $0x10] sm:$0xff]
      %v480 = vld [vmem:[%s467 + $0x18] sm:$0xff]
      %v481 = vld [vmem:[%s467 + $0x20] sm:$0xff]
      %v482 = vld [vmem:[%s467 + $0x28] sm:$0xff]
      %v483 = vld [vmem:[%s467 + $0x30] sm:$0xff]
      %v484 = vld [vmem:[%s467 + $0x38] sm:$0xff]
      %v485 = vld [vmem:[%s467 + $0x40] sm:$0xff]
      %v486 = vld [vmem:[%s467 + $0x48] sm:$0xff]
      %v487 = vld [vmem:[%s467 + $0x50] sm:$0xff]
      %v488 = vld [vmem:[%s467 + $0x58] sm:$0xff]
      %v489 = vld [vmem:[%s467 + $0x60] sm:$0xff]
      %v490 = vld [vmem:[%s467 + $0x68] sm:$0xff]
      %v491 = vld [vmem:[%s467 + $0x70] sm:$0xff]
      %v492 = vld [vmem:[%s467 + $0x78] sm:$0xff]
      %v493 = vld [vmem:[%s2] sm:$0x1]
      %v494 = vld [vmem:[%s3] sm:$0x1]
      %vm495 = vcmask 261120
      %v496 = vsel %vm495, %v477, 0.0
      %497 = vadd.xlane.f32.xlu0 %v496
      %v498 = vpop.xlane.xlu0 %497
      %v499 = vsel %vm495, %v478, 0.0
      %500 = vadd.xlane.f32.xlu0 %v499
      %v501 = vpop.xlane.xlu0 %500
      %v502 = vsel %vm495, %v479, 0.0
      %503 = vadd.xlane.f32.xlu0 %v502
      %v504 = vpop.xlane.xlu0 %503
      %v505 = vsel %vm495, %v480, 0.0
      %506 = vadd.xlane.f32.xlu0 %v505
      %v507 = vpop.xlane.xlu0 %506
      %v508 = vsel %vm495, %v481, 0.0
      %509 = vadd.xlane.f32.xlu0 %v508
      %v510 = vpop.xlane.xlu0 %509
      %v511 = vsel %vm495, %v482, 0.0
      %512 = vadd.xlane.f32.xlu0 %v511
      %v513 = vpop.xlane.xlu0 %512
      %v514 = vsel %vm495, %v483, 0.0
      %515 = vadd.xlane.f32.xlu0 %v514
      %v516 = vpop.xlane.xlu0 %515
      %v517 = vsel %vm495, %v484, 0.0
      %518 = vadd.xlane.f32.xlu0 %v517
      %v519 = vpop.xlane.xlu0 %518
      %v520 = vsel %vm495, %v485, 0.0
      %521 = vadd.xlane.f32.xlu0 %v520
      %v522 = vpop.xlane.xlu0 %521
      %v523 = vsel %vm495, %v486, 0.0
      %524 = vadd.xlane.f32.xlu0 %v523
      %v525 = vpop.xlane.xlu0 %524
      %v526 = vsel %vm495, %v487, 0.0
      %527 = vadd.xlane.f32.xlu0 %v526
      %v528 = vpop.xlane.xlu0 %527
      %v529 = vsel %vm495, %v488, 0.0
      %530 = vadd.xlane.f32.xlu0 %v529
      %v531 = vpop.xlane.xlu0 %530
      %v532 = vsel %vm495, %v489, 0.0
      %533 = vadd.xlane.f32.xlu0 %v532
      %v534 = vpop.xlane.xlu0 %533
      %v535 = vsel %vm495, %v490, 0.0
      %536 = vadd.xlane.f32.xlu0 %v535
      %v537 = vpop.xlane.xlu0 %536
      %v538 = vsel %vm495, %v491, 0.0
      %539 = vadd.xlane.f32.xlu0 %v538
      %v540 = vpop.xlane.xlu0 %539
      %v541 = vsel %vm495, %v492, 0.0
      %542 = vadd.xlane.f32.xlu0 %v541
      %v543 = vpop.xlane.xlu0 %542
      %v544 = vrcp.pop 32.0
      %v545 = vmul.f32 %v498, %v544
      %v546 = vmul.f32 %v501, %v544
      %v547 = vmul.f32 %v504, %v544
      %v548 = vmul.f32 %v507, %v544
      %v549 = vmul.f32 %v510, %v544
      %v550 = vmul.f32 %v513, %v544
      %v551 = vmul.f32 %v516, %v544
      %v552 = vmul.f32 %v519, %v544
      %v553 = vmul.f32 %v522, %v544
      %v554 = vmul.f32 %v525, %v544
      %v555 = vmul.f32 %v528, %v544
      %v556 = vmul.f32 %v531, %v544
      %v557 = vmul.f32 %v534, %v544
      %v558 = vmul.f32 %v537, %v544
      %v559 = vmul.f32 %v540, %v544
      %v560 = vmul.f32 %v543, %v544
      %v561 = vsub.f32 %v477, %v545
      %v562 = vsub.f32 %v478, %v546
      %v563 = vsub.f32 %v479, %v547
      %v564 = vsub.f32 %v480, %v548
      %v565 = vsub.f32 %v481, %v549
      %v566 = vsub.f32 %v482, %v550
      %v567 = vsub.f32 %v483, %v551
      %v568 = vsub.f32 %v484, %v552
      %v569 = vsub.f32 %v485, %v553
      %v570 = vsub.f32 %v486, %v554
      %v571 = vsub.f32 %v487, %v555
      %v572 = vsub.f32 %v488, %v556
      %v573 = vsub.f32 %v489, %v557
      %v574 = vsub.f32 %v490, %v558
      %v575 = vsub.f32 %v491, %v559
      %v576 = vsub.f32 %v492, %v560
      %v577 = vmul.f32 %v561, %v561
      %v578 = vmul.f32 %v562, %v562
      %v579 = vmul.f32 %v563, %v563
      %v580 = vmul.f32 %v564, %v564
      %v581 = vmul.f32 %v565, %v565
      %v582 = vmul.f32 %v566, %v566
      %v583 = vmul.f32 %v567, %v567
      %v584 = vmul.f32 %v568, %v568
      %v585 = vmul.f32 %v569, %v569
      %v586 = vmul.f32 %v570, %v570
      %v587 = vmul.f32 %v571, %v571
      %v588 = vmul.f32 %v572, %v572
      %v589 = vmul.f32 %v573, %v573
      %v590 = vmul.f32 %v574, %v574
      %v591 = vmul.f32 %v575, %v575
      %v592 = vmul.f32 %v576, %v576
      %v593 = vsel %vm495, %v577, 0.0
      %594 = vadd.xlane.f32.xlu0 %v593
      %v595 = vpop.xlane.xlu0 %594
      %v596 = vsel %vm495, %v578, 0.0
      %597 = vadd.xlane.f32.xlu0 %v596
      %v598 = vpop.xlane.xlu0 %597
      %v599 = vsel %vm495, %v579, 0.0
      %600 = vadd.xlane.f32.xlu0 %v599
      %v601 = vpop.xlane.xlu0 %600
      %v602 = vsel %vm495, %v580, 0.0
      %603 = vadd.xlane.f32.xlu0 %v602
      %v604 = vpop.xlane.xlu0 %603
      %v605 = vsel %vm495, %v581, 0.0
      %606 = vadd.xlane.f32.xlu0 %v605
      %v607 = vpop.xlane.xlu0 %606
      %v608 = vsel %vm495, %v582, 0.0
      %609 = vadd.xlane.f32.xlu0 %v608
      %v610 = vpop.xlane.xlu0 %609
      %v611 = vsel %vm495, %v583, 0.0
      %612 = vadd.xlane.f32.xlu0 %v611
      %v613 = vpop.xlane.xlu0 %612
      %v614 = vsel %vm495, %v584, 0.0
      %615 = vadd.xlane.f32.xlu0 %v614
      %v616 = vpop.xlane.xlu0 %615
      %v617 = vsel %vm495, %v585, 0.0
      %618 = vadd.xlane.f32.xlu0 %v617
      %v619 = vpop.xlane.xlu0 %618
      %v620 = vsel %vm495, %v586, 0.0
      %621 = vadd.xlane.f32.xlu0 %v620
      %v622 = vpop.xlane.xlu0 %621
      %v623 = vsel %vm495, %v587, 0.0
      %624 = vadd.xlane.f32.xlu0 %v623
      %v625 = vpop.xlane.xlu0 %624
      %v626 = vsel %vm495, %v588, 0.0
      %627 = vadd.xlane.f32.xlu0 %v626
      %v628 = vpop.xlane.xlu0 %627
      %v629 = vsel %vm495, %v589, 0.0
      %630 = vadd.xlane.f32.xlu0 %v629
      %v631 = vpop.xlane.xlu0 %630
      %v632 = vsel %vm495, %v590, 0.0
      %633 = vadd.xlane.f32.xlu0 %v632
      %v634 = vpop.xlane.xlu0 %633
      %v635 = vsel %vm495, %v591, 0.0
      %636 = vadd.xlane.f32.xlu0 %v635
      %v637 = vpop.xlane.xlu0 %636
      %v638 = vsel %vm495, %v592, 0.0
      %639 = vadd.xlane.f32.xlu0 %v638
      %v640 = vpop.xlane.xlu0 %639
      %v641 = vmul.f32 %v595, %v544
      %v642 = vmul.f32 %v598, %v544
      %v643 = vmul.f32 %v601, %v544
      %v644 = vmul.f32 %v604, %v544
      %v645 = vmul.f32 %v607, %v544
      %v646 = vmul.f32 %v610, %v544
      %v647 = vmul.f32 %v613, %v544
      %v648 = vmul.f32 %v616, %v544
      %v649 = vmul.f32 %v619, %v544
      %v650 = vmul.f32 %v622, %v544
      %v651 = vmul.f32 %v625, %v544
      %v652 = vmul.f32 %v628, %v544
      %v653 = vmul.f32 %v631, %v544
      %v654 = vmul.f32 %v634, %v544
      %v655 = vmul.f32 %v637, %v544
      %v656 = vmul.f32 %v640, %v544
      %v657 = vadd.f32 %v641, 1e-05
      %v658 = vadd.f32 %v642, 1e-05
      %v659 = vadd.f32 %v643, 1e-05
      %v660 = vadd.f32 %v644, 1e-05
      %v661 = vadd.f32 %v645, 1e-05
      %v662 = vadd.f32 %v646, 1e-05
      %v663 = vadd.f32 %v647, 1e-05
      %v664 = vadd.f32 %v648, 1e-05
      %v665 = vadd.f32 %v649, 1e-05
      %v666 = vadd.f32 %v650, 1e-05
      %v667 = vadd.f32 %v651, 1e-05
      %v668 = vadd.f32 %v652, 1e-05
      %v669 = vadd.f32 %v653, 1e-05
      %v670 = vadd.f32 %v654, 1e-05
      %v671 = vadd.f32 %v655, 1e-05
      %v672 = vadd.f32 %v656, 1e-05
      %v673 = vrsqrt.pop %v657
      %v674 = vrsqrt.pop %v658
      %v675 = vrsqrt.pop %v659
      %v676 = vrsqrt.pop %v660
      %v677 = vrsqrt.pop %v661
      %v678 = vrsqrt.pop %v662
      %v679 = vrsqrt.pop %v663
      %v680 = vrsqrt.pop %v664
      %v681 = vrsqrt.pop %v665
      %v682 = vrsqrt.pop %v666
      %v683 = vrsqrt.pop %v667
      %v684 = vrsqrt.pop %v668
      %v685 = vrsqrt.pop %v669
      %v686 = vrsqrt.pop %v670
      %v687 = vrsqrt.pop %v671
      %v688 = vrsqrt.pop %v672
      %v689 = vmul.f32 %v561, %v673
      %v690 = vmul.f32 %v562, %v674
      %v691 = vmul.f32 %v563, %v675
      %v692 = vmul.f32 %v564, %v676
      %v693 = vmul.f32 %v565, %v677
      %v694 = vmul.f32 %v566, %v678
      %v695 = vmul.f32 %v567, %v679
      %v696 = vmul.f32 %v568, %v680
      %v697 = vmul.f32 %v569, %v681
      %v698 = vmul.f32 %v570, %v682
      %v699 = vmul.f32 %v571, %v683
      %v700 = vmul.f32 %v572, %v684
      %v701 = vmul.f32 %v573, %v685
      %v702 = vmul.f32 %v574, %v686
      %v703 = vmul.f32 %v575, %v687
      %v704 = vmul.f32 %v576, %v688
      %v706 = vlaneseq
      %v707 = vshrl.u32 %v706, 7
      %v708 = vsub.s32 0, %v707
      %v709 = vrot.slane %v493, %v708
      %v711 = vmul.f32 %v689, %v709
      %v712 = vmul.f32 %v690, %v709
      %v713 = vmul.f32 %v691, %v709
      %v714 = vmul.f32 %v692, %v709
      %v715 = vmul.f32 %v693, %v709
      %v716 = vmul.f32 %v694, %v709
      %v717 = vmul.f32 %v695, %v709
      %v718 = vmul.f32 %v696, %v709
      %v719 = vmul.f32 %v697, %v709
      %v720 = vmul.f32 %v698, %v709
      %v721 = vmul.f32 %v699, %v709
      %v722 = vmul.f32 %v700, %v709
      %v723 = vmul.f32 %v701, %v709
      %v724 = vmul.f32 %v702, %v709
      %v725 = vmul.f32 %v703, %v709
      %v726 = vmul.f32 %v704, %v709
      %v728 = vlaneseq
      %v729 = vshrl.u32 %v728, 7
      %v730 = vsub.s32 0, %v729
      %v731 = vrot.slane %v494, %v730
      %v733 = vadd.f32 %v711, %v731
      %v734 = vadd.f32 %v712, %v731
      %v735 = vadd.f32 %v713, %v731
      %v736 = vadd.f32 %v714, %v731
      %v737 = vadd.f32 %v715, %v731
      %v738 = vadd.f32 %v716, %v731
      %v739 = vadd.f32 %v717, %v731
      %v740 = vadd.f32 %v718, %v731
      %v741 = vadd.f32 %v719, %v731
      %v742 = vadd.f32 %v720, %v731
      %v743 = vadd.f32 %v721, %v731
      %v744 = vadd.f32 %v722, %v731
      %v745 = vadd.f32 %v723, %v731
      %v746 = vadd.f32 %v724, %v731
      %v747 = vadd.f32 %v725, %v731
      %v748 = vadd.f32 %v726, %v731
      %v749 = vpack.c.bf16 %v734, %v733
      %v750 = vpack.c.bf16 %v736, %v735
      %v751 = vpack.c.bf16 %v738, %v737
      %v752 = vpack.c.bf16 %v740, %v739
      %v753 = vpack.c.bf16 %v742, %v741
      %v754 = vpack.c.bf16 %v744, %v743
      %v755 = vpack.c.bf16 %v746, %v745
      %v756 = vpack.c.bf16 %v748, %v747
      %v757 = vld [vmem:[%s4] sm:$0xf]
      %v758 = vld [vmem:[%s4 + $0x4] sm:$0xf]
      %v759 = vld [vmem:[%s4 + $0x8] sm:$0xf]
      %v760 = vld [vmem:[%s4 + $0xc] sm:$0xf]
      %v761 = vld [vmem:[%s5] sm:$0x1]
      %v763 = vlaneseq
      %v764 = vshrl.u32 %v763, 7
      %v765 = vsub.s32 0, %v764
      %v766 = vrot.slane %v761, %v765
      %v772 = vunpack.c.l.b16 %v757
      %v773 = vunpack.c.l.b16 %v758
      %v774 = vunpack.c.l.b16 %v759
      %v775 = vunpack.c.l.b16 %v760
      %v776 = vpack.c.b16 %v773, %v772
      %v777 = vpack.c.b16 %v775, %v774
      %v781 = vsel %vm495, %v749, 0
      %v784 = vsel %vm495, %v750, 0
      %v787 = vsel %vm495, %v751, 0
      %v790 = vsel %vm495, %v752, 0
      %v793 = vsel %vm495, %v753, 0
      %v796 = vsel %vm495, %v754, 0
      %v799 = vsel %vm495, %v755, 0
      %v802 = vsel %vm495, %v756, 0
      %804 = vmatprep.subr.bf16.mxu0 0
      %805 = vmatpush1.bf16.msra.mxu0 %v776
      %806 = vmatprep.subr.bf16.mxu0 0
      %807 = vmatpush1.bf16.msra.mxu0 %v777
      %808 = vmatprep.subr.bf16.mxu0 0
      %809 = vmatpush1.bf16.msra.mxu0 0
      %810 = vmatprep.subr.bf16.mxu0 0
      %811 = vmatpush1.bf16.msra.mxu0 0
      %812 = vmatprep.subr.bf16.mxu0 0
      %813 = vmatpush1.bf16.msra.mxu0 0
      %814 = vmatprep.subr.bf16.mxu0 0
      %815 = vmatpush1.bf16.msra.mxu0 0
      %816 = vmatprep.subr.bf16.mxu0 0
      %817 = vmatpush1.bf16.msra.mxu0 0
      %818 = vmatprep.subr.bf16.mxu0 0
      %819 = vmatpush1.bf16.msra.mxu0 0
      %820 = vmatprep.subr.bf16.mxu0 0
      %821 = vmatpush1.bf16.msra.mxu0 0
      %822 = vmatprep.subr.bf16.mxu0 0
      %823 = vmatpush1.bf16.msra.mxu0 0
      %824 = vmatprep.subr.bf16.mxu0 0
      %825 = vmatpush1.bf16.msra.mxu0 0
      %826 = vmatprep.subr.bf16.mxu0 0
      %827 = vmatpush1.bf16.msra.mxu0 0
      %828 = vmatprep.subr.bf16.mxu0 0
      %829 = vmatpush1.bf16.msra.mxu0 0
      %830 = vmatprep.subr.bf16.mxu0 0
      %831 = vmatpush1.bf16.msra.mxu0 0
      %832 = vmatprep.subr.bf16.mxu0 0
      %833 = vmatpush1.bf16.msra.mxu0 0
      %834 = vmatprep.subr.bf16.mxu0 0
      %835 = vmatpush1.bf16.msra.mxu0 0
      %836 = vmatprep.mubr.bf16.mxu0 0
      %837 = vmatmul.mubr.bf16.gmra.mrb[0].mxu0 %v781
      %v838 = vpop.f32.mrb[0].mxu0
      %v839 = vadd.f32 %v766, %v838
      %v840 = vpop.f32.mrb[0].mxu0
      %v841 = vpop.f32.mrb[0].mxu0
      %v842 = vadd.f32 %v766, %v841
      %v843 = vpop.f32.mrb[0].mxu0
      %844 = vmatprep.mubr.bf16.mxu0 0
      %845 = vmatmul.mubr.bf16.gmra.mrb[0].mxu0 %v784
      %v846 = vpop.f32.mrb[0].mxu0
      %v847 = vadd.f32 %v766, %v846
      %v848 = vpop.f32.mrb[0].mxu0
      %v849 = vpop.f32.mrb[0].mxu0
      %v850 = vadd.f32 %v766, %v849
      %v851 = vpop.f32.mrb[0].mxu0
      %852 = vmatprep.mubr.bf16.mxu0 0
      %853 = vmatmul.mubr.bf16.gmra.mrb[0].mxu0 %v787
      %v854 = vpop.f32.mrb[0].mxu0
      %v855 = vadd.f32 %v766, %v854
      %v856 = vpop.f32.mrb[0].mxu0
      %v857 = vpop.f32.mrb[0].mxu0
      %v858 = vadd.f32 %v766, %v857
      %v859 = vpop.f32.mrb[0].mxu0
      %860 = vmatprep.mubr.bf16.mxu0 0
      %861 = vmatmul.mubr.bf16.gmra.mrb[0].mxu0 %v790
      %v862 = vpop.f32.mrb[0].mxu0
      %v863 = vadd.f32 %v766, %v862
      %v864 = vpop.f32.mrb[0].mxu0
      %v865 = vpop.f32.mrb[0].mxu0
      %v866 = vadd.f32 %v766, %v865
      %v867 = vpop.f32.mrb[0].mxu0
      %868 = vmatprep.mubr.bf16.mxu0 0
      %869 = vmatmul.mubr.bf16.gmra.mrb[0].mxu0 %v793
      %v870 = vpop.f32.mrb[0].mxu0
      %v871 = vadd.f32 %v766, %v870
      %v872 = vpop.f32.mrb[0].mxu0
      %v873 = vpop.f32.mrb[0].mxu0
      %v874 = vadd.f32 %v766, %v873
      %v875 = vpop.f32.mrb[0].mxu0
      %876 = vmatprep.mubr.bf16.mxu0 0
      %877 = vmatmul.mubr.bf16.gmra.mrb[0].mxu0 %v796
      %v878 = vpop.f32.mrb[0].mxu0
      %v879 = vadd.f32 %v766, %v878
      %v880 = vpop.f32.mrb[0].mxu0
      %v881 = vpop.f32.mrb[0].mxu0
      %v882 = vadd.f32 %v766, %v881
      %v883 = vpop.f32.mrb[0].mxu0
      %884 = vmatprep.mubr.bf16.mxu0 0
      %885 = vmatmul.mubr.bf16.gmra.mrb[0].mxu0 %v799
      %v886 = vpop.f32.mrb[0].mxu0
      %v887 = vadd.f32 %v766, %v886
      %v888 = vpop.f32.mrb[0].mxu0
      %v889 = vpop.f32.mrb[0].mxu0
      %v890 = vadd.f32 %v766, %v889
      %v891 = vpop.f32.mrb[0].mxu0
      %892 = vmatprep.mubr.bf16.mxu0 0
      %893 = vmatmul.mubr.bf16.gmra.mrb[0].mxu0 %v802
      %v894 = vpop.f32.mrb[0].mxu0
      %v895 = vadd.f32 %v766, %v894
      %v896 = vpop.f32.mrb[0].mxu0
      %v897 = vpop.f32.mrb[0].mxu0
      %v898 = vadd.f32 %v766, %v897
      %v899 = vpop.f32.mrb[0].mxu0
      %900 = vdwg.mxu0
      %v901 = vpack.c.bf16 %v842, %v839
      %v902 = vpack.c.bf16 %v850, %v847
      %v903 = vpack.c.bf16 %v858, %v855
      %v904 = vpack.c.bf16 %v866, %v863
      %v905 = vpack.c.bf16 %v874, %v871
      %v906 = vpack.c.bf16 %v882, %v879
      %v907 = vpack.c.bf16 %v890, %v887
      %v908 = vpack.c.bf16 %v898, %v895
      %v909 = vld [vmem:[%s1] sm:$0xf]
      %v910 = vld [vmem:[%s1 + $0x4] sm:$0xf]
      %v911 = vld [vmem:[%s1 + $0x8] sm:$0xf]
      %v912 = vld [vmem:[%s1 + $0xc] sm:$0xf]
      %v913 = vld [vmem:[%s1 + $0x10] sm:$0xf]
      %v914 = vld [vmem:[%s1 + $0x14] sm:$0xf]
      %v915 = vld [vmem:[%s1 + $0x18] sm:$0xf]
      %v916 = vld [vmem:[%s1 + $0x1c] sm:$0xf]
      %v917 = vld [vmem:[%s1 + $0x20] sm:$0xf]
      %v918 = vld [vmem:[%s1 + $0x24] sm:$0xf]
      %v919 = vld [vmem:[%s1 + $0x28] sm:$0xf]
      %v920 = vld [vmem:[%s1 + $0x2c] sm:$0xf]
      %v921 = vld [vmem:[%s1 + $0x30] sm:$0xf]
      %v922 = vld [vmem:[%s1 + $0x34] sm:$0xf]
      %v923 = vld [vmem:[%s1 + $0x38] sm:$0xf]
      %v924 = vld [vmem:[%s1 + $0x3c] sm:$0xf]
      %v925 = vld [vmem:[%s1 + $0x40] sm:$0xf]
      %v926 = vld [vmem:[%s1 + $0x44] sm:$0xf]
      %v927 = vld [vmem:[%s1 + $0x48] sm:$0xf]
      %v928 = vld [vmem:[%s1 + $0x4c] sm:$0xf]
      %v929 = vld [vmem:[%s1 + $0x50] sm:$0xf]
      %v930 = vld [vmem:[%s1 + $0x54] sm:$0xf]
      %v931 = vld [vmem:[%s1 + $0x58] sm:$0xf]
      %v932 = vld [vmem:[%s1 + $0x5c] sm:$0xf]
      %v933 = vld [vmem:[%s1 + $0x60] sm:$0xf]
      %v934 = vld [vmem:[%s1 + $0x64] sm:$0xf]
      %v935 = vld [vmem:[%s1 + $0x68] sm:$0xf]
      %v936 = vld [vmem:[%s1 + $0x6c] sm:$0xf]
      %v937 = vld [vmem:[%s1 + $0x70] sm:$0xf]
      %v938 = vld [vmem:[%s1 + $0x74] sm:$0xf]
      %v939 = vld [vmem:[%s1 + $0x78] sm:$0xf]
      %v940 = vld [vmem:[%s1 + $0x7c] sm:$0xf]
      %v941 = vunpack.c.l.bf16 %v909
      %v942 = vunpack.c.l.bf16 %v910
      %v943 = vunpack.c.l.bf16 %v911
      %v944 = vunpack.c.l.bf16 %v912
      %v945 = vunpack.c.l.bf16 %v913
      %v946 = vunpack.c.l.bf16 %v914
      %v947 = vunpack.c.l.bf16 %v915
      %v948 = vunpack.c.l.bf16 %v916
      %953 = vrot.lane.b32.xlu0 %v901, 96
      %v954 = vpop.permute.xlu0 %953
      %955 = vrot.lane.b32.xlu0 %v902, 96
      %v956 = vpop.permute.xlu0 %955
      %957 = vrot.lane.b32.xlu0 %v903, 96
      %v958 = vpop.permute.xlu0 %957
      %959 = vrot.lane.b32.xlu0 %v904, 96
      %v960 = vpop.permute.xlu0 %959
      %vm961 = vcmask 64512
      %v963 = vsel %vm961, %v901, 0
      %v966 = vsel %vm961, %v902, 0
      %v969 = vsel %vm961, %v903, 0
      %v972 = vsel %vm961, %v904, 0
      %v975 = vsel %vm961, %v954, 0
      %v978 = vsel %vm961, %v956, 0
      %v981 = vsel %vm961, %v958, 0
      %v984 = vsel %vm961, %v960, 0
      %986 = vmatprep.subr.bf16.mxu0 0
      %987 = vmatpush1.bf16.xpose.msra.mxu0 %v975
      %988 = vmatprep.subr.bf16.mxu0 0
      %989 = vmatpush1.bf16.xpose.msra.mxu0 %v978
      %990 = vmatprep.subr.bf16.mxu0 0
      %991 = vmatpush1.bf16.xpose.msra.mxu0 %v981
      %992 = vmatprep.subr.bf16.mxu0 0
      %993 = vmatpush1.bf16.xpose.msra.mxu0 %v984
      %994 = vmatprep.subr.bf16.mxu0 0
      %995 = vmatpush1.bf16.xpose.msra.mxu0 0
      %996 = vmatprep.subr.bf16.mxu0 0
      %997 = vmatpush1.bf16.xpose.msra.mxu0 0
      %998 = vmatprep.subr.bf16.mxu0 0
      %999 = vmatpush1.bf16.xpose.msra.mxu0 0
      %1000 = vmatprep.subr.bf16.mxu0 0
      %1001 = vmatpush1.bf16.xpose.msra.mxu0 0
      %1002 = vmatprep.subr.bf16.mxu0 0
      %1003 = vmatpush1.bf16.xpose.msra.mxu0 0
      %1004 = vmatprep.subr.bf16.mxu0 0
      %1005 = vmatpush1.bf16.xpose.msra.mxu0 0
      %1006 = vmatprep.subr.bf16.mxu0 0
      %1007 = vmatpush1.bf16.xpose.msra.mxu0 0
      %1008 = vmatprep.subr.bf16.mxu0 0
      %1009 = vmatpush1.bf16.xpose.msra.mxu0 0
      %1010 = vmatprep.subr.bf16.mxu0 0
      %1011 = vmatpush1.bf16.xpose.msra.mxu0 0
      %1012 = vmatprep.subr.bf16.mxu0 0
      %1013 = vmatpush1.bf16.xpose.msra.mxu0 0
      %1014 = vmatprep.subr.bf16.mxu0 0
      %1015 = vmatpush1.bf16.xpose.msra.mxu0 0
      %1016 = vmatprep.subr.bf16.mxu0 0
      %1017 = vmatpush1.bf16.xpose.msra.mxu0 0
      %1018 = vmatprep.mubr.bf16.mxu0 0
      %1019 = vmatmul.mubr.bf16.gmra.mrb[0].mxu0 %v963
      %v1020 = vpop.f32.mrb[0].mxu0
      %v1021 = vadd.f32 %v941, %v1020
      %v1022 = vpop.f32.mrb[0].mxu0
      %v1023 = vpop.f32.mrb[0].mxu0
      %v1024 = vadd.f32 %v942, %v1023
      %v1025 = vpop.f32.mrb[0].mxu0
      %1026 = vmatprep.mubr.bf16.mxu0 0
      %1027 = vmatmul.mubr.bf16.gmra.mrb[0].mxu0 %v966
      %v1028 = vpop.f32.mrb[0].mxu0
      %v1029 = vadd.f32 %v943, %v1028
      %v1030 = vpop.f32.mrb[0].mxu0
      %v1031 = vpop.f32.mrb[0].mxu0
      %v1032 = vadd.f32 %v944, %v1031
      %v1033 = vpop.f32.mrb[0].mxu0
      %1034 = vmatprep.mubr.bf16.mxu0 0
      %1035 = vmatmul.mubr.bf16.gmra.mrb[0].mxu0 %v969
      %v1036 = vpop.f32.mrb[0].mxu0
      %v1037 = vadd.f32 %v945, %v1036
      %v1038 = vpop.f32.mrb[0].mxu0
      %v1039 = vpop.f32.mrb[0].mxu0
      %v1040 = vadd.f32 %v946, %v1039
      %v1041 = vpop.f32.mrb[0].mxu0
      %1042 = vmatprep.mubr.bf16.mxu0 0
      %1043 = vmatmul.mubr.bf16.gmra.mrb[0].mxu0 %v972
      %v1044 = vpop.f32.mrb[0].mxu0
      %v1045 = vadd.f32 %v947, %v1044
      %v1046 = vpop.f32.mrb[0].mxu0
      %v1047 = vpop.f32.mrb[0].mxu0
      %v1048 = vadd.f32 %v948, %v1047
      %v1049 = vpop.f32.mrb[0].mxu0
      %1050 = vdwg.mxu0
      %1055 = vrot.lane.b32.xlu0 %v905, 96
      %v1056 = vpop.permute.xlu0 %1055
      %1057 = vrot.lane.b32.xlu0 %v906, 96
      %v1058 = vpop.permute.xlu0 %1057
      %1059 = vrot.lane.b32.xlu0 %v907, 96
      %v1060 = vpop.permute.xlu0 %1059
      %1061 = vrot.lane.b32.xlu0 %v908, 96
      %v1062 = vpop.permute.xlu0 %1061
      %v1064 = vsel %vm961, %v905, 0
      %v1067 = vsel %vm961, %v906, 0
      %v1070 = vsel %vm961, %v907, 0
      %v1073 = vsel %vm961, %v908, 0
      %v1076 = vsel %vm961, %v1056, 0
      %v1079 = vsel %vm961, %v1058, 0
      %v1082 = vsel %vm961, %v1060, 0
      %v1085 = vsel %vm961, %v1062, 0
      %1087 = vmatprep.subr.bf16.mxu0 0
      %1088 = vmatpush1.bf16.xpose.msra.mxu0 %v1076
      %1089 = vmatprep.subr.bf16.mxu0 0
      %1090 = vmatpush1.bf16.xpose.msra.mxu0 %v1079
      %1091 = vmatprep.subr.bf16.mxu0 0
      %1092 = vmatpush1.bf16.xpose.msra.mxu0 %v1082
      %1093 = vmatprep.subr.bf16.mxu0 0
      %1094 = vmatpush1.bf16.xpose.msra.mxu0 %v1085
      %1095 = vmatprep.subr.bf16.mxu0 0
      %1096 = vmatpush1.bf16.xpose.msra.mxu0 0
      %1097 = vmatprep.subr.bf16.mxu0 0
      %1098 = vmatpush1.bf16.xpose.msra.mxu0 0
      %1099 = vmatprep.subr.bf16.mxu0 0
      %1100 = vmatpush1.bf16.xpose.msra.mxu0 0
      %1101 = vmatprep.subr.bf16.mxu0 0
      %1102 = vmatpush1.bf16.xpose.msra.mxu0 0
      %1103 = vmatprep.subr.bf16.mxu0 0
      %1104 = vmatpush1.bf16.xpose.msra.mxu0 0
      %1105 = vmatprep.subr.bf16.mxu0 0
      %1106 = vmatpush1.bf16.xpose.msra.mxu0 0
      %1107 = vmatprep.subr.bf16.mxu0 0
      %1108 = vmatpush1.bf16.xpose.msra.mxu0 0
      %1109 = vmatprep.subr.bf16.mxu0 0
      %1110 = vmatpush1.bf16.xpose.msra.mxu0 0
      %1111 = vmatprep.subr.bf16.mxu0 0
      %1112 = vmatpush1.bf16.xpose.msra.mxu0 0
      %1113 = vmatprep.subr.bf16.mxu0 0
      %1114 = vmatpush1.bf16.xpose.msra.mxu0 0
      %1115 = vmatprep.subr.bf16.mxu0 0
      %1116 = vmatpush1.bf16.xpose.msra.mxu0 0
      %1117 = vmatprep.subr.bf16.mxu0 0
      %1118 = vmatpush1.bf16.xpose.msra.mxu0 0
      %1119 = vmatprep.mubr.bf16.mxu0 0
      %1120 = vmatmul.mubr.bf16.gmra.mrb[0].mxu0 %v1064
      %v1121 = vpop.f32.mrb[0].mxu0
      %v1122 = vadd.f32 %v941, %v1121
      %v1123 = vpop.f32.mrb[0].mxu0
      %v1124 = vpop.f32.mrb[0].mxu0
      %v1125 = vadd.f32 %v942, %v1124
      %v1126 = vpop.f32.mrb[0].mxu0
      %1127 = vmatprep.mubr.bf16.mxu0 0
      %1128 = vmatmul.mubr.bf16.gmra.mrb[0].mxu0 %v1067
      %v1129 = vpop.f32.mrb[0].mxu0
      %v1130 = vadd.f32 %v943, %v1129
      %v1131 = vpop.f32.mrb[0].mxu0
      %v1132 = vpop.f32.mrb[0].mxu0
      %v1133 = vadd.f32 %v944, %v1132
      %v1134 = vpop.f32.mrb[0].mxu0
      %1135 = vmatprep.mubr.bf16.mxu0 0
      %1136 = vmatmul.mubr.bf16.gmra.mrb[0].mxu0 %v1070
      %v1137 = vpop.f32.mrb[0].mxu0
      %v1138 = vadd.f32 %v945, %v1137
      %v1139 = vpop.f32.mrb[0].mxu0
      %v1140 = vpop.f32.mrb[0].mxu0
      %v1141 = vadd.f32 %v946, %v1140
      %v1142 = vpop.f32.mrb[0].mxu0
      %1143 = vmatprep.mubr.bf16.mxu0 0
      %1144 = vmatmul.mubr.bf16.gmra.mrb[0].mxu0 %v1073
      %v1145 = vpop.f32.mrb[0].mxu0
      %v1146 = vadd.f32 %v947, %v1145
      %v1147 = vpop.f32.mrb[0].mxu0
      %v1148 = vpop.f32.mrb[0].mxu0
      %v1149 = vadd.f32 %v948, %v1148
      %v1150 = vpop.f32.mrb[0].mxu0
      %1151 = vdwg.mxu0
      %vm1152 = vcmask 523264
      %v1153 = vsel %vm1152, %v1021, -inf
      %1154 = vmax.xlane.f32.xlu0 %v1153
      %v1155 = vpop.xlane.xlu0 %1154
      %v1156 = vsel %vm1152, %v1024, -inf
      %1157 = vmax.xlane.f32.xlu0 %v1156
      %v1158 = vpop.xlane.xlu0 %1157
      %v1159 = vsel %vm1152, %v1029, -inf
      %1160 = vmax.xlane.f32.xlu0 %v1159
      %v1161 = vpop.xlane.xlu0 %1160
      %v1162 = vsel %vm1152, %v1032, -inf
      %1163 = vmax.xlane.f32.xlu0 %v1162
      %v1164 = vpop.xlane.xlu0 %1163
      %v1165 = vsel %vm1152, %v1037, -inf
      %1166 = vmax.xlane.f32.xlu0 %v1165
      %v1167 = vpop.xlane.xlu0 %1166
      %v1168 = vsel %vm1152, %v1040, -inf
      %1169 = vmax.xlane.f32.xlu0 %v1168
      %v1170 = vpop.xlane.xlu0 %1169
      %v1171 = vsel %vm1152, %v1045, -inf
      %1172 = vmax.xlane.f32.xlu0 %v1171
      %v1173 = vpop.xlane.xlu0 %1172
      %v1174 = vsel %vm1152, %v1048, -inf
      %1175 = vmax.xlane.f32.xlu0 %v1174
      %v1176 = vpop.xlane.xlu0 %1175
      %v1177 = vsel %vm1152, %v1122, -inf
      %1178 = vmax.xlane.f32.xlu0 %v1177
      %v1179 = vpop.xlane.xlu0 %1178
      %v1180 = vsel %vm1152, %v1125, -inf
      %1181 = vmax.xlane.f32.xlu0 %v1180
      %v1182 = vpop.xlane.xlu0 %1181
      %v1183 = vsel %vm1152, %v1130, -inf
      %1184 = vmax.xlane.f32.xlu0 %v1183
      %v1185 = vpop.xlane.xlu0 %1184
      %v1186 = vsel %vm1152, %v1133, -inf
      %1187 = vmax.xlane.f32.xlu0 %v1186
      %v1188 = vpop.xlane.xlu0 %1187
      %v1189 = vsel %vm1152, %v1138, -inf
      %1190 = vmax.xlane.f32.xlu0 %v1189
      %v1191 = vpop.xlane.xlu0 %1190
      %v1192 = vsel %vm1152, %v1141, -inf
      %1193 = vmax.xlane.f32.xlu0 %v1192
      %v1194 = vpop.xlane.xlu0 %1193
      %v1195 = vsel %vm1152, %v1146, -inf
      %1196 = vmax.xlane.f32.xlu0 %v1195
      %v1197 = vpop.xlane.xlu0 %1196
      %v1198 = vsel %vm1152, %v1149, -inf
      %1199 = vmax.xlane.f32.xlu0 %v1198
      %v1200 = vpop.xlane.xlu0 %1199
      %v1201 = vsub.f32 %v1021, %v1155
      %v1202 = vsub.f32 %v1024, %v1158
      %v1203 = vsub.f32 %v1029, %v1161
      %v1204 = vsub.f32 %v1032, %v1164
      %v1205 = vsub.f32 %v1037, %v1167
      %v1206 = vsub.f32 %v1040, %v1170
      %v1207 = vsub.f32 %v1045, %v1173
      %v1208 = vsub.f32 %v1048, %v1176
      %v1209 = vsub.f32 %v1122, %v1179
      %v1210 = vsub.f32 %v1125, %v1182
      %v1211 = vsub.f32 %v1130, %v1185
      %v1212 = vsub.f32 %v1133, %v1188
      %v1213 = vsub.f32 %v1138, %v1191
      %v1214 = vsub.f32 %v1141, %v1194
      %v1215 = vsub.f32 %v1146, %v1197
      %v1216 = vsub.f32 %v1149, %v1200
      %v1217 = vmul.f32 %v1201, 1.442695
      %v1218 = vpow.pop %v1217
      %v1219 = vmul.f32 %v1202, 1.442695
      %v1220 = vpow.pop %v1219
      %v1221 = vmul.f32 %v1203, 1.442695
      %v1222 = vpow.pop %v1221
      %v1223 = vmul.f32 %v1204, 1.442695
      %v1224 = vpow.pop %v1223
      %v1225 = vmul.f32 %v1205, 1.442695
      %v1226 = vpow.pop %v1225
      %v1227 = vmul.f32 %v1206, 1.442695
      %v1228 = vpow.pop %v1227
      %v1229 = vmul.f32 %v1207, 1.442695
      %v1230 = vpow.pop %v1229
      %v1231 = vmul.f32 %v1208, 1.442695
      %v1232 = vpow.pop %v1231
      %v1233 = vmul.f32 %v1209, 1.442695
      %v1234 = vpow.pop %v1233
      %v1235 = vmul.f32 %v1210, 1.442695
      %v1236 = vpow.pop %v1235
      %v1237 = vmul.f32 %v1211, 1.442695
      %v1238 = vpow.pop %v1237
      %v1239 = vmul.f32 %v1212, 1.442695
      %v1240 = vpow.pop %v1239
      %v1241 = vmul.f32 %v1213, 1.442695
      %v1242 = vpow.pop %v1241
      %v1243 = vmul.f32 %v1214, 1.442695
      %v1244 = vpow.pop %v1243
      %v1245 = vmul.f32 %v1215, 1.442695
      %v1246 = vpow.pop %v1245
      %v1247 = vmul.f32 %v1216, 1.442695
      %v1248 = vpow.pop %v1247
      %v1249 = vsel %vm1152, %v1218, 0.0
      %1250 = vadd.xlane.f32.xlu0 %v1249
      %v1251 = vpop.xlane.xlu0 %1250
      %v1252 = vsel %vm1152, %v1220, 0.0
      %1253 = vadd.xlane.f32.xlu0 %v1252
      %v1254 = vpop.xlane.xlu0 %1253
      %v1255 = vsel %vm1152, %v1222, 0.0
      %1256 = vadd.xlane.f32.xlu0 %v1255
      %v1257 = vpop.xlane.xlu0 %1256
      %v1258 = vsel %vm1152, %v1224, 0.0
      %1259 = vadd.xlane.f32.xlu0 %v1258
      %v1260 = vpop.xlane.xlu0 %1259
      %v1261 = vsel %vm1152, %v1226, 0.0
      %1262 = vadd.xlane.f32.xlu0 %v1261
      %v1263 = vpop.xlane.xlu0 %1262
      %v1264 = vsel %vm1152, %v1228, 0.0
      %1265 = vadd.xlane.f32.xlu0 %v1264
      %v1266 = vpop.xlane.xlu0 %1265
      %v1267 = vsel %vm1152, %v1230, 0.0
      %1268 = vadd.xlane.f32.xlu0 %v1267
      %v1269 = vpop.xlane.xlu0 %1268
      %v1270 = vsel %vm1152, %v1232, 0.0
      %1271 = vadd.xlane.f32.xlu0 %v1270
      %v1272 = vpop.xlane.xlu0 %1271
      %v1273 = vsel %vm1152, %v1234, 0.0
      %1274 = vadd.xlane.f32.xlu0 %v1273
      %v1275 = vpop.xlane.xlu0 %1274
      %v1276 = vsel %vm1152, %v1236, 0.0
      %1277 = vadd.xlane.f32.xlu0 %v1276
      %v1278 = vpop.xlane.xlu0 %1277
      %v1279 = vsel %vm1152, %v1238, 0.0
      %1280 = vadd.xlane.f32.xlu0 %v1279
      %v1281 = vpop.xlane.xlu0 %1280
      %v1282 = vsel %vm1152, %v1240, 0.0
      %1283 = vadd.xlane.f32.xlu0 %v1282
      %v1284 = vpop.xlane.xlu0 %1283
      %v1285 = vsel %vm1152, %v1242, 0.0
      %1286 = vadd.xlane.f32.xlu0 %v1285
      %v1287 = vpop.xlane.xlu0 %1286
      %v1288 = vsel %vm1152, %v1244, 0.0
      %1289 = vadd.xlane.f32.xlu0 %v1288
      %v1290 = vpop.xlane.xlu0 %1289
      %v1291 = vsel %vm1152, %v1246, 0.0
      %1292 = vadd.xlane.f32.xlu0 %v1291
      %v1293 = vpop.xlane.xlu0 %1292
      %v1294 = vsel %vm1152, %v1248, 0.0
      %1295 = vadd.xlane.f32.xlu0 %v1294
      %v1296 = vpop.xlane.xlu0 %1295
      %v1297 = vrcp.pop %v1251
      %v1298 = vrcp.pop %v1254
      %v1299 = vrcp.pop %v1257
      %v1300 = vrcp.pop %v1260
      %v1301 = vrcp.pop %v1263
      %v1302 = vrcp.pop %v1266
      %v1303 = vrcp.pop %v1269
      %v1304 = vrcp.pop %v1272
      %v1305 = vrcp.pop %v1275
      %v1306 = vrcp.pop %v1278
      %v1307 = vrcp.pop %v1281
      %v1308 = vrcp.pop %v1284
      %v1309 = vrcp.pop %v1287
      %v1310 = vrcp.pop %v1290
      %v1311 = vrcp.pop %v1293
      %v1312 = vrcp.pop %v1296
      %v1313 = vmul.f32 %v1218, %v1297
      %v1314 = vmul.f32 %v1220, %v1298
      %v1315 = vmul.f32 %v1222, %v1299
      %v1316 = vmul.f32 %v1224, %v1300
      %v1317 = vmul.f32 %v1226, %v1301
      %v1318 = vmul.f32 %v1228, %v1302
      %v1319 = vmul.f32 %v1230, %v1303
      %v1320 = vmul.f32 %v1232, %v1304
      %v1321 = vmul.f32 %v1234, %v1305
      %v1322 = vmul.f32 %v1236, %v1306
      %v1323 = vmul.f32 %v1238, %v1307
      %v1324 = vmul.f32 %v1240, %v1308
      %v1325 = vmul.f32 %v1242, %v1309
      %v1326 = vmul.f32 %v1244, %v1310
      %v1327 = vmul.f32 %v1246, %v1311
      %v1328 = vmul.f32 %v1248, %v1312
      %v1329 = vpack.c.bf16 %v1314, %v1313
      %v1330 = vpack.c.bf16 %v1316, %v1315
      %v1331 = vpack.c.bf16 %v1318, %v1317
      %v1332 = vpack.c.bf16 %v1320, %v1319
      %v1333 = vpack.c.bf16 %v1322, %v1321
      %v1334 = vpack.c.bf16 %v1324, %v1323
      %v1335 = vpack.c.bf16 %v1326, %v1325
      %v1336 = vpack.c.bf16 %v1328, %v1327
      %1337 = vrot.lane.b32.xlu0 %v901, 64
      %v1338 = vpop.permute.xlu0 %1337
      %1339 = vrot.lane.b32.xlu0 %v902, 64
      %v1340 = vpop.permute.xlu0 %1339
      %1341 = vrot.lane.b32.xlu0 %v903, 64
      %v1342 = vpop.permute.xlu0 %1341
      %1343 = vrot.lane.b32.xlu0 %v904, 64
      %v1344 = vpop.permute.xlu0 %1343
      %v1350 = vsel %vm1152, %v1329, 0
      %v1353 = vsel %vm1152, %v1330, 0
      %v1356 = vsel %vm1152, %v1331, 0
      %v1359 = vsel %vm1152, %v1332, 0
      %1361 = vmatprep.subr.bf16.mxu0 0
      %1362 = vmatpush1.bf16.msra.mxu0 %v1338
      %1363 = vmatprep.subr.bf16.mxu0 0
      %1364 = vmatpush1.bf16.msra.mxu0 %v1340
      %1365 = vmatprep.subr.bf16.mxu0 0
      %1366 = vmatpush1.bf16.msra.mxu0 %v1342
      %1367 = vmatprep.subr.bf16.mxu0 0
      %1368 = vmatpush1.bf16.msra.mxu0 %v1344
      %1369 = vmatprep.subr.bf16.mxu0 0
      %1370 = vmatpush1.bf16.msra.mxu0 0
      %1371 = vmatprep.subr.bf16.mxu0 0
      %1372 = vmatpush1.bf16.msra.mxu0 0
      %1373 = vmatprep.subr.bf16.mxu0 0
      %1374 = vmatpush1.bf16.msra.mxu0 0
      %1375 = vmatprep.subr.bf16.mxu0 0
      %1376 = vmatpush1.bf16.msra.mxu0 0
      %1377 = vmatprep.subr.bf16.mxu0 0
      %1378 = vmatpush1.bf16.msra.mxu0 0
      %1379 = vmatprep.subr.bf16.mxu0 0
      %1380 = vmatpush1.bf16.msra.mxu0 0
      %1381 = vmatprep.subr.bf16.mxu0 0
      %1382 = vmatpush1.bf16.msra.mxu0 0
      %1383 = vmatprep.subr.bf16.mxu0 0
      %1384 = vmatpush1.bf16.msra.mxu0 0
      %1385 = vmatprep.subr.bf16.mxu0 0
      %1386 = vmatpush1.bf16.msra.mxu0 0
      %1387 = vmatprep.subr.bf16.mxu0 0
      %1388 = vmatpush1.bf16.msra.mxu0 0
      %1389 = vmatprep.subr.bf16.mxu0 0
      %1390 = vmatpush1.bf16.msra.mxu0 0
      %1391 = vmatprep.subr.bf16.mxu0 0
      %1392 = vmatpush1.bf16.msra.mxu0 0
      %1393 = vmatprep.mubr.bf16.mxu0 0
      %1394 = vmatmul.mubr.bf16.gmra.mrb[0].mxu0 %v1350
      %v1395 = vpop.f32.mrb[0].mxu0
      %v1396 = vadd.f32 0.0, %v1395
      %v1397 = vpop.f32.mrb[0].mxu0
      %v1398 = vpop.f32.mrb[0].mxu0
      %v1399 = vadd.f32 0.0, %v1398
      %v1400 = vpop.f32.mrb[0].mxu0
      %1401 = vmatprep.mubr.bf16.mxu0 0
      %1402 = vmatmul.mubr.bf16.gmra.mrb[0].mxu0 %v1353
      %v1403 = vpop.f32.mrb[0].mxu0
      %v1404 = vadd.f32 0.0, %v1403
      %v1405 = vpop.f32.mrb[0].mxu0
      %v1406 = vpop.f32.mrb[0].mxu0
      %v1407 = vadd.f32 0.0, %v1406
      %v1408 = vpop.f32.mrb[0].mxu0
      %1409 = vmatprep.mubr.bf16.mxu0 0
      %1410 = vmatmul.mubr.bf16.gmra.mrb[0].mxu0 %v1356
      %v1411 = vpop.f32.mrb[0].mxu0
      %v1412 = vadd.f32 0.0, %v1411
      %v1413 = vpop.f32.mrb[0].mxu0
      %v1414 = vpop.f32.mrb[0].mxu0
      %v1415 = vadd.f32 0.0, %v1414
      %v1416 = vpop.f32.mrb[0].mxu0
      %1417 = vmatprep.mubr.bf16.mxu0 0
      %1418 = vmatmul.mubr.bf16.gmra.mrb[0].mxu0 %v1359
      %v1419 = vpop.f32.mrb[0].mxu0
      %v1420 = vadd.f32 0.0, %v1419
      %v1421 = vpop.f32.mrb[0].mxu0
      %v1422 = vpop.f32.mrb[0].mxu0
      %v1423 = vadd.f32 0.0, %v1422
      %v1424 = vpop.f32.mrb[0].mxu0
      %1425 = vdwg.mxu0
      %1426 = vrot.lane.b32.xlu0 %v905, 64
      %v1427 = vpop.permute.xlu0 %1426
      %1428 = vrot.lane.b32.xlu0 %v906, 64
      %v1429 = vpop.permute.xlu0 %1428
      %1430 = vrot.lane.b32.xlu0 %v907, 64
      %v1431 = vpop.permute.xlu0 %1430
      %1432 = vrot.lane.b32.xlu0 %v908, 64
      %v1433 = vpop.permute.xlu0 %1432
      %v1439 = vsel %vm1152, %v1333, 0
      %v1442 = vsel %vm1152, %v1334, 0
      %v1445 = vsel %vm1152, %v1335, 0
      %v1448 = vsel %vm1152, %v1336, 0
      %1450 = vmatprep.subr.bf16.mxu0 0
      %1451 = vmatpush1.bf16.msra.mxu0 %v1427
      %1452 = vmatprep.subr.bf16.mxu0 0
      %1453 = vmatpush1.bf16.msra.mxu0 %v1429
      %1454 = vmatprep.subr.bf16.mxu0 0
      %1455 = vmatpush1.bf16.msra.mxu0 %v1431
      %1456 = vmatprep.subr.bf16.mxu0 0
      %1457 = vmatpush1.bf16.msra.mxu0 %v1433
      %1458 = vmatprep.subr.bf16.mxu0 0
      %1459 = vmatpush1.bf16.msra.mxu0 0
      %1460 = vmatprep.subr.bf16.mxu0 0
      %1461 = vmatpush1.bf16.msra.mxu0 0
      %1462 = vmatprep.subr.bf16.mxu0 0
      %1463 = vmatpush1.bf16.msra.mxu0 0
      %1464 = vmatprep.subr.bf16.mxu0 0
      %1465 = vmatpush1.bf16.msra.mxu0 0
      %1466 = vmatprep.subr.bf16.mxu0 0
      %1467 = vmatpush1.bf16.msra.mxu0 0
      %1468 = vmatprep.subr.bf16.mxu0 0
      %1469 = vmatpush1.bf16.msra.mxu0 0
      %1470 = vmatprep.subr.bf16.mxu0 0
      %1471 = vmatpush1.bf16.msra.mxu0 0
      %1472 = vmatprep.subr.bf16.mxu0 0
      %1473 = vmatpush1.bf16.msra.mxu0 0
      %1474 = vmatprep.subr.bf16.mxu0 0
      %1475 = vmatpush1.bf16.msra.mxu0 0
      %1476 = vmatprep.subr.bf16.mxu0 0
      %1477 = vmatpush1.bf16.msra.mxu0 0
      %1478 = vmatprep.subr.bf16.mxu0 0
      %1479 = vmatpush1.bf16.msra.mxu0 0
      %1480 = vmatprep.subr.bf16.mxu0 0
      %1481 = vmatpush1.bf16.msra.mxu0 0
      %1482 = vmatprep.mubr.bf16.mxu0 0
      %1483 = vmatmul.mubr.bf16.gmra.mrb[0].mxu0 %v1439
      %v1484 = vpop.f32.mrb[0].mxu0
      %v1485 = vadd.f32 0.0, %v1484
      %v1486 = vpop.f32.mrb[0].mxu0
      %v1487 = vpop.f32.mrb[0].mxu0
      %v1488 = vadd.f32 0.0, %v1487
      %v1489 = vpop.f32.mrb[0].mxu0
      %1490 = vmatprep.mubr.bf16.mxu0 0
      %1491 = vmatmul.mubr.bf16.gmra.mrb[0].mxu0 %v1442
      %v1492 = vpop.f32.mrb[0].mxu0
      %v1493 = vadd.f32 0.0, %v1492
      %v1494 = vpop.f32.mrb[0].mxu0
      %v1495 = vpop.f32.mrb[0].mxu0
      %v1496 = vadd.f32 0.0, %v1495
      %v1497 = vpop.f32.mrb[0].mxu0
      %1498 = vmatprep.mubr.bf16.mxu0 0
      %1499 = vmatmul.mubr.bf16.gmra.mrb[0].mxu0 %v1445
      %v1500 = vpop.f32.mrb[0].mxu0
      %v1501 = vadd.f32 0.0, %v1500
      %v1502 = vpop.f32.mrb[0].mxu0
      %v1503 = vpop.f32.mrb[0].mxu0
      %v1504 = vadd.f32 0.0, %v1503
      %v1505 = vpop.f32.mrb[0].mxu0
      %1506 = vmatprep.mubr.bf16.mxu0 0
      %1507 = vmatmul.mubr.bf16.gmra.mrb[0].mxu0 %v1448
      %v1508 = vpop.f32.mrb[0].mxu0
      %v1509 = vadd.f32 0.0, %v1508
      %v1510 = vpop.f32.mrb[0].mxu0
      %v1511 = vpop.f32.mrb[0].mxu0
      %v1512 = vadd.f32 0.0, %v1511
      %v1513 = vpop.f32.mrb[0].mxu0
      %1514 = vdwg.mxu0
      %v1515 = vunpack.c.l.bf16 %v917
      %v1516 = vunpack.c.l.bf16 %v918
      %v1517 = vunpack.c.l.bf16 %v919
      %v1518 = vunpack.c.l.bf16 %v920
      %v1519 = vunpack.c.l.bf16 %v921
      %v1520 = vunpack.c.l.bf16 %v922
      %v1521 = vunpack.c.l.bf16 %v923
      %v1522 = vunpack.c.l.bf16 %v924
      %1523 = vrot.lane.b32.xlu0 %v901, 120
      %v1524 = vpop.permute.xlu0 %1523
      %1525 = vrot.lane.b32.xlu0 %v902, 120
      %v1526 = vpop.permute.xlu0 %1525
      %1527 = vrot.lane.b32.xlu0 %v903, 120
      %v1528 = vpop.permute.xlu0 %1527
      %1529 = vrot.lane.b32.xlu0 %v904, 120
      %v1530 = vpop.permute.xlu0 %1529
      %1531 = vrot.lane.b32.xlu0 %v901, 88
      %v1532 = vpop.permute.xlu0 %1531
      %1533 = vrot.lane.b32.xlu0 %v902, 88
      %v1534 = vpop.permute.xlu0 %1533
      %1535 = vrot.lane.b32.xlu0 %v903, 88
      %v1536 = vpop.permute.xlu0 %1535
      %1537 = vrot.lane.b32.xlu0 %v904, 88
      %v1538 = vpop.permute.xlu0 %1537
      %v1540 = vsel %vm961, %v1524, 0
      %v1543 = vsel %vm961, %v1526, 0
      %v1546 = vsel %vm961, %v1528, 0
      %v1549 = vsel %vm961, %v1530, 0
      %v1552 = vsel %vm961, %v1532, 0
      %v1555 = vsel %vm961, %v1534, 0
      %v1558 = vsel %vm961, %v1536, 0
      %v1561 = vsel %vm961, %v1538, 0
      %1563 = vmatprep.subr.bf16.mxu0 0
      %1564 = vmatpush1.bf16.xpose.msra.mxu0 %v1552
      %1565 = vmatprep.subr.bf16.mxu0 0
      %1566 = vmatpush1.bf16.xpose.msra.mxu0 %v1555
      %1567 = vmatprep.subr.bf16.mxu0 0
      %1568 = vmatpush1.bf16.xpose.msra.mxu0 %v1558
      %1569 = vmatprep.subr.bf16.mxu0 0
      %1570 = vmatpush1.bf16.xpose.msra.mxu0 %v1561
      %1571 = vmatprep.subr.bf16.mxu0 0
      %1572 = vmatpush1.bf16.xpose.msra.mxu0 0
      %1573 = vmatprep.subr.bf16.mxu0 0
      %1574 = vmatpush1.bf16.xpose.msra.mxu0 0
      %1575 = vmatprep.subr.bf16.mxu0 0
      %1576 = vmatpush1.bf16.xpose.msra.mxu0 0
      %1577 = vmatprep.subr.bf16.mxu0 0
      %1578 = vmatpush1.bf16.xpose.msra.mxu0 0
      %1579 = vmatprep.subr.bf16.mxu0 0
      %1580 = vmatpush1.bf16.xpose.msra.mxu0 0
      %1581 = vmatprep.subr.bf16.mxu0 0
      %1582 = vmatpush1.bf16.xpose.msra.mxu0 0
      %1583 = vmatprep.subr.bf16.mxu0 0
      %1584 = vmatpush1.bf16.xpose.msra.mxu0 0
      %1585 = vmatprep.subr.bf16.mxu0 0
      %1586 = vmatpush1.bf16.xpose.msra.mxu0 0
      %1587 = vmatprep.subr.bf16.mxu0 0
      %1588 = vmatpush1.bf16.xpose.msra.mxu0 0
      %1589 = vmatprep.subr.bf16.mxu0 0
      %1590 = vmatpush1.bf16.xpose.msra.mxu0 0
      %1591 = vmatprep.subr.bf16.mxu0 0
      %1592 = vmatpush1.bf16.xpose.msra.mxu0 0
      %1593 = vmatprep.subr.bf16.mxu0 0
      %1594 = vmatpush1.bf16.xpose.msra.mxu0 0
      %1595 = vmatprep.mubr.bf16.mxu0 0
      %1596 = vmatmul.mubr.bf16.gmra.mrb[0].mxu0 %v1540
      %v1597 = vpop.f32.mrb[0].mxu0
      %v1598 = vadd.f32 %v1515, %v1597
      %v1599 = vpop.f32.mrb[0].mxu0
      %v1600 = vpop.f32.mrb[0].mxu0
      %v1601 = vadd.f32 %v1516, %v1600
      %v1602 = vpop.f32.mrb[0].mxu0
      %1603 = vmatprep.mubr.bf16.mxu0 0
      %1604 = vmatmul.mubr.bf16.gmra.mrb[0].mxu0 %v1543
      %v1605 = vpop.f32.mrb[0].mxu0
      %v1606 = vadd.f32 %v1517, %v1605
      %v1607 = vpop.f32.mrb[0].mxu0
      %v1608 = vpop.f32.mrb[0].mxu0
      %v1609 = vadd.f32 %v1518, %v1608
      %v1610 = vpop.f32.mrb[0].mxu0
      %1611 = vmatprep.mubr.bf16.mxu0 0
      %1612 = vmatmul.mubr.bf16.gmra.mrb[0].mxu0 %v1546
      %v1613 = vpop.f32.mrb[0].mxu0
      %v1614 = vadd.f32 %v1519, %v1613
      %v1615 = vpop.f32.mrb[0].mxu0
      %v1616 = vpop.f32.mrb[0].mxu0
      %v1617 = vadd.f32 %v1520, %v1616
      %v1618 = vpop.f32.mrb[0].mxu0
      %1619 = vmatprep.mubr.bf16.mxu0 0
      %1620 = vmatmul.mubr.bf16.gmra.mrb[0].mxu0 %v1549
      %v1621 = vpop.f32.mrb[0].mxu0
      %v1622 = vadd.f32 %v1521, %v1621
      %v1623 = vpop.f32.mrb[0].mxu0
      %v1624 = vpop.f32.mrb[0].mxu0
      %v1625 = vadd.f32 %v1522, %v1624
      %v1626 = vpop.f32.mrb[0].mxu0
      %1627 = vdwg.mxu0
      %1628 = vrot.lane.b32.xlu0 %v905, 120
      %v1629 = vpop.permute.xlu0 %1628
      %1630 = vrot.lane.b32.xlu0 %v906, 120
      %v1631 = vpop.permute.xlu0 %1630
      %1632 = vrot.lane.b32.xlu0 %v907, 120
      %v1633 = vpop.permute.xlu0 %1632
      %1634 = vrot.lane.b32.xlu0 %v908, 120
      %v1635 = vpop.permute.xlu0 %1634
      %1636 = vrot.lane.b32.xlu0 %v905, 88
      %v1637 = vpop.permute.xlu0 %1636
      %1638 = vrot.lane.b32.xlu0 %v906, 88
      %v1639 = vpop.permute.xlu0 %1638
      %1640 = vrot.lane.b32.xlu0 %v907, 88
      %v1641 = vpop.permute.xlu0 %1640
      %1642 = vrot.lane.b32.xlu0 %v908, 88
      %v1643 = vpop.permute.xlu0 %1642
      %v1645 = vsel %vm961, %v1629, 0
      %v1648 = vsel %vm961, %v1631, 0
      %v1651 = vsel %vm961, %v1633, 0
      %v1654 = vsel %vm961, %v1635, 0
      %v1657 = vsel %vm961, %v1637, 0
      %v1660 = vsel %vm961, %v1639, 0
      %v1663 = vsel %vm961, %v1641, 0
      %v1666 = vsel %vm961, %v1643, 0
      %1668 = vmatprep.subr.bf16.mxu0 0
      %1669 = vmatpush1.bf16.xpose.msra.mxu0 %v1657
      %1670 = vmatprep.subr.bf16.mxu0 0
      %1671 = vmatpush1.bf16.xpose.msra.mxu0 %v1660
      %1672 = vmatprep.subr.bf16.mxu0 0
      %1673 = vmatpush1.bf16.xpose.msra.mxu0 %v1663
      %1674 = vmatprep.subr.bf16.mxu0 0
      %1675 = vmatpush1.bf16.xpose.msra.mxu0 %v1666
      %1676 = vmatprep.subr.bf16.mxu0 0
      %1677 = vmatpush1.bf16.xpose.msra.mxu0 0
      %1678 = vmatprep.subr.bf16.mxu0 0
      %1679 = vmatpush1.bf16.xpose.msra.mxu0 0
      %1680 = vmatprep.subr.bf16.mxu0 0
      %1681 = vmatpush1.bf16.xpose.msra.mxu0 0
      %1682 = vmatprep.subr.bf16.mxu0 0
      %1683 = vmatpush1.bf16.xpose.msra.mxu0 0
      %1684 = vmatprep.subr.bf16.mxu0 0
      %1685 = vmatpush1.bf16.xpose.msra.mxu0 0
      %1686 = vmatprep.subr.bf16.mxu0 0
      %1687 = vmatpush1.bf16.xpose.msra.mxu0 0
      %1688 = vmatprep.subr.bf16.mxu0 0
      %1689 = vmatpush1.bf16.xpose.msra.mxu0 0
      %1690 = vmatprep.subr.bf16.mxu0 0
      %1691 = vmatpush1.bf16.xpose.msra.mxu0 0
      %1692 = vmatprep.subr.bf16.mxu0 0
      %1693 = vmatpush1.bf16.xpose.msra.mxu0 0
      %1694 = vmatprep.subr.bf16.mxu0 0
      %1695 = vmatpush1.bf16.xpose.msra.mxu0 0
      %1696 = vmatprep.subr.bf16.mxu0 0
      %1697 = vmatpush1.bf16.xpose.msra.mxu0 0
      %1698 = vmatprep.subr.bf16.mxu0 0
      %1699 = vmatpush1.bf16.xpose.msra.mxu0 0
      %1700 = vmatprep.mubr.bf16.mxu0 0
      %1701 = vmatmul.mubr.bf16.gmra.mrb[0].mxu0 %v1645
      %v1702 = vpop.f32.mrb[0].mxu0
      %v1703 = vadd.f32 %v1515, %v1702
      %v1704 = vpop.f32.mrb[0].mxu0
      %v1705 = vpop.f32.mrb[0].mxu0
      %v1706 = vadd.f32 %v1516, %v1705
      %v1707 = vpop.f32.mrb[0].mxu0
      %1708 = vmatprep.mubr.bf16.mxu0 0
      %1709 = vmatmul.mubr.bf16.gmra.mrb[0].mxu0 %v1648
      %v1710 = vpop.f32.mrb[0].mxu0
      %v1711 = vadd.f32 %v1517, %v1710
      %v1712 = vpop.f32.mrb[0].mxu0
      %v1713 = vpop.f32.mrb[0].mxu0
      %v1714 = vadd.f32 %v1518, %v1713
      %v1715 = vpop.f32.mrb[0].mxu0
      %1716 = vmatprep.mubr.bf16.mxu0 0
      %1717 = vmatmul.mubr.bf16.gmra.mrb[0].mxu0 %v1651
      %v1718 = vpop.f32.mrb[0].mxu0
      %v1719 = vadd.f32 %v1519, %v1718
      %v1720 = vpop.f32.mrb[0].mxu0
      %v1721 = vpop.f32.mrb[0].mxu0
      %v1722 = vadd.f32 %v1520, %v1721
      %v1723 = vpop.f32.mrb[0].mxu0
      %1724 = vmatprep.mubr.bf16.mxu0 0
      %1725 = vmatmul.mubr.bf16.gmra.mrb[0].mxu0 %v1654
      %v1726 = vpop.f32.mrb[0].mxu0
      %v1727 = vadd.f32 %v1521, %v1726
      %v1728 = vpop.f32.mrb[0].mxu0
      %v1729 = vpop.f32.mrb[0].mxu0
      %v1730 = vadd.f32 %v1522, %v1729
      %v1731 = vpop.f32.mrb[0].mxu0
      %1732 = vdwg.mxu0
      %v1733 = vsel %vm1152, %v1598, -inf
      %1734 = vmax.xlane.f32.xlu0 %v1733
      %v1735 = vpop.xlane.xlu0 %1734
      %v1736 = vsel %vm1152, %v1601, -inf
      %1737 = vmax.xlane.f32.xlu0 %v1736
      %v1738 = vpop.xlane.xlu0 %1737
      %v1739 = vsel %vm1152, %v1606, -inf
      %1740 = vmax.xlane.f32.xlu0 %v1739
      %v1741 = vpop.xlane.xlu0 %1740
      %v1742 = vsel %vm1152, %v1609, -inf
      %1743 = vmax.xlane.f32.xlu0 %v1742
      %v1744 = vpop.xlane.xlu0 %1743
      %v1745 = vsel %vm1152, %v1614, -inf
      %1746 = vmax.xlane.f32.xlu0 %v1745
      %v1747 = vpop.xlane.xlu0 %1746
      %v1748 = vsel %vm1152, %v1617, -inf
      %1749 = vmax.xlane.f32.xlu0 %v1748
      %v1750 = vpop.xlane.xlu0 %1749
      %v1751 = vsel %vm1152, %v1622, -inf
      %1752 = vmax.xlane.f32.xlu0 %v1751
      %v1753 = vpop.xlane.xlu0 %1752
      %v1754 = vsel %vm1152, %v1625, -inf
      %1755 = vmax.xlane.f32.xlu0 %v1754
      %v1756 = vpop.xlane.xlu0 %1755
      %v1757 = vsel %vm1152, %v1703, -inf
      %1758 = vmax.xlane.f32.xlu0 %v1757
      %v1759 = vpop.xlane.xlu0 %1758
      %v1760 = vsel %vm1152, %v1706, -inf
      %1761 = vmax.xlane.f32.xlu0 %v1760
      %v1762 = vpop.xlane.xlu0 %1761
      %v1763 = vsel %vm1152, %v1711, -inf
      %1764 = vmax.xlane.f32.xlu0 %v1763
      %v1765 = vpop.xlane.xlu0 %1764
      %v1766 = vsel %vm1152, %v1714, -inf
      %1767 = vmax.xlane.f32.xlu0 %v1766
      %v1768 = vpop.xlane.xlu0 %1767
      %v1769 = vsel %vm1152, %v1719, -inf
      %1770 = vmax.xlane.f32.xlu0 %v1769
      %v1771 = vpop.xlane.xlu0 %1770
      %v1772 = vsel %vm1152, %v1722, -inf
      %1773 = vmax.xlane.f32.xlu0 %v1772
      %v1774 = vpop.xlane.xlu0 %1773
      %v1775 = vsel %vm1152, %v1727, -inf
      %1776 = vmax.xlane.f32.xlu0 %v1775
      %v1777 = vpop.xlane.xlu0 %1776
      %v1778 = vsel %vm1152, %v1730, -inf
      %1779 = vmax.xlane.f32.xlu0 %v1778
      %v1780 = vpop.xlane.xlu0 %1779
      %v1781 = vsub.f32 %v1598, %v1735
      %v1782 = vsub.f32 %v1601, %v1738
      %v1783 = vsub.f32 %v1606, %v1741
      %v1784 = vsub.f32 %v1609, %v1744
      %v1785 = vsub.f32 %v1614, %v1747
      %v1786 = vsub.f32 %v1617, %v1750
      %v1787 = vsub.f32 %v1622, %v1753
      %v1788 = vsub.f32 %v1625, %v1756
      %v1789 = vsub.f32 %v1703, %v1759
      %v1790 = vsub.f32 %v1706, %v1762
      %v1791 = vsub.f32 %v1711, %v1765
      %v1792 = vsub.f32 %v1714, %v1768
      %v1793 = vsub.f32 %v1719, %v1771
      %v1794 = vsub.f32 %v1722, %v1774
      %v1795 = vsub.f32 %v1727, %v1777
      %v1796 = vsub.f32 %v1730, %v1780
      %v1797 = vmul.f32 %v1781, 1.442695
      %v1798 = vpow.pop %v1797
      %v1799 = vmul.f32 %v1782, 1.442695
      %v1800 = vpow.pop %v1799
      %v1801 = vmul.f32 %v1783, 1.442695
      %v1802 = vpow.pop %v1801
      %v1803 = vmul.f32 %v1784, 1.442695
      %v1804 = vpow.pop %v1803
      %v1805 = vmul.f32 %v1785, 1.442695
      %v1806 = vpow.pop %v1805
      %v1807 = vmul.f32 %v1786, 1.442695
      %v1808 = vpow.pop %v1807
      %v1809 = vmul.f32 %v1787, 1.442695
      %v1810 = vpow.pop %v1809
      %v1811 = vmul.f32 %v1788, 1.442695
      %v1812 = vpow.pop %v1811
      %v1813 = vmul.f32 %v1789, 1.442695
      %v1814 = vpow.pop %v1813
      %v1815 = vmul.f32 %v1790, 1.442695
      %v1816 = vpow.pop %v1815
      %v1817 = vmul.f32 %v1791, 1.442695
      %v1818 = vpow.pop %v1817
      %v1819 = vmul.f32 %v1792, 1.442695
      %v1820 = vpow.pop %v1819
      %v1821 = vmul.f32 %v1793, 1.442695
      %v1822 = vpow.pop %v1821
      %v1823 = vmul.f32 %v1794, 1.442695
      %v1824 = vpow.pop %v1823
      %v1825 = vmul.f32 %v1795, 1.442695
      %v1826 = vpow.pop %v1825
      %v1827 = vmul.f32 %v1796, 1.442695
      %v1828 = vpow.pop %v1827
      %v1829 = vsel %vm1152, %v1798, 0.0
      %1830 = vadd.xlane.f32.xlu0 %v1829
      %v1831 = vpop.xlane.xlu0 %1830
      %v1832 = vsel %vm1152, %v1800, 0.0
      %1833 = vadd.xlane.f32.xlu0 %v1832
      %v1834 = vpop.xlane.xlu0 %1833
      %v1835 = vsel %vm1152, %v1802, 0.0
      %1836 = vadd.xlane.f32.xlu0 %v1835
      %v1837 = vpop.xlane.xlu0 %1836
      %v1838 = vsel %vm1152, %v1804, 0.0
      %1839 = vadd.xlane.f32.xlu0 %v1838
      %v1840 = vpop.xlane.xlu0 %1839
      %v1841 = vsel %vm1152, %v1806, 0.0
      %1842 = vadd.xlane.f32.xlu0 %v1841
      %v1843 = vpop.xlane.xlu0 %1842
      %v1844 = vsel %vm1152, %v1808, 0.0
      %1845 = vadd.xlane.f32.xlu0 %v1844
      %v1846 = vpop.xlane.xlu0 %1845
      %v1847 = vsel %vm1152, %v1810, 0.0
      %1848 = vadd.xlane.f32.xlu0 %v1847
      %v1849 = vpop.xlane.xlu0 %1848
      %v1850 = vsel %vm1152, %v1812, 0.0
      %1851 = vadd.xlane.f32.xlu0 %v1850
      %v1852 = vpop.xlane.xlu0 %1851
      %v1853 = vsel %vm1152, %v1814, 0.0
      %1854 = vadd.xlane.f32.xlu0 %v1853
      %v1855 = vpop.xlane.xlu0 %1854
      %v1856 = vsel %vm1152, %v1816, 0.0
      %1857 = vadd.xlane.f32.xlu0 %v1856
      %v1858 = vpop.xlane.xlu0 %1857
      %v1859 = vsel %vm1152, %v1818, 0.0
      %1860 = vadd.xlane.f32.xlu0 %v1859
      %v1861 = vpop.xlane.xlu0 %1860
      %v1862 = vsel %vm1152, %v1820, 0.0
      %1863 = vadd.xlane.f32.xlu0 %v1862
      %v1864 = vpop.xlane.xlu0 %1863
      %v1865 = vsel %vm1152, %v1822, 0.0
      %1866 = vadd.xlane.f32.xlu0 %v1865
      %v1867 = vpop.xlane.xlu0 %1866
      %v1868 = vsel %vm1152, %v1824, 0.0
      %1869 = vadd.xlane.f32.xlu0 %v1868
      %v1870 = vpop.xlane.xlu0 %1869
      %v1871 = vsel %vm1152, %v1826, 0.0
      %1872 = vadd.xlane.f32.xlu0 %v1871
      %v1873 = vpop.xlane.xlu0 %1872
      %v1874 = vsel %vm1152, %v1828, 0.0
      %1875 = vadd.xlane.f32.xlu0 %v1874
      %v1876 = vpop.xlane.xlu0 %1875
      %v1877 = vrcp.pop %v1831
      %v1878 = vrcp.pop %v1834
      %v1879 = vrcp.pop %v1837
      %v1880 = vrcp.pop %v1840
      %v1881 = vrcp.pop %v1843
      %v1882 = vrcp.pop %v1846
      %v1883 = vrcp.pop %v1849
      %v1884 = vrcp.pop %v1852
      %v1885 = vrcp.pop %v1855
      %v1886 = vrcp.pop %v1858
      %v1887 = vrcp.pop %v1861
      %v1888 = vrcp.pop %v1864
      %v1889 = vrcp.pop %v1867
      %v1890 = vrcp.pop %v1870
      %v1891 = vrcp.pop %v1873
      %v1892 = vrcp.pop %v1876
      %v1893 = vmul.f32 %v1798, %v1877
      %v1894 = vmul.f32 %v1800, %v1878
      %v1895 = vmul.f32 %v1802, %v1879
      %v1896 = vmul.f32 %v1804, %v1880
      %v1897 = vmul.f32 %v1806, %v1881
      %v1898 = vmul.f32 %v1808, %v1882
      %v1899 = vmul.f32 %v1810, %v1883
      %v1900 = vmul.f32 %v1812, %v1884
      %v1901 = vmul.f32 %v1814, %v1885
      %v1902 = vmul.f32 %v1816, %v1886
      %v1903 = vmul.f32 %v1818, %v1887
      %v1904 = vmul.f32 %v1820, %v1888
      %v1905 = vmul.f32 %v1822, %v1889
      %v1906 = vmul.f32 %v1824, %v1890
      %v1907 = vmul.f32 %v1826, %v1891
      %v1908 = vmul.f32 %v1828, %v1892
      %v1909 = vpack.c.bf16 %v1894, %v1893
      %v1910 = vpack.c.bf16 %v1896, %v1895
      %v1911 = vpack.c.bf16 %v1898, %v1897
      %v1912 = vpack.c.bf16 %v1900, %v1899
      %v1913 = vpack.c.bf16 %v1902, %v1901
      %v1914 = vpack.c.bf16 %v1904, %v1903
      %v1915 = vpack.c.bf16 %v1906, %v1905
      %v1916 = vpack.c.bf16 %v1908, %v1907
      %1917 = vrot.lane.b32.xlu0 %v901, 56
      %v1918 = vpop.permute.xlu0 %1917
      %1919 = vrot.lane.b32.xlu0 %v902, 56
      %v1920 = vpop.permute.xlu0 %1919
      %1921 = vrot.lane.b32.xlu0 %v903, 56
      %v1922 = vpop.permute.xlu0 %1921
      %1923 = vrot.lane.b32.xlu0 %v904, 56
      %v1924 = vpop.permute.xlu0 %1923
      %v1930 = vsel %vm1152, %v1909, 0
      %v1933 = vsel %vm1152, %v1910, 0
      %v1936 = vsel %vm1152, %v1911, 0
      %v1939 = vsel %vm1152, %v1912, 0
      %1941 = vmatprep.subr.bf16.mxu0 0
      %1942 = vmatpush1.bf16.msra.mxu0 %v1918
      %1943 = vmatprep.subr.bf16.mxu0 0
      %1944 = vmatpush1.bf16.msra.mxu0 %v1920
      %1945 = vmatprep.subr.bf16.mxu0 0
      %1946 = vmatpush1.bf16.msra.mxu0 %v1922
      %1947 = vmatprep.subr.bf16.mxu0 0
      %1948 = vmatpush1.bf16.msra.mxu0 %v1924
      %1949 = vmatprep.subr.bf16.mxu0 0
      %1950 = vmatpush1.bf16.msra.mxu0 0
      %1951 = vmatprep.subr.bf16.mxu0 0
      %1952 = vmatpush1.bf16.msra.mxu0 0
      %1953 = vmatprep.subr.bf16.mxu0 0
      %1954 = vmatpush1.bf16.msra.mxu0 0
      %1955 = vmatprep.subr.bf16.mxu0 0
      %1956 = vmatpush1.bf16.msra.mxu0 0
      %1957 = vmatprep.subr.bf16.mxu0 0
      %1958 = vmatpush1.bf16.msra.mxu0 0
      %1959 = vmatprep.subr.bf16.mxu0 0
      %1960 = vmatpush1.bf16.msra.mxu0 0
      %1961 = vmatprep.subr.bf16.mxu0 0
      %1962 = vmatpush1.bf16.msra.mxu0 0
      %1963 = vmatprep.subr.bf16.mxu0 0
      %1964 = vmatpush1.bf16.msra.mxu0 0
      %1965 = vmatprep.subr.bf16.mxu0 0
      %1966 = vmatpush1.bf16.msra.mxu0 0
      %1967 = vmatprep.subr.bf16.mxu0 0
      %1968 = vmatpush1.bf16.msra.mxu0 0
      %1969 = vmatprep.subr.bf16.mxu0 0
      %1970 = vmatpush1.bf16.msra.mxu0 0
      %1971 = vmatprep.subr.bf16.mxu0 0
      %1972 = vmatpush1.bf16.msra.mxu0 0
      %1973 = vmatprep.mubr.bf16.mxu0 0
      %1974 = vmatmul.mubr.bf16.gmra.mrb[0].mxu0 %v1930
      %v1975 = vpop.f32.mrb[0].mxu0
      %v1976 = vadd.f32 0.0, %v1975
      %v1977 = vpop.f32.mrb[0].mxu0
      %v1978 = vpop.f32.mrb[0].mxu0
      %v1979 = vadd.f32 0.0, %v1978
      %v1980 = vpop.f32.mrb[0].mxu0
      %1981 = vmatprep.mubr.bf16.mxu0 0
      %1982 = vmatmul.mubr.bf16.gmra.mrb[0].mxu0 %v1933
      %v1983 = vpop.f32.mrb[0].mxu0
      %v1984 = vadd.f32 0.0, %v1983
      %v1985 = vpop.f32.mrb[0].mxu0
      %v1986 = vpop.f32.mrb[0].mxu0
      %v1987 = vadd.f32 0.0, %v1986
      %v1988 = vpop.f32.mrb[0].mxu0
      %1989 = vmatprep.mubr.bf16.mxu0 0
      %1990 = vmatmul.mubr.bf16.gmra.mrb[0].mxu0 %v1936
      %v1991 = vpop.f32.mrb[0].mxu0
      %v1992 = vadd.f32 0.0, %v1991
      %v1993 = vpop.f32.mrb[0].mxu0
      %v1994 = vpop.f32.mrb[0].mxu0
      %v1995 = vadd.f32 0.0, %v1994
      %v1996 = vpop.f32.mrb[0].mxu0
      %1997 = vmatprep.mubr.bf16.mxu0 0
      %1998 = vmatmul.mubr.bf16.gmra.mrb[0].mxu0 %v1939
      %v1999 = vpop.f32.mrb[0].mxu0
      %v2000 = vadd.f32 0.0, %v1999
      %v2001 = vpop.f32.mrb[0].mxu0
      %v2002 = vpop.f32.mrb[0].mxu0
      %v2003 = vadd.f32 0.0, %v2002
      %v2004 = vpop.f32.mrb[0].mxu0
      %2005 = vdwg.mxu0
      %2006 = vrot.lane.b32.xlu0 %v905, 56
      %v2007 = vpop.permute.xlu0 %2006
      %2008 = vrot.lane.b32.xlu0 %v906, 56
      %v2009 = vpop.permute.xlu0 %2008
      %2010 = vrot.lane.b32.xlu0 %v907, 56
      %v2011 = vpop.permute.xlu0 %2010
      %2012 = vrot.lane.b32.xlu0 %v908, 56
      %v2013 = vpop.permute.xlu0 %2012
      %v2019 = vsel %vm1152, %v1913, 0
      %v2022 = vsel %vm1152, %v1914, 0
      %v2025 = vsel %vm1152, %v1915, 0
      %v2028 = vsel %vm1152, %v1916, 0
      %2030 = vmatprep.subr.bf16.mxu0 0
      %2031 = vmatpush1.bf16.msra.mxu0 %v2007
      %2032 = vmatprep.subr.bf16.mxu0 0
      %2033 = vmatpush1.bf16.msra.mxu0 %v2009
      %2034 = vmatprep.subr.bf16.mxu0 0
      %2035 = vmatpush1.bf16.msra.mxu0 %v2011
      %2036 = vmatprep.subr.bf16.mxu0 0
      %2037 = vmatpush1.bf16.msra.mxu0 %v2013
      %2038 = vmatprep.subr.bf16.mxu0 0
      %2039 = vmatpush1.bf16.msra.mxu0 0
      %2040 = vmatprep.subr.bf16.mxu0 0
      %2041 = vmatpush1.bf16.msra.mxu0 0
      %2042 = vmatprep.subr.bf16.mxu0 0
      %2043 = vmatpush1.bf16.msra.mxu0 0
      %2044 = vmatprep.subr.bf16.mxu0 0
      %2045 = vmatpush1.bf16.msra.mxu0 0
      %2046 = vmatprep.subr.bf16.mxu0 0
      %2047 = vmatpush1.bf16.msra.mxu0 0
      %2048 = vmatprep.subr.bf16.mxu0 0
      %2049 = vmatpush1.bf16.msra.mxu0 0
      %2050 = vmatprep.subr.bf16.mxu0 0
      %2051 = vmatpush1.bf16.msra.mxu0 0
      %2052 = vmatprep.subr.bf16.mxu0 0
      %2053 = vmatpush1.bf16.msra.mxu0 0
      %2054 = vmatprep.subr.bf16.mxu0 0
      %2055 = vmatpush1.bf16.msra.mxu0 0
      %2056 = vmatprep.subr.bf16.mxu0 0
      %2057 = vmatpush1.bf16.msra.mxu0 0
      %2058 = vmatprep.subr.bf16.mxu0 0
      %2059 = vmatpush1.bf16.msra.mxu0 0
      %2060 = vmatprep.subr.bf16.mxu0 0
      %2061 = vmatpush1.bf16.msra.mxu0 0
      %2062 = vmatprep.mubr.bf16.mxu0 0
      %2063 = vmatmul.mubr.bf16.gmra.mrb[0].mxu0 %v2019
      %v2064 = vpop.f32.mrb[0].mxu0
      %v2065 = vadd.f32 0.0, %v2064
      %v2066 = vpop.f32.mrb[0].mxu0
      %v2067 = vpop.f32.mrb[0].mxu0
      %v2068 = vadd.f32 0.0, %v2067
      %v2069 = vpop.f32.mrb[0].mxu0
      %2070 = vmatprep.mubr.bf16.mxu0 0
      %2071 = vmatmul.mubr.bf16.gmra.mrb[0].mxu0 %v2022
      %v2072 = vpop.f32.mrb[0].mxu0
      %v2073 = vadd.f32 0.0, %v2072
      %v2074 = vpop.f32.mrb[0].mxu0
      %v2075 = vpop.f32.mrb[0].mxu0
      %v2076 = vadd.f32 0.0, %v2075
      %v2077 = vpop.f32.mrb[0].mxu0
      %2078 = vmatprep.mubr.bf16.mxu0 0
      %2079 = vmatmul.mubr.bf16.gmra.mrb[0].mxu0 %v2025
      %v2080 = vpop.f32.mrb[0].mxu0
      %v2081 = vadd.f32 0.0, %v2080
      %v2082 = vpop.f32.mrb[0].mxu0
      %v2083 = vpop.f32.mrb[0].mxu0
      %v2084 = vadd.f32 0.0, %v2083
      %v2085 = vpop.f32.mrb[0].mxu0
      %2086 = vmatprep.mubr.bf16.mxu0 0
      %2087 = vmatmul.mubr.bf16.gmra.mrb[0].mxu0 %v2028
      %v2088 = vpop.f32.mrb[0].mxu0
      %v2089 = vadd.f32 0.0, %v2088
      %v2090 = vpop.f32.mrb[0].mxu0
      %v2091 = vpop.f32.mrb[0].mxu0
      %v2092 = vadd.f32 0.0, %v2091
      %v2093 = vpop.f32.mrb[0].mxu0
      %2094 = vdwg.mxu0
      %v2095 = vunpack.c.l.bf16 %v925
      %v2096 = vunpack.c.l.bf16 %v926
      %v2097 = vunpack.c.l.bf16 %v927
      %v2098 = vunpack.c.l.bf16 %v928
      %v2099 = vunpack.c.l.bf16 %v929
      %v2100 = vunpack.c.l.bf16 %v930
      %v2101 = vunpack.c.l.bf16 %v931
      %v2102 = vunpack.c.l.bf16 %v932
      %2103 = vrot.lane.b32.xlu0 %v901, 112
      %v2104 = vpop.permute.xlu0 %2103
      %2105 = vrot.lane.b32.xlu0 %v902, 112
      %v2106 = vpop.permute.xlu0 %2105
      %2107 = vrot.lane.b32.xlu0 %v903, 112
      %v2108 = vpop.permute.xlu0 %2107
      %2109 = vrot.lane.b32.xlu0 %v904, 112
      %v2110 = vpop.permute.xlu0 %2109
      %2111 = vrot.lane.b32.xlu0 %v901, 80
      %v2112 = vpop.permute.xlu0 %2111
      %2113 = vrot.lane.b32.xlu0 %v902, 80
      %v2114 = vpop.permute.xlu0 %2113
      %2115 = vrot.lane.b32.xlu0 %v903, 80
      %v2116 = vpop.permute.xlu0 %2115
      %2117 = vrot.lane.b32.xlu0 %v904, 80
      %v2118 = vpop.permute.xlu0 %2117
      %v2120 = vsel %vm961, %v2104, 0
      %v2123 = vsel %vm961, %v2106, 0
      %v2126 = vsel %vm961, %v2108, 0
      %v2129 = vsel %vm961, %v2110, 0
      %v2132 = vsel %vm961, %v2112, 0
      %v2135 = vsel %vm961, %v2114, 0
      %v2138 = vsel %vm961, %v2116, 0
      %v2141 = vsel %vm961, %v2118, 0
      %2143 = vmatprep.subr.bf16.mxu0 0
      %2144 = vmatpush1.bf16.xpose.msra.mxu0 %v2132
      %2145 = vmatprep.subr.bf16.mxu0 0
      %2146 = vmatpush1.bf16.xpose.msra.mxu0 %v2135
      %2147 = vmatprep.subr.bf16.mxu0 0
      %2148 = vmatpush1.bf16.xpose.msra.mxu0 %v2138
      %2149 = vmatprep.subr.bf16.mxu0 0
      %2150 = vmatpush1.bf16.xpose.msra.mxu0 %v2141
      %2151 = vmatprep.subr.bf16.mxu0 0
      %2152 = vmatpush1.bf16.xpose.msra.mxu0 0
      %2153 = vmatprep.subr.bf16.mxu0 0
      %2154 = vmatpush1.bf16.xpose.msra.mxu0 0
      %2155 = vmatprep.subr.bf16.mxu0 0
      %2156 = vmatpush1.bf16.xpose.msra.mxu0 0
      %2157 = vmatprep.subr.bf16.mxu0 0
      %2158 = vmatpush1.bf16.xpose.msra.mxu0 0
      %2159 = vmatprep.subr.bf16.mxu0 0
      %2160 = vmatpush1.bf16.xpose.msra.mxu0 0
      %2161 = vmatprep.subr.bf16.mxu0 0
      %2162 = vmatpush1.bf16.xpose.msra.mxu0 0
      %2163 = vmatprep.subr.bf16.mxu0 0
      %2164 = vmatpush1.bf16.xpose.msra.mxu0 0
      %2165 = vmatprep.subr.bf16.mxu0 0
      %2166 = vmatpush1.bf16.xpose.msra.mxu0 0
      %2167 = vmatprep.subr.bf16.mxu0 0
      %2168 = vmatpush1.bf16.xpose.msra.mxu0 0
      %2169 = vmatprep.subr.bf16.mxu0 0
      %2170 = vmatpush1.bf16.xpose.msra.mxu0 0
      %2171 = vmatprep.subr.bf16.mxu0 0
      %2172 = vmatpush1.bf16.xpose.msra.mxu0 0
      %2173 = vmatprep.subr.bf16.mxu0 0
      %2174 = vmatpush1.bf16.xpose.msra.mxu0 0
      %2175 = vmatprep.mubr.bf16.mxu0 0
      %2176 = vmatmul.mubr.bf16.gmra.mrb[0].mxu0 %v2120
      %v2177 = vpop.f32.mrb[0].mxu0
      %v2178 = vadd.f32 %v2095, %v2177
      %v2179 = vpop.f32.mrb[0].mxu0
      %v2180 = vpop.f32.mrb[0].mxu0
      %v2181 = vadd.f32 %v2096, %v2180
      %v2182 = vpop.f32.mrb[0].mxu0
      %2183 = vmatprep.mubr.bf16.mxu0 0
      %2184 = vmatmul.mubr.bf16.gmra.mrb[0].mxu0 %v2123
      %v2185 = vpop.f32.mrb[0].mxu0
      %v2186 = vadd.f32 %v2097, %v2185
      %v2187 = vpop.f32.mrb[0].mxu0
      %v2188 = vpop.f32.mrb[0].mxu0
      %v2189 = vadd.f32 %v2098, %v2188
      %v2190 = vpop.f32.mrb[0].mxu0
      %2191 = vmatprep.mubr.bf16.mxu0 0
      %2192 = vmatmul.mubr.bf16.gmra.mrb[0].mxu0 %v2126
      %v2193 = vpop.f32.mrb[0].mxu0
      %v2194 = vadd.f32 %v2099, %v2193
      %v2195 = vpop.f32.mrb[0].mxu0
      %v2196 = vpop.f32.mrb[0].mxu0
      %v2197 = vadd.f32 %v2100, %v2196
      %v2198 = vpop.f32.mrb[0].mxu0
      %2199 = vmatprep.mubr.bf16.mxu0 0
      %2200 = vmatmul.mubr.bf16.gmra.mrb[0].mxu0 %v2129
      %v2201 = vpop.f32.mrb[0].mxu0
      %v2202 = vadd.f32 %v2101, %v2201
      %v2203 = vpop.f32.mrb[0].mxu0
      %v2204 = vpop.f32.mrb[0].mxu0
      %v2205 = vadd.f32 %v2102, %v2204
      %v2206 = vpop.f32.mrb[0].mxu0
      %2207 = vdwg.mxu0
      %2208 = vrot.lane.b32.xlu0 %v905, 112
      %v2209 = vpop.permute.xlu0 %2208
      %2210 = vrot.lane.b32.xlu0 %v906, 112
      %v2211 = vpop.permute.xlu0 %2210
      %2212 = vrot.lane.b32.xlu0 %v907, 112
      %v2213 = vpop.permute.xlu0 %2212
      %2214 = vrot.lane.b32.xlu0 %v908, 112
      %v2215 = vpop.permute.xlu0 %2214
      %2216 = vrot.lane.b32.xlu0 %v905, 80
      %v2217 = vpop.permute.xlu0 %2216
      %2218 = vrot.lane.b32.xlu0 %v906, 80
      %v2219 = vpop.permute.xlu0 %2218
      %2220 = vrot.lane.b32.xlu0 %v907, 80
      %v2221 = vpop.permute.xlu0 %2220
      %2222 = vrot.lane.b32.xlu0 %v908, 80
      %v2223 = vpop.permute.xlu0 %2222
      %v2225 = vsel %vm961, %v2209, 0
      %v2228 = vsel %vm961, %v2211, 0
      %v2231 = vsel %vm961, %v2213, 0
      %v2234 = vsel %vm961, %v2215, 0
      %v2237 = vsel %vm961, %v2217, 0
      %v2240 = vsel %vm961, %v2219, 0
      %v2243 = vsel %vm961, %v2221, 0
      %v2246 = vsel %vm961, %v2223, 0
      %2248 = vmatprep.subr.bf16.mxu0 0
      %2249 = vmatpush1.bf16.xpose.msra.mxu0 %v2237
      %2250 = vmatprep.subr.bf16.mxu0 0
      %2251 = vmatpush1.bf16.xpose.msra.mxu0 %v2240
      %2252 = vmatprep.subr.bf16.mxu0 0
      %2253 = vmatpush1.bf16.xpose.msra.mxu0 %v2243
      %2254 = vmatprep.subr.bf16.mxu0 0
      %2255 = vmatpush1.bf16.xpose.msra.mxu0 %v2246
      %2256 = vmatprep.subr.bf16.mxu0 0
      %2257 = vmatpush1.bf16.xpose.msra.mxu0 0
      %2258 = vmatprep.subr.bf16.mxu0 0
      %2259 = vmatpush1.bf16.xpose.msra.mxu0 0
      %2260 = vmatprep.subr.bf16.mxu0 0
      %2261 = vmatpush1.bf16.xpose.msra.mxu0 0
      %2262 = vmatprep.subr.bf16.mxu0 0
      %2263 = vmatpush1.bf16.xpose.msra.mxu0 0
      %2264 = vmatprep.subr.bf16.mxu0 0
      %2265 = vmatpush1.bf16.xpose.msra.mxu0 0
      %2266 = vmatprep.subr.bf16.mxu0 0
      %2267 = vmatpush1.bf16.xpose.msra.mxu0 0
      %2268 = vmatprep.subr.bf16.mxu0 0
      %2269 = vmatpush1.bf16.xpose.msra.mxu0 0
      %2270 = vmatprep.subr.bf16.mxu0 0
      %2271 = vmatpush1.bf16.xpose.msra.mxu0 0
      %2272 = vmatprep.subr.bf16.mxu0 0
      %2273 = vmatpush1.bf16.xpose.msra.mxu0 0
      %2274 = vmatprep.subr.bf16.mxu0 0
      %2275 = vmatpush1.bf16.xpose.msra.mxu0 0
      %2276 = vmatprep.subr.bf16.mxu0 0
      %2277 = vmatpush1.bf16.xpose.msra.mxu0 0
      %2278 = vmatprep.subr.bf16.mxu0 0
      %2279 = vmatpush1.bf16.xpose.msra.mxu0 0
      %2280 = vmatprep.mubr.bf16.mxu0 0
      %2281 = vmatmul.mubr.bf16.gmra.mrb[0].mxu0 %v2225
      %v2282 = vpop.f32.mrb[0].mxu0
      %v2283 = vadd.f32 %v2095, %v2282
      %v2284 = vpop.f32.mrb[0].mxu0
      %v2285 = vpop.f32.mrb[0].mxu0
      %v2286 = vadd.f32 %v2096, %v2285
      %v2287 = vpop.f32.mrb[0].mxu0
      %2288 = vmatprep.mubr.bf16.mxu0 0
      %2289 = vmatmul.mubr.bf16.gmra.mrb[0].mxu0 %v2228
      %v2290 = vpop.f32.mrb[0].mxu0
      %v2291 = vadd.f32 %v2097, %v2290
      %v2292 = vpop.f32.mrb[0].mxu0
      %v2293 = vpop.f32.mrb[0].mxu0
      %v2294 = vadd.f32 %v2098, %v2293
      %v2295 = vpop.f32.mrb[0].mxu0
      %2296 = vmatprep.mubr.bf16.mxu0 0
      %2297 = vmatmul.mubr.bf16.gmra.mrb[0].mxu0 %v2231
      %v2298 = vpop.f32.mrb[0].mxu0
      %v2299 = vadd.f32 %v2099, %v2298
      %v2300 = vpop.f32.mrb[0].mxu0
      %v2301 = vpop.f32.mrb[0].mxu0
      %v2302 = vadd.f32 %v2100, %v2301
      %v2303 = vpop.f32.mrb[0].mxu0
      %2304 = vmatprep.mubr.bf16.mxu0 0
      %2305 = vmatmul.mubr.bf16.gmra.mrb[0].mxu0 %v2234
      %v2306 = vpop.f32.mrb[0].mxu0
      %v2307 = vadd.f32 %v2101, %v2306
      %v2308 = vpop.f32.mrb[0].mxu0
      %v2309 = vpop.f32.mrb[0].mxu0
      %v2310 = vadd.f32 %v2102, %v2309
      %v2311 = vpop.f32.mrb[0].mxu0
      %2312 = vdwg.mxu0
      %v2313 = vsel %vm1152, %v2178, -inf
      %2314 = vmax.xlane.f32.xlu0 %v2313
      %v2315 = vpop.xlane.xlu0 %2314
      %v2316 = vsel %vm1152, %v2181, -inf
      %2317 = vmax.xlane.f32.xlu0 %v2316
      %v2318 = vpop.xlane.xlu0 %2317
      %v2319 = vsel %vm1152, %v2186, -inf
      %2320 = vmax.xlane.f32.xlu0 %v2319
      %v2321 = vpop.xlane.xlu0 %2320
      %v2322 = vsel %vm1152, %v2189, -inf
      %2323 = vmax.xlane.f32.xlu0 %v2322
      %v2324 = vpop.xlane.xlu0 %2323
      %v2325 = vsel %vm1152, %v2194, -inf
      %2326 = vmax.xlane.f32.xlu0 %v2325
      %v2327 = vpop.xlane.xlu0 %2326
      %v2328 = vsel %vm1152, %v2197, -inf
      %2329 = vmax.xlane.f32.xlu0 %v2328
      %v2330 = vpop.xlane.xlu0 %2329
      %v2331 = vsel %vm1152, %v2202, -inf
      %2332 = vmax.xlane.f32.xlu0 %v2331
      %v2333 = vpop.xlane.xlu0 %2332
      %v2334 = vsel %vm1152, %v2205, -inf
      %2335 = vmax.xlane.f32.xlu0 %v2334
      %v2336 = vpop.xlane.xlu0 %2335
      %v2337 = vsel %vm1152, %v2283, -inf
      %2338 = vmax.xlane.f32.xlu0 %v2337
      %v2339 = vpop.xlane.xlu0 %2338
      %v2340 = vsel %vm1152, %v2286, -inf
      %2341 = vmax.xlane.f32.xlu0 %v2340
      %v2342 = vpop.xlane.xlu0 %2341
      %v2343 = vsel %vm1152, %v2291, -inf
      %2344 = vmax.xlane.f32.xlu0 %v2343
      %v2345 = vpop.xlane.xlu0 %2344
      %v2346 = vsel %vm1152, %v2294, -inf
      %2347 = vmax.xlane.f32.xlu0 %v2346
      %v2348 = vpop.xlane.xlu0 %2347
      %v2349 = vsel %vm1152, %v2299, -inf
      %2350 = vmax.xlane.f32.xlu0 %v2349
      %v2351 = vpop.xlane.xlu0 %2350
      %v2352 = vsel %vm1152, %v2302, -inf
      %2353 = vmax.xlane.f32.xlu0 %v2352
      %v2354 = vpop.xlane.xlu0 %2353
      %v2355 = vsel %vm1152, %v2307, -inf
      %2356 = vmax.xlane.f32.xlu0 %v2355
      %v2357 = vpop.xlane.xlu0 %2356
      %v2358 = vsel %vm1152, %v2310, -inf
      %2359 = vmax.xlane.f32.xlu0 %v2358
      %v2360 = vpop.xlane.xlu0 %2359
      %v2361 = vsub.f32 %v2178, %v2315
      %v2362 = vsub.f32 %v2181, %v2318
      %v2363 = vsub.f32 %v2186, %v2321
      %v2364 = vsub.f32 %v2189, %v2324
      %v2365 = vsub.f32 %v2194, %v2327
      %v2366 = vsub.f32 %v2197, %v2330
      %v2367 = vsub.f32 %v2202, %v2333
      %v2368 = vsub.f32 %v2205, %v2336
      %v2369 = vsub.f32 %v2283, %v2339
      %v2370 = vsub.f32 %v2286, %v2342
      %v2371 = vsub.f32 %v2291, %v2345
      %v2372 = vsub.f32 %v2294, %v2348
      %v2373 = vsub.f32 %v2299, %v2351
      %v2374 = vsub.f32 %v2302, %v2354
      %v2375 = vsub.f32 %v2307, %v2357
      %v2376 = vsub.f32 %v2310, %v2360
      %v2377 = vmul.f32 %v2361, 1.442695
      %v2378 = vpow.pop %v2377
      %v2379 = vmul.f32 %v2362, 1.442695
      %v2380 = vpow.pop %v2379
      %v2381 = vmul.f32 %v2363, 1.442695
      %v2382 = vpow.pop %v2381
      %v2383 = vmul.f32 %v2364, 1.442695
      %v2384 = vpow.pop %v2383
      %v2385 = vmul.f32 %v2365, 1.442695
      %v2386 = vpow.pop %v2385
      %v2387 = vmul.f32 %v2366, 1.442695
      %v2388 = vpow.pop %v2387
      %v2389 = vmul.f32 %v2367, 1.442695
      %v2390 = vpow.pop %v2389
      %v2391 = vmul.f32 %v2368, 1.442695
      %v2392 = vpow.pop %v2391
      %v2393 = vmul.f32 %v2369, 1.442695
      %v2394 = vpow.pop %v2393
      %v2395 = vmul.f32 %v2370, 1.442695
      %v2396 = vpow.pop %v2395
      %v2397 = vmul.f32 %v2371, 1.442695
      %v2398 = vpow.pop %v2397
      %v2399 = vmul.f32 %v2372, 1.442695
      %v2400 = vpow.pop %v2399
      %v2401 = vmul.f32 %v2373, 1.442695
      %v2402 = vpow.pop %v2401
      %v2403 = vmul.f32 %v2374, 1.442695
      %v2404 = vpow.pop %v2403
      %v2405 = vmul.f32 %v2375, 1.442695
      %v2406 = vpow.pop %v2405
      %v2407 = vmul.f32 %v2376, 1.442695
      %v2408 = vpow.pop %v2407
      %v2409 = vsel %vm1152, %v2378, 0.0
      %2410 = vadd.xlane.f32.xlu0 %v2409
      %v2411 = vpop.xlane.xlu0 %2410
      %v2412 = vsel %vm1152, %v2380, 0.0
      %2413 = vadd.xlane.f32.xlu0 %v2412
      %v2414 = vpop.xlane.xlu0 %2413
      %v2415 = vsel %vm1152, %v2382, 0.0
      %2416 = vadd.xlane.f32.xlu0 %v2415
      %v2417 = vpop.xlane.xlu0 %2416
      %v2418 = vsel %vm1152, %v2384, 0.0
      %2419 = vadd.xlane.f32.xlu0 %v2418
      %v2420 = vpop.xlane.xlu0 %2419
      %v2421 = vsel %vm1152, %v2386, 0.0
      %2422 = vadd.xlane.f32.xlu0 %v2421
      %v2423 = vpop.xlane.xlu0 %2422
      %v2424 = vsel %vm1152, %v2388, 0.0
      %2425 = vadd.xlane.f32.xlu0 %v2424
      %v2426 = vpop.xlane.xlu0 %2425
      %v2427 = vsel %vm1152, %v2390, 0.0
      %2428 = vadd.xlane.f32.xlu0 %v2427
      %v2429 = vpop.xlane.xlu0 %2428
      %v2430 = vsel %vm1152, %v2392, 0.0
      %2431 = vadd.xlane.f32.xlu0 %v2430
      %v2432 = vpop.xlane.xlu0 %2431
      %v2433 = vsel %vm1152, %v2394, 0.0
      %2434 = vadd.xlane.f32.xlu0 %v2433
      %v2435 = vpop.xlane.xlu0 %2434
      %v2436 = vsel %vm1152, %v2396, 0.0
      %2437 = vadd.xlane.f32.xlu0 %v2436
      %v2438 = vpop.xlane.xlu0 %2437
      %v2439 = vsel %vm1152, %v2398, 0.0
      %2440 = vadd.xlane.f32.xlu0 %v2439
      %v2441 = vpop.xlane.xlu0 %2440
      %v2442 = vsel %vm1152, %v2400, 0.0
      %2443 = vadd.xlane.f32.xlu0 %v2442
      %v2444 = vpop.xlane.xlu0 %2443
      %v2445 = vsel %vm1152, %v2402, 0.0
      %2446 = vadd.xlane.f32.xlu0 %v2445
      %v2447 = vpop.xlane.xlu0 %2446
      %v2448 = vsel %vm1152, %v2404, 0.0
      %2449 = vadd.xlane.f32.xlu0 %v2448
      %v2450 = vpop.xlane.xlu0 %2449
      %v2451 = vsel %vm1152, %v2406, 0.0
      %2452 = vadd.xlane.f32.xlu0 %v2451
      %v2453 = vpop.xlane.xlu0 %2452
      %v2454 = vsel %vm1152, %v2408, 0.0
      %2455 = vadd.xlane.f32.xlu0 %v2454
      %v2456 = vpop.xlane.xlu0 %2455
      %v2457 = vrcp.pop %v2411
      %v2458 = vrcp.pop %v2414
      %v2459 = vrcp.pop %v2417
      %v2460 = vrcp.pop %v2420
      %v2461 = vrcp.pop %v2423
      %v2462 = vrcp.pop %v2426
      %v2463 = vrcp.pop %v2429
      %v2464 = vrcp.pop %v2432
      %v2465 = vrcp.pop %v2435
      %v2466 = vrcp.pop %v2438
      %v2467 = vrcp.pop %v2441
      %v2468 = vrcp.pop %v2444
      %v2469 = vrcp.pop %v2447
      %v2470 = vrcp.pop %v2450
      %v2471 = vrcp.pop %v2453
      %v2472 = vrcp.pop %v2456
      %v2473 = vmul.f32 %v2378, %v2457
      %v2474 = vmul.f32 %v2380, %v2458
      %v2475 = vmul.f32 %v2382, %v2459
      %v2476 = vmul.f32 %v2384, %v2460
      %v2477 = vmul.f32 %v2386, %v2461
      %v2478 = vmul.f32 %v2388, %v2462
      %v2479 = vmul.f32 %v2390, %v2463
      %v2480 = vmul.f32 %v2392, %v2464
      %v2481 = vmul.f32 %v2394, %v2465
      %v2482 = vmul.f32 %v2396, %v2466
      %v2483 = vmul.f32 %v2398, %v2467
      %v2484 = vmul.f32 %v2400, %v2468
      %v2485 = vmul.f32 %v2402, %v2469
      %v2486 = vmul.f32 %v2404, %v2470
      %v2487 = vmul.f32 %v2406, %v2471
      %v2488 = vmul.f32 %v2408, %v2472
      %v2489 = vpack.c.bf16 %v2474, %v2473
      %v2490 = vpack.c.bf16 %v2476, %v2475
      %v2491 = vpack.c.bf16 %v2478, %v2477
      %v2492 = vpack.c.bf16 %v2480, %v2479
      %v2493 = vpack.c.bf16 %v2482, %v2481
      %v2494 = vpack.c.bf16 %v2484, %v2483
      %v2495 = vpack.c.bf16 %v2486, %v2485
      %v2496 = vpack.c.bf16 %v2488, %v2487
      %2497 = vrot.lane.b32.xlu0 %v901, 48
      %v2498 = vpop.permute.xlu0 %2497
      %2499 = vrot.lane.b32.xlu0 %v902, 48
      %v2500 = vpop.permute.xlu0 %2499
      %2501 = vrot.lane.b32.xlu0 %v903, 48
      %v2502 = vpop.permute.xlu0 %2501
      %2503 = vrot.lane.b32.xlu0 %v904, 48
      %v2504 = vpop.permute.xlu0 %2503
      %v2510 = vsel %vm1152, %v2489, 0
      %v2513 = vsel %vm1152, %v2490, 0
      %v2516 = vsel %vm1152, %v2491, 0
      %v2519 = vsel %vm1152, %v2492, 0
      %2521 = vmatprep.subr.bf16.mxu0 0
      %2522 = vmatpush1.bf16.msra.mxu0 %v2498
      %2523 = vmatprep.subr.bf16.mxu0 0
      %2524 = vmatpush1.bf16.msra.mxu0 %v2500
      %2525 = vmatprep.subr.bf16.mxu0 0
      %2526 = vmatpush1.bf16.msra.mxu0 %v2502
      %2527 = vmatprep.subr.bf16.mxu0 0
      %2528 = vmatpush1.bf16.msra.mxu0 %v2504
      %2529 = vmatprep.subr.bf16.mxu0 0
      %2530 = vmatpush1.bf16.msra.mxu0 0
      %2531 = vmatprep.subr.bf16.mxu0 0
      %2532 = vmatpush1.bf16.msra.mxu0 0
      %2533 = vmatprep.subr.bf16.mxu0 0
      %2534 = vmatpush1.bf16.msra.mxu0 0
      %2535 = vmatprep.subr.bf16.mxu0 0
      %2536 = vmatpush1.bf16.msra.mxu0 0
      %2537 = vmatprep.subr.bf16.mxu0 0
      %2538 = vmatpush1.bf16.msra.mxu0 0
      %2539 = vmatprep.subr.bf16.mxu0 0
      %2540 = vmatpush1.bf16.msra.mxu0 0
      %2541 = vmatprep.subr.bf16.mxu0 0
      %2542 = vmatpush1.bf16.msra.mxu0 0
      %2543 = vmatprep.subr.bf16.mxu0 0
      %2544 = vmatpush1.bf16.msra.mxu0 0
      %2545 = vmatprep.subr.bf16.mxu0 0
      %2546 = vmatpush1.bf16.msra.mxu0 0
      %2547 = vmatprep.subr.bf16.mxu0 0
      %2548 = vmatpush1.bf16.msra.mxu0 0
      %2549 = vmatprep.subr.bf16.mxu0 0
      %2550 = vmatpush1.bf16.msra.mxu0 0
      %2551 = vmatprep.subr.bf16.mxu0 0
      %2552 = vmatpush1.bf16.msra.mxu0 0
      %2553 = vmatprep.mubr.bf16.mxu0 0
      %2554 = vmatmul.mubr.bf16.gmra.mrb[0].mxu0 %v2510
      %v2555 = vpop.f32.mrb[0].mxu0
      %v2556 = vadd.f32 0.0, %v2555
      %v2557 = vpop.f32.mrb[0].mxu0
      %v2558 = vpop.f32.mrb[0].mxu0
      %v2559 = vadd.f32 0.0, %v2558
      %v2560 = vpop.f32.mrb[0].mxu0
      %2561 = vmatprep.mubr.bf16.mxu0 0
      %2562 = vmatmul.mubr.bf16.gmra.mrb[0].mxu0 %v2513
      %v2563 = vpop.f32.mrb[0].mxu0
      %v2564 = vadd.f32 0.0, %v2563
      %v2565 = vpop.f32.mrb[0].mxu0
      %v2566 = vpop.f32.mrb[0].mxu0
      %v2567 = vadd.f32 0.0, %v2566
      %v2568 = vpop.f32.mrb[0].mxu0
      %2569 = vmatprep.mubr.bf16.mxu0 0
      %2570 = vmatmul.mubr.bf16.gmra.mrb[0].mxu0 %v2516
      %v2571 = vpop.f32.mrb[0].mxu0
      %v2572 = vadd.f32 0.0, %v2571
      %v2573 = vpop.f32.mrb[0].mxu0
      %v2574 = vpop.f32.mrb[0].mxu0
      %v2575 = vadd.f32 0.0, %v2574
      %v2576 = vpop.f32.mrb[0].mxu0
      %2577 = vmatprep.mubr.bf16.mxu0 0
      %2578 = vmatmul.mubr.bf16.gmra.mrb[0].mxu0 %v2519
      %v2579 = vpop.f32.mrb[0].mxu0
      %v2580 = vadd.f32 0.0, %v2579
      %v2581 = vpop.f32.mrb[0].mxu0
      %v2582 = vpop.f32.mrb[0].mxu0
      %v2583 = vadd.f32 0.0, %v2582
      %v2584 = vpop.f32.mrb[0].mxu0
      %2585 = vdwg.mxu0
      %2586 = vrot.lane.b32.xlu0 %v905, 48
      %v2587 = vpop.permute.xlu0 %2586
      %2588 = vrot.lane.b32.xlu0 %v906, 48
      %v2589 = vpop.permute.xlu0 %2588
      %2590 = vrot.lane.b32.xlu0 %v907, 48
      %v2591 = vpop.permute.xlu0 %2590
      %2592 = vrot.lane.b32.xlu0 %v908, 48
      %v2593 = vpop.permute.xlu0 %2592
      %v2599 = vsel %vm1152, %v2493, 0
      %v2602 = vsel %vm1152, %v2494, 0
      %v2605 = vsel %vm1152, %v2495, 0
      %v2608 = vsel %vm1152, %v2496, 0
      %2610 = vmatprep.subr.bf16.mxu0 0
      %2611 = vmatpush1.bf16.msra.mxu0 %v2587
      %2612 = vmatprep.subr.bf16.mxu0 0
      %2613 = vmatpush1.bf16.msra.mxu0 %v2589
      %2614 = vmatprep.subr.bf16.mxu0 0
      %2615 = vmatpush1.bf16.msra.mxu0 %v2591
      %2616 = vmatprep.subr.bf16.mxu0 0
      %2617 = vmatpush1.bf16.msra.mxu0 %v2593
      %2618 = vmatprep.subr.bf16.mxu0 0
      %2619 = vmatpush1.bf16.msra.mxu0 0
      %2620 = vmatprep.subr.bf16.mxu0 0
      %2621 = vmatpush1.bf16.msra.mxu0 0
      %2622 = vmatprep.subr.bf16.mxu0 0
      %2623 = vmatpush1.bf16.msra.mxu0 0
      %2624 = vmatprep.subr.bf16.mxu0 0
      %2625 = vmatpush1.bf16.msra.mxu0 0
      %2626 = vmatprep.subr.bf16.mxu0 0
      %2627 = vmatpush1.bf16.msra.mxu0 0
      %2628 = vmatprep.subr.bf16.mxu0 0
      %2629 = vmatpush1.bf16.msra.mxu0 0
      %2630 = vmatprep.subr.bf16.mxu0 0
      %2631 = vmatpush1.bf16.msra.mxu0 0
      %2632 = vmatprep.subr.bf16.mxu0 0
      %2633 = vmatpush1.bf16.msra.mxu0 0
      %2634 = vmatprep.subr.bf16.mxu0 0
      %2635 = vmatpush1.bf16.msra.mxu0 0
      %2636 = vmatprep.subr.bf16.mxu0 0
      %2637 = vmatpush1.bf16.msra.mxu0 0
      %2638 = vmatprep.subr.bf16.mxu0 0
      %2639 = vmatpush1.bf16.msra.mxu0 0
      %2640 = vmatprep.subr.bf16.mxu0 0
      %2641 = vmatpush1.bf16.msra.mxu0 0
      %2642 = vmatprep.mubr.bf16.mxu0 0
      %2643 = vmatmul.mubr.bf16.gmra.mrb[0].mxu0 %v2599
      %v2644 = vpop.f32.mrb[0].mxu0
      %v2645 = vadd.f32 0.0, %v2644
      %v2646 = vpop.f32.mrb[0].mxu0
      %v2647 = vpop.f32.mrb[0].mxu0
      %v2648 = vadd.f32 0.0, %v2647
      %v2649 = vpop.f32.mrb[0].mxu0
      %2650 = vmatprep.mubr.bf16.mxu0 0
      %2651 = vmatmul.mubr.bf16.gmra.mrb[0].mxu0 %v2602
      %v2652 = vpop.f32.mrb[0].mxu0
      %v2653 = vadd.f32 0.0, %v2652
      %v2654 = vpop.f32.mrb[0].mxu0
      %v2655 = vpop.f32.mrb[0].mxu0
      %v2656 = vadd.f32 0.0, %v2655
      %v2657 = vpop.f32.mrb[0].mxu0
      %2658 = vmatprep.mubr.bf16.mxu0 0
      %2659 = vmatmul.mubr.bf16.gmra.mrb[0].mxu0 %v2605
      %v2660 = vpop.f32.mrb[0].mxu0
      %v2661 = vadd.f32 0.0, %v2660
      %v2662 = vpop.f32.mrb[0].mxu0
      %v2663 = vpop.f32.mrb[0].mxu0
      %v2664 = vadd.f32 0.0, %v2663
      %v2665 = vpop.f32.mrb[0].mxu0
      %2666 = vmatprep.mubr.bf16.mxu0 0
      %2667 = vmatmul.mubr.bf16.gmra.mrb[0].mxu0 %v2608
      %v2668 = vpop.f32.mrb[0].mxu0
      %v2669 = vadd.f32 0.0, %v2668
      %v2670 = vpop.f32.mrb[0].mxu0
      %v2671 = vpop.f32.mrb[0].mxu0
      %v2672 = vadd.f32 0.0, %v2671
      %v2673 = vpop.f32.mrb[0].mxu0
      %2674 = vdwg.mxu0
      %v2675 = vunpack.c.l.bf16 %v933
      %v2676 = vunpack.c.l.bf16 %v934
      %v2677 = vunpack.c.l.bf16 %v935
      %v2678 = vunpack.c.l.bf16 %v936
      %v2679 = vunpack.c.l.bf16 %v937
      %v2680 = vunpack.c.l.bf16 %v938
      %v2681 = vunpack.c.l.bf16 %v939
      %v2682 = vunpack.c.l.bf16 %v940
      %2683 = vrot.lane.b32.xlu0 %v901, 104
      %v2684 = vpop.permute.xlu0 %2683
      %2685 = vrot.lane.b32.xlu0 %v902, 104
      %v2686 = vpop.permute.xlu0 %2685
      %2687 = vrot.lane.b32.xlu0 %v903, 104
      %v2688 = vpop.permute.xlu0 %2687
      %2689 = vrot.lane.b32.xlu0 %v904, 104
      %v2690 = vpop.permute.xlu0 %2689
      %2691 = vrot.lane.b32.xlu0 %v901, 72
      %v2692 = vpop.permute.xlu0 %2691
      %2693 = vrot.lane.b32.xlu0 %v902, 72
      %v2694 = vpop.permute.xlu0 %2693
      %2695 = vrot.lane.b32.xlu0 %v903, 72
      %v2696 = vpop.permute.xlu0 %2695
      %2697 = vrot.lane.b32.xlu0 %v904, 72
      %v2698 = vpop.permute.xlu0 %2697
      %v2700 = vsel %vm961, %v2684, 0
      %v2703 = vsel %vm961, %v2686, 0
      %v2706 = vsel %vm961, %v2688, 0
      %v2709 = vsel %vm961, %v2690, 0
      %v2712 = vsel %vm961, %v2692, 0
      %v2715 = vsel %vm961, %v2694, 0
      %v2718 = vsel %vm961, %v2696, 0
      %v2721 = vsel %vm961, %v2698, 0
      %2723 = vmatprep.subr.bf16.mxu0 0
      %2724 = vmatpush1.bf16.xpose.msra.mxu0 %v2712
      %2725 = vmatprep.subr.bf16.mxu0 0
      %2726 = vmatpush1.bf16.xpose.msra.mxu0 %v2715
      %2727 = vmatprep.subr.bf16.mxu0 0
      %2728 = vmatpush1.bf16.xpose.msra.mxu0 %v2718
      %2729 = vmatprep.subr.bf16.mxu0 0
      %2730 = vmatpush1.bf16.xpose.msra.mxu0 %v2721
      %2731 = vmatprep.subr.bf16.mxu0 0
      %2732 = vmatpush1.bf16.xpose.msra.mxu0 0
      %2733 = vmatprep.subr.bf16.mxu0 0
      %2734 = vmatpush1.bf16.xpose.msra.mxu0 0
      %2735 = vmatprep.subr.bf16.mxu0 0
      %2736 = vmatpush1.bf16.xpose.msra.mxu0 0
      %2737 = vmatprep.subr.bf16.mxu0 0
      %2738 = vmatpush1.bf16.xpose.msra.mxu0 0
      %2739 = vmatprep.subr.bf16.mxu0 0
      %2740 = vmatpush1.bf16.xpose.msra.mxu0 0
      %2741 = vmatprep.subr.bf16.mxu0 0
      %2742 = vmatpush1.bf16.xpose.msra.mxu0 0
      %2743 = vmatprep.subr.bf16.mxu0 0
      %2744 = vmatpush1.bf16.xpose.msra.mxu0 0
      %2745 = vmatprep.subr.bf16.mxu0 0
      %2746 = vmatpush1.bf16.xpose.msra.mxu0 0
      %2747 = vmatprep.subr.bf16.mxu0 0
      %2748 = vmatpush1.bf16.xpose.msra.mxu0 0
      %2749 = vmatprep.subr.bf16.mxu0 0
      %2750 = vmatpush1.bf16.xpose.msra.mxu0 0
      %2751 = vmatprep.subr.bf16.mxu0 0
      %2752 = vmatpush1.bf16.xpose.msra.mxu0 0
      %2753 = vmatprep.subr.bf16.mxu0 0
      %2754 = vmatpush1.bf16.xpose.msra.mxu0 0
      %2755 = vmatprep.mubr.bf16.mxu0 0
      %2756 = vmatmul.mubr.bf16.gmra.mrb[0].mxu0 %v2700
      %v2757 = vpop.f32.mrb[0].mxu0
      %v2758 = vadd.f32 %v2675, %v2757
      %v2759 = vpop.f32.mrb[0].mxu0
      %v2760 = vpop.f32.mrb[0].mxu0
      %v2761 = vadd.f32 %v2676, %v2760
      %v2762 = vpop.f32.mrb[0].mxu0
      %2763 = vmatprep.mubr.bf16.mxu0 0
      %2764 = vmatmul.mubr.bf16.gmra.mrb[0].mxu0 %v2703
      %v2765 = vpop.f32.mrb[0].mxu0
      %v2766 = vadd.f32 %v2677, %v2765
      %v2767 = vpop.f32.mrb[0].mxu0
      %v2768 = vpop.f32.mrb[0].mxu0
      %v2769 = vadd.f32 %v2678, %v2768
      %v2770 = vpop.f32.mrb[0].mxu0
      %2771 = vmatprep.mubr.bf16.mxu0 0
      %2772 = vmatmul.mubr.bf16.gmra.mrb[0].mxu0 %v2706
      %v2773 = vpop.f32.mrb[0].mxu0
      %v2774 = vadd.f32 %v2679, %v2773
      %v2775 = vpop.f32.mrb[0].mxu0
      %v2776 = vpop.f32.mrb[0].mxu0
      %v2777 = vadd.f32 %v2680, %v2776
      %v2778 = vpop.f32.mrb[0].mxu0
      %2779 = vmatprep.mubr.bf16.mxu0 0
      %2780 = vmatmul.mubr.bf16.gmra.mrb[0].mxu0 %v2709
      %v2781 = vpop.f32.mrb[0].mxu0
      %v2782 = vadd.f32 %v2681, %v2781
      %v2783 = vpop.f32.mrb[0].mxu0
      %v2784 = vpop.f32.mrb[0].mxu0
      %v2785 = vadd.f32 %v2682, %v2784
      %v2786 = vpop.f32.mrb[0].mxu0
      %2787 = vdwg.mxu0
      %2788 = vrot.lane.b32.xlu0 %v905, 104
      %v2789 = vpop.permute.xlu0 %2788
      %2790 = vrot.lane.b32.xlu0 %v906, 104
      %v2791 = vpop.permute.xlu0 %2790
      %2792 = vrot.lane.b32.xlu0 %v907, 104
      %v2793 = vpop.permute.xlu0 %2792
      %2794 = vrot.lane.b32.xlu0 %v908, 104
      %v2795 = vpop.permute.xlu0 %2794
      %2796 = vrot.lane.b32.xlu0 %v905, 72
      %v2797 = vpop.permute.xlu0 %2796
      %2798 = vrot.lane.b32.xlu0 %v906, 72
      %v2799 = vpop.permute.xlu0 %2798
      %2800 = vrot.lane.b32.xlu0 %v907, 72
      %v2801 = vpop.permute.xlu0 %2800
      %2802 = vrot.lane.b32.xlu0 %v908, 72
      %v2803 = vpop.permute.xlu0 %2802
      %v2805 = vsel %vm961, %v2789, 0
      %v2808 = vsel %vm961, %v2791, 0
      %v2811 = vsel %vm961, %v2793, 0
      %v2814 = vsel %vm961, %v2795, 0
      %v2817 = vsel %vm961, %v2797, 0
      %v2820 = vsel %vm961, %v2799, 0
      %v2823 = vsel %vm961, %v2801, 0
      %v2826 = vsel %vm961, %v2803, 0
      %2828 = vmatprep.subr.bf16.mxu0 0
      %2829 = vmatpush1.bf16.xpose.msra.mxu0 %v2817
      %2830 = vmatprep.subr.bf16.mxu0 0
      %2831 = vmatpush1.bf16.xpose.msra.mxu0 %v2820
      %2832 = vmatprep.subr.bf16.mxu0 0
      %2833 = vmatpush1.bf16.xpose.msra.mxu0 %v2823
      %2834 = vmatprep.subr.bf16.mxu0 0
      %2835 = vmatpush1.bf16.xpose.msra.mxu0 %v2826
      %2836 = vmatprep.subr.bf16.mxu0 0
      %2837 = vmatpush1.bf16.xpose.msra.mxu0 0
      %2838 = vmatprep.subr.bf16.mxu0 0
      %2839 = vmatpush1.bf16.xpose.msra.mxu0 0
      %2840 = vmatprep.subr.bf16.mxu0 0
      %2841 = vmatpush1.bf16.xpose.msra.mxu0 0
      %2842 = vmatprep.subr.bf16.mxu0 0
      %2843 = vmatpush1.bf16.xpose.msra.mxu0 0
      %2844 = vmatprep.subr.bf16.mxu0 0
      %2845 = vmatpush1.bf16.xpose.msra.mxu0 0
      %2846 = vmatprep.subr.bf16.mxu0 0
      %2847 = vmatpush1.bf16.xpose.msra.mxu0 0
      %2848 = vmatprep.subr.bf16.mxu0 0
      %2849 = vmatpush1.bf16.xpose.msra.mxu0 0
      %2850 = vmatprep.subr.bf16.mxu0 0
      %2851 = vmatpush1.bf16.xpose.msra.mxu0 0
      %2852 = vmatprep.subr.bf16.mxu0 0
      %2853 = vmatpush1.bf16.xpose.msra.mxu0 0
      %2854 = vmatprep.subr.bf16.mxu0 0
      %2855 = vmatpush1.bf16.xpose.msra.mxu0 0
      %2856 = vmatprep.subr.bf16.mxu0 0
      %2857 = vmatpush1.bf16.xpose.msra.mxu0 0
      %2858 = vmatprep.subr.bf16.mxu0 0
      %2859 = vmatpush1.bf16.xpose.msra.mxu0 0
      %2860 = vmatprep.mubr.bf16.mxu0 0
      %2861 = vmatmul.mubr.bf16.gmra.mrb[0].mxu0 %v2805
      %v2862 = vpop.f32.mrb[0].mxu0
      %v2863 = vadd.f32 %v2675, %v2862
      %v2864 = vpop.f32.mrb[0].mxu0
      %v2865 = vpop.f32.mrb[0].mxu0
      %v2866 = vadd.f32 %v2676, %v2865
      %v2867 = vpop.f32.mrb[0].mxu0
      %2868 = vmatprep.mubr.bf16.mxu0 0
      %2869 = vmatmul.mubr.bf16.gmra.mrb[0].mxu0 %v2808
      %v2870 = vpop.f32.mrb[0].mxu0
      %v2871 = vadd.f32 %v2677, %v2870
      %v2872 = vpop.f32.mrb[0].mxu0
      %v2873 = vpop.f32.mrb[0].mxu0
      %v2874 = vadd.f32 %v2678, %v2873
      %v2875 = vpop.f32.mrb[0].mxu0
      %2876 = vmatprep.mubr.bf16.mxu0 0
      %2877 = vmatmul.mubr.bf16.gmra.mrb[0].mxu0 %v2811
      %v2878 = vpop.f32.mrb[0].mxu0
      %v2879 = vadd.f32 %v2679, %v2878
      %v2880 = vpop.f32.mrb[0].mxu0
      %v2881 = vpop.f32.mrb[0].mxu0
      %v2882 = vadd.f32 %v2680, %v2881
      %v2883 = vpop.f32.mrb[0].mxu0
      %2884 = vmatprep.mubr.bf16.mxu0 0
      %2885 = vmatmul.mubr.bf16.gmra.mrb[0].mxu0 %v2814
      %v2886 = vpop.f32.mrb[0].mxu0
      %v2887 = vadd.f32 %v2681, %v2886
      %v2888 = vpop.f32.mrb[0].mxu0
      %v2889 = vpop.f32.mrb[0].mxu0
      %v2890 = vadd.f32 %v2682, %v2889
      %v2891 = vpop.f32.mrb[0].mxu0
      %2892 = vdwg.mxu0
      %v2893 = vsel %vm1152, %v2758, -inf
      %2894 = vmax.xlane.f32.xlu0 %v2893
      %v2895 = vpop.xlane.xlu0 %2894
      %v2896 = vsel %vm1152, %v2761, -inf
      %2897 = vmax.xlane.f32.xlu0 %v2896
      %v2898 = vpop.xlane.xlu0 %2897
      %v2899 = vsel %vm1152, %v2766, -inf
      %2900 = vmax.xlane.f32.xlu0 %v2899
      %v2901 = vpop.xlane.xlu0 %2900
      %v2902 = vsel %vm1152, %v2769, -inf
      %2903 = vmax.xlane.f32.xlu0 %v2902
      %v2904 = vpop.xlane.xlu0 %2903
      %v2905 = vsel %vm1152, %v2774, -inf
      %2906 = vmax.xlane.f32.xlu0 %v2905
      %v2907 = vpop.xlane.xlu0 %2906
      %v2908 = vsel %vm1152, %v2777, -inf
      %2909 = vmax.xlane.f32.xlu0 %v2908
      %v2910 = vpop.xlane.xlu0 %2909
      %v2911 = vsel %vm1152, %v2782, -inf
      %2912 = vmax.xlane.f32.xlu0 %v2911
      %v2913 = vpop.xlane.xlu0 %2912
      %v2914 = vsel %vm1152, %v2785, -inf
      %2915 = vmax.xlane.f32.xlu0 %v2914
      %v2916 = vpop.xlane.xlu0 %2915
      %v2917 = vsel %vm1152, %v2863, -inf
      %2918 = vmax.xlane.f32.xlu0 %v2917
      %v2919 = vpop.xlane.xlu0 %2918
      %v2920 = vsel %vm1152, %v2866, -inf
      %2921 = vmax.xlane.f32.xlu0 %v2920
      %v2922 = vpop.xlane.xlu0 %2921
      %v2923 = vsel %vm1152, %v2871, -inf
      %2924 = vmax.xlane.f32.xlu0 %v2923
      %v2925 = vpop.xlane.xlu0 %2924
      %v2926 = vsel %vm1152, %v2874, -inf
      %2927 = vmax.xlane.f32.xlu0 %v2926
      %v2928 = vpop.xlane.xlu0 %2927
      %v2929 = vsel %vm1152, %v2879, -inf
      %2930 = vmax.xlane.f32.xlu0 %v2929
      %v2931 = vpop.xlane.xlu0 %2930
      %v2932 = vsel %vm1152, %v2882, -inf
      %2933 = vmax.xlane.f32.xlu0 %v2932
      %v2934 = vpop.xlane.xlu0 %2933
      %v2935 = vsel %vm1152, %v2887, -inf
      %2936 = vmax.xlane.f32.xlu0 %v2935
      %v2937 = vpop.xlane.xlu0 %2936
      %v2938 = vsel %vm1152, %v2890, -inf
      %2939 = vmax.xlane.f32.xlu0 %v2938
      %v2940 = vpop.xlane.xlu0 %2939
      %v2941 = vsub.f32 %v2758, %v2895
      %v2942 = vsub.f32 %v2761, %v2898
      %v2943 = vsub.f32 %v2766, %v2901
      %v2944 = vsub.f32 %v2769, %v2904
      %v2945 = vsub.f32 %v2774, %v2907
      %v2946 = vsub.f32 %v2777, %v2910
      %v2947 = vsub.f32 %v2782, %v2913
      %v2948 = vsub.f32 %v2785, %v2916
      %v2949 = vsub.f32 %v2863, %v2919
      %v2950 = vsub.f32 %v2866, %v2922
      %v2951 = vsub.f32 %v2871, %v2925
      %v2952 = vsub.f32 %v2874, %v2928
      %v2953 = vsub.f32 %v2879, %v2931
      %v2954 = vsub.f32 %v2882, %v2934
      %v2955 = vsub.f32 %v2887, %v2937
      %v2956 = vsub.f32 %v2890, %v2940
      %v2957 = vmul.f32 %v2941, 1.442695
      %v2958 = vpow.pop %v2957
      %v2959 = vmul.f32 %v2942, 1.442695
      %v2960 = vpow.pop %v2959
      %v2961 = vmul.f32 %v2943, 1.442695
      %v2962 = vpow.pop %v2961
      %v2963 = vmul.f32 %v2944, 1.442695
      %v2964 = vpow.pop %v2963
      %v2965 = vmul.f32 %v2945, 1.442695
      %v2966 = vpow.pop %v2965
      %v2967 = vmul.f32 %v2946, 1.442695
      %v2968 = vpow.pop %v2967
      %v2969 = vmul.f32 %v2947, 1.442695
      %v2970 = vpow.pop %v2969
      %v2971 = vmul.f32 %v2948, 1.442695
      %v2972 = vpow.pop %v2971
      %v2973 = vmul.f32 %v2949, 1.442695
      %v2974 = vpow.pop %v2973
      %v2975 = vmul.f32 %v2950, 1.442695
      %v2976 = vpow.pop %v2975
      %v2977 = vmul.f32 %v2951, 1.442695
      %v2978 = vpow.pop %v2977
      %v2979 = vmul.f32 %v2952, 1.442695
      %v2980 = vpow.pop %v2979
      %v2981 = vmul.f32 %v2953, 1.442695
      %v2982 = vpow.pop %v2981
      %v2983 = vmul.f32 %v2954, 1.442695
      %v2984 = vpow.pop %v2983
      %v2985 = vmul.f32 %v2955, 1.442695
      %v2986 = vpow.pop %v2985
      %v2987 = vmul.f32 %v2956, 1.442695
      %v2988 = vpow.pop %v2987
      %v2989 = vsel %vm1152, %v2958, 0.0
      %2990 = vadd.xlane.f32.xlu0 %v2989
      %v2991 = vpop.xlane.xlu0 %2990
      %v2992 = vsel %vm1152, %v2960, 0.0
      %2993 = vadd.xlane.f32.xlu0 %v2992
      %v2994 = vpop.xlane.xlu0 %2993
      %v2995 = vsel %vm1152, %v2962, 0.0
      %2996 = vadd.xlane.f32.xlu0 %v2995
      %v2997 = vpop.xlane.xlu0 %2996
      %v2998 = vsel %vm1152, %v2964, 0.0
      %2999 = vadd.xlane.f32.xlu0 %v2998
      %v3000 = vpop.xlane.xlu0 %2999
      %v3001 = vsel %vm1152, %v2966, 0.0
      %3002 = vadd.xlane.f32.xlu0 %v3001
      %v3003 = vpop.xlane.xlu0 %3002
      %v3004 = vsel %vm1152, %v2968, 0.0
      %3005 = vadd.xlane.f32.xlu0 %v3004
      %v3006 = vpop.xlane.xlu0 %3005
      %v3007 = vsel %vm1152, %v2970, 0.0
      %3008 = vadd.xlane.f32.xlu0 %v3007
      %v3009 = vpop.xlane.xlu0 %3008
      %v3010 = vsel %vm1152, %v2972, 0.0
      %3011 = vadd.xlane.f32.xlu0 %v3010
      %v3012 = vpop.xlane.xlu0 %3011
      %v3013 = vsel %vm1152, %v2974, 0.0
      %3014 = vadd.xlane.f32.xlu0 %v3013
      %v3015 = vpop.xlane.xlu0 %3014
      %v3016 = vsel %vm1152, %v2976, 0.0
      %3017 = vadd.xlane.f32.xlu0 %v3016
      %v3018 = vpop.xlane.xlu0 %3017
      %v3019 = vsel %vm1152, %v2978, 0.0
      %3020 = vadd.xlane.f32.xlu0 %v3019
      %v3021 = vpop.xlane.xlu0 %3020
      %v3022 = vsel %vm1152, %v2980, 0.0
      %3023 = vadd.xlane.f32.xlu0 %v3022
      %v3024 = vpop.xlane.xlu0 %3023
      %v3025 = vsel %vm1152, %v2982, 0.0
      %3026 = vadd.xlane.f32.xlu0 %v3025
      %v3027 = vpop.xlane.xlu0 %3026
      %v3028 = vsel %vm1152, %v2984, 0.0
      %3029 = vadd.xlane.f32.xlu0 %v3028
      %v3030 = vpop.xlane.xlu0 %3029
      %v3031 = vsel %vm1152, %v2986, 0.0
      %3032 = vadd.xlane.f32.xlu0 %v3031
      %v3033 = vpop.xlane.xlu0 %3032
      %v3034 = vsel %vm1152, %v2988, 0.0
      %3035 = vadd.xlane.f32.xlu0 %v3034
      %v3036 = vpop.xlane.xlu0 %3035
      %v3037 = vrcp.pop %v2991
      %v3038 = vrcp.pop %v2994
      %v3039 = vrcp.pop %v2997
      %v3040 = vrcp.pop %v3000
      %v3041 = vrcp.pop %v3003
      %v3042 = vrcp.pop %v3006
      %v3043 = vrcp.pop %v3009
      %v3044 = vrcp.pop %v3012
      %v3045 = vrcp.pop %v3015
      %v3046 = vrcp.pop %v3018
      %v3047 = vrcp.pop %v3021
      %v3048 = vrcp.pop %v3024
      %v3049 = vrcp.pop %v3027
      %v3050 = vrcp.pop %v3030
      %v3051 = vrcp.pop %v3033
      %v3052 = vrcp.pop %v3036
      %v3053 = vmul.f32 %v2958, %v3037
      %v3054 = vmul.f32 %v2960, %v3038
      %v3055 = vmul.f32 %v2962, %v3039
      %v3056 = vmul.f32 %v2964, %v3040
      %v3057 = vmul.f32 %v2966, %v3041
      %v3058 = vmul.f32 %v2968, %v3042
      %v3059 = vmul.f32 %v2970, %v3043
      %v3060 = vmul.f32 %v2972, %v3044
      %v3061 = vmul.f32 %v2974, %v3045
      %v3062 = vmul.f32 %v2976, %v3046
      %v3063 = vmul.f32 %v2978, %v3047
      %v3064 = vmul.f32 %v2980, %v3048
      %v3065 = vmul.f32 %v2982, %v3049
      %v3066 = vmul.f32 %v2984, %v3050
      %v3067 = vmul.f32 %v2986, %v3051
      %v3068 = vmul.f32 %v2988, %v3052
      %v3069 = vpack.c.bf16 %v3054, %v3053
      %v3070 = vpack.c.bf16 %v3056, %v3055
      %v3071 = vpack.c.bf16 %v3058, %v3057
      %v3072 = vpack.c.bf16 %v3060, %v3059
      %v3073 = vpack.c.bf16 %v3062, %v3061
      %v3074 = vpack.c.bf16 %v3064, %v3063
      %v3075 = vpack.c.bf16 %v3066, %v3065
      %v3076 = vpack.c.bf16 %v3068, %v3067
      %3077 = vrot.lane.b32.xlu0 %v901, 40
      %v3078 = vpop.permute.xlu0 %3077
      %3079 = vrot.lane.b32.xlu0 %v902, 40
      %v3080 = vpop.permute.xlu0 %3079
      %3081 = vrot.lane.b32.xlu0 %v903, 40
      %v3082 = vpop.permute.xlu0 %3081
      %3083 = vrot.lane.b32.xlu0 %v904, 40
      %v3084 = vpop.permute.xlu0 %3083
      %v3090 = vsel %vm1152, %v3069, 0
      %v3093 = vsel %vm1152, %v3070, 0
      %v3096 = vsel %vm1152, %v3071, 0
      %v3099 = vsel %vm1152, %v3072, 0
      %3101 = vmatprep.subr.bf16.mxu0 0
      %3102 = vmatpush1.bf16.msra.mxu0 %v3078
      %3103 = vmatprep.subr.bf16.mxu0 0
      %3104 = vmatpush1.bf16.msra.mxu0 %v3080
      %3105 = vmatprep.subr.bf16.mxu0 0
      %3106 = vmatpush1.bf16.msra.mxu0 %v3082
      %3107 = vmatprep.subr.bf16.mxu0 0
      %3108 = vmatpush1.bf16.msra.mxu0 %v3084
      %3109 = vmatprep.subr.bf16.mxu0 0
      %3110 = vmatpush1.bf16.msra.mxu0 0
      %3111 = vmatprep.subr.bf16.mxu0 0
      %3112 = vmatpush1.bf16.msra.mxu0 0
      %3113 = vmatprep.subr.bf16.mxu0 0
      %3114 = vmatpush1.bf16.msra.mxu0 0
      %3115 = vmatprep.subr.bf16.mxu0 0
      %3116 = vmatpush1.bf16.msra.mxu0 0
      %3117 = vmatprep.subr.bf16.mxu0 0
      %3118 = vmatpush1.bf16.msra.mxu0 0
      %3119 = vmatprep.subr.bf16.mxu0 0
      %3120 = vmatpush1.bf16.msra.mxu0 0
      %3121 = vmatprep.subr.bf16.mxu0 0
      %3122 = vmatpush1.bf16.msra.mxu0 0
      %3123 = vmatprep.subr.bf16.mxu0 0
      %3124 = vmatpush1.bf16.msra.mxu0 0
      %3125 = vmatprep.subr.bf16.mxu0 0
      %3126 = vmatpush1.bf16.msra.mxu0 0
      %3127 = vmatprep.subr.bf16.mxu0 0
      %3128 = vmatpush1.bf16.msra.mxu0 0
      %3129 = vmatprep.subr.bf16.mxu0 0
      %3130 = vmatpush1.bf16.msra.mxu0 0
      %3131 = vmatprep.subr.bf16.mxu0 0
      %3132 = vmatpush1.bf16.msra.mxu0 0
      %3133 = vmatprep.mubr.bf16.mxu0 0
      %3134 = vmatmul.mubr.bf16.gmra.mrb[0].mxu0 %v3090
      %v3135 = vpop.f32.mrb[0].mxu0
      %v3136 = vadd.f32 0.0, %v3135
      %v3137 = vpop.f32.mrb[0].mxu0
      %v3138 = vpop.f32.mrb[0].mxu0
      %v3139 = vadd.f32 0.0, %v3138
      %v3140 = vpop.f32.mrb[0].mxu0
      %3141 = vmatprep.mubr.bf16.mxu0 0
      %3142 = vmatmul.mubr.bf16.gmra.mrb[0].mxu0 %v3093
      %v3143 = vpop.f32.mrb[0].mxu0
      %v3144 = vadd.f32 0.0, %v3143
      %v3145 = vpop.f32.mrb[0].mxu0
      %v3146 = vpop.f32.mrb[0].mxu0
      %v3147 = vadd.f32 0.0, %v3146
      %v3148 = vpop.f32.mrb[0].mxu0
      %3149 = vmatprep.mubr.bf16.mxu0 0
      %3150 = vmatmul.mubr.bf16.gmra.mrb[0].mxu0 %v3096
      %v3151 = vpop.f32.mrb[0].mxu0
      %v3152 = vadd.f32 0.0, %v3151
      %v3153 = vpop.f32.mrb[0].mxu0
      %v3154 = vpop.f32.mrb[0].mxu0
      %v3155 = vadd.f32 0.0, %v3154
      %v3156 = vpop.f32.mrb[0].mxu0
      %3157 = vmatprep.mubr.bf16.mxu0 0
      %3158 = vmatmul.mubr.bf16.gmra.mrb[0].mxu0 %v3099
      %v3159 = vpop.f32.mrb[0].mxu0
      %v3160 = vadd.f32 0.0, %v3159
      %v3161 = vpop.f32.mrb[0].mxu0
      %v3162 = vpop.f32.mrb[0].mxu0
      %v3163 = vadd.f32 0.0, %v3162
      %v3164 = vpop.f32.mrb[0].mxu0
      %3165 = vdwg.mxu0
      %3166 = vrot.lane.b32.xlu0 %v905, 40
      %v3167 = vpop.permute.xlu0 %3166
      %3168 = vrot.lane.b32.xlu0 %v906, 40
      %v3169 = vpop.permute.xlu0 %3168
      %3170 = vrot.lane.b32.xlu0 %v907, 40
      %v3171 = vpop.permute.xlu0 %3170
      %3172 = vrot.lane.b32.xlu0 %v908, 40
      %v3173 = vpop.permute.xlu0 %3172
      %v3179 = vsel %vm1152, %v3073, 0
      %v3182 = vsel %vm1152, %v3074, 0
      %v3185 = vsel %vm1152, %v3075, 0
      %v3188 = vsel %vm1152, %v3076, 0
      %3190 = vmatprep.subr.bf16.mxu0 0
      %3191 = vmatpush1.bf16.msra.mxu0 %v3167
      %3192 = vmatprep.subr.bf16.mxu0 0
      %3193 = vmatpush1.bf16.msra.mxu0 %v3169
      %3194 = vmatprep.subr.bf16.mxu0 0
      %3195 = vmatpush1.bf16.msra.mxu0 %v3171
      %3196 = vmatprep.subr.bf16.mxu0 0
      %3197 = vmatpush1.bf16.msra.mxu0 %v3173
      %3198 = vmatprep.subr.bf16.mxu0 0
      %3199 = vmatpush1.bf16.msra.mxu0 0
      %3200 = vmatprep.subr.bf16.mxu0 0
      %3201 = vmatpush1.bf16.msra.mxu0 0
      %3202 = vmatprep.subr.bf16.mxu0 0
      %3203 = vmatpush1.bf16.msra.mxu0 0
      %3204 = vmatprep.subr.bf16.mxu0 0
      %3205 = vmatpush1.bf16.msra.mxu0 0
      %3206 = vmatprep.subr.bf16.mxu0 0
      %3207 = vmatpush1.bf16.msra.mxu0 0
      %3208 = vmatprep.subr.bf16.mxu0 0
      %3209 = vmatpush1.bf16.msra.mxu0 0
      %3210 = vmatprep.subr.bf16.mxu0 0
      %3211 = vmatpush1.bf16.msra.mxu0 0
      %3212 = vmatprep.subr.bf16.mxu0 0
      %3213 = vmatpush1.bf16.msra.mxu0 0
      %3214 = vmatprep.subr.bf16.mxu0 0
      %3215 = vmatpush1.bf16.msra.mxu0 0
      %3216 = vmatprep.subr.bf16.mxu0 0
      %3217 = vmatpush1.bf16.msra.mxu0 0
      %3218 = vmatprep.subr.bf16.mxu0 0
      %3219 = vmatpush1.bf16.msra.mxu0 0
      %3220 = vmatprep.subr.bf16.mxu0 0
      %3221 = vmatpush1.bf16.msra.mxu0 0
      %3222 = vmatprep.mubr.bf16.mxu0 0
      %3223 = vmatmul.mubr.bf16.gmra.mrb[0].mxu0 %v3179
      %v3224 = vpop.f32.mrb[0].mxu0
      %v3225 = vadd.f32 0.0, %v3224
      %v3226 = vpop.f32.mrb[0].mxu0
      %v3227 = vpop.f32.mrb[0].mxu0
      %v3228 = vadd.f32 0.0, %v3227
      %v3229 = vpop.f32.mrb[0].mxu0
      %3230 = vmatprep.mubr.bf16.mxu0 0
      %3231 = vmatmul.mubr.bf16.gmra.mrb[0].mxu0 %v3182
      %v3232 = vpop.f32.mrb[0].mxu0
      %v3233 = vadd.f32 0.0, %v3232
      %v3234 = vpop.f32.mrb[0].mxu0
      %v3235 = vpop.f32.mrb[0].mxu0
      %v3236 = vadd.f32 0.0, %v3235
      %v3237 = vpop.f32.mrb[0].mxu0
      %3238 = vmatprep.mubr.bf16.mxu0 0
      %3239 = vmatmul.mubr.bf16.gmra.mrb[0].mxu0 %v3185
      %v3240 = vpop.f32.mrb[0].mxu0
      %v3241 = vadd.f32 0.0, %v3240
      %v3242 = vpop.f32.mrb[0].mxu0
      %v3243 = vpop.f32.mrb[0].mxu0
      %v3244 = vadd.f32 0.0, %v3243
      %v3245 = vpop.f32.mrb[0].mxu0
      %3246 = vmatprep.mubr.bf16.mxu0 0
      %3247 = vmatmul.mubr.bf16.gmra.mrb[0].mxu0 %v3188
      %v3248 = vpop.f32.mrb[0].mxu0
      %v3249 = vadd.f32 0.0, %v3248
      %v3250 = vpop.f32.mrb[0].mxu0
      %v3251 = vpop.f32.mrb[0].mxu0
      %v3252 = vadd.f32 0.0, %v3251
      %v3253 = vpop.f32.mrb[0].mxu0
      %3254 = vdwg.mxu0
      %3271 = vrot.lane.b32.xlu0 %v1976, 8
      %v3272 = vpop.permute.xlu0 %3271
      %3273 = vrot.lane.b32.xlu0 %v1979, 8
      %v3274 = vpop.permute.xlu0 %3273
      %3275 = vrot.lane.b32.xlu0 %v1984, 8
      %v3276 = vpop.permute.xlu0 %3275
      %3277 = vrot.lane.b32.xlu0 %v1987, 8
      %v3278 = vpop.permute.xlu0 %3277
      %3279 = vrot.lane.b32.xlu0 %v1992, 8
      %v3280 = vpop.permute.xlu0 %3279
      %3281 = vrot.lane.b32.xlu0 %v1995, 8
      %v3282 = vpop.permute.xlu0 %3281
      %3283 = vrot.lane.b32.xlu0 %v2000, 8
      %v3284 = vpop.permute.xlu0 %3283
      %3285 = vrot.lane.b32.xlu0 %v2003, 8
      %v3286 = vpop.permute.xlu0 %3285
      %3287 = vrot.lane.b32.xlu0 %v2065, 8
      %v3288 = vpop.permute.xlu0 %3287
      %3289 = vrot.lane.b32.xlu0 %v2068, 8
      %v3290 = vpop.permute.xlu0 %3289
      %3291 = vrot.lane.b32.xlu0 %v2073, 8
      %v3292 = vpop.permute.xlu0 %3291
      %3293 = vrot.lane.b32.xlu0 %v2076, 8
      %v3294 = vpop.permute.xlu0 %3293
      %3295 = vrot.lane.b32.xlu0 %v2081, 8
      %v3296 = vpop.permute.xlu0 %3295
      %3297 = vrot.lane.b32.xlu0 %v2084, 8
      %v3298 = vpop.permute.xlu0 %3297
      %3299 = vrot.lane.b32.xlu0 %v2089, 8
      %v3300 = vpop.permute.xlu0 %3299
      %3301 = vrot.lane.b32.xlu0 %v2092, 8
      %v3302 = vpop.permute.xlu0 %3301
      %3335 = vrot.lane.b32.xlu0 %v2556, 16
      %v3336 = vpop.permute.xlu0 %3335
      %3337 = vrot.lane.b32.xlu0 %v2559, 16
      %v3338 = vpop.permute.xlu0 %3337
      %3339 = vrot.lane.b32.xlu0 %v2564, 16
      %v3340 = vpop.permute.xlu0 %3339
      %3341 = vrot.lane.b32.xlu0 %v2567, 16
      %v3342 = vpop.permute.xlu0 %3341
      %3343 = vrot.lane.b32.xlu0 %v2572, 16
      %v3344 = vpop.permute.xlu0 %3343
      %3345 = vrot.lane.b32.xlu0 %v2575, 16
      %v3346 = vpop.permute.xlu0 %3345
      %3347 = vrot.lane.b32.xlu0 %v2580, 16
      %v3348 = vpop.permute.xlu0 %3347
      %3349 = vrot.lane.b32.xlu0 %v2583, 16
      %v3350 = vpop.permute.xlu0 %3349
      %3351 = vrot.lane.b32.xlu0 %v2645, 16
      %v3352 = vpop.permute.xlu0 %3351
      %3353 = vrot.lane.b32.xlu0 %v2648, 16
      %v3354 = vpop.permute.xlu0 %3353
      %3355 = vrot.lane.b32.xlu0 %v2653, 16
      %v3356 = vpop.permute.xlu0 %3355
      %3357 = vrot.lane.b32.xlu0 %v2656, 16
      %v3358 = vpop.permute.xlu0 %3357
      %3359 = vrot.lane.b32.xlu0 %v2661, 16
      %v3360 = vpop.permute.xlu0 %3359
      %3361 = vrot.lane.b32.xlu0 %v2664, 16
      %v3362 = vpop.permute.xlu0 %3361
      %3363 = vrot.lane.b32.xlu0 %v2669, 16
      %v3364 = vpop.permute.xlu0 %3363
      %3365 = vrot.lane.b32.xlu0 %v2672, 16
      %v3366 = vpop.permute.xlu0 %3365
      %3399 = vrot.lane.b32.xlu0 %v3136, 24
      %v3400 = vpop.permute.xlu0 %3399
      %3401 = vrot.lane.b32.xlu0 %v3139, 24
      %v3402 = vpop.permute.xlu0 %3401
      %3403 = vrot.lane.b32.xlu0 %v3144, 24
      %v3404 = vpop.permute.xlu0 %3403
      %3405 = vrot.lane.b32.xlu0 %v3147, 24
      %v3406 = vpop.permute.xlu0 %3405
      %3407 = vrot.lane.b32.xlu0 %v3152, 24
      %v3408 = vpop.permute.xlu0 %3407
      %3409 = vrot.lane.b32.xlu0 %v3155, 24
      %v3410 = vpop.permute.xlu0 %3409
      %3411 = vrot.lane.b32.xlu0 %v3160, 24
      %v3412 = vpop.permute.xlu0 %3411
      %3413 = vrot.lane.b32.xlu0 %v3163, 24
      %v3414 = vpop.permute.xlu0 %3413
      %3415 = vrot.lane.b32.xlu0 %v3225, 24
      %v3416 = vpop.permute.xlu0 %3415
      %3417 = vrot.lane.b32.xlu0 %v3228, 24
      %v3418 = vpop.permute.xlu0 %3417
      %3419 = vrot.lane.b32.xlu0 %v3233, 24
      %v3420 = vpop.permute.xlu0 %3419
      %3421 = vrot.lane.b32.xlu0 %v3236, 24
      %v3422 = vpop.permute.xlu0 %3421
      %3423 = vrot.lane.b32.xlu0 %v3241, 24
      %v3424 = vpop.permute.xlu0 %3423
      %3425 = vrot.lane.b32.xlu0 %v3244, 24
      %v3426 = vpop.permute.xlu0 %3425
      %3427 = vrot.lane.b32.xlu0 %v3249, 24
      %v3428 = vpop.permute.xlu0 %3427
      %3429 = vrot.lane.b32.xlu0 %v3252, 24
      %v3430 = vpop.permute.xlu0 %3429
      %v3447 = vsel %vm961, %v1396, %v3272
      %v3448 = vsel %vm961, %v1399, %v3274
      %v3449 = vsel %vm961, %v1404, %v3276
      %v3450 = vsel %vm961, %v1407, %v3278
      %v3451 = vsel %vm961, %v1412, %v3280
      %v3452 = vsel %vm961, %v1415, %v3282
      %v3453 = vsel %vm961, %v1420, %v3284
      %v3454 = vsel %vm961, %v1423, %v3286
      %v3455 = vsel %vm961, %v1485, %v3288
      %v3456 = vsel %vm961, %v1488, %v3290
      %v3457 = vsel %vm961, %v1493, %v3292
      %v3458 = vsel %vm961, %v1496, %v3294
      %v3459 = vsel %vm961, %v1501, %v3296
      %v3460 = vsel %vm961, %v1504, %v3298
      %v3461 = vsel %vm961, %v1509, %v3300
      %v3462 = vsel %vm961, %v1512, %v3302
      %vm3463 = vcmask 130048
      %v3464 = vsel %vm3463, %v3447, %v3336
      %v3465 = vsel %vm3463, %v3448, %v3338
      %v3466 = vsel %vm3463, %v3449, %v3340
      %v3467 = vsel %vm3463, %v3450, %v3342
      %v3468 = vsel %vm3463, %v3451, %v3344
      %v3469 = vsel %vm3463, %v3452, %v3346
      %v3470 = vsel %vm3463, %v3453, %v3348
      %v3471 = vsel %vm3463, %v3454, %v3350
      %v3472 = vsel %vm3463, %v3455, %v3352
      %v3473 = vsel %vm3463, %v3456, %v3354
      %v3474 = vsel %vm3463, %v3457, %v3356
      %v3475 = vsel %vm3463, %v3458, %v3358
      %v3476 = vsel %vm3463, %v3459, %v3360
      %v3477 = vsel %vm3463, %v3460, %v3362
      %v3478 = vsel %vm3463, %v3461, %v3364
      %v3479 = vsel %vm3463, %v3462, %v3366
      %vm3480 = vcmask 195584
      %v3481 = vsel %vm3480, %v3464, %v3400
      %v3482 = vsel %vm3480, %v3465, %v3402
      %v3483 = vsel %vm3480, %v3466, %v3404
      %v3484 = vsel %vm3480, %v3467, %v3406
      %v3485 = vsel %vm3480, %v3468, %v3408
      %v3486 = vsel %vm3480, %v3469, %v3410
      %v3487 = vsel %vm3480, %v3470, %v3412
      %v3488 = vsel %vm3480, %v3471, %v3414
      %v3489 = vsel %vm3480, %v3472, %v3416
      %v3490 = vsel %vm3480, %v3473, %v3418
      %v3491 = vsel %vm3480, %v3474, %v3420
      %v3492 = vsel %vm3480, %v3475, %v3422
      %v3493 = vsel %vm3480, %v3476, %v3424
      %v3494 = vsel %vm3480, %v3477, %v3426
      %v3495 = vsel %vm3480, %v3478, %v3428
      %v3496 = vsel %vm3480, %v3479, %v3430
      %v3497 = vpack.c.bf16 %v3482, %v3481
      %v3498 = vpack.c.bf16 %v3484, %v3483
      %v3499 = vpack.c.bf16 %v3486, %v3485
      %v3500 = vpack.c.bf16 %v3488, %v3487
      %v3501 = vpack.c.bf16 %v3490, %v3489
      %v3502 = vpack.c.bf16 %v3492, %v3491
      %v3503 = vpack.c.bf16 %v3494, %v3493
      %v3504 = vpack.c.bf16 %v3496, %v3495
      %v3505 = vld [vmem:[%s6] sm:$0xf]
      %v3506 = vld [vmem:[%s6 + $0x4] sm:$0xf]
      %v3507 = vld [vmem:[%s6 + $0x8] sm:$0xf]
      %v3508 = vld [vmem:[%s6 + $0xc] sm:$0xf]
      %v3509 = vld [vmem:[%s7] sm:$0x1]
      %v3511 = vlaneseq
      %v3512 = vshrl.u32 %v3511, 7
      %v3513 = vsub.s32 0, %v3512
      %v3514 = vrot.slane %v3509, %v3513
      %v3520 = vunpack.c.l.b16 %v3505
      %v3521 = vunpack.c.l.b16 %v3506
      %v3522 = vunpack.c.l.b16 %v3507
      %v3523 = vunpack.c.l.b16 %v3508
      %v3524 = vpack.c.b16 %v3521, %v3520
      %v3525 = vpack.c.b16 %v3523, %v3522
      %v3529 = vsel %vm495, %v3497, 0
      %v3532 = vsel %vm495, %v3498, 0
      %v3535 = vsel %vm495, %v3499, 0
      %v3538 = vsel %vm495, %v3500, 0
      %v3541 = vsel %vm495, %v3501, 0
      %v3544 = vsel %vm495, %v3502, 0
      %v3547 = vsel %vm495, %v3503, 0
      %v3550 = vsel %vm495, %v3504, 0
      %3552 = vmatprep.subr.bf16.mxu0 0
      %3553 = vmatpush1.bf16.msra.mxu0 %v3524
      %3554 = vmatprep.subr.bf16.mxu0 0
      %3555 = vmatpush1.bf16.msra.mxu0 %v3525
      %3556 = vmatprep.subr.bf16.mxu0 0
      %3557 = vmatpush1.bf16.msra.mxu0 0
      %3558 = vmatprep.subr.bf16.mxu0 0
      %3559 = vmatpush1.bf16.msra.mxu0 0
      %3560 = vmatprep.subr.bf16.mxu0 0
      %3561 = vmatpush1.bf16.msra.mxu0 0
      %3562 = vmatprep.subr.bf16.mxu0 0
      %3563 = vmatpush1.bf16.msra.mxu0 0
      %3564 = vmatprep.subr.bf16.mxu0 0
      %3565 = vmatpush1.bf16.msra.mxu0 0
      %3566 = vmatprep.subr.bf16.mxu0 0
      %3567 = vmatpush1.bf16.msra.mxu0 0
      %3568 = vmatprep.subr.bf16.mxu0 0
      %3569 = vmatpush1.bf16.msra.mxu0 0
      %3570 = vmatprep.subr.bf16.mxu0 0
      %3571 = vmatpush1.bf16.msra.mxu0 0
      %3572 = vmatprep.subr.bf16.mxu0 0
      %3573 = vmatpush1.bf16.msra.mxu0 0
      %3574 = vmatprep.subr.bf16.mxu0 0
      %3575 = vmatpush1.bf16.msra.mxu0 0
      %3576 = vmatprep.subr.bf16.mxu0 0
      %3577 = vmatpush1.bf16.msra.mxu0 0
      %3578 = vmatprep.subr.bf16.mxu0 0
      %3579 = vmatpush1.bf16.msra.mxu0 0
      %3580 = vmatprep.subr.bf16.mxu0 0
      %3581 = vmatpush1.bf16.msra.mxu0 0
      %3582 = vmatprep.subr.bf16.mxu0 0
      %3583 = vmatpush1.bf16.msra.mxu0 0
      %3584 = vmatprep.mubr.bf16.mxu0 0
      %3585 = vmatmul.mubr.bf16.gmra.mrb[0].mxu0 %v3529
      %v3586 = vpop.f32.mrb[0].mxu0
      %v3587 = vadd.f32 %v3514, %v3586
      %v3588 = vpop.f32.mrb[0].mxu0
      %v3589 = vpop.f32.mrb[0].mxu0
      %v3590 = vadd.f32 %v3514, %v3589
      %v3591 = vpop.f32.mrb[0].mxu0
      %3592 = vmatprep.mubr.bf16.mxu0 0
      %3593 = vmatmul.mubr.bf16.gmra.mrb[0].mxu0 %v3532
      %v3594 = vpop.f32.mrb[0].mxu0
      %v3595 = vadd.f32 %v3514, %v3594
      %v3596 = vpop.f32.mrb[0].mxu0
      %v3597 = vpop.f32.mrb[0].mxu0
      %v3598 = vadd.f32 %v3514, %v3597
      %v3599 = vpop.f32.mrb[0].mxu0
      %3600 = vmatprep.mubr.bf16.mxu0 0
      %3601 = vmatmul.mubr.bf16.gmra.mrb[0].mxu0 %v3535
      %v3602 = vpop.f32.mrb[0].mxu0
      %v3603 = vadd.f32 %v3514, %v3602
      %v3604 = vpop.f32.mrb[0].mxu0
      %v3605 = vpop.f32.mrb[0].mxu0
      %v3606 = vadd.f32 %v3514, %v3605
      %v3607 = vpop.f32.mrb[0].mxu0
      %3608 = vmatprep.mubr.bf16.mxu0 0
      %3609 = vmatmul.mubr.bf16.gmra.mrb[0].mxu0 %v3538
      %v3610 = vpop.f32.mrb[0].mxu0
      %v3611 = vadd.f32 %v3514, %v3610
      %v3612 = vpop.f32.mrb[0].mxu0
      %v3613 = vpop.f32.mrb[0].mxu0
      %v3614 = vadd.f32 %v3514, %v3613
      %v3615 = vpop.f32.mrb[0].mxu0
      %3616 = vmatprep.mubr.bf16.mxu0 0
      %3617 = vmatmul.mubr.bf16.gmra.mrb[0].mxu0 %v3541
      %v3618 = vpop.f32.mrb[0].mxu0
      %v3619 = vadd.f32 %v3514, %v3618
      %v3620 = vpop.f32.mrb[0].mxu0
      %v3621 = vpop.f32.mrb[0].mxu0
      %v3622 = vadd.f32 %v3514, %v3621
      %v3623 = vpop.f32.mrb[0].mxu0
      %3624 = vmatprep.mubr.bf16.mxu0 0
      %3625 = vmatmul.mubr.bf16.gmra.mrb[0].mxu0 %v3544
      %v3626 = vpop.f32.mrb[0].mxu0
      %v3627 = vadd.f32 %v3514, %v3626
      %v3628 = vpop.f32.mrb[0].mxu0
      %v3629 = vpop.f32.mrb[0].mxu0
      %v3630 = vadd.f32 %v3514, %v3629
      %v3631 = vpop.f32.mrb[0].mxu0
      %3632 = vmatprep.mubr.bf16.mxu0 0
      %3633 = vmatmul.mubr.bf16.gmra.mrb[0].mxu0 %v3547
      %v3634 = vpop.f32.mrb[0].mxu0
      %v3635 = vadd.f32 %v3514, %v3634
      %v3636 = vpop.f32.mrb[0].mxu0
      %v3637 = vpop.f32.mrb[0].mxu0
      %v3638 = vadd.f32 %v3514, %v3637
      %v3639 = vpop.f32.mrb[0].mxu0
      %3640 = vmatprep.mubr.bf16.mxu0 0
      %3641 = vmatmul.mubr.bf16.gmra.mrb[0].mxu0 %v3550
      %v3642 = vpop.f32.mrb[0].mxu0
      %v3643 = vadd.f32 %v3514, %v3642
      %v3644 = vpop.f32.mrb[0].mxu0
      %v3645 = vpop.f32.mrb[0].mxu0
      %v3646 = vadd.f32 %v3514, %v3645
      %v3647 = vpop.f32.mrb[0].mxu0
      %3648 = vdwg.mxu0
      %v3649 = vadd.f32 %v477, %v3587
      %v3650 = vadd.f32 %v478, %v3590
      %v3651 = vadd.f32 %v479, %v3595
      %v3652 = vadd.f32 %v480, %v3598
      %v3653 = vadd.f32 %v481, %v3603
      %v3654 = vadd.f32 %v482, %v3606
      %v3655 = vadd.f32 %v483, %v3611
      %v3656 = vadd.f32 %v484, %v3614
      %v3657 = vadd.f32 %v485, %v3619
      %v3658 = vadd.f32 %v486, %v3622
      %v3659 = vadd.f32 %v487, %v3627
      %v3660 = vadd.f32 %v488, %v3630
      %v3661 = vadd.f32 %v489, %v3635
      %v3662 = vadd.f32 %v490, %v3638
      %v3663 = vadd.f32 %v491, %v3643
      %v3664 = vadd.f32 %v492, %v3646
      %v3665 = vld [vmem:[%s8] sm:$0x1]
      %v3666 = vld [vmem:[%s9] sm:$0x1]
      %v3667 = vsel %vm495, %v3649, 0.0
      %3668 = vadd.xlane.f32.xlu0 %v3667
      %v3669 = vpop.xlane.xlu0 %3668
      %v3670 = vsel %vm495, %v3650, 0.0
      %3671 = vadd.xlane.f32.xlu0 %v3670
      %v3672 = vpop.xlane.xlu0 %3671
      %v3673 = vsel %vm495, %v3651, 0.0
      %3674 = vadd.xlane.f32.xlu0 %v3673
      %v3675 = vpop.xlane.xlu0 %3674
      %v3676 = vsel %vm495, %v3652, 0.0
      %3677 = vadd.xlane.f32.xlu0 %v3676
      %v3678 = vpop.xlane.xlu0 %3677
      %v3679 = vsel %vm495, %v3653, 0.0
      %3680 = vadd.xlane.f32.xlu0 %v3679
      %v3681 = vpop.xlane.xlu0 %3680
      %v3682 = vsel %vm495, %v3654, 0.0
      %3683 = vadd.xlane.f32.xlu0 %v3682
      %v3684 = vpop.xlane.xlu0 %3683
      %v3685 = vsel %vm495, %v3655, 0.0
      %3686 = vadd.xlane.f32.xlu0 %v3685
      %v3687 = vpop.xlane.xlu0 %3686
      %v3688 = vsel %vm495, %v3656, 0.0
      %3689 = vadd.xlane.f32.xlu0 %v3688
      %v3690 = vpop.xlane.xlu0 %3689
      %v3691 = vsel %vm495, %v3657, 0.0
      %3692 = vadd.xlane.f32.xlu0 %v3691
      %v3693 = vpop.xlane.xlu0 %3692
      %v3694 = vsel %vm495, %v3658, 0.0
      %3695 = vadd.xlane.f32.xlu0 %v3694
      %v3696 = vpop.xlane.xlu0 %3695
      %v3697 = vsel %vm495, %v3659, 0.0
      %3698 = vadd.xlane.f32.xlu0 %v3697
      %v3699 = vpop.xlane.xlu0 %3698
      %v3700 = vsel %vm495, %v3660, 0.0
      %3701 = vadd.xlane.f32.xlu0 %v3700
      %v3702 = vpop.xlane.xlu0 %3701
      %v3703 = vsel %vm495, %v3661, 0.0
      %3704 = vadd.xlane.f32.xlu0 %v3703
      %v3705 = vpop.xlane.xlu0 %3704
      %v3706 = vsel %vm495, %v3662, 0.0
      %3707 = vadd.xlane.f32.xlu0 %v3706
      %v3708 = vpop.xlane.xlu0 %3707
      %v3709 = vsel %vm495, %v3663, 0.0
      %3710 = vadd.xlane.f32.xlu0 %v3709
      %v3711 = vpop.xlane.xlu0 %3710
      %v3712 = vsel %vm495, %v3664, 0.0
      %3713 = vadd.xlane.f32.xlu0 %v3712
      %v3714 = vpop.xlane.xlu0 %3713
      %v3715 = vmul.f32 %v3669, %v544
      %v3716 = vmul.f32 %v3672, %v544
      %v3717 = vmul.f32 %v3675, %v544
      %v3718 = vmul.f32 %v3678, %v544
      %v3719 = vmul.f32 %v3681, %v544
      %v3720 = vmul.f32 %v3684, %v544
      %v3721 = vmul.f32 %v3687, %v544
      %v3722 = vmul.f32 %v3690, %v544
      %v3723 = vmul.f32 %v3693, %v544
      %v3724 = vmul.f32 %v3696, %v544
      %v3725 = vmul.f32 %v3699, %v544
      %v3726 = vmul.f32 %v3702, %v544
      %v3727 = vmul.f32 %v3705, %v544
      %v3728 = vmul.f32 %v3708, %v544
      %v3729 = vmul.f32 %v3711, %v544
      %v3730 = vmul.f32 %v3714, %v544
      %v3731 = vsub.f32 %v3649, %v3715
      %v3732 = vsub.f32 %v3650, %v3716
      %v3733 = vsub.f32 %v3651, %v3717
      %v3734 = vsub.f32 %v3652, %v3718
      %v3735 = vsub.f32 %v3653, %v3719
      %v3736 = vsub.f32 %v3654, %v3720
      %v3737 = vsub.f32 %v3655, %v3721
      %v3738 = vsub.f32 %v3656, %v3722
      %v3739 = vsub.f32 %v3657, %v3723
      %v3740 = vsub.f32 %v3658, %v3724
      %v3741 = vsub.f32 %v3659, %v3725
      %v3742 = vsub.f32 %v3660, %v3726
      %v3743 = vsub.f32 %v3661, %v3727
      %v3744 = vsub.f32 %v3662, %v3728
      %v3745 = vsub.f32 %v3663, %v3729
      %v3746 = vsub.f32 %v3664, %v3730
      %v3747 = vmul.f32 %v3731, %v3731
      %v3748 = vmul.f32 %v3732, %v3732
      %v3749 = vmul.f32 %v3733, %v3733
      %v3750 = vmul.f32 %v3734, %v3734
      %v3751 = vmul.f32 %v3735, %v3735
      %v3752 = vmul.f32 %v3736, %v3736
      %v3753 = vmul.f32 %v3737, %v3737
      %v3754 = vmul.f32 %v3738, %v3738
      %v3755 = vmul.f32 %v3739, %v3739
      %v3756 = vmul.f32 %v3740, %v3740
      %v3757 = vmul.f32 %v3741, %v3741
      %v3758 = vmul.f32 %v3742, %v3742
      %v3759 = vmul.f32 %v3743, %v3743
      %v3760 = vmul.f32 %v3744, %v3744
      %v3761 = vmul.f32 %v3745, %v3745
      %v3762 = vmul.f32 %v3746, %v3746
      %v3763 = vsel %vm495, %v3747, 0.0
      %3764 = vadd.xlane.f32.xlu0 %v3763
      %v3765 = vpop.xlane.xlu0 %3764
      %v3766 = vsel %vm495, %v3748, 0.0
      %3767 = vadd.xlane.f32.xlu0 %v3766
      %v3768 = vpop.xlane.xlu0 %3767
      %v3769 = vsel %vm495, %v3749, 0.0
      %3770 = vadd.xlane.f32.xlu0 %v3769
      %v3771 = vpop.xlane.xlu0 %3770
      %v3772 = vsel %vm495, %v3750, 0.0
      %3773 = vadd.xlane.f32.xlu0 %v3772
      %v3774 = vpop.xlane.xlu0 %3773
      %v3775 = vsel %vm495, %v3751, 0.0
      %3776 = vadd.xlane.f32.xlu0 %v3775
      %v3777 = vpop.xlane.xlu0 %3776
      %v3778 = vsel %vm495, %v3752, 0.0
      %3779 = vadd.xlane.f32.xlu0 %v3778
      %v3780 = vpop.xlane.xlu0 %3779
      %v3781 = vsel %vm495, %v3753, 0.0
      %3782 = vadd.xlane.f32.xlu0 %v3781
      %v3783 = vpop.xlane.xlu0 %3782
      %v3784 = vsel %vm495, %v3754, 0.0
      %3785 = vadd.xlane.f32.xlu0 %v3784
      %v3786 = vpop.xlane.xlu0 %3785
      %v3787 = vsel %vm495, %v3755, 0.0
      %3788 = vadd.xlane.f32.xlu0 %v3787
      %v3789 = vpop.xlane.xlu0 %3788
      %v3790 = vsel %vm495, %v3756, 0.0
      %3791 = vadd.xlane.f32.xlu0 %v3790
      %v3792 = vpop.xlane.xlu0 %3791
      %v3793 = vsel %vm495, %v3757, 0.0
      %3794 = vadd.xlane.f32.xlu0 %v3793
      %v3795 = vpop.xlane.xlu0 %3794
      %v3796 = vsel %vm495, %v3758, 0.0
      %3797 = vadd.xlane.f32.xlu0 %v3796
      %v3798 = vpop.xlane.xlu0 %3797
      %v3799 = vsel %vm495, %v3759, 0.0
      %3800 = vadd.xlane.f32.xlu0 %v3799
      %v3801 = vpop.xlane.xlu0 %3800
      %v3802 = vsel %vm495, %v3760, 0.0
      %3803 = vadd.xlane.f32.xlu0 %v3802
      %v3804 = vpop.xlane.xlu0 %3803
      %v3805 = vsel %vm495, %v3761, 0.0
      %3806 = vadd.xlane.f32.xlu0 %v3805
      %v3807 = vpop.xlane.xlu0 %3806
      %v3808 = vsel %vm495, %v3762, 0.0
      %3809 = vadd.xlane.f32.xlu0 %v3808
      %v3810 = vpop.xlane.xlu0 %3809
      %v3811 = vmul.f32 %v3765, %v544
      %v3812 = vmul.f32 %v3768, %v544
      %v3813 = vmul.f32 %v3771, %v544
      %v3814 = vmul.f32 %v3774, %v544
      %v3815 = vmul.f32 %v3777, %v544
      %v3816 = vmul.f32 %v3780, %v544
      %v3817 = vmul.f32 %v3783, %v544
      %v3818 = vmul.f32 %v3786, %v544
      %v3819 = vmul.f32 %v3789, %v544
      %v3820 = vmul.f32 %v3792, %v544
      %v3821 = vmul.f32 %v3795, %v544
      %v3822 = vmul.f32 %v3798, %v544
      %v3823 = vmul.f32 %v3801, %v544
      %v3824 = vmul.f32 %v3804, %v544
      %v3825 = vmul.f32 %v3807, %v544
      %v3826 = vmul.f32 %v3810, %v544
      %v3827 = vadd.f32 %v3811, 1e-05
      %v3828 = vadd.f32 %v3812, 1e-05
      %v3829 = vadd.f32 %v3813, 1e-05
      %v3830 = vadd.f32 %v3814, 1e-05
      %v3831 = vadd.f32 %v3815, 1e-05
      %v3832 = vadd.f32 %v3816, 1e-05
      %v3833 = vadd.f32 %v3817, 1e-05
      %v3834 = vadd.f32 %v3818, 1e-05
      %v3835 = vadd.f32 %v3819, 1e-05
      %v3836 = vadd.f32 %v3820, 1e-05
      %v3837 = vadd.f32 %v3821, 1e-05
      %v3838 = vadd.f32 %v3822, 1e-05
      %v3839 = vadd.f32 %v3823, 1e-05
      %v3840 = vadd.f32 %v3824, 1e-05
      %v3841 = vadd.f32 %v3825, 1e-05
      %v3842 = vadd.f32 %v3826, 1e-05
      %v3843 = vrsqrt.pop %v3827
      %v3844 = vrsqrt.pop %v3828
      %v3845 = vrsqrt.pop %v3829
      %v3846 = vrsqrt.pop %v3830
      %v3847 = vrsqrt.pop %v3831
      %v3848 = vrsqrt.pop %v3832
      %v3849 = vrsqrt.pop %v3833
      %v3850 = vrsqrt.pop %v3834
      %v3851 = vrsqrt.pop %v3835
      %v3852 = vrsqrt.pop %v3836
      %v3853 = vrsqrt.pop %v3837
      %v3854 = vrsqrt.pop %v3838
      %v3855 = vrsqrt.pop %v3839
      %v3856 = vrsqrt.pop %v3840
      %v3857 = vrsqrt.pop %v3841
      %v3858 = vrsqrt.pop %v3842
      %v3859 = vmul.f32 %v3731, %v3843
      %v3860 = vmul.f32 %v3732, %v3844
      %v3861 = vmul.f32 %v3733, %v3845
      %v3862 = vmul.f32 %v3734, %v3846
      %v3863 = vmul.f32 %v3735, %v3847
      %v3864 = vmul.f32 %v3736, %v3848
      %v3865 = vmul.f32 %v3737, %v3849
      %v3866 = vmul.f32 %v3738, %v3850
      %v3867 = vmul.f32 %v3739, %v3851
      %v3868 = vmul.f32 %v3740, %v3852
      %v3869 = vmul.f32 %v3741, %v3853
      %v3870 = vmul.f32 %v3742, %v3854
      %v3871 = vmul.f32 %v3743, %v3855
      %v3872 = vmul.f32 %v3744, %v3856
      %v3873 = vmul.f32 %v3745, %v3857
      %v3874 = vmul.f32 %v3746, %v3858
      %v3876 = vlaneseq
      %v3877 = vshrl.u32 %v3876, 7
      %v3878 = vsub.s32 0, %v3877
      %v3879 = vrot.slane %v3665, %v3878
      %v3881 = vmul.f32 %v3859, %v3879
      %v3882 = vmul.f32 %v3860, %v3879
      %v3883 = vmul.f32 %v3861, %v3879
      %v3884 = vmul.f32 %v3862, %v3879
      %v3885 = vmul.f32 %v3863, %v3879
      %v3886 = vmul.f32 %v3864, %v3879
      %v3887 = vmul.f32 %v3865, %v3879
      %v3888 = vmul.f32 %v3866, %v3879
      %v3889 = vmul.f32 %v3867, %v3879
      %v3890 = vmul.f32 %v3868, %v3879
      %v3891 = vmul.f32 %v3869, %v3879
      %v3892 = vmul.f32 %v3870, %v3879
      %v3893 = vmul.f32 %v3871, %v3879
      %v3894 = vmul.f32 %v3872, %v3879
      %v3895 = vmul.f32 %v3873, %v3879
      %v3896 = vmul.f32 %v3874, %v3879
      %v3898 = vlaneseq
      %v3899 = vshrl.u32 %v3898, 7
      %v3900 = vsub.s32 0, %v3899
      %v3901 = vrot.slane %v3666, %v3900
      %v3903 = vadd.f32 %v3881, %v3901
      %v3904 = vadd.f32 %v3882, %v3901
      %v3905 = vadd.f32 %v3883, %v3901
      %v3906 = vadd.f32 %v3884, %v3901
      %v3907 = vadd.f32 %v3885, %v3901
      %v3908 = vadd.f32 %v3886, %v3901
      %v3909 = vadd.f32 %v3887, %v3901
      %v3910 = vadd.f32 %v3888, %v3901
      %v3911 = vadd.f32 %v3889, %v3901
      %v3912 = vadd.f32 %v3890, %v3901
      %v3913 = vadd.f32 %v3891, %v3901
      %v3914 = vadd.f32 %v3892, %v3901
      %v3915 = vadd.f32 %v3893, %v3901
      %v3916 = vadd.f32 %v3894, %v3901
      %v3917 = vadd.f32 %v3895, %v3901
      %v3918 = vadd.f32 %v3896, %v3901
      %v3919 = vpack.c.bf16 %v3904, %v3903
      %v3920 = vpack.c.bf16 %v3906, %v3905
      %v3921 = vpack.c.bf16 %v3908, %v3907
      %v3922 = vpack.c.bf16 %v3910, %v3909
      %v3923 = vpack.c.bf16 %v3912, %v3911
      %v3924 = vpack.c.bf16 %v3914, %v3913
      %v3925 = vpack.c.bf16 %v3916, %v3915
      %v3926 = vpack.c.bf16 %v3918, %v3917
      %v3927 = vld [vmem:[%s10] sm:$0xf]
      %v3928 = vld [vmem:[%s10 + $0x4] sm:$0xf]
      %v3929 = vld [vmem:[%s10 + $0x8] sm:$0xf]
      %v3930 = vld [vmem:[%s10 + $0xc] sm:$0xf]
      %v3931 = vld [vmem:[%s11] sm:$0x1]
      %v3933 = vlaneseq
      %v3934 = vshrl.u32 %v3933, 7
      %v3935 = vsub.s32 0, %v3934
      %v3936 = vrot.slane %v3931, %v3935
      %v3942 = vunpack.c.l.b16 %v3927
      %v3943 = vunpack.c.l.b16 %v3928
      %v3944 = vunpack.c.l.b16 %v3929
      %v3945 = vunpack.c.l.b16 %v3930
      %v3946 = vpack.c.b16 %v3943, %v3942
      %v3947 = vpack.c.b16 %v3945, %v3944
      %v3951 = vsel %vm495, %v3919, 0
      %v3954 = vsel %vm495, %v3920, 0
      %v3957 = vsel %vm495, %v3921, 0
      %v3960 = vsel %vm495, %v3922, 0
      %v3963 = vsel %vm495, %v3923, 0
      %v3966 = vsel %vm495, %v3924, 0
      %v3969 = vsel %vm495, %v3925, 0
      %v3972 = vsel %vm495, %v3926, 0
      %3974 = vmatprep.subr.bf16.mxu0 0
      %3975 = vmatpush1.bf16.msra.mxu0 %v3946
      %3976 = vmatprep.subr.bf16.mxu0 0
      %3977 = vmatpush1.bf16.msra.mxu0 %v3947
      %3978 = vmatprep.subr.bf16.mxu0 0
      %3979 = vmatpush1.bf16.msra.mxu0 0
      %3980 = vmatprep.subr.bf16.mxu0 0
      %3981 = vmatpush1.bf16.msra.mxu0 0
      %3982 = vmatprep.subr.bf16.mxu0 0
      %3983 = vmatpush1.bf16.msra.mxu0 0
      %3984 = vmatprep.subr.bf16.mxu0 0
      %3985 = vmatpush1.bf16.msra.mxu0 0
      %3986 = vmatprep.subr.bf16.mxu0 0
      %3987 = vmatpush1.bf16.msra.mxu0 0
      %3988 = vmatprep.subr.bf16.mxu0 0
      %3989 = vmatpush1.bf16.msra.mxu0 0
      %3990 = vmatprep.subr.bf16.mxu0 0
      %3991 = vmatpush1.bf16.msra.mxu0 0
      %3992 = vmatprep.subr.bf16.mxu0 0
      %3993 = vmatpush1.bf16.msra.mxu0 0
      %3994 = vmatprep.subr.bf16.mxu0 0
      %3995 = vmatpush1.bf16.msra.mxu0 0
      %3996 = vmatprep.subr.bf16.mxu0 0
      %3997 = vmatpush1.bf16.msra.mxu0 0
      %3998 = vmatprep.subr.bf16.mxu0 0
      %3999 = vmatpush1.bf16.msra.mxu0 0
      %4000 = vmatprep.subr.bf16.mxu0 0
      %4001 = vmatpush1.bf16.msra.mxu0 0
      %4002 = vmatprep.subr.bf16.mxu0 0
      %4003 = vmatpush1.bf16.msra.mxu0 0
      %4004 = vmatprep.subr.bf16.mxu0 0
      %4005 = vmatpush1.bf16.msra.mxu0 0
      %4006 = vmatprep.mubr.bf16.mxu0 0
      %4007 = vmatmul.mubr.bf16.gmra.mrb[0].mxu0 %v3951
      %v4008 = vpop.f32.mrb[0].mxu0
      %v4009 = vadd.f32 %v3936, %v4008
      %v4010 = vpop.f32.mrb[0].mxu0
      %v4011 = vpop.f32.mrb[0].mxu0
      %v4012 = vadd.f32 %v3936, %v4011
      %v4013 = vpop.f32.mrb[0].mxu0
      %4014 = vmatprep.mubr.bf16.mxu0 0
      %4015 = vmatmul.mubr.bf16.gmra.mrb[0].mxu0 %v3954
      %v4016 = vpop.f32.mrb[0].mxu0
      %v4017 = vadd.f32 %v3936, %v4016
      %v4018 = vpop.f32.mrb[0].mxu0
      %v4019 = vpop.f32.mrb[0].mxu0
      %v4020 = vadd.f32 %v3936, %v4019
      %v4021 = vpop.f32.mrb[0].mxu0
      %4022 = vmatprep.mubr.bf16.mxu0 0
      %4023 = vmatmul.mubr.bf16.gmra.mrb[0].mxu0 %v3957
      %v4024 = vpop.f32.mrb[0].mxu0
      %v4025 = vadd.f32 %v3936, %v4024
      %v4026 = vpop.f32.mrb[0].mxu0
      %v4027 = vpop.f32.mrb[0].mxu0
      %v4028 = vadd.f32 %v3936, %v4027
      %v4029 = vpop.f32.mrb[0].mxu0
      %4030 = vmatprep.mubr.bf16.mxu0 0
      %4031 = vmatmul.mubr.bf16.gmra.mrb[0].mxu0 %v3960
      %v4032 = vpop.f32.mrb[0].mxu0
      %v4033 = vadd.f32 %v3936, %v4032
      %v4034 = vpop.f32.mrb[0].mxu0
      %v4035 = vpop.f32.mrb[0].mxu0
      %v4036 = vadd.f32 %v3936, %v4035
      %v4037 = vpop.f32.mrb[0].mxu0
      %4038 = vmatprep.mubr.bf16.mxu0 0
      %4039 = vmatmul.mubr.bf16.gmra.mrb[0].mxu0 %v3963
      %v4040 = vpop.f32.mrb[0].mxu0
      %v4041 = vadd.f32 %v3936, %v4040
      %v4042 = vpop.f32.mrb[0].mxu0
      %v4043 = vpop.f32.mrb[0].mxu0
      %v4044 = vadd.f32 %v3936, %v4043
      %v4045 = vpop.f32.mrb[0].mxu0
      %4046 = vmatprep.mubr.bf16.mxu0 0
      %4047 = vmatmul.mubr.bf16.gmra.mrb[0].mxu0 %v3966
      %v4048 = vpop.f32.mrb[0].mxu0
      %v4049 = vadd.f32 %v3936, %v4048
      %v4050 = vpop.f32.mrb[0].mxu0
      %v4051 = vpop.f32.mrb[0].mxu0
      %v4052 = vadd.f32 %v3936, %v4051
      %v4053 = vpop.f32.mrb[0].mxu0
      %4054 = vmatprep.mubr.bf16.mxu0 0
      %4055 = vmatmul.mubr.bf16.gmra.mrb[0].mxu0 %v3969
      %v4056 = vpop.f32.mrb[0].mxu0
      %v4057 = vadd.f32 %v3936, %v4056
      %v4058 = vpop.f32.mrb[0].mxu0
      %v4059 = vpop.f32.mrb[0].mxu0
      %v4060 = vadd.f32 %v3936, %v4059
      %v4061 = vpop.f32.mrb[0].mxu0
      %4062 = vmatprep.mubr.bf16.mxu0 0
      %4063 = vmatmul.mubr.bf16.gmra.mrb[0].mxu0 %v3972
      %v4064 = vpop.f32.mrb[0].mxu0
      %v4065 = vadd.f32 %v3936, %v4064
      %v4066 = vpop.f32.mrb[0].mxu0
      %v4067 = vpop.f32.mrb[0].mxu0
      %v4068 = vadd.f32 %v3936, %v4067
      %v4069 = vpop.f32.mrb[0].mxu0
      %4070 = vdwg.mxu0
      %v4071 = vmul.f32 %v4009, 0.5
      %v4072 = vmul.f32 %v4012, 0.5
      %v4073 = vmul.f32 %v4017, 0.5
      %v4074 = vmul.f32 %v4020, 0.5
      %v4075 = vmul.f32 %v4025, 0.5
      %v4076 = vmul.f32 %v4028, 0.5
      %v4077 = vmul.f32 %v4033, 0.5
      %v4078 = vmul.f32 %v4036, 0.5
      %v4079 = vmul.f32 %v4041, 0.5
      %v4080 = vmul.f32 %v4044, 0.5
      %v4081 = vmul.f32 %v4049, 0.5
      %v4082 = vmul.f32 %v4052, 0.5
      %v4083 = vmul.f32 %v4057, 0.5
      %v4084 = vmul.f32 %v4060, 0.5
      %v4085 = vmul.f32 %v4065, 0.5
      %v4086 = vmul.f32 %v4068, 0.5
      %v4087 = vmul.f32 %v4009, 0.70710677
      %v4088 = vmul.f32 %v4012, 0.70710677
      %v4089 = vmul.f32 %v4017, 0.70710677
      %v4090 = vmul.f32 %v4020, 0.70710677
      %v4091 = vmul.f32 %v4025, 0.70710677
      %v4092 = vmul.f32 %v4028, 0.70710677
      %v4093 = vmul.f32 %v4033, 0.70710677
      %v4094 = vmul.f32 %v4036, 0.70710677
      %v4095 = vmul.f32 %v4041, 0.70710677
      %v4096 = vmul.f32 %v4044, 0.70710677
      %v4097 = vmul.f32 %v4049, 0.70710677
      %v4098 = vmul.f32 %v4052, 0.70710677
      %v4099 = vmul.f32 %v4057, 0.70710677
      %v4100 = vmul.f32 %v4060, 0.70710677
      %v4101 = vmul.f32 %v4065, 0.70710677
      %v4102 = vmul.f32 %v4068, 0.70710677
      %v4103 = verf.f32.pop %v4087
      %v4104 = verf.f32.pop %v4088
      %v4105 = verf.f32.pop %v4089
      %v4106 = verf.f32.pop %v4090
      %v4107 = verf.f32.pop %v4091
      %v4108 = verf.f32.pop %v4092
      %v4109 = verf.f32.pop %v4093
      %v4110 = verf.f32.pop %v4094
      %v4111 = verf.f32.pop %v4095
      %v4112 = verf.f32.pop %v4096
      %v4113 = verf.f32.pop %v4097
      %v4114 = verf.f32.pop %v4098
      %v4115 = verf.f32.pop %v4099
      %v4116 = verf.f32.pop %v4100
      %v4117 = verf.f32.pop %v4101
      %v4118 = verf.f32.pop %v4102
      %v4119 = vadd.f32 %v4103, 1.0
      %v4120 = vadd.f32 %v4104, 1.0
      %v4121 = vadd.f32 %v4105, 1.0
      %v4122 = vadd.f32 %v4106, 1.0
      %v4123 = vadd.f32 %v4107, 1.0
      %v4124 = vadd.f32 %v4108, 1.0
      %v4125 = vadd.f32 %v4109, 1.0
      %v4126 = vadd.f32 %v4110, 1.0
      %v4127 = vadd.f32 %v4111, 1.0
      %v4128 = vadd.f32 %v4112, 1.0
      %v4129 = vadd.f32 %v4113, 1.0
      %v4130 = vadd.f32 %v4114, 1.0
      %v4131 = vadd.f32 %v4115, 1.0
      %v4132 = vadd.f32 %v4116, 1.0
      %v4133 = vadd.f32 %v4117, 1.0
      %v4134 = vadd.f32 %v4118, 1.0
      %v4135 = vmul.f32 %v4071, %v4119
      %v4136 = vmul.f32 %v4072, %v4120
      %v4137 = vmul.f32 %v4073, %v4121
      %v4138 = vmul.f32 %v4074, %v4122
      %v4139 = vmul.f32 %v4075, %v4123
      %v4140 = vmul.f32 %v4076, %v4124
      %v4141 = vmul.f32 %v4077, %v4125
      %v4142 = vmul.f32 %v4078, %v4126
      %v4143 = vmul.f32 %v4079, %v4127
      %v4144 = vmul.f32 %v4080, %v4128
      %v4145 = vmul.f32 %v4081, %v4129
      %v4146 = vmul.f32 %v4082, %v4130
      %v4147 = vmul.f32 %v4083, %v4131
      %v4148 = vmul.f32 %v4084, %v4132
      %v4149 = vmul.f32 %v4085, %v4133
      %v4150 = vmul.f32 %v4086, %v4134
      %v4151 = vpack.c.bf16 %v4136, %v4135
      %v4152 = vpack.c.bf16 %v4138, %v4137
      %v4153 = vpack.c.bf16 %v4140, %v4139
      %v4154 = vpack.c.bf16 %v4142, %v4141
      %v4155 = vpack.c.bf16 %v4144, %v4143
      %v4156 = vpack.c.bf16 %v4146, %v4145
      %v4157 = vpack.c.bf16 %v4148, %v4147
      %v4158 = vpack.c.bf16 %v4150, %v4149
      %v4159 = vld [vmem:[%s12] sm:$0xf]
      %v4160 = vld [vmem:[%s12 + $0x4] sm:$0xf]
      %v4161 = vld [vmem:[%s12 + $0x8] sm:$0xf]
      %v4162 = vld [vmem:[%s12 + $0xc] sm:$0xf]
      %v4163 = vld [vmem:[%s12 + $0x10] sm:$0xf]
      %v4164 = vld [vmem:[%s12 + $0x14] sm:$0xf]
      %v4165 = vld [vmem:[%s12 + $0x18] sm:$0xf]
      %v4166 = vld [vmem:[%s12 + $0x1c] sm:$0xf]
      %v4167 = vld [vmem:[%s12 + $0x20] sm:$0xf]
      %v4168 = vld [vmem:[%s12 + $0x24] sm:$0xf]
      %v4169 = vld [vmem:[%s12 + $0x28] sm:$0xf]
      %v4170 = vld [vmem:[%s12 + $0x2c] sm:$0xf]
      %v4171 = vld [vmem:[%s12 + $0x30] sm:$0xf]
      %v4172 = vld [vmem:[%s12 + $0x34] sm:$0xf]
      %v4173 = vld [vmem:[%s12 + $0x38] sm:$0xf]
      %v4174 = vld [vmem:[%s12 + $0x3c] sm:$0xf]
      %v4191 = vunpack.c.l.b16 %v4159
      %v4192 = vunpack.c.l.b16 %v4160
      %v4193 = vunpack.c.l.b16 %v4161
      %v4194 = vunpack.c.l.b16 %v4162
      %v4195 = vunpack.c.l.b16 %v4163
      %v4196 = vunpack.c.l.b16 %v4164
      %v4197 = vunpack.c.l.b16 %v4165
      %v4198 = vunpack.c.l.b16 %v4166
      %v4199 = vunpack.c.l.b16 %v4167
      %v4200 = vunpack.c.l.b16 %v4168
      %v4201 = vunpack.c.l.b16 %v4169
      %v4202 = vunpack.c.l.b16 %v4170
      %v4203 = vunpack.c.l.b16 %v4171
      %v4204 = vunpack.c.l.b16 %v4172
      %v4205 = vunpack.c.l.b16 %v4173
      %v4206 = vunpack.c.l.b16 %v4174
      %v4207 = vpack.c.b16 %v4192, %v4191
      %v4208 = vpack.c.b16 %v4194, %v4193
      %v4209 = vpack.c.b16 %v4196, %v4195
      %v4210 = vpack.c.b16 %v4198, %v4197
      %v4211 = vpack.c.b16 %v4200, %v4199
      %v4212 = vpack.c.b16 %v4202, %v4201
      %v4213 = vpack.c.b16 %v4204, %v4203
      %v4214 = vpack.c.b16 %v4206, %v4205
      %4223 = vmatprep.subr.bf16.mxu0 0
      %4224 = vmatpush1.bf16.msra.mxu0 %v4207
      %4225 = vmatprep.subr.bf16.mxu0 0
      %4226 = vmatpush1.bf16.msra.mxu0 %v4208
      %4227 = vmatprep.subr.bf16.mxu0 0
      %4228 = vmatpush1.bf16.msra.mxu0 %v4209
      %4229 = vmatprep.subr.bf16.mxu0 0
      %4230 = vmatpush1.bf16.msra.mxu0 %v4210
      %4231 = vmatprep.subr.bf16.mxu0 0
      %4232 = vmatpush1.bf16.msra.mxu0 %v4211
      %4233 = vmatprep.subr.bf16.mxu0 0
      %4234 = vmatpush1.bf16.msra.mxu0 %v4212
      %4235 = vmatprep.subr.bf16.mxu0 0
      %4236 = vmatpush1.bf16.msra.mxu0 %v4213
      %4237 = vmatprep.subr.bf16.mxu0 0
      %4238 = vmatpush1.bf16.msra.mxu0 %v4214
      %4239 = vmatprep.subr.bf16.mxu0 0
      %4240 = vmatpush1.bf16.msra.mxu0 0
      %4241 = vmatprep.subr.bf16.mxu0 0
      %4242 = vmatpush1.bf16.msra.mxu0 0
      %4243 = vmatprep.subr.bf16.mxu0 0
      %4244 = vmatpush1.bf16.msra.mxu0 0
      %4245 = vmatprep.subr.bf16.mxu0 0
      %4246 = vmatpush1.bf16.msra.mxu0 0
      %4247 = vmatprep.subr.bf16.mxu0 0
      %4248 = vmatpush1.bf16.msra.mxu0 0
      %4249 = vmatprep.subr.bf16.mxu0 0
      %4250 = vmatpush1.bf16.msra.mxu0 0
      %4251 = vmatprep.subr.bf16.mxu0 0
      %4252 = vmatpush1.bf16.msra.mxu0 0
      %4253 = vmatprep.subr.bf16.mxu0 0
      %4254 = vmatpush1.bf16.msra.mxu0 0
      %4255 = vmatprep.mubr.bf16.mxu0 0
      %4256 = vmatmul.mubr.bf16.gmra.mrb[0].mxu0 %v4151
      %v4257 = vpop.f32.mrb[0].mxu0
      %v4258 = vadd.f32 0.0, %v4257
      %v4259 = vpop.f32.mrb[0].mxu0
      %v4260 = vpop.f32.mrb[0].mxu0
      %v4261 = vadd.f32 0.0, %v4260
      %v4262 = vpop.f32.mrb[0].mxu0
      %4263 = vmatprep.mubr.bf16.mxu0 0
      %4264 = vmatmul.mubr.bf16.gmra.mrb[0].mxu0 %v4152
      %v4265 = vpop.f32.mrb[0].mxu0
      %v4266 = vadd.f32 0.0, %v4265
      %v4267 = vpop.f32.mrb[0].mxu0
      %v4268 = vpop.f32.mrb[0].mxu0
      %v4269 = vadd.f32 0.0, %v4268
      %v4270 = vpop.f32.mrb[0].mxu0
      %4271 = vmatprep.mubr.bf16.mxu0 0
      %4272 = vmatmul.mubr.bf16.gmra.mrb[0].mxu0 %v4153
      %v4273 = vpop.f32.mrb[0].mxu0
      %v4274 = vadd.f32 0.0, %v4273
      %v4275 = vpop.f32.mrb[0].mxu0
      %v4276 = vpop.f32.mrb[0].mxu0
      %v4277 = vadd.f32 0.0, %v4276
      %v4278 = vpop.f32.mrb[0].mxu0
      %4279 = vmatprep.mubr.bf16.mxu0 0
      %4280 = vmatmul.mubr.bf16.gmra.mrb[0].mxu0 %v4154
      %v4281 = vpop.f32.mrb[0].mxu0
      %v4282 = vadd.f32 0.0, %v4281
      %v4283 = vpop.f32.mrb[0].mxu0
      %v4284 = vpop.f32.mrb[0].mxu0
      %v4285 = vadd.f32 0.0, %v4284
      %v4286 = vpop.f32.mrb[0].mxu0
      %4287 = vmatprep.mubr.bf16.mxu0 0
      %4288 = vmatmul.mubr.bf16.gmra.mrb[0].mxu0 %v4155
      %v4289 = vpop.f32.mrb[0].mxu0
      %v4290 = vadd.f32 0.0, %v4289
      %v4291 = vpop.f32.mrb[0].mxu0
      %v4292 = vpop.f32.mrb[0].mxu0
      %v4293 = vadd.f32 0.0, %v4292
      %v4294 = vpop.f32.mrb[0].mxu0
      %4295 = vmatprep.mubr.bf16.mxu0 0
      %4296 = vmatmul.mubr.bf16.gmra.mrb[0].mxu0 %v4156
      %v4297 = vpop.f32.mrb[0].mxu0
      %v4298 = vadd.f32 0.0, %v4297
      %v4299 = vpop.f32.mrb[0].mxu0
      %v4300 = vpop.f32.mrb[0].mxu0
      %v4301 = vadd.f32 0.0, %v4300
      %v4302 = vpop.f32.mrb[0].mxu0
      %4303 = vmatprep.mubr.bf16.mxu0 0
      %4304 = vmatmul.mubr.bf16.gmra.mrb[0].mxu0 %v4157
      %v4305 = vpop.f32.mrb[0].mxu0
      %v4306 = vadd.f32 0.0, %v4305
      %v4307 = vpop.f32.mrb[0].mxu0
      %v4308 = vpop.f32.mrb[0].mxu0
      %v4309 = vadd.f32 0.0, %v4308
      %v4310 = vpop.f32.mrb[0].mxu0
      %4311 = vmatprep.mubr.bf16.mxu0 0
      %4312 = vmatmul.mubr.bf16.gmra.mrb[0].mxu0 %v4158
      %v4313 = vpop.f32.mrb[0].mxu0
      %v4314 = vadd.f32 0.0, %v4313
      %v4315 = vpop.f32.mrb[0].mxu0
      %v4316 = vpop.f32.mrb[0].mxu0
      %v4317 = vadd.f32 0.0, %v4316
      %v4318 = vpop.f32.mrb[0].mxu0
      %4319 = vdwg.mxu0
      %v4320 = vadd.f32 %v3649, %v4258
      %v4321 = vadd.f32 %v3650, %v4261
      %v4322 = vadd.f32 %v3651, %v4266
      %v4323 = vadd.f32 %v3652, %v4269
      %v4324 = vadd.f32 %v3653, %v4274
      %v4325 = vadd.f32 %v3654, %v4277
      %v4326 = vadd.f32 %v3655, %v4282
      %v4327 = vadd.f32 %v3656, %v4285
      %v4328 = vadd.f32 %v3657, %v4290
      %v4329 = vadd.f32 %v3658, %v4293
      %v4330 = vadd.f32 %v3659, %v4298
      %v4331 = vadd.f32 %v3660, %v4301
      %v4332 = vadd.f32 %v3661, %v4306
      %v4333 = vadd.f32 %v3662, %v4309
      %v4334 = vadd.f32 %v3663, %v4314
      %v4335 = vadd.f32 %v3664, %v4317
      %v4336 = vld [vmem:[%s13] sm:$0x1]
      %v4338 = vlaneseq
      %v4339 = vshrl.u32 %v4338, 7
      %v4340 = vsub.s32 0, %v4339
      %v4341 = vrot.slane %v4336, %v4340
      %v4343 = vadd.f32 %v4320, %v4341
      %v4344 = vadd.f32 %v4321, %v4341
      %v4345 = vadd.f32 %v4322, %v4341
      %v4346 = vadd.f32 %v4323, %v4341
      %v4347 = vadd.f32 %v4324, %v4341
      %v4348 = vadd.f32 %v4325, %v4341
      %v4349 = vadd.f32 %v4326, %v4341
      %v4350 = vadd.f32 %v4327, %v4341
      %v4351 = vadd.f32 %v4328, %v4341
      %v4352 = vadd.f32 %v4329, %v4341
      %v4353 = vadd.f32 %v4330, %v4341
      %v4354 = vadd.f32 %v4331, %v4341
      %v4355 = vadd.f32 %v4332, %v4341
      %v4356 = vadd.f32 %v4333, %v4341
      %v4357 = vadd.f32 %v4334, %v4341
      %v4358 = vadd.f32 %v4335, %v4341
      %s4359 = scalar_lea.vmem %s2, 1
      %v4360 = vld [vmem:[%s4359] sm:$0x1]
      %s4361 = scalar_lea.vmem %s3, 1
      %v4362 = vld [vmem:[%s4361] sm:$0x1]
      %v4363 = vsel %vm495, %v4343, 0.0
      %4364 = vadd.xlane.f32.xlu0 %v4363
      %v4365 = vpop.xlane.xlu0 %4364
      %v4366 = vsel %vm495, %v4344, 0.0
      %4367 = vadd.xlane.f32.xlu0 %v4366
      %v4368 = vpop.xlane.xlu0 %4367
      %v4369 = vsel %vm495, %v4345, 0.0
      %4370 = vadd.xlane.f32.xlu0 %v4369
      %v4371 = vpop.xlane.xlu0 %4370
      %v4372 = vsel %vm495, %v4346, 0.0
      %4373 = vadd.xlane.f32.xlu0 %v4372
      %v4374 = vpop.xlane.xlu0 %4373
      %v4375 = vsel %vm495, %v4347, 0.0
      %4376 = vadd.xlane.f32.xlu0 %v4375
      %v4377 = vpop.xlane.xlu0 %4376
      %v4378 = vsel %vm495, %v4348, 0.0
      %4379 = vadd.xlane.f32.xlu0 %v4378
      %v4380 = vpop.xlane.xlu0 %4379
      %v4381 = vsel %vm495, %v4349, 0.0
      %4382 = vadd.xlane.f32.xlu0 %v4381
      %v4383 = vpop.xlane.xlu0 %4382
      %v4384 = vsel %vm495, %v4350, 0.0
      %4385 = vadd.xlane.f32.xlu0 %v4384
      %v4386 = vpop.xlane.xlu0 %4385
      %v4387 = vsel %vm495, %v4351, 0.0
      %4388 = vadd.xlane.f32.xlu0 %v4387
      %v4389 = vpop.xlane.xlu0 %4388
      %v4390 = vsel %vm495, %v4352, 0.0
      %4391 = vadd.xlane.f32.xlu0 %v4390
      %v4392 = vpop.xlane.xlu0 %4391
      %v4393 = vsel %vm495, %v4353, 0.0
      %4394 = vadd.xlane.f32.xlu0 %v4393
      %v4395 = vpop.xlane.xlu0 %4394
      %v4396 = vsel %vm495, %v4354, 0.0
      %4397 = vadd.xlane.f32.xlu0 %v4396
      %v4398 = vpop.xlane.xlu0 %4397
      %v4399 = vsel %vm495, %v4355, 0.0
      %4400 = vadd.xlane.f32.xlu0 %v4399
      %v4401 = vpop.xlane.xlu0 %4400
      %v4402 = vsel %vm495, %v4356, 0.0
      %4403 = vadd.xlane.f32.xlu0 %v4402
      %v4404 = vpop.xlane.xlu0 %4403
      %v4405 = vsel %vm495, %v4357, 0.0
      %4406 = vadd.xlane.f32.xlu0 %v4405
      %v4407 = vpop.xlane.xlu0 %4406
      %v4408 = vsel %vm495, %v4358, 0.0
      %4409 = vadd.xlane.f32.xlu0 %v4408
      %v4410 = vpop.xlane.xlu0 %4409
      %v4411 = vmul.f32 %v4365, %v544
      %v4412 = vmul.f32 %v4368, %v544
      %v4413 = vmul.f32 %v4371, %v544
      %v4414 = vmul.f32 %v4374, %v544
      %v4415 = vmul.f32 %v4377, %v544
      %v4416 = vmul.f32 %v4380, %v544
      %v4417 = vmul.f32 %v4383, %v544
      %v4418 = vmul.f32 %v4386, %v544
      %v4419 = vmul.f32 %v4389, %v544
      %v4420 = vmul.f32 %v4392, %v544
      %v4421 = vmul.f32 %v4395, %v544
      %v4422 = vmul.f32 %v4398, %v544
      %v4423 = vmul.f32 %v4401, %v544
      %v4424 = vmul.f32 %v4404, %v544
      %v4425 = vmul.f32 %v4407, %v544
      %v4426 = vmul.f32 %v4410, %v544
      %v4427 = vsub.f32 %v4343, %v4411
      %v4428 = vsub.f32 %v4344, %v4412
      %v4429 = vsub.f32 %v4345, %v4413
      %v4430 = vsub.f32 %v4346, %v4414
      %v4431 = vsub.f32 %v4347, %v4415
      %v4432 = vsub.f32 %v4348, %v4416
      %v4433 = vsub.f32 %v4349, %v4417
      %v4434 = vsub.f32 %v4350, %v4418
      %v4435 = vsub.f32 %v4351, %v4419
      %v4436 = vsub.f32 %v4352, %v4420
      %v4437 = vsub.f32 %v4353, %v4421
      %v4438 = vsub.f32 %v4354, %v4422
      %v4439 = vsub.f32 %v4355, %v4423
      %v4440 = vsub.f32 %v4356, %v4424
      %v4441 = vsub.f32 %v4357, %v4425
      %v4442 = vsub.f32 %v4358, %v4426
      %v4443 = vmul.f32 %v4427, %v4427
      %v4444 = vmul.f32 %v4428, %v4428
      %v4445 = vmul.f32 %v4429, %v4429
      %v4446 = vmul.f32 %v4430, %v4430
      %v4447 = vmul.f32 %v4431, %v4431
      %v4448 = vmul.f32 %v4432, %v4432
      %v4449 = vmul.f32 %v4433, %v4433
      %v4450 = vmul.f32 %v4434, %v4434
      %v4451 = vmul.f32 %v4435, %v4435
      %v4452 = vmul.f32 %v4436, %v4436
      %v4453 = vmul.f32 %v4437, %v4437
      %v4454 = vmul.f32 %v4438, %v4438
      %v4455 = vmul.f32 %v4439, %v4439
      %v4456 = vmul.f32 %v4440, %v4440
      %v4457 = vmul.f32 %v4441, %v4441
      %v4458 = vmul.f32 %v4442, %v4442
      %v4459 = vsel %vm495, %v4443, 0.0
      %4460 = vadd.xlane.f32.xlu0 %v4459
      %v4461 = vpop.xlane.xlu0 %4460
      %v4462 = vsel %vm495, %v4444, 0.0
      %4463 = vadd.xlane.f32.xlu0 %v4462
      %v4464 = vpop.xlane.xlu0 %4463
      %v4465 = vsel %vm495, %v4445, 0.0
      %4466 = vadd.xlane.f32.xlu0 %v4465
      %v4467 = vpop.xlane.xlu0 %4466
      %v4468 = vsel %vm495, %v4446, 0.0
      %4469 = vadd.xlane.f32.xlu0 %v4468
      %v4470 = vpop.xlane.xlu0 %4469
      %v4471 = vsel %vm495, %v4447, 0.0
      %4472 = vadd.xlane.f32.xlu0 %v4471
      %v4473 = vpop.xlane.xlu0 %4472
      %v4474 = vsel %vm495, %v4448, 0.0
      %4475 = vadd.xlane.f32.xlu0 %v4474
      %v4476 = vpop.xlane.xlu0 %4475
      %v4477 = vsel %vm495, %v4449, 0.0
      %4478 = vadd.xlane.f32.xlu0 %v4477
      %v4479 = vpop.xlane.xlu0 %4478
      %v4480 = vsel %vm495, %v4450, 0.0
      %4481 = vadd.xlane.f32.xlu0 %v4480
      %v4482 = vpop.xlane.xlu0 %4481
      %v4483 = vsel %vm495, %v4451, 0.0
      %4484 = vadd.xlane.f32.xlu0 %v4483
      %v4485 = vpop.xlane.xlu0 %4484
      %v4486 = vsel %vm495, %v4452, 0.0
      %4487 = vadd.xlane.f32.xlu0 %v4486
      %v4488 = vpop.xlane.xlu0 %4487
      %v4489 = vsel %vm495, %v4453, 0.0
      %4490 = vadd.xlane.f32.xlu0 %v4489
      %v4491 = vpop.xlane.xlu0 %4490
      %v4492 = vsel %vm495, %v4454, 0.0
      %4493 = vadd.xlane.f32.xlu0 %v4492
      %v4494 = vpop.xlane.xlu0 %4493
      %v4495 = vsel %vm495, %v4455, 0.0
      %4496 = vadd.xlane.f32.xlu0 %v4495
      %v4497 = vpop.xlane.xlu0 %4496
      %v4498 = vsel %vm495, %v4456, 0.0
      %4499 = vadd.xlane.f32.xlu0 %v4498
      %v4500 = vpop.xlane.xlu0 %4499
      %v4501 = vsel %vm495, %v4457, 0.0
      %4502 = vadd.xlane.f32.xlu0 %v4501
      %v4503 = vpop.xlane.xlu0 %4502
      %v4504 = vsel %vm495, %v4458, 0.0
      %4505 = vadd.xlane.f32.xlu0 %v4504
      %v4506 = vpop.xlane.xlu0 %4505
      %v4507 = vmul.f32 %v4461, %v544
      %v4508 = vmul.f32 %v4464, %v544
      %v4509 = vmul.f32 %v4467, %v544
      %v4510 = vmul.f32 %v4470, %v544
      %v4511 = vmul.f32 %v4473, %v544
      %v4512 = vmul.f32 %v4476, %v544
      %v4513 = vmul.f32 %v4479, %v544
      %v4514 = vmul.f32 %v4482, %v544
      %v4515 = vmul.f32 %v4485, %v544
      %v4516 = vmul.f32 %v4488, %v544
      %v4517 = vmul.f32 %v4491, %v544
      %v4518 = vmul.f32 %v4494, %v544
      %v4519 = vmul.f32 %v4497, %v544
      %v4520 = vmul.f32 %v4500, %v544
      %v4521 = vmul.f32 %v4503, %v544
      %v4522 = vmul.f32 %v4506, %v544
      %v4523 = vadd.f32 %v4507, 1e-05
      %v4524 = vadd.f32 %v4508, 1e-05
      %v4525 = vadd.f32 %v4509, 1e-05
      %v4526 = vadd.f32 %v4510, 1e-05
      %v4527 = vadd.f32 %v4511, 1e-05
      %v4528 = vadd.f32 %v4512, 1e-05
      %v4529 = vadd.f32 %v4513, 1e-05
      %v4530 = vadd.f32 %v4514, 1e-05
      %v4531 = vadd.f32 %v4515, 1e-05
      %v4532 = vadd.f32 %v4516, 1e-05
      %v4533 = vadd.f32 %v4517, 1e-05
      %v4534 = vadd.f32 %v4518, 1e-05
      %v4535 = vadd.f32 %v4519, 1e-05
      %v4536 = vadd.f32 %v4520, 1e-05
      %v4537 = vadd.f32 %v4521, 1e-05
      %v4538 = vadd.f32 %v4522, 1e-05
      %v4539 = vrsqrt.pop %v4523
      %v4540 = vrsqrt.pop %v4524
      %v4541 = vrsqrt.pop %v4525
      %v4542 = vrsqrt.pop %v4526
      %v4543 = vrsqrt.pop %v4527
      %v4544 = vrsqrt.pop %v4528
      %v4545 = vrsqrt.pop %v4529
      %v4546 = vrsqrt.pop %v4530
      %v4547 = vrsqrt.pop %v4531
      %v4548 = vrsqrt.pop %v4532
      %v4549 = vrsqrt.pop %v4533
      %v4550 = vrsqrt.pop %v4534
      %v4551 = vrsqrt.pop %v4535
      %v4552 = vrsqrt.pop %v4536
      %v4553 = vrsqrt.pop %v4537
      %v4554 = vrsqrt.pop %v4538
      %v4555 = vmul.f32 %v4427, %v4539
      %v4556 = vmul.f32 %v4428, %v4540
      %v4557 = vmul.f32 %v4429, %v4541
      %v4558 = vmul.f32 %v4430, %v4542
      %v4559 = vmul.f32 %v4431, %v4543
      %v4560 = vmul.f32 %v4432, %v4544
      %v4561 = vmul.f32 %v4433, %v4545
      %v4562 = vmul.f32 %v4434, %v4546
      %v4563 = vmul.f32 %v4435, %v4547
      %v4564 = vmul.f32 %v4436, %v4548
      %v4565 = vmul.f32 %v4437, %v4549
      %v4566 = vmul.f32 %v4438, %v4550
      %v4567 = vmul.f32 %v4439, %v4551
      %v4568 = vmul.f32 %v4440, %v4552
      %v4569 = vmul.f32 %v4441, %v4553
      %v4570 = vmul.f32 %v4442, %v4554
      %v4572 = vlaneseq
      %v4573 = vshrl.u32 %v4572, 7
      %v4574 = vsub.s32 0, %v4573
      %v4575 = vrot.slane %v4360, %v4574
      %v4577 = vmul.f32 %v4555, %v4575
      %v4578 = vmul.f32 %v4556, %v4575
      %v4579 = vmul.f32 %v4557, %v4575
      %v4580 = vmul.f32 %v4558, %v4575
      %v4581 = vmul.f32 %v4559, %v4575
      %v4582 = vmul.f32 %v4560, %v4575
      %v4583 = vmul.f32 %v4561, %v4575
      %v4584 = vmul.f32 %v4562, %v4575
      %v4585 = vmul.f32 %v4563, %v4575
      %v4586 = vmul.f32 %v4564, %v4575
      %v4587 = vmul.f32 %v4565, %v4575
      %v4588 = vmul.f32 %v4566, %v4575
      %v4589 = vmul.f32 %v4567, %v4575
      %v4590 = vmul.f32 %v4568, %v4575
      %v4591 = vmul.f32 %v4569, %v4575
      %v4592 = vmul.f32 %v4570, %v4575
      %v4594 = vlaneseq
      %v4595 = vshrl.u32 %v4594, 7
      %v4596 = vsub.s32 0, %v4595
      %v4597 = vrot.slane %v4362, %v4596
      %v4599 = vadd.f32 %v4577, %v4597
      %v4600 = vadd.f32 %v4578, %v4597
      %v4601 = vadd.f32 %v4579, %v4597
      %v4602 = vadd.f32 %v4580, %v4597
      %v4603 = vadd.f32 %v4581, %v4597
      %v4604 = vadd.f32 %v4582, %v4597
      %v4605 = vadd.f32 %v4583, %v4597
      %v4606 = vadd.f32 %v4584, %v4597
      %v4607 = vadd.f32 %v4585, %v4597
      %v4608 = vadd.f32 %v4586, %v4597
      %v4609 = vadd.f32 %v4587, %v4597
      %v4610 = vadd.f32 %v4588, %v4597
      %v4611 = vadd.f32 %v4589, %v4597
      %v4612 = vadd.f32 %v4590, %v4597
      %v4613 = vadd.f32 %v4591, %v4597
      %v4614 = vadd.f32 %v4592, %v4597
      %v4615 = vpack.c.bf16 %v4600, %v4599
      %v4616 = vpack.c.bf16 %v4602, %v4601
      %v4617 = vpack.c.bf16 %v4604, %v4603
      %v4618 = vpack.c.bf16 %v4606, %v4605
      %v4619 = vpack.c.bf16 %v4608, %v4607
      %v4620 = vpack.c.bf16 %v4610, %v4609
      %v4621 = vpack.c.bf16 %v4612, %v4611
      %v4622 = vpack.c.bf16 %v4614, %v4613
      %s4623 = scalar_lea.vmem %s4, 16
      %v4624 = vld [vmem:[%s4623] sm:$0xf]
      %v4625 = vld [vmem:[%s4623 + $0x4] sm:$0xf]
      %v4626 = vld [vmem:[%s4623 + $0x8] sm:$0xf]
      %v4627 = vld [vmem:[%s4623 + $0xc] sm:$0xf]
      %s4628 = scalar_lea.vmem %s5, 1
      %v4629 = vld [vmem:[%s4628] sm:$0x1]
      %v4631 = vlaneseq
      %v4632 = vshrl.u32 %v4631, 7
      %v4633 = vsub.s32 0, %v4632
      %v4634 = vrot.slane %v4629, %v4633
      %v4640 = vunpack.c.l.b16 %v4624
      %v4641 = vunpack.c.l.b16 %v4625
      %v4642 = vunpack.c.l.b16 %v4626
      %v4643 = vunpack.c.l.b16 %v4627
      %v4644 = vpack.c.b16 %v4641, %v4640
      %v4645 = vpack.c.b16 %v4643, %v4642
      %v4649 = vsel %vm495, %v4615, 0
      %v4652 = vsel %vm495, %v4616, 0
      %v4655 = vsel %vm495, %v4617, 0
      %v4658 = vsel %vm495, %v4618, 0
      %v4661 = vsel %vm495, %v4619, 0
      %v4664 = vsel %vm495, %v4620, 0
      %v4667 = vsel %vm495, %v4621, 0
      %v4670 = vsel %vm495, %v4622, 0
      %4672 = vmatprep.subr.bf16.mxu0 0
      %4673 = vmatpush1.bf16.msra.mxu0 %v4644
      %4674 = vmatprep.subr.bf16.mxu0 0
      %4675 = vmatpush1.bf16.msra.mxu0 %v4645
      %4676 = vmatprep.subr.bf16.mxu0 0
      %4677 = vmatpush1.bf16.msra.mxu0 0
      %4678 = vmatprep.subr.bf16.mxu0 0
      %4679 = vmatpush1.bf16.msra.mxu0 0
      %4680 = vmatprep.subr.bf16.mxu0 0
      %4681 = vmatpush1.bf16.msra.mxu0 0
      %4682 = vmatprep.subr.bf16.mxu0 0
      %4683 = vmatpush1.bf16.msra.mxu0 0
      %4684 = vmatprep.subr.bf16.mxu0 0
      %4685 = vmatpush1.bf16.msra.mxu0 0
      %4686 = vmatprep.subr.bf16.mxu0 0
      %4687 = vmatpush1.bf16.msra.mxu0 0
      %4688 = vmatprep.subr.bf16.mxu0 0
      %4689 = vmatpush1.bf16.msra.mxu0 0
      %4690 = vmatprep.subr.bf16.mxu0 0
      %4691 = vmatpush1.bf16.msra.mxu0 0
      %4692 = vmatprep.subr.bf16.mxu0 0
      %4693 = vmatpush1.bf16.msra.mxu0 0
      %4694 = vmatprep.subr.bf16.mxu0 0
      %4695 = vmatpush1.bf16.msra.mxu0 0
      %4696 = vmatprep.subr.bf16.mxu0 0
      %4697 = vmatpush1.bf16.msra.mxu0 0
      %4698 = vmatprep.subr.bf16.mxu0 0
      %4699 = vmatpush1.bf16.msra.mxu0 0
      %4700 = vmatprep.subr.bf16.mxu0 0
      %4701 = vmatpush1.bf16.msra.mxu0 0
      %4702 = vmatprep.subr.bf16.mxu0 0
      %4703 = vmatpush1.bf16.msra.mxu0 0
      %4704 = vmatprep.mubr.bf16.mxu0 0
      %4705 = vmatmul.mubr.bf16.gmra.mrb[0].mxu0 %v4649
      %v4706 = vpop.f32.mrb[0].mxu0
      %v4707 = vadd.f32 %v4634, %v4706
      %v4708 = vpop.f32.mrb[0].mxu0
      %v4709 = vpop.f32.mrb[0].mxu0
      %v4710 = vadd.f32 %v4634, %v4709
      %v4711 = vpop.f32.mrb[0].mxu0
      %4712 = vmatprep.mubr.bf16.mxu0 0
      %4713 = vmatmul.mubr.bf16.gmra.mrb[0].mxu0 %v4652
      %v4714 = vpop.f32.mrb[0].mxu0
      %v4715 = vadd.f32 %v4634, %v4714
      %v4716 = vpop.f32.mrb[0].mxu0
      %v4717 = vpop.f32.mrb[0].mxu0
      %v4718 = vadd.f32 %v4634, %v4717
      %v4719 = vpop.f32.mrb[0].mxu0
      %4720 = vmatprep.mubr.bf16.mxu0 0
      %4721 = vmatmul.mubr.bf16.gmra.mrb[0].mxu0 %v4655
      %v4722 = vpop.f32.mrb[0].mxu0
      %v4723 = vadd.f32 %v4634, %v4722
      %v4724 = vpop.f32.mrb[0].mxu0
      %v4725 = vpop.f32.mrb[0].mxu0
      %v4726 = vadd.f32 %v4634, %v4725
      %v4727 = vpop.f32.mrb[0].mxu0
      %4728 = vmatprep.mubr.bf16.mxu0 0
      %4729 = vmatmul.mubr.bf16.gmra.mrb[0].mxu0 %v4658
      %v4730 = vpop.f32.mrb[0].mxu0
      %v4731 = vadd.f32 %v4634, %v4730
      %v4732 = vpop.f32.mrb[0].mxu0
      %v4733 = vpop.f32.mrb[0].mxu0
      %v4734 = vadd.f32 %v4634, %v4733
      %v4735 = vpop.f32.mrb[0].mxu0
      %4736 = vmatprep.mubr.bf16.mxu0 0
      %4737 = vmatmul.mubr.bf16.gmra.mrb[0].mxu0 %v4661
      %v4738 = vpop.f32.mrb[0].mxu0
      %v4739 = vadd.f32 %v4634, %v4738
      %v4740 = vpop.f32.mrb[0].mxu0
      %v4741 = vpop.f32.mrb[0].mxu0
      %v4742 = vadd.f32 %v4634, %v4741
      %v4743 = vpop.f32.mrb[0].mxu0
      %4744 = vmatprep.mubr.bf16.mxu0 0
      %4745 = vmatmul.mubr.bf16.gmra.mrb[0].mxu0 %v4664
      %v4746 = vpop.f32.mrb[0].mxu0
      %v4747 = vadd.f32 %v4634, %v4746
      %v4748 = vpop.f32.mrb[0].mxu0
      %v4749 = vpop.f32.mrb[0].mxu0
      %v4750 = vadd.f32 %v4634, %v4749
      %v4751 = vpop.f32.mrb[0].mxu0
      %4752 = vmatprep.mubr.bf16.mxu0 0
      %4753 = vmatmul.mubr.bf16.gmra.mrb[0].mxu0 %v4667
      %v4754 = vpop.f32.mrb[0].mxu0
      %v4755 = vadd.f32 %v4634, %v4754
      %v4756 = vpop.f32.mrb[0].mxu0
      %v4757 = vpop.f32.mrb[0].mxu0
      %v4758 = vadd.f32 %v4634, %v4757
      %v4759 = vpop.f32.mrb[0].mxu0
      %4760 = vmatprep.mubr.bf16.mxu0 0
      %4761 = vmatmul.mubr.bf16.gmra.mrb[0].mxu0 %v4670
      %v4762 = vpop.f32.mrb[0].mxu0
      %v4763 = vadd.f32 %v4634, %v4762
      %v4764 = vpop.f32.mrb[0].mxu0
      %v4765 = vpop.f32.mrb[0].mxu0
      %v4766 = vadd.f32 %v4634, %v4765
      %v4767 = vpop.f32.mrb[0].mxu0
      %4768 = vdwg.mxu0
      %v4769 = vpack.c.bf16 %v4710, %v4707
      %v4770 = vpack.c.bf16 %v4718, %v4715
      %v4771 = vpack.c.bf16 %v4726, %v4723
      %v4772 = vpack.c.bf16 %v4734, %v4731
      %v4773 = vpack.c.bf16 %v4742, %v4739
      %v4774 = vpack.c.bf16 %v4750, %v4747
      %v4775 = vpack.c.bf16 %v4758, %v4755
      %v4776 = vpack.c.bf16 %v4766, %v4763
      %s4777 = scalar_lea.vmem %s1, 128
      %v4778 = vld [vmem:[%s4777] sm:$0xf]
      %v4779 = vld [vmem:[%s4777 + $0x4] sm:$0xf]
      %v4780 = vld [vmem:[%s4777 + $0x8] sm:$0xf]
      %v4781 = vld [vmem:[%s4777 + $0xc] sm:$0xf]
      %v4782 = vld [vmem:[%s4777 + $0x10] sm:$0xf]
      %v4783 = vld [vmem:[%s4777 + $0x14] sm:$0xf]
      %v4784 = vld [vmem:[%s4777 + $0x18] sm:$0xf]
      %v4785 = vld [vmem:[%s4777 + $0x1c] sm:$0xf]
      %v4786 = vld [vmem:[%s4777 + $0x20] sm:$0xf]
      %v4787 = vld [vmem:[%s4777 + $0x24] sm:$0xf]
      %v4788 = vld [vmem:[%s4777 + $0x28] sm:$0xf]
      %v4789 = vld [vmem:[%s4777 + $0x2c] sm:$0xf]
      %v4790 = vld [vmem:[%s4777 + $0x30] sm:$0xf]
      %v4791 = vld [vmem:[%s4777 + $0x34] sm:$0xf]
      %v4792 = vld [vmem:[%s4777 + $0x38] sm:$0xf]
      %v4793 = vld [vmem:[%s4777 + $0x3c] sm:$0xf]
      %v4794 = vld [vmem:[%s4777 + $0x40] sm:$0xf]
      %v4795 = vld [vmem:[%s4777 + $0x44] sm:$0xf]
      %v4796 = vld [vmem:[%s4777 + $0x48] sm:$0xf]
      %v4797 = vld [vmem:[%s4777 + $0x4c] sm:$0xf]
      %v4798 = vld [vmem:[%s4777 + $0x50] sm:$0xf]
      %v4799 = vld [vmem:[%s4777 + $0x54] sm:$0xf]
      %v4800 = vld [vmem:[%s4777 + $0x58] sm:$0xf]
      %v4801 = vld [vmem:[%s4777 + $0x5c] sm:$0xf]
      %v4802 = vld [vmem:[%s4777 + $0x60] sm:$0xf]
      %v4803 = vld [vmem:[%s4777 + $0x64] sm:$0xf]
      %v4804 = vld [vmem:[%s4777 + $0x68] sm:$0xf]
      %v4805 = vld [vmem:[%s4777 + $0x6c] sm:$0xf]
      %v4806 = vld [vmem:[%s4777 + $0x70] sm:$0xf]
      %v4807 = vld [vmem:[%s4777 + $0x74] sm:$0xf]
      %v4808 = vld [vmem:[%s4777 + $0x78] sm:$0xf]
      %v4809 = vld [vmem:[%s4777 + $0x7c] sm:$0xf]
      %v4810 = vunpack.c.l.bf16 %v4778
      %v4811 = vunpack.c.l.bf16 %v4779
      %v4812 = vunpack.c.l.bf16 %v4780
      %v4813 = vunpack.c.l.bf16 %v4781
      %v4814 = vunpack.c.l.bf16 %v4782
      %v4815 = vunpack.c.l.bf16 %v4783
      %v4816 = vunpack.c.l.bf16 %v4784
      %v4817 = vunpack.c.l.bf16 %v4785
      %4822 = vrot.lane.b32.xlu0 %v4769, 96
      %v4823 = vpop.permute.xlu0 %4822
      %4824 = vrot.lane.b32.xlu0 %v4770, 96
      %v4825 = vpop.permute.xlu0 %4824
      %4826 = vrot.lane.b32.xlu0 %v4771, 96
      %v4827 = vpop.permute.xlu0 %4826
      %4828 = vrot.lane.b32.xlu0 %v4772, 96
      %v4829 = vpop.permute.xlu0 %4828
      %v4831 = vsel %vm961, %v4769, 0
      %v4834 = vsel %vm961, %v4770, 0
      %v4837 = vsel %vm961, %v4771, 0
      %v4840 = vsel %vm961, %v4772, 0
      %v4843 = vsel %vm961, %v4823, 0
      %v4846 = vsel %vm961, %v4825, 0
      %v4849 = vsel %vm961, %v4827, 0
      %v4852 = vsel %vm961, %v4829, 0
      %4854 = vmatprep.subr.bf16.mxu0 0
      %4855 = vmatpush1.bf16.xpose.msra.mxu0 %v4843
      %4856 = vmatprep.subr.bf16.mxu0 0
      %4857 = vmatpush1.bf16.xpose.msra.mxu0 %v4846
      %4858 = vmatprep.subr.bf16.mxu0 0
      %4859 = vmatpush1.bf16.xpose.msra.mxu0 %v4849
      %4860 = vmatprep.subr.bf16.mxu0 0
      %4861 = vmatpush1.bf16.xpose.msra.mxu0 %v4852
      %4862 = vmatprep.subr.bf16.mxu0 0
      %4863 = vmatpush1.bf16.xpose.msra.mxu0 0
      %4864 = vmatprep.subr.bf16.mxu0 0
      %4865 = vmatpush1.bf16.xpose.msra.mxu0 0
      %4866 = vmatprep.subr.bf16.mxu0 0
      %4867 = vmatpush1.bf16.xpose.msra.mxu0 0
      %4868 = vmatprep.subr.bf16.mxu0 0
      %4869 = vmatpush1.bf16.xpose.msra.mxu0 0
      %4870 = vmatprep.subr.bf16.mxu0 0
      %4871 = vmatpush1.bf16.xpose.msra.mxu0 0
      %4872 = vmatprep.subr.bf16.mxu0 0
      %4873 = vmatpush1.bf16.xpose.msra.mxu0 0
      %4874 = vmatprep.subr.bf16.mxu0 0
      %4875 = vmatpush1.bf16.xpose.msra.mxu0 0
      %4876 = vmatprep.subr.bf16.mxu0 0
      %4877 = vmatpush1.bf16.xpose.msra.mxu0 0
      %4878 = vmatprep.subr.bf16.mxu0 0
      %4879 = vmatpush1.bf16.xpose.msra.mxu0 0
      %4880 = vmatprep.subr.bf16.mxu0 0
      %4881 = vmatpush1.bf16.xpose.msra.mxu0 0
      %4882 = vmatprep.subr.bf16.mxu0 0
      %4883 = vmatpush1.bf16.xpose.msra.mxu0 0
      %4884 = vmatprep.subr.bf16.mxu0 0
      %4885 = vmatpush1.bf16.xpose.msra.mxu0 0
      %4886 = vmatprep.mubr.bf16.mxu0 0
      %4887 = vmatmul.mubr.bf16.gmra.mrb[0].mxu0 %v4831
      %v4888 = vpop.f32.mrb[0].mxu0
      %v4889 = vadd.f32 %v4810, %v4888
      %v4890 = vpop.f32.mrb[0].mxu0
      %v4891 = vpop.f32.mrb[0].mxu0
      %v4892 = vadd.f32 %v4811, %v4891
      %v4893 = vpop.f32.mrb[0].mxu0
      %4894 = vmatprep.mubr.bf16.mxu0 0
      %4895 = vmatmul.mubr.bf16.gmra.mrb[0].mxu0 %v4834
      %v4896 = vpop.f32.mrb[0].mxu0
      %v4897 = vadd.f32 %v4812, %v4896
      %v4898 = vpop.f32.mrb[0].mxu0
      %v4899 = vpop.f32.mrb[0].mxu0
      %v4900 = vadd.f32 %v4813, %v4899
      %v4901 = vpop.f32.mrb[0].mxu0
      %4902 = vmatprep.mubr.bf16.mxu0 0
      %4903 = vmatmul.mubr.bf16.gmra.mrb[0].mxu0 %v4837
      %v4904 = vpop.f32.mrb[0].mxu0
      %v4905 = vadd.f32 %v4814, %v4904
      %v4906 = vpop.f32.mrb[0].mxu0
      %v4907 = vpop.f32.mrb[0].mxu0
      %v4908 = vadd.f32 %v4815, %v4907
      %v4909 = vpop.f32.mrb[0].mxu0
      %4910 = vmatprep.mubr.bf16.mxu0 0
      %4911 = vmatmul.mubr.bf16.gmra.mrb[0].mxu0 %v4840
      %v4912 = vpop.f32.mrb[0].mxu0
      %v4913 = vadd.f32 %v4816, %v4912
      %v4914 = vpop.f32.mrb[0].mxu0
      %v4915 = vpop.f32.mrb[0].mxu0
      %v4916 = vadd.f32 %v4817, %v4915
      %v4917 = vpop.f32.mrb[0].mxu0
      %4918 = vdwg.mxu0
      %4923 = vrot.lane.b32.xlu0 %v4773, 96
      %v4924 = vpop.permute.xlu0 %4923
      %4925 = vrot.lane.b32.xlu0 %v4774, 96
      %v4926 = vpop.permute.xlu0 %4925
      %4927 = vrot.lane.b32.xlu0 %v4775, 96
      %v4928 = vpop.permute.xlu0 %4927
      %4929 = vrot.lane.b32.xlu0 %v4776, 96
      %v4930 = vpop.permute.xlu0 %4929
      %v4932 = vsel %vm961, %v4773, 0
      %v4935 = vsel %vm961, %v4774, 0
      %v4938 = vsel %vm961, %v4775, 0
      %v4941 = vsel %vm961, %v4776, 0
      %v4944 = vsel %vm961, %v4924, 0
      %v4947 = vsel %vm961, %v4926, 0
      %v4950 = vsel %vm961, %v4928, 0
      %v4953 = vsel %vm961, %v4930, 0
      %4955 = vmatprep.subr.bf16.mxu0 0
      %4956 = vmatpush1.bf16.xpose.msra.mxu0 %v4944
      %4957 = vmatprep.subr.bf16.mxu0 0
      %4958 = vmatpush1.bf16.xpose.msra.mxu0 %v4947
      %4959 = vmatprep.subr.bf16.mxu0 0
      %4960 = vmatpush1.bf16.xpose.msra.mxu0 %v4950
      %4961 = vmatprep.subr.bf16.mxu0 0
      %4962 = vmatpush1.bf16.xpose.msra.mxu0 %v4953
      %4963 = vmatprep.subr.bf16.mxu0 0
      %4964 = vmatpush1.bf16.xpose.msra.mxu0 0
      %4965 = vmatprep.subr.bf16.mxu0 0
      %4966 = vmatpush1.bf16.xpose.msra.mxu0 0
      %4967 = vmatprep.subr.bf16.mxu0 0
      %4968 = vmatpush1.bf16.xpose.msra.mxu0 0
      %4969 = vmatprep.subr.bf16.mxu0 0
      %4970 = vmatpush1.bf16.xpose.msra.mxu0 0
      %4971 = vmatprep.subr.bf16.mxu0 0
      %4972 = vmatpush1.bf16.xpose.msra.mxu0 0
      %4973 = vmatprep.subr.bf16.mxu0 0
      %4974 = vmatpush1.bf16.xpose.msra.mxu0 0
      %4975 = vmatprep.subr.bf16.mxu0 0
      %4976 = vmatpush1.bf16.xpose.msra.mxu0 0
      %4977 = vmatprep.subr.bf16.mxu0 0
      %4978 = vmatpush1.bf16.xpose.msra.mxu0 0
      %4979 = vmatprep.subr.bf16.mxu0 0
      %4980 = vmatpush1.bf16.xpose.msra.mxu0 0
      %4981 = vmatprep.subr.bf16.mxu0 0
      %4982 = vmatpush1.bf16.xpose.msra.mxu0 0
      %4983 = vmatprep.subr.bf16.mxu0 0
      %4984 = vmatpush1.bf16.xpose.msra.mxu0 0
      %4985 = vmatprep.subr.bf16.mxu0 0
      %4986 = vmatpush1.bf16.xpose.msra.mxu0 0
      %4987 = vmatprep.mubr.bf16.mxu0 0
      %4988 = vmatmul.mubr.bf16.gmra.mrb[0].mxu0 %v4932
      %v4989 = vpop.f32.mrb[0].mxu0
      %v4990 = vadd.f32 %v4810, %v4989
      %v4991 = vpop.f32.mrb[0].mxu0
      %v4992 = vpop.f32.mrb[0].mxu0
      %v4993 = vadd.f32 %v4811, %v4992
      %v4994 = vpop.f32.mrb[0].mxu0
      %4995 = vmatprep.mubr.bf16.mxu0 0
      %4996 = vmatmul.mubr.bf16.gmra.mrb[0].mxu0 %v4935
      %v4997 = vpop.f32.mrb[0].mxu0
      %v4998 = vadd.f32 %v4812, %v4997
      %v4999 = vpop.f32.mrb[0].mxu0
      %v5000 = vpop.f32.mrb[0].mxu0
      %v5001 = vadd.f32 %v4813, %v5000
      %v5002 = vpop.f32.mrb[0].mxu0
      %5003 = vmatprep.mubr.bf16.mxu0 0
      %5004 = vmatmul.mubr.bf16.gmra.mrb[0].mxu0 %v4938
      %v5005 = vpop.f32.mrb[0].mxu0
      %v5006 = vadd.f32 %v4814, %v5005
      %v5007 = vpop.f32.mrb[0].mxu0
      %v5008 = vpop.f32.mrb[0].mxu0
      %v5009 = vadd.f32 %v4815, %v5008
      %v5010 = vpop.f32.mrb[0].mxu0
      %5011 = vmatprep.mubr.bf16.mxu0 0
      %5012 = vmatmul.mubr.bf16.gmra.mrb[0].mxu0 %v4941
      %v5013 = vpop.f32.mrb[0].mxu0
      %v5014 = vadd.f32 %v4816, %v5013
      %v5015 = vpop.f32.mrb[0].mxu0
      %v5016 = vpop.f32.mrb[0].mxu0
      %v5017 = vadd.f32 %v4817, %v5016
      %v5018 = vpop.f32.mrb[0].mxu0
      %5019 = vdwg.mxu0
      %v5020 = vsel %vm1152, %v4889, -inf
      %5021 = vmax.xlane.f32.xlu0 %v5020
      %v5022 = vpop.xlane.xlu0 %5021
      %v5023 = vsel %vm1152, %v4892, -inf
      %5024 = vmax.xlane.f32.xlu0 %v5023
      %v5025 = vpop.xlane.xlu0 %5024
      %v5026 = vsel %vm1152, %v4897, -inf
      %5027 = vmax.xlane.f32.xlu0 %v5026
      %v5028 = vpop.xlane.xlu0 %5027
      %v5029 = vsel %vm1152, %v4900, -inf
      %5030 = vmax.xlane.f32.xlu0 %v5029
      %v5031 = vpop.xlane.xlu0 %5030
      %v5032 = vsel %vm1152, %v4905, -inf
      %5033 = vmax.xlane.f32.xlu0 %v5032
      %v5034 = vpop.xlane.xlu0 %5033
      %v5035 = vsel %vm1152, %v4908, -inf
      %5036 = vmax.xlane.f32.xlu0 %v5035
      %v5037 = vpop.xlane.xlu0 %5036
      %v5038 = vsel %vm1152, %v4913, -inf
      %5039 = vmax.xlane.f32.xlu0 %v5038
      %v5040 = vpop.xlane.xlu0 %5039
      %v5041 = vsel %vm1152, %v4916, -inf
      %5042 = vmax.xlane.f32.xlu0 %v5041
      %v5043 = vpop.xlane.xlu0 %5042
      %v5044 = vsel %vm1152, %v4990, -inf
      %5045 = vmax.xlane.f32.xlu0 %v5044
      %v5046 = vpop.xlane.xlu0 %5045
      %v5047 = vsel %vm1152, %v4993, -inf
      %5048 = vmax.xlane.f32.xlu0 %v5047
      %v5049 = vpop.xlane.xlu0 %5048
      %v5050 = vsel %vm1152, %v4998, -inf
      %5051 = vmax.xlane.f32.xlu0 %v5050
      %v5052 = vpop.xlane.xlu0 %5051
      %v5053 = vsel %vm1152, %v5001, -inf
      %5054 = vmax.xlane.f32.xlu0 %v5053
      %v5055 = vpop.xlane.xlu0 %5054
      %v5056 = vsel %vm1152, %v5006, -inf
      %5057 = vmax.xlane.f32.xlu0 %v5056
      %v5058 = vpop.xlane.xlu0 %5057
      %v5059 = vsel %vm1152, %v5009, -inf
      %5060 = vmax.xlane.f32.xlu0 %v5059
      %v5061 = vpop.xlane.xlu0 %5060
      %v5062 = vsel %vm1152, %v5014, -inf
      %5063 = vmax.xlane.f32.xlu0 %v5062
      %v5064 = vpop.xlane.xlu0 %5063
      %v5065 = vsel %vm1152, %v5017, -inf
      %5066 = vmax.xlane.f32.xlu0 %v5065
      %v5067 = vpop.xlane.xlu0 %5066
      %v5068 = vsub.f32 %v4889, %v5022
      %v5069 = vsub.f32 %v4892, %v5025
      %v5070 = vsub.f32 %v4897, %v5028
      %v5071 = vsub.f32 %v4900, %v5031
      %v5072 = vsub.f32 %v4905, %v5034
      %v5073 = vsub.f32 %v4908, %v5037
      %v5074 = vsub.f32 %v4913, %v5040
      %v5075 = vsub.f32 %v4916, %v5043
      %v5076 = vsub.f32 %v4990, %v5046
      %v5077 = vsub.f32 %v4993, %v5049
      %v5078 = vsub.f32 %v4998, %v5052
      %v5079 = vsub.f32 %v5001, %v5055
      %v5080 = vsub.f32 %v5006, %v5058
      %v5081 = vsub.f32 %v5009, %v5061
      %v5082 = vsub.f32 %v5014, %v5064
      %v5083 = vsub.f32 %v5017, %v5067
      %v5084 = vmul.f32 %v5068, 1.442695
      %v5085 = vpow.pop %v5084
      %v5086 = vmul.f32 %v5069, 1.442695
      %v5087 = vpow.pop %v5086
      %v5088 = vmul.f32 %v5070, 1.442695
      %v5089 = vpow.pop %v5088
      %v5090 = vmul.f32 %v5071, 1.442695
      %v5091 = vpow.pop %v5090
      %v5092 = vmul.f32 %v5072, 1.442695
      %v5093 = vpow.pop %v5092
      %v5094 = vmul.f32 %v5073, 1.442695
      %v5095 = vpow.pop %v5094
      %v5096 = vmul.f32 %v5074, 1.442695
      %v5097 = vpow.pop %v5096
      %v5098 = vmul.f32 %v5075, 1.442695
      %v5099 = vpow.pop %v5098
      %v5100 = vmul.f32 %v5076, 1.442695
      %v5101 = vpow.pop %v5100
      %v5102 = vmul.f32 %v5077, 1.442695
      %v5103 = vpow.pop %v5102
      %v5104 = vmul.f32 %v5078, 1.442695
      %v5105 = vpow.pop %v5104
      %v5106 = vmul.f32 %v5079, 1.442695
      %v5107 = vpow.pop %v5106
      %v5108 = vmul.f32 %v5080, 1.442695
      %v5109 = vpow.pop %v5108
      %v5110 = vmul.f32 %v5081, 1.442695
      %v5111 = vpow.pop %v5110
      %v5112 = vmul.f32 %v5082, 1.442695
      %v5113 = vpow.pop %v5112
      %v5114 = vmul.f32 %v5083, 1.442695
      %v5115 = vpow.pop %v5114
      %v5116 = vsel %vm1152, %v5085, 0.0
      %5117 = vadd.xlane.f32.xlu0 %v5116
      %v5118 = vpop.xlane.xlu0 %5117
      %v5119 = vsel %vm1152, %v5087, 0.0
      %5120 = vadd.xlane.f32.xlu0 %v5119
      %v5121 = vpop.xlane.xlu0 %5120
      %v5122 = vsel %vm1152, %v5089, 0.0
      %5123 = vadd.xlane.f32.xlu0 %v5122
      %v5124 = vpop.xlane.xlu0 %5123
      %v5125 = vsel %vm1152, %v5091, 0.0
      %5126 = vadd.xlane.f32.xlu0 %v5125
      %v5127 = vpop.xlane.xlu0 %5126
      %v5128 = vsel %vm1152, %v5093, 0.0
      %5129 = vadd.xlane.f32.xlu0 %v5128
      %v5130 = vpop.xlane.xlu0 %5129
      %v5131 = vsel %vm1152, %v5095, 0.0
      %5132 = vadd.xlane.f32.xlu0 %v5131
      %v5133 = vpop.xlane.xlu0 %5132
      %v5134 = vsel %vm1152, %v5097, 0.0
      %5135 = vadd.xlane.f32.xlu0 %v5134
      %v5136 = vpop.xlane.xlu0 %5135
      %v5137 = vsel %vm1152, %v5099, 0.0
      %5138 = vadd.xlane.f32.xlu0 %v5137
      %v5139 = vpop.xlane.xlu0 %5138
      %v5140 = vsel %vm1152, %v5101, 0.0
      %5141 = vadd.xlane.f32.xlu0 %v5140
      %v5142 = vpop.xlane.xlu0 %5141
      %v5143 = vsel %vm1152, %v5103, 0.0
      %5144 = vadd.xlane.f32.xlu0 %v5143
      %v5145 = vpop.xlane.xlu0 %5144
      %v5146 = vsel %vm1152, %v5105, 0.0
      %5147 = vadd.xlane.f32.xlu0 %v5146
      %v5148 = vpop.xlane.xlu0 %5147
      %v5149 = vsel %vm1152, %v5107, 0.0
      %5150 = vadd.xlane.f32.xlu0 %v5149
      %v5151 = vpop.xlane.xlu0 %5150
      %v5152 = vsel %vm1152, %v5109, 0.0
      %5153 = vadd.xlane.f32.xlu0 %v5152
      %v5154 = vpop.xlane.xlu0 %5153
      %v5155 = vsel %vm1152, %v5111, 0.0
      %5156 = vadd.xlane.f32.xlu0 %v5155
      %v5157 = vpop.xlane.xlu0 %5156
      %v5158 = vsel %vm1152, %v5113, 0.0
      %5159 = vadd.xlane.f32.xlu0 %v5158
      %v5160 = vpop.xlane.xlu0 %5159
      %v5161 = vsel %vm1152, %v5115, 0.0
      %5162 = vadd.xlane.f32.xlu0 %v5161
      %v5163 = vpop.xlane.xlu0 %5162
      %v5164 = vrcp.pop %v5118
      %v5165 = vrcp.pop %v5121
      %v5166 = vrcp.pop %v5124
      %v5167 = vrcp.pop %v5127
      %v5168 = vrcp.pop %v5130
      %v5169 = vrcp.pop %v5133
      %v5170 = vrcp.pop %v5136
      %v5171 = vrcp.pop %v5139
      %v5172 = vrcp.pop %v5142
      %v5173 = vrcp.pop %v5145
      %v5174 = vrcp.pop %v5148
      %v5175 = vrcp.pop %v5151
      %v5176 = vrcp.pop %v5154
      %v5177 = vrcp.pop %v5157
      %v5178 = vrcp.pop %v5160
      %v5179 = vrcp.pop %v5163
      %v5180 = vmul.f32 %v5085, %v5164
      %v5181 = vmul.f32 %v5087, %v5165
      %v5182 = vmul.f32 %v5089, %v5166
      %v5183 = vmul.f32 %v5091, %v5167
      %v5184 = vmul.f32 %v5093, %v5168
      %v5185 = vmul.f32 %v5095, %v5169
      %v5186 = vmul.f32 %v5097, %v5170
      %v5187 = vmul.f32 %v5099, %v5171
      %v5188 = vmul.f32 %v5101, %v5172
      %v5189 = vmul.f32 %v5103, %v5173
      %v5190 = vmul.f32 %v5105, %v5174
      %v5191 = vmul.f32 %v5107, %v5175
      %v5192 = vmul.f32 %v5109, %v5176
      %v5193 = vmul.f32 %v5111, %v5177
      %v5194 = vmul.f32 %v5113, %v5178
      %v5195 = vmul.f32 %v5115, %v5179
      %v5196 = vpack.c.bf16 %v5181, %v5180
      %v5197 = vpack.c.bf16 %v5183, %v5182
      %v5198 = vpack.c.bf16 %v5185, %v5184
      %v5199 = vpack.c.bf16 %v5187, %v5186
      %v5200 = vpack.c.bf16 %v5189, %v5188
      %v5201 = vpack.c.bf16 %v5191, %v5190
      %v5202 = vpack.c.bf16 %v5193, %v5192
      %v5203 = vpack.c.bf16 %v5195, %v5194
      %5204 = vrot.lane.b32.xlu0 %v4769, 64
      %v5205 = vpop.permute.xlu0 %5204
      %5206 = vrot.lane.b32.xlu0 %v4770, 64
      %v5207 = vpop.permute.xlu0 %5206
      %5208 = vrot.lane.b32.xlu0 %v4771, 64
      %v5209 = vpop.permute.xlu0 %5208
      %5210 = vrot.lane.b32.xlu0 %v4772, 64
      %v5211 = vpop.permute.xlu0 %5210
      %v5217 = vsel %vm1152, %v5196, 0
      %v5220 = vsel %vm1152, %v5197, 0
      %v5223 = vsel %vm1152, %v5198, 0
      %v5226 = vsel %vm1152, %v5199, 0
      %5228 = vmatprep.subr.bf16.mxu0 0
      %5229 = vmatpush1.bf16.msra.mxu0 %v5205
      %5230 = vmatprep.subr.bf16.mxu0 0
      %5231 = vmatpush1.bf16.msra.mxu0 %v5207
      %5232 = vmatprep.subr.bf16.mxu0 0
      %5233 = vmatpush1.bf16.msra.mxu0 %v5209
      %5234 = vmatprep.subr.bf16.mxu0 0
      %5235 = vmatpush1.bf16.msra.mxu0 %v5211
      %5236 = vmatprep.subr.bf16.mxu0 0
      %5237 = vmatpush1.bf16.msra.mxu0 0
      %5238 = vmatprep.subr.bf16.mxu0 0
      %5239 = vmatpush1.bf16.msra.mxu0 0
      %5240 = vmatprep.subr.bf16.mxu0 0
      %5241 = vmatpush1.bf16.msra.mxu0 0
      %5242 = vmatprep.subr.bf16.mxu0 0
      %5243 = vmatpush1.bf16.msra.mxu0 0
      %5244 = vmatprep.subr.bf16.mxu0 0
      %5245 = vmatpush1.bf16.msra.mxu0 0
      %5246 = vmatprep.subr.bf16.mxu0 0
      %5247 = vmatpush1.bf16.msra.mxu0 0
      %5248 = vmatprep.subr.bf16.mxu0 0
      %5249 = vmatpush1.bf16.msra.mxu0 0
      %5250 = vmatprep.subr.bf16.mxu0 0
      %5251 = vmatpush1.bf16.msra.mxu0 0
      %5252 = vmatprep.subr.bf16.mxu0 0
      %5253 = vmatpush1.bf16.msra.mxu0 0
      %5254 = vmatprep.subr.bf16.mxu0 0
      %5255 = vmatpush1.bf16.msra.mxu0 0
      %5256 = vmatprep.subr.bf16.mxu0 0
      %5257 = vmatpush1.bf16.msra.mxu0 0
      %5258 = vmatprep.subr.bf16.mxu0 0
      %5259 = vmatpush1.bf16.msra.mxu0 0
      %5260 = vmatprep.mubr.bf16.mxu0 0
      %5261 = vmatmul.mubr.bf16.gmra.mrb[0].mxu0 %v5217
      %v5262 = vpop.f32.mrb[0].mxu0
      %v5263 = vadd.f32 0.0, %v5262
      %v5264 = vpop.f32.mrb[0].mxu0
      %v5265 = vpop.f32.mrb[0].mxu0
      %v5266 = vadd.f32 0.0, %v5265
      %v5267 = vpop.f32.mrb[0].mxu0
      %5268 = vmatprep.mubr.bf16.mxu0 0
      %5269 = vmatmul.mubr.bf16.gmra.mrb[0].mxu0 %v5220
      %v5270 = vpop.f32.mrb[0].mxu0
      %v5271 = vadd.f32 0.0, %v5270
      %v5272 = vpop.f32.mrb[0].mxu0
      %v5273 = vpop.f32.mrb[0].mxu0
      %v5274 = vadd.f32 0.0, %v5273
      %v5275 = vpop.f32.mrb[0].mxu0
      %5276 = vmatprep.mubr.bf16.mxu0 0
      %5277 = vmatmul.mubr.bf16.gmra.mrb[0].mxu0 %v5223
      %v5278 = vpop.f32.mrb[0].mxu0
      %v5279 = vadd.f32 0.0, %v5278
      %v5280 = vpop.f32.mrb[0].mxu0
      %v5281 = vpop.f32.mrb[0].mxu0
      %v5282 = vadd.f32 0.0, %v5281
      %v5283 = vpop.f32.mrb[0].mxu0
      %5284 = vmatprep.mubr.bf16.mxu0 0
      %5285 = vmatmul.mubr.bf16.gmra.mrb[0].mxu0 %v5226
      %v5286 = vpop.f32.mrb[0].mxu0
      %v5287 = vadd.f32 0.0, %v5286
      %v5288 = vpop.f32.mrb[0].mxu0
      %v5289 = vpop.f32.mrb[0].mxu0
      %v5290 = vadd.f32 0.0, %v5289
      %v5291 = vpop.f32.mrb[0].mxu0
      %5292 = vdwg.mxu0
      %5293 = vrot.lane.b32.xlu0 %v4773, 64
      %v5294 = vpop.permute.xlu0 %5293
      %5295 = vrot.lane.b32.xlu0 %v4774, 64
      %v5296 = vpop.permute.xlu0 %5295
      %5297 = vrot.lane.b32.xlu0 %v4775, 64
      %v5298 = vpop.permute.xlu0 %5297
      %5299 = vrot.lane.b32.xlu0 %v4776, 64
      %v5300 = vpop.permute.xlu0 %5299
      %v5306 = vsel %vm1152, %v5200, 0
      %v5309 = vsel %vm1152, %v5201, 0
      %v5312 = vsel %vm1152, %v5202, 0
      %v5315 = vsel %vm1152, %v5203, 0
      %5317 = vmatprep.subr.bf16.mxu0 0
      %5318 = vmatpush1.bf16.msra.mxu0 %v5294
      %5319 = vmatprep.subr.bf16.mxu0 0
      %5320 = vmatpush1.bf16.msra.mxu0 %v5296
      %5321 = vmatprep.subr.bf16.mxu0 0
      %5322 = vmatpush1.bf16.msra.mxu0 %v5298
      %5323 = vmatprep.subr.bf16.mxu0 0
      %5324 = vmatpush1.bf16.msra.mxu0 %v5300
      %5325 = vmatprep.subr.bf16.mxu0 0
      %5326 = vmatpush1.bf16.msra.mxu0 0
      %5327 = vmatprep.subr.bf16.mxu0 0
      %5328 = vmatpush1.bf16.msra.mxu0 0
      %5329 = vmatprep.subr.bf16.mxu0 0
      %5330 = vmatpush1.bf16.msra.mxu0 0
      %5331 = vmatprep.subr.bf16.mxu0 0
      %5332 = vmatpush1.bf16.msra.mxu0 0
      %5333 = vmatprep.subr.bf16.mxu0 0
      %5334 = vmatpush1.bf16.msra.mxu0 0
      %5335 = vmatprep.subr.bf16.mxu0 0
      %5336 = vmatpush1.bf16.msra.mxu0 0
      %5337 = vmatprep.subr.bf16.mxu0 0
      %5338 = vmatpush1.bf16.msra.mxu0 0
      %5339 = vmatprep.subr.bf16.mxu0 0
      %5340 = vmatpush1.bf16.msra.mxu0 0
      %5341 = vmatprep.subr.bf16.mxu0 0
      %5342 = vmatpush1.bf16.msra.mxu0 0
      %5343 = vmatprep.subr.bf16.mxu0 0
      %5344 = vmatpush1.bf16.msra.mxu0 0
      %5345 = vmatprep.subr.bf16.mxu0 0
      %5346 = vmatpush1.bf16.msra.mxu0 0
      %5347 = vmatprep.subr.bf16.mxu0 0
      %5348 = vmatpush1.bf16.msra.mxu0 0
      %5349 = vmatprep.mubr.bf16.mxu0 0
      %5350 = vmatmul.mubr.bf16.gmra.mrb[0].mxu0 %v5306
      %v5351 = vpop.f32.mrb[0].mxu0
      %v5352 = vadd.f32 0.0, %v5351
      %v5353 = vpop.f32.mrb[0].mxu0
      %v5354 = vpop.f32.mrb[0].mxu0
      %v5355 = vadd.f32 0.0, %v5354
      %v5356 = vpop.f32.mrb[0].mxu0
      %5357 = vmatprep.mubr.bf16.mxu0 0
      %5358 = vmatmul.mubr.bf16.gmra.mrb[0].mxu0 %v5309
      %v5359 = vpop.f32.mrb[0].mxu0
      %v5360 = vadd.f32 0.0, %v5359
      %v5361 = vpop.f32.mrb[0].mxu0
      %v5362 = vpop.f32.mrb[0].mxu0
      %v5363 = vadd.f32 0.0, %v5362
      %v5364 = vpop.f32.mrb[0].mxu0
      %5365 = vmatprep.mubr.bf16.mxu0 0
      %5366 = vmatmul.mubr.bf16.gmra.mrb[0].mxu0 %v5312
      %v5367 = vpop.f32.mrb[0].mxu0
      %v5368 = vadd.f32 0.0, %v5367
      %v5369 = vpop.f32.mrb[0].mxu0
      %v5370 = vpop.f32.mrb[0].mxu0
      %v5371 = vadd.f32 0.0, %v5370
      %v5372 = vpop.f32.mrb[0].mxu0
      %5373 = vmatprep.mubr.bf16.mxu0 0
      %5374 = vmatmul.mubr.bf16.gmra.mrb[0].mxu0 %v5315
      %v5375 = vpop.f32.mrb[0].mxu0
      %v5376 = vadd.f32 0.0, %v5375
      %v5377 = vpop.f32.mrb[0].mxu0
      %v5378 = vpop.f32.mrb[0].mxu0
      %v5379 = vadd.f32 0.0, %v5378
      %v5380 = vpop.f32.mrb[0].mxu0
      %5381 = vdwg.mxu0
      %v5382 = vunpack.c.l.bf16 %v4786
      %v5383 = vunpack.c.l.bf16 %v4787
      %v5384 = vunpack.c.l.bf16 %v4788
      %v5385 = vunpack.c.l.bf16 %v4789
      %v5386 = vunpack.c.l.bf16 %v4790
      %v5387 = vunpack.c.l.bf16 %v4791
      %v5388 = vunpack.c.l.bf16 %v4792
      %v5389 = vunpack.c.l.bf16 %v4793
      %5390 = vrot.lane.b32.xlu0 %v4769, 120
      %v5391 = vpop.permute.xlu0 %5390
      %5392 = vrot.lane.b32.xlu0 %v4770, 120
      %v5393 = vpop.permute.xlu0 %5392
      %5394 = vrot.lane.b32.xlu0 %v4771, 120
      %v5395 = vpop.permute.xlu0 %5394
      %5396 = vrot.lane.b32.xlu0 %v4772, 120
      %v5397 = vpop.permute.xlu0 %5396
      %5398 = vrot.lane.b32.xlu0 %v4769, 88
      %v5399 = vpop.permute.xlu0 %5398
      %5400 = vrot.lane.b32.xlu0 %v4770, 88
      %v5401 = vpop.permute.xlu0 %5400
      %5402 = vrot.lane.b32.xlu0 %v4771, 88
      %v5403 = vpop.permute.xlu0 %5402
      %5404 = vrot.lane.b32.xlu0 %v4772, 88
      %v5405 = vpop.permute.xlu0 %5404
      %v5407 = vsel %vm961, %v5391, 0
      %v5410 = vsel %vm961, %v5393, 0
      %v5413 = vsel %vm961, %v5395, 0
      %v5416 = vsel %vm961, %v5397, 0
      %v5419 = vsel %vm961, %v5399, 0
      %v5422 = vsel %vm961, %v5401, 0
      %v5425 = vsel %vm961, %v5403, 0
      %v5428 = vsel %vm961, %v5405, 0
      %5430 = vmatprep.subr.bf16.mxu0 0
      %5431 = vmatpush1.bf16.xpose.msra.mxu0 %v5419
      %5432 = vmatprep.subr.bf16.mxu0 0
      %5433 = vmatpush1.bf16.xpose.msra.mxu0 %v5422
      %5434 = vmatprep.subr.bf16.mxu0 0
      %5435 = vmatpush1.bf16.xpose.msra.mxu0 %v5425
      %5436 = vmatprep.subr.bf16.mxu0 0
      %5437 = vmatpush1.bf16.xpose.msra.mxu0 %v5428
      %5438 = vmatprep.subr.bf16.mxu0 0
      %5439 = vmatpush1.bf16.xpose.msra.mxu0 0
      %5440 = vmatprep.subr.bf16.mxu0 0
      %5441 = vmatpush1.bf16.xpose.msra.mxu0 0
      %5442 = vmatprep.subr.bf16.mxu0 0
      %5443 = vmatpush1.bf16.xpose.msra.mxu0 0
      %5444 = vmatprep.subr.bf16.mxu0 0
      %5445 = vmatpush1.bf16.xpose.msra.mxu0 0
      %5446 = vmatprep.subr.bf16.mxu0 0
      %5447 = vmatpush1.bf16.xpose.msra.mxu0 0
      %5448 = vmatprep.subr.bf16.mxu0 0
      %5449 = vmatpush1.bf16.xpose.msra.mxu0 0
      %5450 = vmatprep.subr.bf16.mxu0 0
      %5451 = vmatpush1.bf16.xpose.msra.mxu0 0
      %5452 = vmatprep.subr.bf16.mxu0 0
      %5453 = vmatpush1.bf16.xpose.msra.mxu0 0
      %5454 = vmatprep.subr.bf16.mxu0 0
      %5455 = vmatpush1.bf16.xpose.msra.mxu0 0
      %5456 = vmatprep.subr.bf16.mxu0 0
      %5457 = vmatpush1.bf16.xpose.msra.mxu0 0
      %5458 = vmatprep.subr.bf16.mxu0 0
      %5459 = vmatpush1.bf16.xpose.msra.mxu0 0
      %5460 = vmatprep.subr.bf16.mxu0 0
      %5461 = vmatpush1.bf16.xpose.msra.mxu0 0
      %5462 = vmatprep.mubr.bf16.mxu0 0
      %5463 = vmatmul.mubr.bf16.gmra.mrb[0].mxu0 %v5407
      %v5464 = vpop.f32.mrb[0].mxu0
      %v5465 = vadd.f32 %v5382, %v5464
      %v5466 = vpop.f32.mrb[0].mxu0
      %v5467 = vpop.f32.mrb[0].mxu0
      %v5468 = vadd.f32 %v5383, %v5467
      %v5469 = vpop.f32.mrb[0].mxu0
      %5470 = vmatprep.mubr.bf16.mxu0 0
      %5471 = vmatmul.mubr.bf16.gmra.mrb[0].mxu0 %v5410
      %v5472 = vpop.f32.mrb[0].mxu0
      %v5473 = vadd.f32 %v5384, %v5472
      %v5474 = vpop.f32.mrb[0].mxu0
      %v5475 = vpop.f32.mrb[0].mxu0
      %v5476 = vadd.f32 %v5385, %v5475
      %v5477 = vpop.f32.mrb[0].mxu0
      %5478 = vmatprep.mubr.bf16.mxu0 0
      %5479 = vmatmul.mubr.bf16.gmra.mrb[0].mxu0 %v5413
      %v5480 = vpop.f32.mrb[0].mxu0
      %v5481 = vadd.f32 %v5386, %v5480
      %v5482 = vpop.f32.mrb[0].mxu0
      %v5483 = vpop.f32.mrb[0].mxu0
      %v5484 = vadd.f32 %v5387, %v5483
      %v5485 = vpop.f32.mrb[0].mxu0
      %5486 = vmatprep.mubr.bf16.mxu0 0
      %5487 = vmatmul.mubr.bf16.gmra.mrb[0].mxu0 %v5416
      %v5488 = vpop.f32.mrb[0].mxu0
      %v5489 = vadd.f32 %v5388, %v5488
      %v5490 = vpop.f32.mrb[0].mxu0
      %v5491 = vpop.f32.mrb[0].mxu0
      %v5492 = vadd.f32 %v5389, %v5491
      %v5493 = vpop.f32.mrb[0].mxu0
      %5494 = vdwg.mxu0
      %5495 = vrot.lane.b32.xlu0 %v4773, 120
      %v5496 = vpop.permute.xlu0 %5495
      %5497 = vrot.lane.b32.xlu0 %v4774, 120
      %v5498 = vpop.permute.xlu0 %5497
      %5499 = vrot.lane.b32.xlu0 %v4775, 120
      %v5500 = vpop.permute.xlu0 %5499
      %5501 = vrot.lane.b32.xlu0 %v4776, 120
      %v5502 = vpop.permute.xlu0 %5501
      %5503 = vrot.lane.b32.xlu0 %v4773, 88
      %v5504 = vpop.permute.xlu0 %5503
      %5505 = vrot.lane.b32.xlu0 %v4774, 88
      %v5506 = vpop.permute.xlu0 %5505
      %5507 = vrot.lane.b32.xlu0 %v4775, 88
      %v5508 = vpop.permute.xlu0 %5507
      %5509 = vrot.lane.b32.xlu0 %v4776, 88
      %v5510 = vpop.permute.xlu0 %5509
      %v5512 = vsel %vm961, %v5496, 0
      %v5515 = vsel %vm961, %v5498, 0
      %v5518 = vsel %vm961, %v5500, 0
      %v5521 = vsel %vm961, %v5502, 0
      %v5524 = vsel %vm961, %v5504, 0
      %v5527 = vsel %vm961, %v5506, 0
      %v5530 = vsel %vm961, %v5508, 0
      %v5533 = vsel %vm961, %v5510, 0
      %5535 = vmatprep.subr.bf16.mxu0 0
      %5536 = vmatpush1.bf16.xpose.msra.mxu0 %v5524
      %5537 = vmatprep.subr.bf16.mxu0 0
      %5538 = vmatpush1.bf16.xpose.msra.mxu0 %v5527
      %5539 = vmatprep.subr.bf16.mxu0 0
      %5540 = vmatpush1.bf16.xpose.msra.mxu0 %v5530
      %5541 = vmatprep.subr.bf16.mxu0 0
      %5542 = vmatpush1.bf16.xpose.msra.mxu0 %v5533
      %5543 = vmatprep.subr.bf16.mxu0 0
      %5544 = vmatpush1.bf16.xpose.msra.mxu0 0
      %5545 = vmatprep.subr.bf16.mxu0 0
      %5546 = vmatpush1.bf16.xpose.msra.mxu0 0
      %5547 = vmatprep.subr.bf16.mxu0 0
      %5548 = vmatpush1.bf16.xpose.msra.mxu0 0
      %5549 = vmatprep.subr.bf16.mxu0 0
      %5550 = vmatpush1.bf16.xpose.msra.mxu0 0
      %5551 = vmatprep.subr.bf16.mxu0 0
      %5552 = vmatpush1.bf16.xpose.msra.mxu0 0
      %5553 = vmatprep.subr.bf16.mxu0 0
      %5554 = vmatpush1.bf16.xpose.msra.mxu0 0
      %5555 = vmatprep.subr.bf16.mxu0 0
      %5556 = vmatpush1.bf16.xpose.msra.mxu0 0
      %5557 = vmatprep.subr.bf16.mxu0 0
      %5558 = vmatpush1.bf16.xpose.msra.mxu0 0
      %5559 = vmatprep.subr.bf16.mxu0 0
      %5560 = vmatpush1.bf16.xpose.msra.mxu0 0
      %5561 = vmatprep.subr.bf16.mxu0 0
      %5562 = vmatpush1.bf16.xpose.msra.mxu0 0
      %5563 = vmatprep.subr.bf16.mxu0 0
      %5564 = vmatpush1.bf16.xpose.msra.mxu0 0
      %5565 = vmatprep.subr.bf16.mxu0 0
      %5566 = vmatpush1.bf16.xpose.msra.mxu0 0
      %5567 = vmatprep.mubr.bf16.mxu0 0
      %5568 = vmatmul.mubr.bf16.gmra.mrb[0].mxu0 %v5512
      %v5569 = vpop.f32.mrb[0].mxu0
      %v5570 = vadd.f32 %v5382, %v5569
      %v5571 = vpop.f32.mrb[0].mxu0
      %v5572 = vpop.f32.mrb[0].mxu0
      %v5573 = vadd.f32 %v5383, %v5572
      %v5574 = vpop.f32.mrb[0].mxu0
      %5575 = vmatprep.mubr.bf16.mxu0 0
      %5576 = vmatmul.mubr.bf16.gmra.mrb[0].mxu0 %v5515
      %v5577 = vpop.f32.mrb[0].mxu0
      %v5578 = vadd.f32 %v5384, %v5577
      %v5579 = vpop.f32.mrb[0].mxu0
      %v5580 = vpop.f32.mrb[0].mxu0
      %v5581 = vadd.f32 %v5385, %v5580
      %v5582 = vpop.f32.mrb[0].mxu0
      %5583 = vmatprep.mubr.bf16.mxu0 0
      %5584 = vmatmul.mubr.bf16.gmra.mrb[0].mxu0 %v5518
      %v5585 = vpop.f32.mrb[0].mxu0
      %v5586 = vadd.f32 %v5386, %v5585
      %v5587 = vpop.f32.mrb[0].mxu0
      %v5588 = vpop.f32.mrb[0].mxu0
      %v5589 = vadd.f32 %v5387, %v5588
      %v5590 = vpop.f32.mrb[0].mxu0
      %5591 = vmatprep.mubr.bf16.mxu0 0
      %5592 = vmatmul.mubr.bf16.gmra.mrb[0].mxu0 %v5521
      %v5593 = vpop.f32.mrb[0].mxu0
      %v5594 = vadd.f32 %v5388, %v5593
      %v5595 = vpop.f32.mrb[0].mxu0
      %v5596 = vpop.f32.mrb[0].mxu0
      %v5597 = vadd.f32 %v5389, %v5596
      %v5598 = vpop.f32.mrb[0].mxu0
      %5599 = vdwg.mxu0
      %v5600 = vsel %vm1152, %v5465, -inf
      %5601 = vmax.xlane.f32.xlu0 %v5600
      %v5602 = vpop.xlane.xlu0 %5601
      %v5603 = vsel %vm1152, %v5468, -inf
      %5604 = vmax.xlane.f32.xlu0 %v5603
      %v5605 = vpop.xlane.xlu0 %5604
      %v5606 = vsel %vm1152, %v5473, -inf
      %5607 = vmax.xlane.f32.xlu0 %v5606
      %v5608 = vpop.xlane.xlu0 %5607
      %v5609 = vsel %vm1152, %v5476, -inf
      %5610 = vmax.xlane.f32.xlu0 %v5609
      %v5611 = vpop.xlane.xlu0 %5610
      %v5612 = vsel %vm1152, %v5481, -inf
      %5613 = vmax.xlane.f32.xlu0 %v5612
      %v5614 = vpop.xlane.xlu0 %5613
      %v5615 = vsel %vm1152, %v5484, -inf
      %5616 = vmax.xlane.f32.xlu0 %v5615
      %v5617 = vpop.xlane.xlu0 %5616
      %v5618 = vsel %vm1152, %v5489, -inf
      %5619 = vmax.xlane.f32.xlu0 %v5618
      %v5620 = vpop.xlane.xlu0 %5619
      %v5621 = vsel %vm1152, %v5492, -inf
      %5622 = vmax.xlane.f32.xlu0 %v5621
      %v5623 = vpop.xlane.xlu0 %5622
      %v5624 = vsel %vm1152, %v5570, -inf
      %5625 = vmax.xlane.f32.xlu0 %v5624
      %v5626 = vpop.xlane.xlu0 %5625
      %v5627 = vsel %vm1152, %v5573, -inf
      %5628 = vmax.xlane.f32.xlu0 %v5627
      %v5629 = vpop.xlane.xlu0 %5628
      %v5630 = vsel %vm1152, %v5578, -inf
      %5631 = vmax.xlane.f32.xlu0 %v5630
      %v5632 = vpop.xlane.xlu0 %5631
      %v5633 = vsel %vm1152, %v5581, -inf
      %5634 = vmax.xlane.f32.xlu0 %v5633
      %v5635 = vpop.xlane.xlu0 %5634
      %v5636 = vsel %vm1152, %v5586, -inf
      %5637 = vmax.xlane.f32.xlu0 %v5636
      %v5638 = vpop.xlane.xlu0 %5637
      %v5639 = vsel %vm1152, %v5589, -inf
      %5640 = vmax.xlane.f32.xlu0 %v5639
      %v5641 = vpop.xlane.xlu0 %5640
      %v5642 = vsel %vm1152, %v5594, -inf
      %5643 = vmax.xlane.f32.xlu0 %v5642
      %v5644 = vpop.xlane.xlu0 %5643
      %v5645 = vsel %vm1152, %v5597, -inf
      %5646 = vmax.xlane.f32.xlu0 %v5645
      %v5647 = vpop.xlane.xlu0 %5646
      %v5648 = vsub.f32 %v5465, %v5602
      %v5649 = vsub.f32 %v5468, %v5605
      %v5650 = vsub.f32 %v5473, %v5608
      %v5651 = vsub.f32 %v5476, %v5611
      %v5652 = vsub.f32 %v5481, %v5614
      %v5653 = vsub.f32 %v5484, %v5617
      %v5654 = vsub.f32 %v5489, %v5620
      %v5655 = vsub.f32 %v5492, %v5623
      %v5656 = vsub.f32 %v5570, %v5626
      %v5657 = vsub.f32 %v5573, %v5629
      %v5658 = vsub.f32 %v5578, %v5632
      %v5659 = vsub.f32 %v5581, %v5635
      %v5660 = vsub.f32 %v5586, %v5638
      %v5661 = vsub.f32 %v5589, %v5641
      %v5662 = vsub.f32 %v5594, %v5644
      %v5663 = vsub.f32 %v5597, %v5647
      %v5664 = vmul.f32 %v5648, 1.442695
      %v5665 = vpow.pop %v5664
      %v5666 = vmul.f32 %v5649, 1.442695
      %v5667 = vpow.pop %v5666
      %v5668 = vmul.f32 %v5650, 1.442695
      %v5669 = vpow.pop %v5668
      %v5670 = vmul.f32 %v5651, 1.442695
      %v5671 = vpow.pop %v5670
      %v5672 = vmul.f32 %v5652, 1.442695
      %v5673 = vpow.pop %v5672
      %v5674 = vmul.f32 %v5653, 1.442695
      %v5675 = vpow.pop %v5674
      %v5676 = vmul.f32 %v5654, 1.442695
      %v5677 = vpow.pop %v5676
      %v5678 = vmul.f32 %v5655, 1.442695
      %v5679 = vpow.pop %v5678
      %v5680 = vmul.f32 %v5656, 1.442695
      %v5681 = vpow.pop %v5680
      %v5682 = vmul.f32 %v5657, 1.442695
      %v5683 = vpow.pop %v5682
      %v5684 = vmul.f32 %v5658, 1.442695
      %v5685 = vpow.pop %v5684
      %v5686 = vmul.f32 %v5659, 1.442695
      %v5687 = vpow.pop %v5686
      %v5688 = vmul.f32 %v5660, 1.442695
      %v5689 = vpow.pop %v5688
      %v5690 = vmul.f32 %v5661, 1.442695
      %v5691 = vpow.pop %v5690
      %v5692 = vmul.f32 %v5662, 1.442695
      %v5693 = vpow.pop %v5692
      %v5694 = vmul.f32 %v5663, 1.442695
      %v5695 = vpow.pop %v5694
      %v5696 = vsel %vm1152, %v5665, 0.0
      %5697 = vadd.xlane.f32.xlu0 %v5696
      %v5698 = vpop.xlane.xlu0 %5697
      %v5699 = vsel %vm1152, %v5667, 0.0
      %5700 = vadd.xlane.f32.xlu0 %v5699
      %v5701 = vpop.xlane.xlu0 %5700
      %v5702 = vsel %vm1152, %v5669, 0.0
      %5703 = vadd.xlane.f32.xlu0 %v5702
      %v5704 = vpop.xlane.xlu0 %5703
      %v5705 = vsel %vm1152, %v5671, 0.0
      %5706 = vadd.xlane.f32.xlu0 %v5705
      %v5707 = vpop.xlane.xlu0 %5706
      %v5708 = vsel %vm1152, %v5673, 0.0
      %5709 = vadd.xlane.f32.xlu0 %v5708
      %v5710 = vpop.xlane.xlu0 %5709
      %v5711 = vsel %vm1152, %v5675, 0.0
      %5712 = vadd.xlane.f32.xlu0 %v5711
      %v5713 = vpop.xlane.xlu0 %5712
      %v5714 = vsel %vm1152, %v5677, 0.0
      %5715 = vadd.xlane.f32.xlu0 %v5714
      %v5716 = vpop.xlane.xlu0 %5715
      %v5717 = vsel %vm1152, %v5679, 0.0
      %5718 = vadd.xlane.f32.xlu0 %v5717
      %v5719 = vpop.xlane.xlu0 %5718
      %v5720 = vsel %vm1152, %v5681, 0.0
      %5721 = vadd.xlane.f32.xlu0 %v5720
      %v5722 = vpop.xlane.xlu0 %5721
      %v5723 = vsel %vm1152, %v5683, 0.0
      %5724 = vadd.xlane.f32.xlu0 %v5723
      %v5725 = vpop.xlane.xlu0 %5724
      %v5726 = vsel %vm1152, %v5685, 0.0
      %5727 = vadd.xlane.f32.xlu0 %v5726
      %v5728 = vpop.xlane.xlu0 %5727
      %v5729 = vsel %vm1152, %v5687, 0.0
      %5730 = vadd.xlane.f32.xlu0 %v5729
      %v5731 = vpop.xlane.xlu0 %5730
      %v5732 = vsel %vm1152, %v5689, 0.0
      %5733 = vadd.xlane.f32.xlu0 %v5732
      %v5734 = vpop.xlane.xlu0 %5733
      %v5735 = vsel %vm1152, %v5691, 0.0
      %5736 = vadd.xlane.f32.xlu0 %v5735
      %v5737 = vpop.xlane.xlu0 %5736
      %v5738 = vsel %vm1152, %v5693, 0.0
      %5739 = vadd.xlane.f32.xlu0 %v5738
      %v5740 = vpop.xlane.xlu0 %5739
      %v5741 = vsel %vm1152, %v5695, 0.0
      %5742 = vadd.xlane.f32.xlu0 %v5741
      %v5743 = vpop.xlane.xlu0 %5742
      %v5744 = vrcp.pop %v5698
      %v5745 = vrcp.pop %v5701
      %v5746 = vrcp.pop %v5704
      %v5747 = vrcp.pop %v5707
      %v5748 = vrcp.pop %v5710
      %v5749 = vrcp.pop %v5713
      %v5750 = vrcp.pop %v5716
      %v5751 = vrcp.pop %v5719
      %v5752 = vrcp.pop %v5722
      %v5753 = vrcp.pop %v5725
      %v5754 = vrcp.pop %v5728
      %v5755 = vrcp.pop %v5731
      %v5756 = vrcp.pop %v5734
      %v5757 = vrcp.pop %v5737
      %v5758 = vrcp.pop %v5740
      %v5759 = vrcp.pop %v5743
      %v5760 = vmul.f32 %v5665, %v5744
      %v5761 = vmul.f32 %v5667, %v5745
      %v5762 = vmul.f32 %v5669, %v5746
      %v5763 = vmul.f32 %v5671, %v5747
      %v5764 = vmul.f32 %v5673, %v5748
      %v5765 = vmul.f32 %v5675, %v5749
      %v5766 = vmul.f32 %v5677, %v5750
      %v5767 = vmul.f32 %v5679, %v5751
      %v5768 = vmul.f32 %v5681, %v5752
      %v5769 = vmul.f32 %v5683, %v5753
      %v5770 = vmul.f32 %v5685, %v5754
      %v5771 = vmul.f32 %v5687, %v5755
      %v5772 = vmul.f32 %v5689, %v5756
      %v5773 = vmul.f32 %v5691, %v5757
      %v5774 = vmul.f32 %v5693, %v5758
      %v5775 = vmul.f32 %v5695, %v5759
      %v5776 = vpack.c.bf16 %v5761, %v5760
      %v5777 = vpack.c.bf16 %v5763, %v5762
      %v5778 = vpack.c.bf16 %v5765, %v5764
      %v5779 = vpack.c.bf16 %v5767, %v5766
      %v5780 = vpack.c.bf16 %v5769, %v5768
      %v5781 = vpack.c.bf16 %v5771, %v5770
      %v5782 = vpack.c.bf16 %v5773, %v5772
      %v5783 = vpack.c.bf16 %v5775, %v5774
      %5784 = vrot.lane.b32.xlu0 %v4769, 56
      %v5785 = vpop.permute.xlu0 %5784
      %5786 = vrot.lane.b32.xlu0 %v4770, 56
      %v5787 = vpop.permute.xlu0 %5786
      %5788 = vrot.lane.b32.xlu0 %v4771, 56
      %v5789 = vpop.permute.xlu0 %5788
      %5790 = vrot.lane.b32.xlu0 %v4772, 56
      %v5791 = vpop.permute.xlu0 %5790
      %v5797 = vsel %vm1152, %v5776, 0
      %v5800 = vsel %vm1152, %v5777, 0
      %v5803 = vsel %vm1152, %v5778, 0
      %v5806 = vsel %vm1152, %v5779, 0
      %5808 = vmatprep.subr.bf16.mxu0 0
      %5809 = vmatpush1.bf16.msra.mxu0 %v5785
      %5810 = vmatprep.subr.bf16.mxu0 0
      %5811 = vmatpush1.bf16.msra.mxu0 %v5787
      %5812 = vmatprep.subr.bf16.mxu0 0
      %5813 = vmatpush1.bf16.msra.mxu0 %v5789
      %5814 = vmatprep.subr.bf16.mxu0 0
      %5815 = vmatpush1.bf16.msra.mxu0 %v5791
      %5816 = vmatprep.subr.bf16.mxu0 0
      %5817 = vmatpush1.bf16.msra.mxu0 0
      %5818 = vmatprep.subr.bf16.mxu0 0
      %5819 = vmatpush1.bf16.msra.mxu0 0
      %5820 = vmatprep.subr.bf16.mxu0 0
      %5821 = vmatpush1.bf16.msra.mxu0 0
      %5822 = vmatprep.subr.bf16.mxu0 0
      %5823 = vmatpush1.bf16.msra.mxu0 0
      %5824 = vmatprep.subr.bf16.mxu0 0
      %5825 = vmatpush1.bf16.msra.mxu0 0
      %5826 = vmatprep.subr.bf16.mxu0 0
      %5827 = vmatpush1.bf16.msra.mxu0 0
      %5828 = vmatprep.subr.bf16.mxu0 0
      %5829 = vmatpush1.bf16.msra.mxu0 0
      %5830 = vmatprep.subr.bf16.mxu0 0
      %5831 = vmatpush1.bf16.msra.mxu0 0
      %5832 = vmatprep.subr.bf16.mxu0 0
      %5833 = vmatpush1.bf16.msra.mxu0 0
      %5834 = vmatprep.subr.bf16.mxu0 0
      %5835 = vmatpush1.bf16.msra.mxu0 0
      %5836 = vmatprep.subr.bf16.mxu0 0
      %5837 = vmatpush1.bf16.msra.mxu0 0
      %5838 = vmatprep.subr.bf16.mxu0 0
      %5839 = vmatpush1.bf16.msra.mxu0 0
      %5840 = vmatprep.mubr.bf16.mxu0 0
      %5841 = vmatmul.mubr.bf16.gmra.mrb[0].mxu0 %v5797
      %v5842 = vpop.f32.mrb[0].mxu0
      %v5843 = vadd.f32 0.0, %v5842
      %v5844 = vpop.f32.mrb[0].mxu0
      %v5845 = vpop.f32.mrb[0].mxu0
      %v5846 = vadd.f32 0.0, %v5845
      %v5847 = vpop.f32.mrb[0].mxu0
      %5848 = vmatprep.mubr.bf16.mxu0 0
      %5849 = vmatmul.mubr.bf16.gmra.mrb[0].mxu0 %v5800
      %v5850 = vpop.f32.mrb[0].mxu0
      %v5851 = vadd.f32 0.0, %v5850
      %v5852 = vpop.f32.mrb[0].mxu0
      %v5853 = vpop.f32.mrb[0].mxu0
      %v5854 = vadd.f32 0.0, %v5853
      %v5855 = vpop.f32.mrb[0].mxu0
      %5856 = vmatprep.mubr.bf16.mxu0 0
      %5857 = vmatmul.mubr.bf16.gmra.mrb[0].mxu0 %v5803
      %v5858 = vpop.f32.mrb[0].mxu0
      %v5859 = vadd.f32 0.0, %v5858
      %v5860 = vpop.f32.mrb[0].mxu0
      %v5861 = vpop.f32.mrb[0].mxu0
      %v5862 = vadd.f32 0.0, %v5861
      %v5863 = vpop.f32.mrb[0].mxu0
      %5864 = vmatprep.mubr.bf16.mxu0 0
      %5865 = vmatmul.mubr.bf16.gmra.mrb[0].mxu0 %v5806
      %v5866 = vpop.f32.mrb[0].mxu0
      %v5867 = vadd.f32 0.0, %v5866
      %v5868 = vpop.f32.mrb[0].mxu0
      %v5869 = vpop.f32.mrb[0].mxu0
      %v5870 = vadd.f32 0.0, %v5869
      %v5871 = vpop.f32.mrb[0].mxu0
      %5872 = vdwg.mxu0
      %5873 = vrot.lane.b32.xlu0 %v4773, 56
      %v5874 = vpop.permute.xlu0 %5873
      %5875 = vrot.lane.b32.xlu0 %v4774, 56
      %v5876 = vpop.permute.xlu0 %5875
      %5877 = vrot.lane.b32.xlu0 %v4775, 56
      %v5878 = vpop.permute.xlu0 %5877
      %5879 = vrot.lane.b32.xlu0 %v4776, 56
      %v5880 = vpop.permute.xlu0 %5879
      %v5886 = vsel %vm1152, %v5780, 0
      %v5889 = vsel %vm1152, %v5781, 0
      %v5892 = vsel %vm1152, %v5782, 0
      %v5895 = vsel %vm1152, %v5783, 0
      %5897 = vmatprep.subr.bf16.mxu0 0
      %5898 = vmatpush1.bf16.msra.mxu0 %v5874
      %5899 = vmatprep.subr.bf16.mxu0 0
      %5900 = vmatpush1.bf16.msra.mxu0 %v5876
      %5901 = vmatprep.subr.bf16.mxu0 0
      %5902 = vmatpush1.bf16.msra.mxu0 %v5878
      %5903 = vmatprep.subr.bf16.mxu0 0
      %5904 = vmatpush1.bf16.msra.mxu0 %v5880
      %5905 = vmatprep.subr.bf16.mxu0 0
      %5906 = vmatpush1.bf16.msra.mxu0 0
      %5907 = vmatprep.subr.bf16.mxu0 0
      %5908 = vmatpush1.bf16.msra.mxu0 0
      %5909 = vmatprep.subr.bf16.mxu0 0
      %5910 = vmatpush1.bf16.msra.mxu0 0
      %5911 = vmatprep.subr.bf16.mxu0 0
      %5912 = vmatpush1.bf16.msra.mxu0 0
      %5913 = vmatprep.subr.bf16.mxu0 0
      %5914 = vmatpush1.bf16.msra.mxu0 0
      %5915 = vmatprep.subr.bf16.mxu0 0
      %5916 = vmatpush1.bf16.msra.mxu0 0
      %5917 = vmatprep.subr.bf16.mxu0 0
      %5918 = vmatpush1.bf16.msra.mxu0 0
      %5919 = vmatprep.subr.bf16.mxu0 0
      %5920 = vmatpush1.bf16.msra.mxu0 0
      %5921 = vmatprep.subr.bf16.mxu0 0
      %5922 = vmatpush1.bf16.msra.mxu0 0
      %5923 = vmatprep.subr.bf16.mxu0 0
      %5924 = vmatpush1.bf16.msra.mxu0 0
      %5925 = vmatprep.subr.bf16.mxu0 0
      %5926 = vmatpush1.bf16.msra.mxu0 0
      %5927 = vmatprep.subr.bf16.mxu0 0
      %5928 = vmatpush1.bf16.msra.mxu0 0
      %5929 = vmatprep.mubr.bf16.mxu0 0
      %5930 = vmatmul.mubr.bf16.gmra.mrb[0].mxu0 %v5886
      %v5931 = vpop.f32.mrb[0].mxu0
      %v5932 = vadd.f32 0.0, %v5931
      %v5933 = vpop.f32.mrb[0].mxu0
      %v5934 = vpop.f32.mrb[0].mxu0
      %v5935 = vadd.f32 0.0, %v5934
      %v5936 = vpop.f32.mrb[0].mxu0
      %5937 = vmatprep.mubr.bf16.mxu0 0
      %5938 = vmatmul.mubr.bf16.gmra.mrb[0].mxu0 %v5889
      %v5939 = vpop.f32.mrb[0].mxu0
      %v5940 = vadd.f32 0.0, %v5939
      %v5941 = vpop.f32.mrb[0].mxu0
      %v5942 = vpop.f32.mrb[0].mxu0
      %v5943 = vadd.f32 0.0, %v5942
      %v5944 = vpop.f32.mrb[0].mxu0
      %5945 = vmatprep.mubr.bf16.mxu0 0
      %5946 = vmatmul.mubr.bf16.gmra.mrb[0].mxu0 %v5892
      %v5947 = vpop.f32.mrb[0].mxu0
      %v5948 = vadd.f32 0.0, %v5947
      %v5949 = vpop.f32.mrb[0].mxu0
      %v5950 = vpop.f32.mrb[0].mxu0
      %v5951 = vadd.f32 0.0, %v5950
      %v5952 = vpop.f32.mrb[0].mxu0
      %5953 = vmatprep.mubr.bf16.mxu0 0
      %5954 = vmatmul.mubr.bf16.gmra.mrb[0].mxu0 %v5895
      %v5955 = vpop.f32.mrb[0].mxu0
      %v5956 = vadd.f32 0.0, %v5955
      %v5957 = vpop.f32.mrb[0].mxu0
      %v5958 = vpop.f32.mrb[0].mxu0
      %v5959 = vadd.f32 0.0, %v5958
      %v5960 = vpop.f32.mrb[0].mxu0
      %5961 = vdwg.mxu0
      %v5962 = vunpack.c.l.bf16 %v4794
      %v5963 = vunpack.c.l.bf16 %v4795
      %v5964 = vunpack.c.l.bf16 %v4796
      %v5965 = vunpack.c.l.bf16 %v4797
      %v5966 = vunpack.c.l.bf16 %v4798
      %v5967 = vunpack.c.l.bf16 %v4799
      %v5968 = vunpack.c.l.bf16 %v4800
      %v5969 = vunpack.c.l.bf16 %v4801
      %5970 = vrot.lane.b32.xlu0 %v4769, 112
      %v5971 = vpop.permute.xlu0 %5970
      %5972 = vrot.lane.b32.xlu0 %v4770, 112
      %v5973 = vpop.permute.xlu0 %5972
      %5974 = vrot.lane.b32.xlu0 %v4771, 112
      %v5975 = vpop.permute.xlu0 %5974
      %5976 = vrot.lane.b32.xlu0 %v4772, 112
      %v5977 = vpop.permute.xlu0 %5976
      %5978 = vrot.lane.b32.xlu0 %v4769, 80
      %v5979 = vpop.permute.xlu0 %5978
      %5980 = vrot.lane.b32.xlu0 %v4770, 80
      %v5981 = vpop.permute.xlu0 %5980
      %5982 = vrot.lane.b32.xlu0 %v4771, 80
      %v5983 = vpop.permute.xlu0 %5982
      %5984 = vrot.lane.b32.xlu0 %v4772, 80
      %v5985 = vpop.permute.xlu0 %5984
      %v5987 = vsel %vm961, %v5971, 0
      %v5990 = vsel %vm961, %v5973, 0
      %v5993 = vsel %vm961, %v5975, 0
      %v5996 = vsel %vm961, %v5977, 0
      %v5999 = vsel %vm961, %v5979, 0
      %v6002 = vsel %vm961, %v5981, 0
      %v6005 = vsel %vm961, %v5983, 0
      %v6008 = vsel %vm961, %v5985, 0
      %6010 = vmatprep.subr.bf16.mxu0 0
      %6011 = vmatpush1.bf16.xpose.msra.mxu0 %v5999
      %6012 = vmatprep.subr.bf16.mxu0 0
      %6013 = vmatpush1.bf16.xpose.msra.mxu0 %v6002
      %6014 = vmatprep.subr.bf16.mxu0 0
      %6015 = vmatpush1.bf16.xpose.msra.mxu0 %v6005
      %6016 = vmatprep.subr.bf16.mxu0 0
      %6017 = vmatpush1.bf16.xpose.msra.mxu0 %v6008
      %6018 = vmatprep.subr.bf16.mxu0 0
      %6019 = vmatpush1.bf16.xpose.msra.mxu0 0
      %6020 = vmatprep.subr.bf16.mxu0 0
      %6021 = vmatpush1.bf16.xpose.msra.mxu0 0
      %6022 = vmatprep.subr.bf16.mxu0 0
      %6023 = vmatpush1.bf16.xpose.msra.mxu0 0
      %6024 = vmatprep.subr.bf16.mxu0 0
      %6025 = vmatpush1.bf16.xpose.msra.mxu0 0
      %6026 = vmatprep.subr.bf16.mxu0 0
      %6027 = vmatpush1.bf16.xpose.msra.mxu0 0
      %6028 = vmatprep.subr.bf16.mxu0 0
      %6029 = vmatpush1.bf16.xpose.msra.mxu0 0
      %6030 = vmatprep.subr.bf16.mxu0 0
      %6031 = vmatpush1.bf16.xpose.msra.mxu0 0
      %6032 = vmatprep.subr.bf16.mxu0 0
      %6033 = vmatpush1.bf16.xpose.msra.mxu0 0
      %6034 = vmatprep.subr.bf16.mxu0 0
      %6035 = vmatpush1.bf16.xpose.msra.mxu0 0
      %6036 = vmatprep.subr.bf16.mxu0 0
      %6037 = vmatpush1.bf16.xpose.msra.mxu0 0
      %6038 = vmatprep.subr.bf16.mxu0 0
      %6039 = vmatpush1.bf16.xpose.msra.mxu0 0
      %6040 = vmatprep.subr.bf16.mxu0 0
      %6041 = vmatpush1.bf16.xpose.msra.mxu0 0
      %6042 = vmatprep.mubr.bf16.mxu0 0
      %6043 = vmatmul.mubr.bf16.gmra.mrb[0].mxu0 %v5987
      %v6044 = vpop.f32.mrb[0].mxu0
      %v6045 = vadd.f32 %v5962, %v6044
      %v6046 = vpop.f32.mrb[0].mxu0
      %v6047 = vpop.f32.mrb[0].mxu0
      %v6048 = vadd.f32 %v5963, %v6047
      %v6049 = vpop.f32.mrb[0].mxu0
      %6050 = vmatprep.mubr.bf16.mxu0 0
      %6051 = vmatmul.mubr.bf16.gmra.mrb[0].mxu0 %v5990
      %v6052 = vpop.f32.mrb[0].mxu0
      %v6053 = vadd.f32 %v5964, %v6052
      %v6054 = vpop.f32.mrb[0].mxu0
      %v6055 = vpop.f32.mrb[0].mxu0
      %v6056 = vadd.f32 %v5965, %v6055
      %v6057 = vpop.f32.mrb[0].mxu0
      %6058 = vmatprep.mubr.bf16.mxu0 0
      %6059 = vmatmul.mubr.bf16.gmra.mrb[0].mxu0 %v5993
      %v6060 = vpop.f32.mrb[0].mxu0
      %v6061 = vadd.f32 %v5966, %v6060
      %v6062 = vpop.f32.mrb[0].mxu0
      %v6063 = vpop.f32.mrb[0].mxu0
      %v6064 = vadd.f32 %v5967, %v6063
      %v6065 = vpop.f32.mrb[0].mxu0
      %6066 = vmatprep.mubr.bf16.mxu0 0
      %6067 = vmatmul.mubr.bf16.gmra.mrb[0].mxu0 %v5996
      %v6068 = vpop.f32.mrb[0].mxu0
      %v6069 = vadd.f32 %v5968, %v6068
      %v6070 = vpop.f32.mrb[0].mxu0
      %v6071 = vpop.f32.mrb[0].mxu0
      %v6072 = vadd.f32 %v5969, %v6071
      %v6073 = vpop.f32.mrb[0].mxu0
      %6074 = vdwg.mxu0
      %6075 = vrot.lane.b32.xlu0 %v4773, 112
      %v6076 = vpop.permute.xlu0 %6075
      %6077 = vrot.lane.b32.xlu0 %v4774, 112
      %v6078 = vpop.permute.xlu0 %6077
      %6079 = vrot.lane.b32.xlu0 %v4775, 112
      %v6080 = vpop.permute.xlu0 %6079
      %6081 = vrot.lane.b32.xlu0 %v4776, 112
      %v6082 = vpop.permute.xlu0 %6081
      %6083 = vrot.lane.b32.xlu0 %v4773, 80
      %v6084 = vpop.permute.xlu0 %6083
      %6085 = vrot.lane.b32.xlu0 %v4774, 80
      %v6086 = vpop.permute.xlu0 %6085
      %6087 = vrot.lane.b32.xlu0 %v4775, 80
      %v6088 = vpop.permute.xlu0 %6087
      %6089 = vrot.lane.b32.xlu0 %v4776, 80
      %v6090 = vpop.permute.xlu0 %6089
      %v6092 = vsel %vm961, %v6076, 0
      %v6095 = vsel %vm961, %v6078, 0
      %v6098 = vsel %vm961, %v6080, 0
      %v6101 = vsel %vm961, %v6082, 0
      %v6104 = vsel %vm961, %v6084, 0
      %v6107 = vsel %vm961, %v6086, 0
      %v6110 = vsel %vm961, %v6088, 0
      %v6113 = vsel %vm961, %v6090, 0
      %6115 = vmatprep.subr.bf16.mxu0 0
      %6116 = vmatpush1.bf16.xpose.msra.mxu0 %v6104
      %6117 = vmatprep.subr.bf16.mxu0 0
      %6118 = vmatpush1.bf16.xpose.msra.mxu0 %v6107
      %6119 = vmatprep.subr.bf16.mxu0 0
      %6120 = vmatpush1.bf16.xpose.msra.mxu0 %v6110
      %6121 = vmatprep.subr.bf16.mxu0 0
      %6122 = vmatpush1.bf16.xpose.msra.mxu0 %v6113
      %6123 = vmatprep.subr.bf16.mxu0 0
      %6124 = vmatpush1.bf16.xpose.msra.mxu0 0
      %6125 = vmatprep.subr.bf16.mxu0 0
      %6126 = vmatpush1.bf16.xpose.msra.mxu0 0
      %6127 = vmatprep.subr.bf16.mxu0 0
      %6128 = vmatpush1.bf16.xpose.msra.mxu0 0
      %6129 = vmatprep.subr.bf16.mxu0 0
      %6130 = vmatpush1.bf16.xpose.msra.mxu0 0
      %6131 = vmatprep.subr.bf16.mxu0 0
      %6132 = vmatpush1.bf16.xpose.msra.mxu0 0
      %6133 = vmatprep.subr.bf16.mxu0 0
      %6134 = vmatpush1.bf16.xpose.msra.mxu0 0
      %6135 = vmatprep.subr.bf16.mxu0 0
      %6136 = vmatpush1.bf16.xpose.msra.mxu0 0
      %6137 = vmatprep.subr.bf16.mxu0 0
      %6138 = vmatpush1.bf16.xpose.msra.mxu0 0
      %6139 = vmatprep.subr.bf16.mxu0 0
      %6140 = vmatpush1.bf16.xpose.msra.mxu0 0
      %6141 = vmatprep.subr.bf16.mxu0 0
      %6142 = vmatpush1.bf16.xpose.msra.mxu0 0
      %6143 = vmatprep.subr.bf16.mxu0 0
      %6144 = vmatpush1.bf16.xpose.msra.mxu0 0
      %6145 = vmatprep.subr.bf16.mxu0 0
      %6146 = vmatpush1.bf16.xpose.msra.mxu0 0
      %6147 = vmatprep.mubr.bf16.mxu0 0
      %6148 = vmatmul.mubr.bf16.gmra.mrb[0].mxu0 %v6092
      %v6149 = vpop.f32.mrb[0].mxu0
      %v6150 = vadd.f32 %v5962, %v6149
      %v6151 = vpop.f32.mrb[0].mxu0
      %v6152 = vpop.f32.mrb[0].mxu0
      %v6153 = vadd.f32 %v5963, %v6152
      %v6154 = vpop.f32.mrb[0].mxu0
      %6155 = vmatprep.mubr.bf16.mxu0 0
      %6156 = vmatmul.mubr.bf16.gmra.mrb[0].mxu0 %v6095
      %v6157 = vpop.f32.mrb[0].mxu0
      %v6158 = vadd.f32 %v5964, %v6157
      %v6159 = vpop.f32.mrb[0].mxu0
      %v6160 = vpop.f32.mrb[0].mxu0
      %v6161 = vadd.f32 %v5965, %v6160
      %v6162 = vpop.f32.mrb[0].mxu0
      %6163 = vmatprep.mubr.bf16.mxu0 0
      %6164 = vmatmul.mubr.bf16.gmra.mrb[0].mxu0 %v6098
      %v6165 = vpop.f32.mrb[0].mxu0
      %v6166 = vadd.f32 %v5966, %v6165
      %v6167 = vpop.f32.mrb[0].mxu0
      %v6168 = vpop.f32.mrb[0].mxu0
      %v6169 = vadd.f32 %v5967, %v6168
      %v6170 = vpop.f32.mrb[0].mxu0
      %6171 = vmatprep.mubr.bf16.mxu0 0
      %6172 = vmatmul.mubr.bf16.gmra.mrb[0].mxu0 %v6101
      %v6173 = vpop.f32.mrb[0].mxu0
      %v6174 = vadd.f32 %v5968, %v6173
      %v6175 = vpop.f32.mrb[0].mxu0
      %v6176 = vpop.f32.mrb[0].mxu0
      %v6177 = vadd.f32 %v5969, %v6176
      %v6178 = vpop.f32.mrb[0].mxu0
      %6179 = vdwg.mxu0
      %v6180 = vsel %vm1152, %v6045, -inf
      %6181 = vmax.xlane.f32.xlu0 %v6180
      %v6182 = vpop.xlane.xlu0 %6181
      %v6183 = vsel %vm1152, %v6048, -inf
      %6184 = vmax.xlane.f32.xlu0 %v6183
      %v6185 = vpop.xlane.xlu0 %6184
      %v6186 = vsel %vm1152, %v6053, -inf
      %6187 = vmax.xlane.f32.xlu0 %v6186
      %v6188 = vpop.xlane.xlu0 %6187
      %v6189 = vsel %vm1152, %v6056, -inf
      %6190 = vmax.xlane.f32.xlu0 %v6189
      %v6191 = vpop.xlane.xlu0 %6190
      %v6192 = vsel %vm1152, %v6061, -inf
      %6193 = vmax.xlane.f32.xlu0 %v6192
      %v6194 = vpop.xlane.xlu0 %6193
      %v6195 = vsel %vm1152, %v6064, -inf
      %6196 = vmax.xlane.f32.xlu0 %v6195
      %v6197 = vpop.xlane.xlu0 %6196
      %v6198 = vsel %vm1152, %v6069, -inf
      %6199 = vmax.xlane.f32.xlu0 %v6198
      %v6200 = vpop.xlane.xlu0 %6199
      %v6201 = vsel %vm1152, %v6072, -inf
      %6202 = vmax.xlane.f32.xlu0 %v6201
      %v6203 = vpop.xlane.xlu0 %6202
      %v6204 = vsel %vm1152, %v6150, -inf
      %6205 = vmax.xlane.f32.xlu0 %v6204
      %v6206 = vpop.xlane.xlu0 %6205
      %v6207 = vsel %vm1152, %v6153, -inf
      %6208 = vmax.xlane.f32.xlu0 %v6207
      %v6209 = vpop.xlane.xlu0 %6208
      %v6210 = vsel %vm1152, %v6158, -inf
      %6211 = vmax.xlane.f32.xlu0 %v6210
      %v6212 = vpop.xlane.xlu0 %6211
      %v6213 = vsel %vm1152, %v6161, -inf
      %6214 = vmax.xlane.f32.xlu0 %v6213
      %v6215 = vpop.xlane.xlu0 %6214
      %v6216 = vsel %vm1152, %v6166, -inf
      %6217 = vmax.xlane.f32.xlu0 %v6216
      %v6218 = vpop.xlane.xlu0 %6217
      %v6219 = vsel %vm1152, %v6169, -inf
      %6220 = vmax.xlane.f32.xlu0 %v6219
      %v6221 = vpop.xlane.xlu0 %6220
      %v6222 = vsel %vm1152, %v6174, -inf
      %6223 = vmax.xlane.f32.xlu0 %v6222
      %v6224 = vpop.xlane.xlu0 %6223
      %v6225 = vsel %vm1152, %v6177, -inf
      %6226 = vmax.xlane.f32.xlu0 %v6225
      %v6227 = vpop.xlane.xlu0 %6226
      %v6228 = vsub.f32 %v6045, %v6182
      %v6229 = vsub.f32 %v6048, %v6185
      %v6230 = vsub.f32 %v6053, %v6188
      %v6231 = vsub.f32 %v6056, %v6191
      %v6232 = vsub.f32 %v6061, %v6194
      %v6233 = vsub.f32 %v6064, %v6197
      %v6234 = vsub.f32 %v6069, %v6200
      %v6235 = vsub.f32 %v6072, %v6203
      %v6236 = vsub.f32 %v6150, %v6206
      %v6237 = vsub.f32 %v6153, %v6209
      %v6238 = vsub.f32 %v6158, %v6212
      %v6239 = vsub.f32 %v6161, %v6215
      %v6240 = vsub.f32 %v6166, %v6218
      %v6241 = vsub.f32 %v6169, %v6221
      %v6242 = vsub.f32 %v6174, %v6224
      %v6243 = vsub.f32 %v6177, %v6227
      %v6244 = vmul.f32 %v6228, 1.442695
      %v6245 = vpow.pop %v6244
      %v6246 = vmul.f32 %v6229, 1.442695
      %v6247 = vpow.pop %v6246
      %v6248 = vmul.f32 %v6230, 1.442695
      %v6249 = vpow.pop %v6248
      %v6250 = vmul.f32 %v6231, 1.442695
      %v6251 = vpow.pop %v6250
      %v6252 = vmul.f32 %v6232, 1.442695
      %v6253 = vpow.pop %v6252
      %v6254 = vmul.f32 %v6233, 1.442695
      %v6255 = vpow.pop %v6254
      %v6256 = vmul.f32 %v6234, 1.442695
      %v6257 = vpow.pop %v6256
      %v6258 = vmul.f32 %v6235, 1.442695
      %v6259 = vpow.pop %v6258
      %v6260 = vmul.f32 %v6236, 1.442695
      %v6261 = vpow.pop %v6260
      %v6262 = vmul.f32 %v6237, 1.442695
      %v6263 = vpow.pop %v6262
      %v6264 = vmul.f32 %v6238, 1.442695
      %v6265 = vpow.pop %v6264
      %v6266 = vmul.f32 %v6239, 1.442695
      %v6267 = vpow.pop %v6266
      %v6268 = vmul.f32 %v6240, 1.442695
      %v6269 = vpow.pop %v6268
      %v6270 = vmul.f32 %v6241, 1.442695
      %v6271 = vpow.pop %v6270
      %v6272 = vmul.f32 %v6242, 1.442695
      %v6273 = vpow.pop %v6272
      %v6274 = vmul.f32 %v6243, 1.442695
      %v6275 = vpow.pop %v6274
      %v6276 = vsel %vm1152, %v6245, 0.0
      %6277 = vadd.xlane.f32.xlu0 %v6276
      %v6278 = vpop.xlane.xlu0 %6277
      %v6279 = vsel %vm1152, %v6247, 0.0
      %6280 = vadd.xlane.f32.xlu0 %v6279
      %v6281 = vpop.xlane.xlu0 %6280
      %v6282 = vsel %vm1152, %v6249, 0.0
      %6283 = vadd.xlane.f32.xlu0 %v6282
      %v6284 = vpop.xlane.xlu0 %6283
      %v6285 = vsel %vm1152, %v6251, 0.0
      %6286 = vadd.xlane.f32.xlu0 %v6285
      %v6287 = vpop.xlane.xlu0 %6286
      %v6288 = vsel %vm1152, %v6253, 0.0
      %6289 = vadd.xlane.f32.xlu0 %v6288
      %v6290 = vpop.xlane.xlu0 %6289
      %v6291 = vsel %vm1152, %v6255, 0.0
      %6292 = vadd.xlane.f32.xlu0 %v6291
      %v6293 = vpop.xlane.xlu0 %6292
      %v6294 = vsel %vm1152, %v6257, 0.0
      %6295 = vadd.xlane.f32.xlu0 %v6294
      %v6296 = vpop.xlane.xlu0 %6295
      %v6297 = vsel %vm1152, %v6259, 0.0
      %6298 = vadd.xlane.f32.xlu0 %v6297
      %v6299 = vpop.xlane.xlu0 %6298
      %v6300 = vsel %vm1152, %v6261, 0.0
      %6301 = vadd.xlane.f32.xlu0 %v6300
      %v6302 = vpop.xlane.xlu0 %6301
      %v6303 = vsel %vm1152, %v6263, 0.0
      %6304 = vadd.xlane.f32.xlu0 %v6303
      %v6305 = vpop.xlane.xlu0 %6304
      %v6306 = vsel %vm1152, %v6265, 0.0
      %6307 = vadd.xlane.f32.xlu0 %v6306
      %v6308 = vpop.xlane.xlu0 %6307
      %v6309 = vsel %vm1152, %v6267, 0.0
      %6310 = vadd.xlane.f32.xlu0 %v6309
      %v6311 = vpop.xlane.xlu0 %6310
      %v6312 = vsel %vm1152, %v6269, 0.0
      %6313 = vadd.xlane.f32.xlu0 %v6312
      %v6314 = vpop.xlane.xlu0 %6313
      %v6315 = vsel %vm1152, %v6271, 0.0
      %6316 = vadd.xlane.f32.xlu0 %v6315
      %v6317 = vpop.xlane.xlu0 %6316
      %v6318 = vsel %vm1152, %v6273, 0.0
      %6319 = vadd.xlane.f32.xlu0 %v6318
      %v6320 = vpop.xlane.xlu0 %6319
      %v6321 = vsel %vm1152, %v6275, 0.0
      %6322 = vadd.xlane.f32.xlu0 %v6321
      %v6323 = vpop.xlane.xlu0 %6322
      %v6324 = vrcp.pop %v6278
      %v6325 = vrcp.pop %v6281
      %v6326 = vrcp.pop %v6284
      %v6327 = vrcp.pop %v6287
      %v6328 = vrcp.pop %v6290
      %v6329 = vrcp.pop %v6293
      %v6330 = vrcp.pop %v6296
      %v6331 = vrcp.pop %v6299
      %v6332 = vrcp.pop %v6302
      %v6333 = vrcp.pop %v6305
      %v6334 = vrcp.pop %v6308
      %v6335 = vrcp.pop %v6311
      %v6336 = vrcp.pop %v6314
      %v6337 = vrcp.pop %v6317
      %v6338 = vrcp.pop %v6320
      %v6339 = vrcp.pop %v6323
      %v6340 = vmul.f32 %v6245, %v6324
      %v6341 = vmul.f32 %v6247, %v6325
      %v6342 = vmul.f32 %v6249, %v6326
      %v6343 = vmul.f32 %v6251, %v6327
      %v6344 = vmul.f32 %v6253, %v6328
      %v6345 = vmul.f32 %v6255, %v6329
      %v6346 = vmul.f32 %v6257, %v6330
      %v6347 = vmul.f32 %v6259, %v6331
      %v6348 = vmul.f32 %v6261, %v6332
      %v6349 = vmul.f32 %v6263, %v6333
      %v6350 = vmul.f32 %v6265, %v6334
      %v6351 = vmul.f32 %v6267, %v6335
      %v6352 = vmul.f32 %v6269, %v6336
      %v6353 = vmul.f32 %v6271, %v6337
      %v6354 = vmul.f32 %v6273, %v6338
      %v6355 = vmul.f32 %v6275, %v6339
      %v6356 = vpack.c.bf16 %v6341, %v6340
      %v6357 = vpack.c.bf16 %v6343, %v6342
      %v6358 = vpack.c.bf16 %v6345, %v6344
      %v6359 = vpack.c.bf16 %v6347, %v6346
      %v6360 = vpack.c.bf16 %v6349, %v6348
      %v6361 = vpack.c.bf16 %v6351, %v6350
      %v6362 = vpack.c.bf16 %v6353, %v6352
      %v6363 = vpack.c.bf16 %v6355, %v6354
      %6364 = vrot.lane.b32.xlu0 %v4769, 48
      %v6365 = vpop.permute.xlu0 %6364
      %6366 = vrot.lane.b32.xlu0 %v4770, 48
      %v6367 = vpop.permute.xlu0 %6366
      %6368 = vrot.lane.b32.xlu0 %v4771, 48
      %v6369 = vpop.permute.xlu0 %6368
      %6370 = vrot.lane.b32.xlu0 %v4772, 48
      %v6371 = vpop.permute.xlu0 %6370
      %v6377 = vsel %vm1152, %v6356, 0
      %v6380 = vsel %vm1152, %v6357, 0
      %v6383 = vsel %vm1152, %v6358, 0
      %v6386 = vsel %vm1152, %v6359, 0
      %6388 = vmatprep.subr.bf16.mxu0 0
      %6389 = vmatpush1.bf16.msra.mxu0 %v6365
      %6390 = vmatprep.subr.bf16.mxu0 0
      %6391 = vmatpush1.bf16.msra.mxu0 %v6367
      %6392 = vmatprep.subr.bf16.mxu0 0
      %6393 = vmatpush1.bf16.msra.mxu0 %v6369
      %6394 = vmatprep.subr.bf16.mxu0 0
      %6395 = vmatpush1.bf16.msra.mxu0 %v6371
      %6396 = vmatprep.subr.bf16.mxu0 0
      %6397 = vmatpush1.bf16.msra.mxu0 0
      %6398 = vmatprep.subr.bf16.mxu0 0
      %6399 = vmatpush1.bf16.msra.mxu0 0
      %6400 = vmatprep.subr.bf16.mxu0 0
      %6401 = vmatpush1.bf16.msra.mxu0 0
      %6402 = vmatprep.subr.bf16.mxu0 0
      %6403 = vmatpush1.bf16.msra.mxu0 0
      %6404 = vmatprep.subr.bf16.mxu0 0
      %6405 = vmatpush1.bf16.msra.mxu0 0
      %6406 = vmatprep.subr.bf16.mxu0 0
      %6407 = vmatpush1.bf16.msra.mxu0 0
      %6408 = vmatprep.subr.bf16.mxu0 0
      %6409 = vmatpush1.bf16.msra.mxu0 0
      %6410 = vmatprep.subr.bf16.mxu0 0
      %6411 = vmatpush1.bf16.msra.mxu0 0
      %6412 = vmatprep.subr.bf16.mxu0 0
      %6413 = vmatpush1.bf16.msra.mxu0 0
      %6414 = vmatprep.subr.bf16.mxu0 0
      %6415 = vmatpush1.bf16.msra.mxu0 0
      %6416 = vmatprep.subr.bf16.mxu0 0
      %6417 = vmatpush1.bf16.msra.mxu0 0
      %6418 = vmatprep.subr.bf16.mxu0 0
      %6419 = vmatpush1.bf16.msra.mxu0 0
      %6420 = vmatprep.mubr.bf16.mxu0 0
      %6421 = vmatmul.mubr.bf16.gmra.mrb[0].mxu0 %v6377
      %v6422 = vpop.f32.mrb[0].mxu0
      %v6423 = vadd.f32 0.0, %v6422
      %v6424 = vpop.f32.mrb[0].mxu0
      %v6425 = vpop.f32.mrb[0].mxu0
      %v6426 = vadd.f32 0.0, %v6425
      %v6427 = vpop.f32.mrb[0].mxu0
      %6428 = vmatprep.mubr.bf16.mxu0 0
      %6429 = vmatmul.mubr.bf16.gmra.mrb[0].mxu0 %v6380
      %v6430 = vpop.f32.mrb[0].mxu0
      %v6431 = vadd.f32 0.0, %v6430
      %v6432 = vpop.f32.mrb[0].mxu0
      %v6433 = vpop.f32.mrb[0].mxu0
      %v6434 = vadd.f32 0.0, %v6433
      %v6435 = vpop.f32.mrb[0].mxu0
      %6436 = vmatprep.mubr.bf16.mxu0 0
      %6437 = vmatmul.mubr.bf16.gmra.mrb[0].mxu0 %v6383
      %v6438 = vpop.f32.mrb[0].mxu0
      %v6439 = vadd.f32 0.0, %v6438
      %v6440 = vpop.f32.mrb[0].mxu0
      %v6441 = vpop.f32.mrb[0].mxu0
      %v6442 = vadd.f32 0.0, %v6441
      %v6443 = vpop.f32.mrb[0].mxu0
      %6444 = vmatprep.mubr.bf16.mxu0 0
      %6445 = vmatmul.mubr.bf16.gmra.mrb[0].mxu0 %v6386
      %v6446 = vpop.f32.mrb[0].mxu0
      %v6447 = vadd.f32 0.0, %v6446
      %v6448 = vpop.f32.mrb[0].mxu0
      %v6449 = vpop.f32.mrb[0].mxu0
      %v6450 = vadd.f32 0.0, %v6449
      %v6451 = vpop.f32.mrb[0].mxu0
      %6452 = vdwg.mxu0
      %6453 = vrot.lane.b32.xlu0 %v4773, 48
      %v6454 = vpop.permute.xlu0 %6453
      %6455 = vrot.lane.b32.xlu0 %v4774, 48
      %v6456 = vpop.permute.xlu0 %6455
      %6457 = vrot.lane.b32.xlu0 %v4775, 48
      %v6458 = vpop.permute.xlu0 %6457
      %6459 = vrot.lane.b32.xlu0 %v4776, 48
      %v6460 = vpop.permute.xlu0 %6459
      %v6466 = vsel %vm1152, %v6360, 0
      %v6469 = vsel %vm1152, %v6361, 0
      %v6472 = vsel %vm1152, %v6362, 0
      %v6475 = vsel %vm1152, %v6363, 0
      %6477 = vmatprep.subr.bf16.mxu0 0
      %6478 = vmatpush1.bf16.msra.mxu0 %v6454
      %6479 = vmatprep.subr.bf16.mxu0 0
      %6480 = vmatpush1.bf16.msra.mxu0 %v6456
      %6481 = vmatprep.subr.bf16.mxu0 0
      %6482 = vmatpush1.bf16.msra.mxu0 %v6458
      %6483 = vmatprep.subr.bf16.mxu0 0
      %6484 = vmatpush1.bf16.msra.mxu0 %v6460
      %6485 = vmatprep.subr.bf16.mxu0 0
      %6486 = vmatpush1.bf16.msra.mxu0 0
      %6487 = vmatprep.subr.bf16.mxu0 0
      %6488 = vmatpush1.bf16.msra.mxu0 0
      %6489 = vmatprep.subr.bf16.mxu0 0
      %6490 = vmatpush1.bf16.msra.mxu0 0
      %6491 = vmatprep.subr.bf16.mxu0 0
      %6492 = vmatpush1.bf16.msra.mxu0 0
      %6493 = vmatprep.subr.bf16.mxu0 0
      %6494 = vmatpush1.bf16.msra.mxu0 0
      %6495 = vmatprep.subr.bf16.mxu0 0
      %6496 = vmatpush1.bf16.msra.mxu0 0
      %6497 = vmatprep.subr.bf16.mxu0 0
      %6498 = vmatpush1.bf16.msra.mxu0 0
      %6499 = vmatprep.subr.bf16.mxu0 0
      %6500 = vmatpush1.bf16.msra.mxu0 0
      %6501 = vmatprep.subr.bf16.mxu0 0
      %6502 = vmatpush1.bf16.msra.mxu0 0
      %6503 = vmatprep.subr.bf16.mxu0 0
      %6504 = vmatpush1.bf16.msra.mxu0 0
      %6505 = vmatprep.subr.bf16.mxu0 0
      %6506 = vmatpush1.bf16.msra.mxu0 0
      %6507 = vmatprep.subr.bf16.mxu0 0
      %6508 = vmatpush1.bf16.msra.mxu0 0
      %6509 = vmatprep.mubr.bf16.mxu0 0
      %6510 = vmatmul.mubr.bf16.gmra.mrb[0].mxu0 %v6466
      %v6511 = vpop.f32.mrb[0].mxu0
      %v6512 = vadd.f32 0.0, %v6511
      %v6513 = vpop.f32.mrb[0].mxu0
      %v6514 = vpop.f32.mrb[0].mxu0
      %v6515 = vadd.f32 0.0, %v6514
      %v6516 = vpop.f32.mrb[0].mxu0
      %6517 = vmatprep.mubr.bf16.mxu0 0
      %6518 = vmatmul.mubr.bf16.gmra.mrb[0].mxu0 %v6469
      %v6519 = vpop.f32.mrb[0].mxu0
      %v6520 = vadd.f32 0.0, %v6519
      %v6521 = vpop.f32.mrb[0].mxu0
      %v6522 = vpop.f32.mrb[0].mxu0
      %v6523 = vadd.f32 0.0, %v6522
      %v6524 = vpop.f32.mrb[0].mxu0
      %6525 = vmatprep.mubr.bf16.mxu0 0
      %6526 = vmatmul.mubr.bf16.gmra.mrb[0].mxu0 %v6472
      %v6527 = vpop.f32.mrb[0].mxu0
      %v6528 = vadd.f32 0.0, %v6527
      %v6529 = vpop.f32.mrb[0].mxu0
      %v6530 = vpop.f32.mrb[0].mxu0
      %v6531 = vadd.f32 0.0, %v6530
      %v6532 = vpop.f32.mrb[0].mxu0
      %6533 = vmatprep.mubr.bf16.mxu0 0
      %6534 = vmatmul.mubr.bf16.gmra.mrb[0].mxu0 %v6475
      %v6535 = vpop.f32.mrb[0].mxu0
      %v6536 = vadd.f32 0.0, %v6535
      %v6537 = vpop.f32.mrb[0].mxu0
      %v6538 = vpop.f32.mrb[0].mxu0
      %v6539 = vadd.f32 0.0, %v6538
      %v6540 = vpop.f32.mrb[0].mxu0
      %6541 = vdwg.mxu0
      %v6542 = vunpack.c.l.bf16 %v4802
      %v6543 = vunpack.c.l.bf16 %v4803
      %v6544 = vunpack.c.l.bf16 %v4804
      %v6545 = vunpack.c.l.bf16 %v4805
      %v6546 = vunpack.c.l.bf16 %v4806
      %v6547 = vunpack.c.l.bf16 %v4807
      %v6548 = vunpack.c.l.bf16 %v4808
      %v6549 = vunpack.c.l.bf16 %v4809
      %6550 = vrot.lane.b32.xlu0 %v4769, 104
      %v6551 = vpop.permute.xlu0 %6550
      %6552 = vrot.lane.b32.xlu0 %v4770, 104
      %v6553 = vpop.permute.xlu0 %6552
      %6554 = vrot.lane.b32.xlu0 %v4771, 104
      %v6555 = vpop.permute.xlu0 %6554
      %6556 = vrot.lane.b32.xlu0 %v4772, 104
      %v6557 = vpop.permute.xlu0 %6556
      %6558 = vrot.lane.b32.xlu0 %v4769, 72
      %v6559 = vpop.permute.xlu0 %6558
      %6560 = vrot.lane.b32.xlu0 %v4770, 72
      %v6561 = vpop.permute.xlu0 %6560
      %6562 = vrot.lane.b32.xlu0 %v4771, 72
      %v6563 = vpop.permute.xlu0 %6562
      %6564 = vrot.lane.b32.xlu0 %v4772, 72
      %v6565 = vpop.permute.xlu0 %6564
      %v6567 = vsel %vm961, %v6551, 0
      %v6570 = vsel %vm961, %v6553, 0
      %v6573 = vsel %vm961, %v6555, 0
      %v6576 = vsel %vm961, %v6557, 0
      %v6579 = vsel %vm961, %v6559, 0
      %v6582 = vsel %vm961, %v6561, 0
      %v6585 = vsel %vm961, %v6563, 0
      %v6588 = vsel %vm961, %v6565, 0
      %6590 = vmatprep.subr.bf16.mxu0 0
      %6591 = vmatpush1.bf16.xpose.msra.mxu0 %v6579
      %6592 = vmatprep.subr.bf16.mxu0 0
      %6593 = vmatpush1.bf16.xpose.msra.mxu0 %v6582
      %6594 = vmatprep.subr.bf16.mxu0 0
      %6595 = vmatpush1.bf16.xpose.msra.mxu0 %v6585
      %6596 = vmatprep.subr.bf16.mxu0 0
      %6597 = vmatpush1.bf16.xpose.msra.mxu0 %v6588
      %6598 = vmatprep.subr.bf16.mxu0 0
      %6599 = vmatpush1.bf16.xpose.msra.mxu0 0
      %6600 = vmatprep.subr.bf16.mxu0 0
      %6601 = vmatpush1.bf16.xpose.msra.mxu0 0
      %6602 = vmatprep.subr.bf16.mxu0 0
      %6603 = vmatpush1.bf16.xpose.msra.mxu0 0
      %6604 = vmatprep.subr.bf16.mxu0 0
      %6605 = vmatpush1.bf16.xpose.msra.mxu0 0
      %6606 = vmatprep.subr.bf16.mxu0 0
      %6607 = vmatpush1.bf16.xpose.msra.mxu0 0
      %6608 = vmatprep.subr.bf16.mxu0 0
      %6609 = vmatpush1.bf16.xpose.msra.mxu0 0
      %6610 = vmatprep.subr.bf16.mxu0 0
      %6611 = vmatpush1.bf16.xpose.msra.mxu0 0
      %6612 = vmatprep.subr.bf16.mxu0 0
      %6613 = vmatpush1.bf16.xpose.msra.mxu0 0
      %6614 = vmatprep.subr.bf16.mxu0 0
      %6615 = vmatpush1.bf16.xpose.msra.mxu0 0
      %6616 = vmatprep.subr.bf16.mxu0 0
      %6617 = vmatpush1.bf16.xpose.msra.mxu0 0
      %6618 = vmatprep.subr.bf16.mxu0 0
      %6619 = vmatpush1.bf16.xpose.msra.mxu0 0
      %6620 = vmatprep.subr.bf16.mxu0 0
      %6621 = vmatpush1.bf16.xpose.msra.mxu0 0
      %6622 = vmatprep.mubr.bf16.mxu0 0
      %6623 = vmatmul.mubr.bf16.gmra.mrb[0].mxu0 %v6567
      %v6624 = vpop.f32.mrb[0].mxu0
      %v6625 = vadd.f32 %v6542, %v6624
      %v6626 = vpop.f32.mrb[0].mxu0
      %v6627 = vpop.f32.mrb[0].mxu0
      %v6628 = vadd.f32 %v6543, %v6627
      %v6629 = vpop.f32.mrb[0].mxu0
      %6630 = vmatprep.mubr.bf16.mxu0 0
      %6631 = vmatmul.mubr.bf16.gmra.mrb[0].mxu0 %v6570
      %v6632 = vpop.f32.mrb[0].mxu0
      %v6633 = vadd.f32 %v6544, %v6632
      %v6634 = vpop.f32.mrb[0].mxu0
      %v6635 = vpop.f32.mrb[0].mxu0
      %v6636 = vadd.f32 %v6545, %v6635
      %v6637 = vpop.f32.mrb[0].mxu0
      %6638 = vmatprep.mubr.bf16.mxu0 0
      %6639 = vmatmul.mubr.bf16.gmra.mrb[0].mxu0 %v6573
      %v6640 = vpop.f32.mrb[0].mxu0
      %v6641 = vadd.f32 %v6546, %v6640
      %v6642 = vpop.f32.mrb[0].mxu0
      %v6643 = vpop.f32.mrb[0].mxu0
      %v6644 = vadd.f32 %v6547, %v6643
      %v6645 = vpop.f32.mrb[0].mxu0
      %6646 = vmatprep.mubr.bf16.mxu0 0
      %6647 = vmatmul.mubr.bf16.gmra.mrb[0].mxu0 %v6576
      %v6648 = vpop.f32.mrb[0].mxu0
      %v6649 = vadd.f32 %v6548, %v6648
      %v6650 = vpop.f32.mrb[0].mxu0
      %v6651 = vpop.f32.mrb[0].mxu0
      %v6652 = vadd.f32 %v6549, %v6651
      %v6653 = vpop.f32.mrb[0].mxu0
      %6654 = vdwg.mxu0
      %6655 = vrot.lane.b32.xlu0 %v4773, 104
      %v6656 = vpop.permute.xlu0 %6655
      %6657 = vrot.lane.b32.xlu0 %v4774, 104
      %v6658 = vpop.permute.xlu0 %6657
      %6659 = vrot.lane.b32.xlu0 %v4775, 104
      %v6660 = vpop.permute.xlu0 %6659
      %6661 = vrot.lane.b32.xlu0 %v4776, 104
      %v6662 = vpop.permute.xlu0 %6661
      %6663 = vrot.lane.b32.xlu0 %v4773, 72
      %v6664 = vpop.permute.xlu0 %6663
      %6665 = vrot.lane.b32.xlu0 %v4774, 72
      %v6666 = vpop.permute.xlu0 %6665
      %6667 = vrot.lane.b32.xlu0 %v4775, 72
      %v6668 = vpop.permute.xlu0 %6667
      %6669 = vrot.lane.b32.xlu0 %v4776, 72
      %v6670 = vpop.permute.xlu0 %6669
      %v6672 = vsel %vm961, %v6656, 0
      %v6675 = vsel %vm961, %v6658, 0
      %v6678 = vsel %vm961, %v6660, 0
      %v6681 = vsel %vm961, %v6662, 0
      %v6684 = vsel %vm961, %v6664, 0
      %v6687 = vsel %vm961, %v6666, 0
      %v6690 = vsel %vm961, %v6668, 0
      %v6693 = vsel %vm961, %v6670, 0
      %6695 = vmatprep.subr.bf16.mxu0 0
      %6696 = vmatpush1.bf16.xpose.msra.mxu0 %v6684
      %6697 = vmatprep.subr.bf16.mxu0 0
      %6698 = vmatpush1.bf16.xpose.msra.mxu0 %v6687
      %6699 = vmatprep.subr.bf16.mxu0 0
      %6700 = vmatpush1.bf16.xpose.msra.mxu0 %v6690
      %6701 = vmatprep.subr.bf16.mxu0 0
      %6702 = vmatpush1.bf16.xpose.msra.mxu0 %v6693
      %6703 = vmatprep.subr.bf16.mxu0 0
      %6704 = vmatpush1.bf16.xpose.msra.mxu0 0
      %6705 = vmatprep.subr.bf16.mxu0 0
      %6706 = vmatpush1.bf16.xpose.msra.mxu0 0
      %6707 = vmatprep.subr.bf16.mxu0 0
      %6708 = vmatpush1.bf16.xpose.msra.mxu0 0
      %6709 = vmatprep.subr.bf16.mxu0 0
      %6710 = vmatpush1.bf16.xpose.msra.mxu0 0
      %6711 = vmatprep.subr.bf16.mxu0 0
      %6712 = vmatpush1.bf16.xpose.msra.mxu0 0
      %6713 = vmatprep.subr.bf16.mxu0 0
      %6714 = vmatpush1.bf16.xpose.msra.mxu0 0
      %6715 = vmatprep.subr.bf16.mxu0 0
      %6716 = vmatpush1.bf16.xpose.msra.mxu0 0
      %6717 = vmatprep.subr.bf16.mxu0 0
      %6718 = vmatpush1.bf16.xpose.msra.mxu0 0
      %6719 = vmatprep.subr.bf16.mxu0 0
      %6720 = vmatpush1.bf16.xpose.msra.mxu0 0
      %6721 = vmatprep.subr.bf16.mxu0 0
      %6722 = vmatpush1.bf16.xpose.msra.mxu0 0
      %6723 = vmatprep.subr.bf16.mxu0 0
      %6724 = vmatpush1.bf16.xpose.msra.mxu0 0
      %6725 = vmatprep.subr.bf16.mxu0 0
      %6726 = vmatpush1.bf16.xpose.msra.mxu0 0
      %6727 = vmatprep.mubr.bf16.mxu0 0
      %6728 = vmatmul.mubr.bf16.gmra.mrb[0].mxu0 %v6672
      %v6729 = vpop.f32.mrb[0].mxu0
      %v6730 = vadd.f32 %v6542, %v6729
      %v6731 = vpop.f32.mrb[0].mxu0
      %v6732 = vpop.f32.mrb[0].mxu0
      %v6733 = vadd.f32 %v6543, %v6732
      %v6734 = vpop.f32.mrb[0].mxu0
      %6735 = vmatprep.mubr.bf16.mxu0 0
      %6736 = vmatmul.mubr.bf16.gmra.mrb[0].mxu0 %v6675
      %v6737 = vpop.f32.mrb[0].mxu0
      %v6738 = vadd.f32 %v6544, %v6737
      %v6739 = vpop.f32.mrb[0].mxu0
      %v6740 = vpop.f32.mrb[0].mxu0
      %v6741 = vadd.f32 %v6545, %v6740
      %v6742 = vpop.f32.mrb[0].mxu0
      %6743 = vmatprep.mubr.bf16.mxu0 0
      %6744 = vmatmul.mubr.bf16.gmra.mrb[0].mxu0 %v6678
      %v6745 = vpop.f32.mrb[0].mxu0
      %v6746 = vadd.f32 %v6546, %v6745
      %v6747 = vpop.f32.mrb[0].mxu0
      %v6748 = vpop.f32.mrb[0].mxu0
      %v6749 = vadd.f32 %v6547, %v6748
      %v6750 = vpop.f32.mrb[0].mxu0
      %6751 = vmatprep.mubr.bf16.mxu0 0
      %6752 = vmatmul.mubr.bf16.gmra.mrb[0].mxu0 %v6681
      %v6753 = vpop.f32.mrb[0].mxu0
      %v6754 = vadd.f32 %v6548, %v6753
      %v6755 = vpop.f32.mrb[0].mxu0
      %v6756 = vpop.f32.mrb[0].mxu0
      %v6757 = vadd.f32 %v6549, %v6756
      %v6758 = vpop.f32.mrb[0].mxu0
      %6759 = vdwg.mxu0
      %v6760 = vsel %vm1152, %v6625, -inf
      %6761 = vmax.xlane.f32.xlu0 %v6760
      %v6762 = vpop.xlane.xlu0 %6761
      %v6763 = vsel %vm1152, %v6628, -inf
      %6764 = vmax.xlane.f32.xlu0 %v6763
      %v6765 = vpop.xlane.xlu0 %6764
      %v6766 = vsel %vm1152, %v6633, -inf
      %6767 = vmax.xlane.f32.xlu0 %v6766
      %v6768 = vpop.xlane.xlu0 %6767
      %v6769 = vsel %vm1152, %v6636, -inf
      %6770 = vmax.xlane.f32.xlu0 %v6769
      %v6771 = vpop.xlane.xlu0 %6770
      %v6772 = vsel %vm1152, %v6641, -inf
      %6773 = vmax.xlane.f32.xlu0 %v6772
      %v6774 = vpop.xlane.xlu0 %6773
      %v6775 = vsel %vm1152, %v6644, -inf
      %6776 = vmax.xlane.f32.xlu0 %v6775
      %v6777 = vpop.xlane.xlu0 %6776
      %v6778 = vsel %vm1152, %v6649, -inf
      %6779 = vmax.xlane.f32.xlu0 %v6778
      %v6780 = vpop.xlane.xlu0 %6779
      %v6781 = vsel %vm1152, %v6652, -inf
      %6782 = vmax.xlane.f32.xlu0 %v6781
      %v6783 = vpop.xlane.xlu0 %6782
      %v6784 = vsel %vm1152, %v6730, -inf
      %6785 = vmax.xlane.f32.xlu0 %v6784
      %v6786 = vpop.xlane.xlu0 %6785
      %v6787 = vsel %vm1152, %v6733, -inf
      %6788 = vmax.xlane.f32.xlu0 %v6787
      %v6789 = vpop.xlane.xlu0 %6788
      %v6790 = vsel %vm1152, %v6738, -inf
      %6791 = vmax.xlane.f32.xlu0 %v6790
      %v6792 = vpop.xlane.xlu0 %6791
      %v6793 = vsel %vm1152, %v6741, -inf
      %6794 = vmax.xlane.f32.xlu0 %v6793
      %v6795 = vpop.xlane.xlu0 %6794
      %v6796 = vsel %vm1152, %v6746, -inf
      %6797 = vmax.xlane.f32.xlu0 %v6796
      %v6798 = vpop.xlane.xlu0 %6797
      %v6799 = vsel %vm1152, %v6749, -inf
      %6800 = vmax.xlane.f32.xlu0 %v6799
      %v6801 = vpop.xlane.xlu0 %6800
      %v6802 = vsel %vm1152, %v6754, -inf
      %6803 = vmax.xlane.f32.xlu0 %v6802
      %v6804 = vpop.xlane.xlu0 %6803
      %v6805 = vsel %vm1152, %v6757, -inf
      %6806 = vmax.xlane.f32.xlu0 %v6805
      %v6807 = vpop.xlane.xlu0 %6806
      %v6808 = vsub.f32 %v6625, %v6762
      %v6809 = vsub.f32 %v6628, %v6765
      %v6810 = vsub.f32 %v6633, %v6768
      %v6811 = vsub.f32 %v6636, %v6771
      %v6812 = vsub.f32 %v6641, %v6774
      %v6813 = vsub.f32 %v6644, %v6777
      %v6814 = vsub.f32 %v6649, %v6780
      %v6815 = vsub.f32 %v6652, %v6783
      %v6816 = vsub.f32 %v6730, %v6786
      %v6817 = vsub.f32 %v6733, %v6789
      %v6818 = vsub.f32 %v6738, %v6792
      %v6819 = vsub.f32 %v6741, %v6795
      %v6820 = vsub.f32 %v6746, %v6798
      %v6821 = vsub.f32 %v6749, %v6801
      %v6822 = vsub.f32 %v6754, %v6804
      %v6823 = vsub.f32 %v6757, %v6807
      %v6824 = vmul.f32 %v6808, 1.442695
      %v6825 = vpow.pop %v6824
      %v6826 = vmul.f32 %v6809, 1.442695
      %v6827 = vpow.pop %v6826
      %v6828 = vmul.f32 %v6810, 1.442695
      %v6829 = vpow.pop %v6828
      %v6830 = vmul.f32 %v6811, 1.442695
      %v6831 = vpow.pop %v6830
      %v6832 = vmul.f32 %v6812, 1.442695
      %v6833 = vpow.pop %v6832
      %v6834 = vmul.f32 %v6813, 1.442695
      %v6835 = vpow.pop %v6834
      %v6836 = vmul.f32 %v6814, 1.442695
      %v6837 = vpow.pop %v6836
      %v6838 = vmul.f32 %v6815, 1.442695
      %v6839 = vpow.pop %v6838
      %v6840 = vmul.f32 %v6816, 1.442695
      %v6841 = vpow.pop %v6840
      %v6842 = vmul.f32 %v6817, 1.442695
      %v6843 = vpow.pop %v6842
      %v6844 = vmul.f32 %v6818, 1.442695
      %v6845 = vpow.pop %v6844
      %v6846 = vmul.f32 %v6819, 1.442695
      %v6847 = vpow.pop %v6846
      %v6848 = vmul.f32 %v6820, 1.442695
      %v6849 = vpow.pop %v6848
      %v6850 = vmul.f32 %v6821, 1.442695
      %v6851 = vpow.pop %v6850
      %v6852 = vmul.f32 %v6822, 1.442695
      %v6853 = vpow.pop %v6852
      %v6854 = vmul.f32 %v6823, 1.442695
      %v6855 = vpow.pop %v6854
      %v6856 = vsel %vm1152, %v6825, 0.0
      %6857 = vadd.xlane.f32.xlu0 %v6856
      %v6858 = vpop.xlane.xlu0 %6857
      %v6859 = vsel %vm1152, %v6827, 0.0
      %6860 = vadd.xlane.f32.xlu0 %v6859
      %v6861 = vpop.xlane.xlu0 %6860
      %v6862 = vsel %vm1152, %v6829, 0.0
      %6863 = vadd.xlane.f32.xlu0 %v6862
      %v6864 = vpop.xlane.xlu0 %6863
      %v6865 = vsel %vm1152, %v6831, 0.0
      %6866 = vadd.xlane.f32.xlu0 %v6865
      %v6867 = vpop.xlane.xlu0 %6866
      %v6868 = vsel %vm1152, %v6833, 0.0
      %6869 = vadd.xlane.f32.xlu0 %v6868
      %v6870 = vpop.xlane.xlu0 %6869
      %v6871 = vsel %vm1152, %v6835, 0.0
      %6872 = vadd.xlane.f32.xlu0 %v6871
      %v6873 = vpop.xlane.xlu0 %6872
      %v6874 = vsel %vm1152, %v6837, 0.0
      %6875 = vadd.xlane.f32.xlu0 %v6874
      %v6876 = vpop.xlane.xlu0 %6875
      %v6877 = vsel %vm1152, %v6839, 0.0
      %6878 = vadd.xlane.f32.xlu0 %v6877
      %v6879 = vpop.xlane.xlu0 %6878
      %v6880 = vsel %vm1152, %v6841, 0.0
      %6881 = vadd.xlane.f32.xlu0 %v6880
      %v6882 = vpop.xlane.xlu0 %6881
      %v6883 = vsel %vm1152, %v6843, 0.0
      %6884 = vadd.xlane.f32.xlu0 %v6883
      %v6885 = vpop.xlane.xlu0 %6884
      %v6886 = vsel %vm1152, %v6845, 0.0
      %6887 = vadd.xlane.f32.xlu0 %v6886
      %v6888 = vpop.xlane.xlu0 %6887
      %v6889 = vsel %vm1152, %v6847, 0.0
      %6890 = vadd.xlane.f32.xlu0 %v6889
      %v6891 = vpop.xlane.xlu0 %6890
      %v6892 = vsel %vm1152, %v6849, 0.0
      %6893 = vadd.xlane.f32.xlu0 %v6892
      %v6894 = vpop.xlane.xlu0 %6893
      %v6895 = vsel %vm1152, %v6851, 0.0
      %6896 = vadd.xlane.f32.xlu0 %v6895
      %v6897 = vpop.xlane.xlu0 %6896
      %v6898 = vsel %vm1152, %v6853, 0.0
      %6899 = vadd.xlane.f32.xlu0 %v6898
      %v6900 = vpop.xlane.xlu0 %6899
      %v6901 = vsel %vm1152, %v6855, 0.0
      %6902 = vadd.xlane.f32.xlu0 %v6901
      %v6903 = vpop.xlane.xlu0 %6902
      %v6904 = vrcp.pop %v6858
      %v6905 = vrcp.pop %v6861
      %v6906 = vrcp.pop %v6864
      %v6907 = vrcp.pop %v6867
      %v6908 = vrcp.pop %v6870
      %v6909 = vrcp.pop %v6873
      %v6910 = vrcp.pop %v6876
      %v6911 = vrcp.pop %v6879
      %v6912 = vrcp.pop %v6882
      %v6913 = vrcp.pop %v6885
      %v6914 = vrcp.pop %v6888
      %v6915 = vrcp.pop %v6891
      %v6916 = vrcp.pop %v6894
      %v6917 = vrcp.pop %v6897
      %v6918 = vrcp.pop %v6900
      %v6919 = vrcp.pop %v6903
      %v6920 = vmul.f32 %v6825, %v6904
      %v6921 = vmul.f32 %v6827, %v6905
      %v6922 = vmul.f32 %v6829, %v6906
      %v6923 = vmul.f32 %v6831, %v6907
      %v6924 = vmul.f32 %v6833, %v6908
      %v6925 = vmul.f32 %v6835, %v6909
      %v6926 = vmul.f32 %v6837, %v6910
      %v6927 = vmul.f32 %v6839, %v6911
      %v6928 = vmul.f32 %v6841, %v6912
      %v6929 = vmul.f32 %v6843, %v6913
      %v6930 = vmul.f32 %v6845, %v6914
      %v6931 = vmul.f32 %v6847, %v6915
      %v6932 = vmul.f32 %v6849, %v6916
      %v6933 = vmul.f32 %v6851, %v6917
      %v6934 = vmul.f32 %v6853, %v6918
      %v6935 = vmul.f32 %v6855, %v6919
      %v6936 = vpack.c.bf16 %v6921, %v6920
      %v6937 = vpack.c.bf16 %v6923, %v6922
      %v6938 = vpack.c.bf16 %v6925, %v6924
      %v6939 = vpack.c.bf16 %v6927, %v6926
      %v6940 = vpack.c.bf16 %v6929, %v6928
      %v6941 = vpack.c.bf16 %v6931, %v6930
      %v6942 = vpack.c.bf16 %v6933, %v6932
      %v6943 = vpack.c.bf16 %v6935, %v6934
      %6944 = vrot.lane.b32.xlu0 %v4769, 40
      %v6945 = vpop.permute.xlu0 %6944
      %6946 = vrot.lane.b32.xlu0 %v4770, 40
      %v6947 = vpop.permute.xlu0 %6946
      %6948 = vrot.lane.b32.xlu0 %v4771, 40
      %v6949 = vpop.permute.xlu0 %6948
      %6950 = vrot.lane.b32.xlu0 %v4772, 40
      %v6951 = vpop.permute.xlu0 %6950
      %v6957 = vsel %vm1152, %v6936, 0
      %v6960 = vsel %vm1152, %v6937, 0
      %v6963 = vsel %vm1152, %v6938, 0
      %v6966 = vsel %vm1152, %v6939, 0
      %6968 = vmatprep.subr.bf16.mxu0 0
      %6969 = vmatpush1.bf16.msra.mxu0 %v6945
      %6970 = vmatprep.subr.bf16.mxu0 0
      %6971 = vmatpush1.bf16.msra.mxu0 %v6947
      %6972 = vmatprep.subr.bf16.mxu0 0
      %6973 = vmatpush1.bf16.msra.mxu0 %v6949
      %6974 = vmatprep.subr.bf16.mxu0 0
      %6975 = vmatpush1.bf16.msra.mxu0 %v6951
      %6976 = vmatprep.subr.bf16.mxu0 0
      %6977 = vmatpush1.bf16.msra.mxu0 0
      %6978 = vmatprep.subr.bf16.mxu0 0
      %6979 = vmatpush1.bf16.msra.mxu0 0
      %6980 = vmatprep.subr.bf16.mxu0 0
      %6981 = vmatpush1.bf16.msra.mxu0 0
      %6982 = vmatprep.subr.bf16.mxu0 0
      %6983 = vmatpush1.bf16.msra.mxu0 0
      %6984 = vmatprep.subr.bf16.mxu0 0
      %6985 = vmatpush1.bf16.msra.mxu0 0
      %6986 = vmatprep.subr.bf16.mxu0 0
      %6987 = vmatpush1.bf16.msra.mxu0 0
      %6988 = vmatprep.subr.bf16.mxu0 0
      %6989 = vmatpush1.bf16.msra.mxu0 0
      %6990 = vmatprep.subr.bf16.mxu0 0
      %6991 = vmatpush1.bf16.msra.mxu0 0
      %6992 = vmatprep.subr.bf16.mxu0 0
      %6993 = vmatpush1.bf16.msra.mxu0 0
      %6994 = vmatprep.subr.bf16.mxu0 0
      %6995 = vmatpush1.bf16.msra.mxu0 0
      %6996 = vmatprep.subr.bf16.mxu0 0
      %6997 = vmatpush1.bf16.msra.mxu0 0
      %6998 = vmatprep.subr.bf16.mxu0 0
      %6999 = vmatpush1.bf16.msra.mxu0 0
      %7000 = vmatprep.mubr.bf16.mxu0 0
      %7001 = vmatmul.mubr.bf16.gmra.mrb[0].mxu0 %v6957
      %v7002 = vpop.f32.mrb[0].mxu0
      %v7003 = vadd.f32 0.0, %v7002
      %v7004 = vpop.f32.mrb[0].mxu0
      %v7005 = vpop.f32.mrb[0].mxu0
      %v7006 = vadd.f32 0.0, %v7005
      %v7007 = vpop.f32.mrb[0].mxu0
      %7008 = vmatprep.mubr.bf16.mxu0 0
      %7009 = vmatmul.mubr.bf16.gmra.mrb[0].mxu0 %v6960
      %v7010 = vpop.f32.mrb[0].mxu0
      %v7011 = vadd.f32 0.0, %v7010
      %v7012 = vpop.f32.mrb[0].mxu0
      %v7013 = vpop.f32.mrb[0].mxu0
      %v7014 = vadd.f32 0.0, %v7013
      %v7015 = vpop.f32.mrb[0].mxu0
      %7016 = vmatprep.mubr.bf16.mxu0 0
      %7017 = vmatmul.mubr.bf16.gmra.mrb[0].mxu0 %v6963
      %v7018 = vpop.f32.mrb[0].mxu0
      %v7019 = vadd.f32 0.0, %v7018
      %v7020 = vpop.f32.mrb[0].mxu0
      %v7021 = vpop.f32.mrb[0].mxu0
      %v7022 = vadd.f32 0.0, %v7021
      %v7023 = vpop.f32.mrb[0].mxu0
      %7024 = vmatprep.mubr.bf16.mxu0 0
      %7025 = vmatmul.mubr.bf16.gmra.mrb[0].mxu0 %v6966
      %v7026 = vpop.f32.mrb[0].mxu0
      %v7027 = vadd.f32 0.0, %v7026
      %v7028 = vpop.f32.mrb[0].mxu0
      %v7029 = vpop.f32.mrb[0].mxu0
      %v7030 = vadd.f32 0.0, %v7029
      %v7031 = vpop.f32.mrb[0].mxu0
      %7032 = vdwg.mxu0
      %7033 = vrot.lane.b32.xlu0 %v4773, 40
      %v7034 = vpop.permute.xlu0 %7033
      %7035 = vrot.lane.b32.xlu0 %v4774, 40
      %v7036 = vpop.permute.xlu0 %7035
      %7037 = vrot.lane.b32.xlu0 %v4775, 40
      %v7038 = vpop.permute.xlu0 %7037
      %7039 = vrot.lane.b32.xlu0 %v4776, 40
      %v7040 = vpop.permute.xlu0 %7039
      %v7046 = vsel %vm1152, %v6940, 0
      %v7049 = vsel %vm1152, %v6941, 0
      %v7052 = vsel %vm1152, %v6942, 0
      %v7055 = vsel %vm1152, %v6943, 0
      %7057 = vmatprep.subr.bf16.mxu0 0
      %7058 = vmatpush1.bf16.msra.mxu0 %v7034
      %7059 = vmatprep.subr.bf16.mxu0 0
      %7060 = vmatpush1.bf16.msra.mxu0 %v7036
      %7061 = vmatprep.subr.bf16.mxu0 0
      %7062 = vmatpush1.bf16.msra.mxu0 %v7038
      %7063 = vmatprep.subr.bf16.mxu0 0
      %7064 = vmatpush1.bf16.msra.mxu0 %v7040
      %7065 = vmatprep.subr.bf16.mxu0 0
      %7066 = vmatpush1.bf16.msra.mxu0 0
      %7067 = vmatprep.subr.bf16.mxu0 0
      %7068 = vmatpush1.bf16.msra.mxu0 0
      %7069 = vmatprep.subr.bf16.mxu0 0
      %7070 = vmatpush1.bf16.msra.mxu0 0
      %7071 = vmatprep.subr.bf16.mxu0 0
      %7072 = vmatpush1.bf16.msra.mxu0 0
      %7073 = vmatprep.subr.bf16.mxu0 0
      %7074 = vmatpush1.bf16.msra.mxu0 0
      %7075 = vmatprep.subr.bf16.mxu0 0
      %7076 = vmatpush1.bf16.msra.mxu0 0
      %7077 = vmatprep.subr.bf16.mxu0 0
      %7078 = vmatpush1.bf16.msra.mxu0 0
      %7079 = vmatprep.subr.bf16.mxu0 0
      %7080 = vmatpush1.bf16.msra.mxu0 0
      %7081 = vmatprep.subr.bf16.mxu0 0
      %7082 = vmatpush1.bf16.msra.mxu0 0
      %7083 = vmatprep.subr.bf16.mxu0 0
      %7084 = vmatpush1.bf16.msra.mxu0 0
      %7085 = vmatprep.subr.bf16.mxu0 0
      %7086 = vmatpush1.bf16.msra.mxu0 0
      %7087 = vmatprep.subr.bf16.mxu0 0
      %7088 = vmatpush1.bf16.msra.mxu0 0
      %7089 = vmatprep.mubr.bf16.mxu0 0
      %7090 = vmatmul.mubr.bf16.gmra.mrb[0].mxu0 %v7046
      %v7091 = vpop.f32.mrb[0].mxu0
      %v7092 = vadd.f32 0.0, %v7091
      %v7093 = vpop.f32.mrb[0].mxu0
      %v7094 = vpop.f32.mrb[0].mxu0
      %v7095 = vadd.f32 0.0, %v7094
      %v7096 = vpop.f32.mrb[0].mxu0
      %7097 = vmatprep.mubr.bf16.mxu0 0
      %7098 = vmatmul.mubr.bf16.gmra.mrb[0].mxu0 %v7049
      %v7099 = vpop.f32.mrb[0].mxu0
      %v7100 = vadd.f32 0.0, %v7099
      %v7101 = vpop.f32.mrb[0].mxu0
      %v7102 = vpop.f32.mrb[0].mxu0
      %v7103 = vadd.f32 0.0, %v7102
      %v7104 = vpop.f32.mrb[0].mxu0
      %7105 = vmatprep.mubr.bf16.mxu0 0
      %7106 = vmatmul.mubr.bf16.gmra.mrb[0].mxu0 %v7052
      %v7107 = vpop.f32.mrb[0].mxu0
      %v7108 = vadd.f32 0.0, %v7107
      %v7109 = vpop.f32.mrb[0].mxu0
      %v7110 = vpop.f32.mrb[0].mxu0
      %v7111 = vadd.f32 0.0, %v7110
      %v7112 = vpop.f32.mrb[0].mxu0
      %7113 = vmatprep.mubr.bf16.mxu0 0
      %7114 = vmatmul.mubr.bf16.gmra.mrb[0].mxu0 %v7055
      %v7115 = vpop.f32.mrb[0].mxu0
      %v7116 = vadd.f32 0.0, %v7115
      %v7117 = vpop.f32.mrb[0].mxu0
      %v7118 = vpop.f32.mrb[0].mxu0
      %v7119 = vadd.f32 0.0, %v7118
      %v7120 = vpop.f32.mrb[0].mxu0
      %7121 = vdwg.mxu0
      %7138 = vrot.lane.b32.xlu0 %v5843, 8
      %v7139 = vpop.permute.xlu0 %7138
      %7140 = vrot.lane.b32.xlu0 %v5846, 8
      %v7141 = vpop.permute.xlu0 %7140
      %7142 = vrot.lane.b32.xlu0 %v5851, 8
      %v7143 = vpop.permute.xlu0 %7142
      %7144 = vrot.lane.b32.xlu0 %v5854, 8
      %v7145 = vpop.permute.xlu0 %7144
      %7146 = vrot.lane.b32.xlu0 %v5859, 8
      %v7147 = vpop.permute.xlu0 %7146
      %7148 = vrot.lane.b32.xlu0 %v5862, 8
      %v7149 = vpop.permute.xlu0 %7148
      %7150 = vrot.lane.b32.xlu0 %v5867, 8
      %v7151 = vpop.permute.xlu0 %7150
      %7152 = vrot.lane.b32.xlu0 %v5870, 8
      %v7153 = vpop.permute.xlu0 %7152
      %7154 = vrot.lane.b32.xlu0 %v5932, 8
      %v7155 = vpop.permute.xlu0 %7154
      %7156 = vrot.lane.b32.xlu0 %v5935, 8
      %v7157 = vpop.permute.xlu0 %7156
      %7158 = vrot.lane.b32.xlu0 %v5940, 8
      %v7159 = vpop.permute.xlu0 %7158
      %7160 = vrot.lane.b32.xlu0 %v5943, 8
      %v7161 = vpop.permute.xlu0 %7160
      %7162 = vrot.lane.b32.xlu0 %v5948, 8
      %v7163 = vpop.permute.xlu0 %7162
      %7164 = vrot.lane.b32.xlu0 %v5951, 8
      %v7165 = vpop.permute.xlu0 %7164
      %7166 = vrot.lane.b32.xlu0 %v5956, 8
      %v7167 = vpop.permute.xlu0 %7166
      %7168 = vrot.lane.b32.xlu0 %v5959, 8
      %v7169 = vpop.permute.xlu0 %7168
      %7202 = vrot.lane.b32.xlu0 %v6423, 16
      %v7203 = vpop.permute.xlu0 %7202
      %7204 = vrot.lane.b32.xlu0 %v6426, 16
      %v7205 = vpop.permute.xlu0 %7204
      %7206 = vrot.lane.b32.xlu0 %v6431, 16
      %v7207 = vpop.permute.xlu0 %7206
      %7208 = vrot.lane.b32.xlu0 %v6434, 16
      %v7209 = vpop.permute.xlu0 %7208
      %7210 = vrot.lane.b32.xlu0 %v6439, 16
      %v7211 = vpop.permute.xlu0 %7210
      %7212 = vrot.lane.b32.xlu0 %v6442, 16
      %v7213 = vpop.permute.xlu0 %7212
      %7214 = vrot.lane.b32.xlu0 %v6447, 16
      %v7215 = vpop.permute.xlu0 %7214
      %7216 = vrot.lane.b32.xlu0 %v6450, 16
      %v7217 = vpop.permute.xlu0 %7216
      %7218 = vrot.lane.b32.xlu0 %v6512, 16
      %v7219 = vpop.permute.xlu0 %7218
      %7220 = vrot.lane.b32.xlu0 %v6515, 16
      %v7221 = vpop.permute.xlu0 %7220
      %7222 = vrot.lane.b32.xlu0 %v6520, 16
      %v7223 = vpop.permute.xlu0 %7222
      %7224 = vrot.lane.b32.xlu0 %v6523, 16
      %v7225 = vpop.permute.xlu0 %7224
      %7226 = vrot.lane.b32.xlu0 %v6528, 16
      %v7227 = vpop.permute.xlu0 %7226
      %7228 = vrot.lane.b32.xlu0 %v6531, 16
      %v7229 = vpop.permute.xlu0 %7228
      %7230 = vrot.lane.b32.xlu0 %v6536, 16
      %v7231 = vpop.permute.xlu0 %7230
      %7232 = vrot.lane.b32.xlu0 %v6539, 16
      %v7233 = vpop.permute.xlu0 %7232
      %7266 = vrot.lane.b32.xlu0 %v7003, 24
      %v7267 = vpop.permute.xlu0 %7266
      %7268 = vrot.lane.b32.xlu0 %v7006, 24
      %v7269 = vpop.permute.xlu0 %7268
      %7270 = vrot.lane.b32.xlu0 %v7011, 24
      %v7271 = vpop.permute.xlu0 %7270
      %7272 = vrot.lane.b32.xlu0 %v7014, 24
      %v7273 = vpop.permute.xlu0 %7272
      %7274 = vrot.lane.b32.xlu0 %v7019, 24
      %v7275 = vpop.permute.xlu0 %7274
      %7276 = vrot.lane.b32.xlu0 %v7022, 24
      %v7277 = vpop.permute.xlu0 %7276
      %7278 = vrot.lane.b32.xlu0 %v7027, 24
      %v7279 = vpop.permute.xlu0 %7278
      %7280 = vrot.lane.b32.xlu0 %v7030, 24
      %v7281 = vpop.permute.xlu0 %7280
      %7282 = vrot.lane.b32.xlu0 %v7092, 24
      %v7283 = vpop.permute.xlu0 %7282
      %7284 = vrot.lane.b32.xlu0 %v7095, 24
      %v7285 = vpop.permute.xlu0 %7284
      %7286 = vrot.lane.b32.xlu0 %v7100, 24
      %v7287 = vpop.permute.xlu0 %7286
      %7288 = vrot.lane.b32.xlu0 %v7103, 24
      %v7289 = vpop.permute.xlu0 %7288
      %7290 = vrot.lane.b32.xlu0 %v7108, 24
      %v7291 = vpop.permute.xlu0 %7290
      %7292 = vrot.lane.b32.xlu0 %v7111, 24
      %v7293 = vpop.permute.xlu0 %7292
      %7294 = vrot.lane.b32.xlu0 %v7116, 24
      %v7295 = vpop.permute.xlu0 %7294
      %7296 = vrot.lane.b32.xlu0 %v7119, 24
      %v7297 = vpop.permute.xlu0 %7296
      %v7314 = vsel %vm961, %v5263, %v7139
      %v7315 = vsel %vm961, %v5266, %v7141
      %v7316 = vsel %vm961, %v5271, %v7143
      %v7317 = vsel %vm961, %v5274, %v7145
      %v7318 = vsel %vm961, %v5279, %v7147
      %v7319 = vsel %vm961, %v5282, %v7149
      %v7320 = vsel %vm961, %v5287, %v7151
      %v7321 = vsel %vm961, %v5290, %v7153
      %v7322 = vsel %vm961, %v5352, %v7155
      %v7323 = vsel %vm961, %v5355, %v7157
      %v7324 = vsel %vm961, %v5360, %v7159
      %v7325 = vsel %vm961, %v5363, %v7161
      %v7326 = vsel %vm961, %v5368, %v7163
      %v7327 = vsel %vm961, %v5371, %v7165
      %v7328 = vsel %vm961, %v5376, %v7167
      %v7329 = vsel %vm961, %v5379, %v7169
      %v7330 = vsel %vm3463, %v7314, %v7203
      %v7331 = vsel %vm3463, %v7315, %v7205
      %v7332 = vsel %vm3463, %v7316, %v7207
      %v7333 = vsel %vm3463, %v7317, %v7209
      %v7334 = vsel %vm3463, %v7318, %v7211
      %v7335 = vsel %vm3463, %v7319, %v7213
      %v7336 = vsel %vm3463, %v7320, %v7215
      %v7337 = vsel %vm3463, %v7321, %v7217
      %v7338 = vsel %vm3463, %v7322, %v7219
      %v7339 = vsel %vm3463, %v7323, %v7221
      %v7340 = vsel %vm3463, %v7324, %v7223
      %v7341 = vsel %vm3463, %v7325, %v7225
      %v7342 = vsel %vm3463, %v7326, %v7227
      %v7343 = vsel %vm3463, %v7327, %v7229
      %v7344 = vsel %vm3463, %v7328, %v7231
      %v7345 = vsel %vm3463, %v7329, %v7233
      %v7346 = vsel %vm3480, %v7330, %v7267
      %v7347 = vsel %vm3480, %v7331, %v7269
      %v7348 = vsel %vm3480, %v7332, %v7271
      %v7349 = vsel %vm3480, %v7333, %v7273
      %v7350 = vsel %vm3480, %v7334, %v7275
      %v7351 = vsel %vm3480, %v7335, %v7277
      %v7352 = vsel %vm3480, %v7336, %v7279
      %v7353 = vsel %vm3480, %v7337, %v7281
      %v7354 = vsel %vm3480, %v7338, %v7283
      %v7355 = vsel %vm3480, %v7339, %v7285
      %v7356 = vsel %vm3480, %v7340, %v7287
      %v7357 = vsel %vm3480, %v7341, %v7289
      %v7358 = vsel %vm3480, %v7342, %v7291
      %v7359 = vsel %vm3480, %v7343, %v7293
      %v7360 = vsel %vm3480, %v7344, %v7295
      %v7361 = vsel %vm3480, %v7345, %v7297
      %v7362 = vpack.c.bf16 %v7347, %v7346
      %v7363 = vpack.c.bf16 %v7349, %v7348
      %v7364 = vpack.c.bf16 %v7351, %v7350
      %v7365 = vpack.c.bf16 %v7353, %v7352
      %v7366 = vpack.c.bf16 %v7355, %v7354
      %v7367 = vpack.c.bf16 %v7357, %v7356
      %v7368 = vpack.c.bf16 %v7359, %v7358
      %v7369 = vpack.c.bf16 %v7361, %v7360
      %s7370 = scalar_lea.vmem %s6, 16
      %v7371 = vld [vmem:[%s7370] sm:$0xf]
      %v7372 = vld [vmem:[%s7370 + $0x4] sm:$0xf]
      %v7373 = vld [vmem:[%s7370 + $0x8] sm:$0xf]
      %v7374 = vld [vmem:[%s7370 + $0xc] sm:$0xf]
      %s7375 = scalar_lea.vmem %s7, 1
      %v7376 = vld [vmem:[%s7375] sm:$0x1]
      %v7378 = vlaneseq
      %v7379 = vshrl.u32 %v7378, 7
      %v7380 = vsub.s32 0, %v7379
      %v7381 = vrot.slane %v7376, %v7380
      %v7387 = vunpack.c.l.b16 %v7371
      %v7388 = vunpack.c.l.b16 %v7372
      %v7389 = vunpack.c.l.b16 %v7373
      %v7390 = vunpack.c.l.b16 %v7374
      %v7391 = vpack.c.b16 %v7388, %v7387
      %v7392 = vpack.c.b16 %v7390, %v7389
      %v7396 = vsel %vm495, %v7362, 0
      %v7399 = vsel %vm495, %v7363, 0
      %v7402 = vsel %vm495, %v7364, 0
      %v7405 = vsel %vm495, %v7365, 0
      %v7408 = vsel %vm495, %v7366, 0
      %v7411 = vsel %vm495, %v7367, 0
      %v7414 = vsel %vm495, %v7368, 0
      %v7417 = vsel %vm495, %v7369, 0
      %7419 = vmatprep.subr.bf16.mxu0 0
      %7420 = vmatpush1.bf16.msra.mxu0 %v7391
      %7421 = vmatprep.subr.bf16.mxu0 0
      %7422 = vmatpush1.bf16.msra.mxu0 %v7392
      %7423 = vmatprep.subr.bf16.mxu0 0
      %7424 = vmatpush1.bf16.msra.mxu0 0
      %7425 = vmatprep.subr.bf16.mxu0 0
      %7426 = vmatpush1.bf16.msra.mxu0 0
      %7427 = vmatprep.subr.bf16.mxu0 0
      %7428 = vmatpush1.bf16.msra.mxu0 0
      %7429 = vmatprep.subr.bf16.mxu0 0
      %7430 = vmatpush1.bf16.msra.mxu0 0
      %7431 = vmatprep.subr.bf16.mxu0 0
      %7432 = vmatpush1.bf16.msra.mxu0 0
      %7433 = vmatprep.subr.bf16.mxu0 0
      %7434 = vmatpush1.bf16.msra.mxu0 0
      %7435 = vmatprep.subr.bf16.mxu0 0
      %7436 = vmatpush1.bf16.msra.mxu0 0
      %7437 = vmatprep.subr.bf16.mxu0 0
      %7438 = vmatpush1.bf16.msra.mxu0 0
      %7439 = vmatprep.subr.bf16.mxu0 0
      %7440 = vmatpush1.bf16.msra.mxu0 0
      %7441 = vmatprep.subr.bf16.mxu0 0
      %7442 = vmatpush1.bf16.msra.mxu0 0
      %7443 = vmatprep.subr.bf16.mxu0 0
      %7444 = vmatpush1.bf16.msra.mxu0 0
      %7445 = vmatprep.subr.bf16.mxu0 0
      %7446 = vmatpush1.bf16.msra.mxu0 0
      %7447 = vmatprep.subr.bf16.mxu0 0
      %7448 = vmatpush1.bf16.msra.mxu0 0
      %7449 = vmatprep.subr.bf16.mxu0 0
      %7450 = vmatpush1.bf16.msra.mxu0 0
      %7451 = vmatprep.mubr.bf16.mxu0 0
      %7452 = vmatmul.mubr.bf16.gmra.mrb[0].mxu0 %v7396
      %v7453 = vpop.f32.mrb[0].mxu0
      %v7454 = vadd.f32 %v7381, %v7453
      %v7455 = vpop.f32.mrb[0].mxu0
      %v7456 = vpop.f32.mrb[0].mxu0
      %v7457 = vadd.f32 %v7381, %v7456
      %v7458 = vpop.f32.mrb[0].mxu0
      %7459 = vmatprep.mubr.bf16.mxu0 0
      %7460 = vmatmul.mubr.bf16.gmra.mrb[0].mxu0 %v7399
      %v7461 = vpop.f32.mrb[0].mxu0
      %v7462 = vadd.f32 %v7381, %v7461
      %v7463 = vpop.f32.mrb[0].mxu0
      %v7464 = vpop.f32.mrb[0].mxu0
      %v7465 = vadd.f32 %v7381, %v7464
      %v7466 = vpop.f32.mrb[0].mxu0
      %7467 = vmatprep.mubr.bf16.mxu0 0
      %7468 = vmatmul.mubr.bf16.gmra.mrb[0].mxu0 %v7402
      %v7469 = vpop.f32.mrb[0].mxu0
      %v7470 = vadd.f32 %v7381, %v7469
      %v7471 = vpop.f32.mrb[0].mxu0
      %v7472 = vpop.f32.mrb[0].mxu0
      %v7473 = vadd.f32 %v7381, %v7472
      %v7474 = vpop.f32.mrb[0].mxu0
      %7475 = vmatprep.mubr.bf16.mxu0 0
      %7476 = vmatmul.mubr.bf16.gmra.mrb[0].mxu0 %v7405
      %v7477 = vpop.f32.mrb[0].mxu0
      %v7478 = vadd.f32 %v7381, %v7477
      %v7479 = vpop.f32.mrb[0].mxu0
      %v7480 = vpop.f32.mrb[0].mxu0
      %v7481 = vadd.f32 %v7381, %v7480
      %v7482 = vpop.f32.mrb[0].mxu0
      %7483 = vmatprep.mubr.bf16.mxu0 0
      %7484 = vmatmul.mubr.bf16.gmra.mrb[0].mxu0 %v7408
      %v7485 = vpop.f32.mrb[0].mxu0
      %v7486 = vadd.f32 %v7381, %v7485
      %v7487 = vpop.f32.mrb[0].mxu0
      %v7488 = vpop.f32.mrb[0].mxu0
      %v7489 = vadd.f32 %v7381, %v7488
      %v7490 = vpop.f32.mrb[0].mxu0
      %7491 = vmatprep.mubr.bf16.mxu0 0
      %7492 = vmatmul.mubr.bf16.gmra.mrb[0].mxu0 %v7411
      %v7493 = vpop.f32.mrb[0].mxu0
      %v7494 = vadd.f32 %v7381, %v7493
      %v7495 = vpop.f32.mrb[0].mxu0
      %v7496 = vpop.f32.mrb[0].mxu0
      %v7497 = vadd.f32 %v7381, %v7496
      %v7498 = vpop.f32.mrb[0].mxu0
      %7499 = vmatprep.mubr.bf16.mxu0 0
      %7500 = vmatmul.mubr.bf16.gmra.mrb[0].mxu0 %v7414
      %v7501 = vpop.f32.mrb[0].mxu0
      %v7502 = vadd.f32 %v7381, %v7501
      %v7503 = vpop.f32.mrb[0].mxu0
      %v7504 = vpop.f32.mrb[0].mxu0
      %v7505 = vadd.f32 %v7381, %v7504
      %v7506 = vpop.f32.mrb[0].mxu0
      %7507 = vmatprep.mubr.bf16.mxu0 0
      %7508 = vmatmul.mubr.bf16.gmra.mrb[0].mxu0 %v7417
      %v7509 = vpop.f32.mrb[0].mxu0
      %v7510 = vadd.f32 %v7381, %v7509
      %v7511 = vpop.f32.mrb[0].mxu0
      %v7512 = vpop.f32.mrb[0].mxu0
      %v7513 = vadd.f32 %v7381, %v7512
      %v7514 = vpop.f32.mrb[0].mxu0
      %7515 = vdwg.mxu0
      %v7516 = vadd.f32 %v4343, %v7454
      %v7517 = vadd.f32 %v4344, %v7457
      %v7518 = vadd.f32 %v4345, %v7462
      %v7519 = vadd.f32 %v4346, %v7465
      %v7520 = vadd.f32 %v4347, %v7470
      %v7521 = vadd.f32 %v4348, %v7473
      %v7522 = vadd.f32 %v4349, %v7478
      %v7523 = vadd.f32 %v4350, %v7481
      %v7524 = vadd.f32 %v4351, %v7486
      %v7525 = vadd.f32 %v4352, %v7489
      %v7526 = vadd.f32 %v4353, %v7494
      %v7527 = vadd.f32 %v4354, %v7497
      %v7528 = vadd.f32 %v4355, %v7502
      %v7529 = vadd.f32 %v4356, %v7505
      %v7530 = vadd.f32 %v4357, %v7510
      %v7531 = vadd.f32 %v4358, %v7513
      %s7532 = scalar_lea.vmem %s8, 1
      %v7533 = vld [vmem:[%s7532] sm:$0x1]
      %s7534 = scalar_lea.vmem %s9, 1
      %v7535 = vld [vmem:[%s7534] sm:$0x1]
      %v7536 = vsel %vm495, %v7516, 0.0
      %7537 = vadd.xlane.f32.xlu0 %v7536
      %v7538 = vpop.xlane.xlu0 %7537
      %v7539 = vsel %vm495, %v7517, 0.0
      %7540 = vadd.xlane.f32.xlu0 %v7539
      %v7541 = vpop.xlane.xlu0 %7540
      %v7542 = vsel %vm495, %v7518, 0.0
      %7543 = vadd.xlane.f32.xlu0 %v7542
      %v7544 = vpop.xlane.xlu0 %7543
      %v7545 = vsel %vm495, %v7519, 0.0
      %7546 = vadd.xlane.f32.xlu0 %v7545
      %v7547 = vpop.xlane.xlu0 %7546
      %v7548 = vsel %vm495, %v7520, 0.0
      %7549 = vadd.xlane.f32.xlu0 %v7548
      %v7550 = vpop.xlane.xlu0 %7549
      %v7551 = vsel %vm495, %v7521, 0.0
      %7552 = vadd.xlane.f32.xlu0 %v7551
      %v7553 = vpop.xlane.xlu0 %7552
      %v7554 = vsel %vm495, %v7522, 0.0
      %7555 = vadd.xlane.f32.xlu0 %v7554
      %v7556 = vpop.xlane.xlu0 %7555
      %v7557 = vsel %vm495, %v7523, 0.0
      %7558 = vadd.xlane.f32.xlu0 %v7557
      %v7559 = vpop.xlane.xlu0 %7558
      %v7560 = vsel %vm495, %v7524, 0.0
      %7561 = vadd.xlane.f32.xlu0 %v7560
      %v7562 = vpop.xlane.xlu0 %7561
      %v7563 = vsel %vm495, %v7525, 0.0
      %7564 = vadd.xlane.f32.xlu0 %v7563
      %v7565 = vpop.xlane.xlu0 %7564
      %v7566 = vsel %vm495, %v7526, 0.0
      %7567 = vadd.xlane.f32.xlu0 %v7566
      %v7568 = vpop.xlane.xlu0 %7567
      %v7569 = vsel %vm495, %v7527, 0.0
      %7570 = vadd.xlane.f32.xlu0 %v7569
      %v7571 = vpop.xlane.xlu0 %7570
      %v7572 = vsel %vm495, %v7528, 0.0
      %7573 = vadd.xlane.f32.xlu0 %v7572
      %v7574 = vpop.xlane.xlu0 %7573
      %v7575 = vsel %vm495, %v7529, 0.0
      %7576 = vadd.xlane.f32.xlu0 %v7575
      %v7577 = vpop.xlane.xlu0 %7576
      %v7578 = vsel %vm495, %v7530, 0.0
      %7579 = vadd.xlane.f32.xlu0 %v7578
      %v7580 = vpop.xlane.xlu0 %7579
      %v7581 = vsel %vm495, %v7531, 0.0
      %7582 = vadd.xlane.f32.xlu0 %v7581
      %v7583 = vpop.xlane.xlu0 %7582
      %v7584 = vmul.f32 %v7538, %v544
      %v7585 = vmul.f32 %v7541, %v544
      %v7586 = vmul.f32 %v7544, %v544
      %v7587 = vmul.f32 %v7547, %v544
      %v7588 = vmul.f32 %v7550, %v544
      %v7589 = vmul.f32 %v7553, %v544
      %v7590 = vmul.f32 %v7556, %v544
      %v7591 = vmul.f32 %v7559, %v544
      %v7592 = vmul.f32 %v7562, %v544
      %v7593 = vmul.f32 %v7565, %v544
      %v7594 = vmul.f32 %v7568, %v544
      %v7595 = vmul.f32 %v7571, %v544
      %v7596 = vmul.f32 %v7574, %v544
      %v7597 = vmul.f32 %v7577, %v544
      %v7598 = vmul.f32 %v7580, %v544
      %v7599 = vmul.f32 %v7583, %v544
      %v7600 = vsub.f32 %v7516, %v7584
      %v7601 = vsub.f32 %v7517, %v7585
      %v7602 = vsub.f32 %v7518, %v7586
      %v7603 = vsub.f32 %v7519, %v7587
      %v7604 = vsub.f32 %v7520, %v7588
      %v7605 = vsub.f32 %v7521, %v7589
      %v7606 = vsub.f32 %v7522, %v7590
      %v7607 = vsub.f32 %v7523, %v7591
      %v7608 = vsub.f32 %v7524, %v7592
      %v7609 = vsub.f32 %v7525, %v7593
      %v7610 = vsub.f32 %v7526, %v7594
      %v7611 = vsub.f32 %v7527, %v7595
      %v7612 = vsub.f32 %v7528, %v7596
      %v7613 = vsub.f32 %v7529, %v7597
      %v7614 = vsub.f32 %v7530, %v7598
      %v7615 = vsub.f32 %v7531, %v7599
      %v7616 = vmul.f32 %v7600, %v7600
      %v7617 = vmul.f32 %v7601, %v7601
      %v7618 = vmul.f32 %v7602, %v7602
      %v7619 = vmul.f32 %v7603, %v7603
      %v7620 = vmul.f32 %v7604, %v7604
      %v7621 = vmul.f32 %v7605, %v7605
      %v7622 = vmul.f32 %v7606, %v7606
      %v7623 = vmul.f32 %v7607, %v7607
      %v7624 = vmul.f32 %v7608, %v7608
      %v7625 = vmul.f32 %v7609, %v7609
      %v7626 = vmul.f32 %v7610, %v7610
      %v7627 = vmul.f32 %v7611, %v7611
      %v7628 = vmul.f32 %v7612, %v7612
      %v7629 = vmul.f32 %v7613, %v7613
      %v7630 = vmul.f32 %v7614, %v7614
      %v7631 = vmul.f32 %v7615, %v7615
      %v7632 = vsel %vm495, %v7616, 0.0
      %7633 = vadd.xlane.f32.xlu0 %v7632
      %v7634 = vpop.xlane.xlu0 %7633
      %v7635 = vsel %vm495, %v7617, 0.0
      %7636 = vadd.xlane.f32.xlu0 %v7635
      %v7637 = vpop.xlane.xlu0 %7636
      %v7638 = vsel %vm495, %v7618, 0.0
      %7639 = vadd.xlane.f32.xlu0 %v7638
      %v7640 = vpop.xlane.xlu0 %7639
      %v7641 = vsel %vm495, %v7619, 0.0
      %7642 = vadd.xlane.f32.xlu0 %v7641
      %v7643 = vpop.xlane.xlu0 %7642
      %v7644 = vsel %vm495, %v7620, 0.0
      %7645 = vadd.xlane.f32.xlu0 %v7644
      %v7646 = vpop.xlane.xlu0 %7645
      %v7647 = vsel %vm495, %v7621, 0.0
      %7648 = vadd.xlane.f32.xlu0 %v7647
      %v7649 = vpop.xlane.xlu0 %7648
      %v7650 = vsel %vm495, %v7622, 0.0
      %7651 = vadd.xlane.f32.xlu0 %v7650
      %v7652 = vpop.xlane.xlu0 %7651
      %v7653 = vsel %vm495, %v7623, 0.0
      %7654 = vadd.xlane.f32.xlu0 %v7653
      %v7655 = vpop.xlane.xlu0 %7654
      %v7656 = vsel %vm495, %v7624, 0.0
      %7657 = vadd.xlane.f32.xlu0 %v7656
      %v7658 = vpop.xlane.xlu0 %7657
      %v7659 = vsel %vm495, %v7625, 0.0
      %7660 = vadd.xlane.f32.xlu0 %v7659
      %v7661 = vpop.xlane.xlu0 %7660
      %v7662 = vsel %vm495, %v7626, 0.0
      %7663 = vadd.xlane.f32.xlu0 %v7662
      %v7664 = vpop.xlane.xlu0 %7663
      %v7665 = vsel %vm495, %v7627, 0.0
      %7666 = vadd.xlane.f32.xlu0 %v7665
      %v7667 = vpop.xlane.xlu0 %7666
      %v7668 = vsel %vm495, %v7628, 0.0
      %7669 = vadd.xlane.f32.xlu0 %v7668
      %v7670 = vpop.xlane.xlu0 %7669
      %v7671 = vsel %vm495, %v7629, 0.0
      %7672 = vadd.xlane.f32.xlu0 %v7671
      %v7673 = vpop.xlane.xlu0 %7672
      %v7674 = vsel %vm495, %v7630, 0.0
      %7675 = vadd.xlane.f32.xlu0 %v7674
      %v7676 = vpop.xlane.xlu0 %7675
      %v7677 = vsel %vm495, %v7631, 0.0
      %7678 = vadd.xlane.f32.xlu0 %v7677
      %v7679 = vpop.xlane.xlu0 %7678
      %v7680 = vmul.f32 %v7634, %v544
      %v7681 = vmul.f32 %v7637, %v544
      %v7682 = vmul.f32 %v7640, %v544
      %v7683 = vmul.f32 %v7643, %v544
      %v7684 = vmul.f32 %v7646, %v544
      %v7685 = vmul.f32 %v7649, %v544
      %v7686 = vmul.f32 %v7652, %v544
      %v7687 = vmul.f32 %v7655, %v544
      %v7688 = vmul.f32 %v7658, %v544
      %v7689 = vmul.f32 %v7661, %v544
      %v7690 = vmul.f32 %v7664, %v544
      %v7691 = vmul.f32 %v7667, %v544
      %v7692 = vmul.f32 %v7670, %v544
      %v7693 = vmul.f32 %v7673, %v544
      %v7694 = vmul.f32 %v7676, %v544
      %v7695 = vmul.f32 %v7679, %v544
      %v7696 = vadd.f32 %v7680, 1e-05
      %v7697 = vadd.f32 %v7681, 1e-05
      %v7698 = vadd.f32 %v7682, 1e-05
      %v7699 = vadd.f32 %v7683, 1e-05
      %v7700 = vadd.f32 %v7684, 1e-05
      %v7701 = vadd.f32 %v7685, 1e-05
      %v7702 = vadd.f32 %v7686, 1e-05
      %v7703 = vadd.f32 %v7687, 1e-05
      %v7704 = vadd.f32 %v7688, 1e-05
      %v7705 = vadd.f32 %v7689, 1e-05
      %v7706 = vadd.f32 %v7690, 1e-05
      %v7707 = vadd.f32 %v7691, 1e-05
      %v7708 = vadd.f32 %v7692, 1e-05
      %v7709 = vadd.f32 %v7693, 1e-05
      %v7710 = vadd.f32 %v7694, 1e-05
      %v7711 = vadd.f32 %v7695, 1e-05
      %v7712 = vrsqrt.pop %v7696
      %v7713 = vrsqrt.pop %v7697
      %v7714 = vrsqrt.pop %v7698
      %v7715 = vrsqrt.pop %v7699
      %v7716 = vrsqrt.pop %v7700
      %v7717 = vrsqrt.pop %v7701
      %v7718 = vrsqrt.pop %v7702
      %v7719 = vrsqrt.pop %v7703
      %v7720 = vrsqrt.pop %v7704
      %v7721 = vrsqrt.pop %v7705
      %v7722 = vrsqrt.pop %v7706
      %v7723 = vrsqrt.pop %v7707
      %v7724 = vrsqrt.pop %v7708
      %v7725 = vrsqrt.pop %v7709
      %v7726 = vrsqrt.pop %v7710
      %v7727 = vrsqrt.pop %v7711
      %v7728 = vmul.f32 %v7600, %v7712
      %v7729 = vmul.f32 %v7601, %v7713
      %v7730 = vmul.f32 %v7602, %v7714
      %v7731 = vmul.f32 %v7603, %v7715
      %v7732 = vmul.f32 %v7604, %v7716
      %v7733 = vmul.f32 %v7605, %v7717
      %v7734 = vmul.f32 %v7606, %v7718
      %v7735 = vmul.f32 %v7607, %v7719
      %v7736 = vmul.f32 %v7608, %v7720
      %v7737 = vmul.f32 %v7609, %v7721
      %v7738 = vmul.f32 %v7610, %v7722
      %v7739 = vmul.f32 %v7611, %v7723
      %v7740 = vmul.f32 %v7612, %v7724
      %v7741 = vmul.f32 %v7613, %v7725
      %v7742 = vmul.f32 %v7614, %v7726
      %v7743 = vmul.f32 %v7615, %v7727
      %v7745 = vlaneseq
      %v7746 = vshrl.u32 %v7745, 7
      %v7747 = vsub.s32 0, %v7746
      %v7748 = vrot.slane %v7533, %v7747
      %v7750 = vmul.f32 %v7728, %v7748
      %v7751 = vmul.f32 %v7729, %v7748
      %v7752 = vmul.f32 %v7730, %v7748
      %v7753 = vmul.f32 %v7731, %v7748
      %v7754 = vmul.f32 %v7732, %v7748
      %v7755 = vmul.f32 %v7733, %v7748
      %v7756 = vmul.f32 %v7734, %v7748
      %v7757 = vmul.f32 %v7735, %v7748
      %v7758 = vmul.f32 %v7736, %v7748
      %v7759 = vmul.f32 %v7737, %v7748
      %v7760 = vmul.f32 %v7738, %v7748
      %v7761 = vmul.f32 %v7739, %v7748
      %v7762 = vmul.f32 %v7740, %v7748
      %v7763 = vmul.f32 %v7741, %v7748
      %v7764 = vmul.f32 %v7742, %v7748
      %v7765 = vmul.f32 %v7743, %v7748
      %v7767 = vlaneseq
      %v7768 = vshrl.u32 %v7767, 7
      %v7769 = vsub.s32 0, %v7768
      %v7770 = vrot.slane %v7535, %v7769
      %v7772 = vadd.f32 %v7750, %v7770
      %v7773 = vadd.f32 %v7751, %v7770
      %v7774 = vadd.f32 %v7752, %v7770
      %v7775 = vadd.f32 %v7753, %v7770
      %v7776 = vadd.f32 %v7754, %v7770
      %v7777 = vadd.f32 %v7755, %v7770
      %v7778 = vadd.f32 %v7756, %v7770
      %v7779 = vadd.f32 %v7757, %v7770
      %v7780 = vadd.f32 %v7758, %v7770
      %v7781 = vadd.f32 %v7759, %v7770
      %v7782 = vadd.f32 %v7760, %v7770
      %v7783 = vadd.f32 %v7761, %v7770
      %v7784 = vadd.f32 %v7762, %v7770
      %v7785 = vadd.f32 %v7763, %v7770
      %v7786 = vadd.f32 %v7764, %v7770
      %v7787 = vadd.f32 %v7765, %v7770
      %v7788 = vpack.c.bf16 %v7773, %v7772
      %v7789 = vpack.c.bf16 %v7775, %v7774
      %v7790 = vpack.c.bf16 %v7777, %v7776
      %v7791 = vpack.c.bf16 %v7779, %v7778
      %v7792 = vpack.c.bf16 %v7781, %v7780
      %v7793 = vpack.c.bf16 %v7783, %v7782
      %v7794 = vpack.c.bf16 %v7785, %v7784
      %v7795 = vpack.c.bf16 %v7787, %v7786
      %s7796 = scalar_lea.vmem %s10, 16
      %v7797 = vld [vmem:[%s7796] sm:$0xf]
      %v7798 = vld [vmem:[%s7796 + $0x4] sm:$0xf]
      %v7799 = vld [vmem:[%s7796 + $0x8] sm:$0xf]
      %v7800 = vld [vmem:[%s7796 + $0xc] sm:$0xf]
      %s7801 = scalar_lea.vmem %s11, 1
      %v7802 = vld [vmem:[%s7801] sm:$0x1]
      %v7804 = vlaneseq
      %v7805 = vshrl.u32 %v7804, 7
      %v7806 = vsub.s32 0, %v7805
      %v7807 = vrot.slane %v7802, %v7806
      %v7813 = vunpack.c.l.b16 %v7797
      %v7814 = vunpack.c.l.b16 %v7798
      %v7815 = vunpack.c.l.b16 %v7799
      %v7816 = vunpack.c.l.b16 %v7800
      %v7817 = vpack.c.b16 %v7814, %v7813
      %v7818 = vpack.c.b16 %v7816, %v7815
      %v7822 = vsel %vm495, %v7788, 0
      %v7825 = vsel %vm495, %v7789, 0
      %v7828 = vsel %vm495, %v7790, 0
      %v7831 = vsel %vm495, %v7791, 0
      %v7834 = vsel %vm495, %v7792, 0
      %v7837 = vsel %vm495, %v7793, 0
      %v7840 = vsel %vm495, %v7794, 0
      %v7843 = vsel %vm495, %v7795, 0
      %7845 = vmatprep.subr.bf16.mxu0 0
      %7846 = vmatpush1.bf16.msra.mxu0 %v7817
      %7847 = vmatprep.subr.bf16.mxu0 0
      %7848 = vmatpush1.bf16.msra.mxu0 %v7818
      %7849 = vmatprep.subr.bf16.mxu0 0
      %7850 = vmatpush1.bf16.msra.mxu0 0
      %7851 = vmatprep.subr.bf16.mxu0 0
      %7852 = vmatpush1.bf16.msra.mxu0 0
      %7853 = vmatprep.subr.bf16.mxu0 0
      %7854 = vmatpush1.bf16.msra.mxu0 0
      %7855 = vmatprep.subr.bf16.mxu0 0
      %7856 = vmatpush1.bf16.msra.mxu0 0
      %7857 = vmatprep.subr.bf16.mxu0 0
      %7858 = vmatpush1.bf16.msra.mxu0 0
      %7859 = vmatprep.subr.bf16.mxu0 0
      %7860 = vmatpush1.bf16.msra.mxu0 0
      %7861 = vmatprep.subr.bf16.mxu0 0
      %7862 = vmatpush1.bf16.msra.mxu0 0
      %7863 = vmatprep.subr.bf16.mxu0 0
      %7864 = vmatpush1.bf16.msra.mxu0 0
      %7865 = vmatprep.subr.bf16.mxu0 0
      %7866 = vmatpush1.bf16.msra.mxu0 0
      %7867 = vmatprep.subr.bf16.mxu0 0
      %7868 = vmatpush1.bf16.msra.mxu0 0
      %7869 = vmatprep.subr.bf16.mxu0 0
      %7870 = vmatpush1.bf16.msra.mxu0 0
      %7871 = vmatprep.subr.bf16.mxu0 0
      %7872 = vmatpush1.bf16.msra.mxu0 0
      %7873 = vmatprep.subr.bf16.mxu0 0
      %7874 = vmatpush1.bf16.msra.mxu0 0
      %7875 = vmatprep.subr.bf16.mxu0 0
      %7876 = vmatpush1.bf16.msra.mxu0 0
      %7877 = vmatprep.mubr.bf16.mxu0 0
      %7878 = vmatmul.mubr.bf16.gmra.mrb[0].mxu0 %v7822
      %v7879 = vpop.f32.mrb[0].mxu0
      %v7880 = vadd.f32 %v7807, %v7879
      %v7881 = vpop.f32.mrb[0].mxu0
      %v7882 = vpop.f32.mrb[0].mxu0
      %v7883 = vadd.f32 %v7807, %v7882
      %v7884 = vpop.f32.mrb[0].mxu0
      %7885 = vmatprep.mubr.bf16.mxu0 0
      %7886 = vmatmul.mubr.bf16.gmra.mrb[0].mxu0 %v7825
      %v7887 = vpop.f32.mrb[0].mxu0
      %v7888 = vadd.f32 %v7807, %v7887
      %v7889 = vpop.f32.mrb[0].mxu0
      %v7890 = vpop.f32.mrb[0].mxu0
      %v7891 = vadd.f32 %v7807, %v7890
      %v7892 = vpop.f32.mrb[0].mxu0
      %7893 = vmatprep.mubr.bf16.mxu0 0
      %7894 = vmatmul.mubr.bf16.gmra.mrb[0].mxu0 %v7828
      %v7895 = vpop.f32.mrb[0].mxu0
      %v7896 = vadd.f32 %v7807, %v7895
      %v7897 = vpop.f32.mrb[0].mxu0
      %v7898 = vpop.f32.mrb[0].mxu0
      %v7899 = vadd.f32 %v7807, %v7898
      %v7900 = vpop.f32.mrb[0].mxu0
      %7901 = vmatprep.mubr.bf16.mxu0 0
      %7902 = vmatmul.mubr.bf16.gmra.mrb[0].mxu0 %v7831
      %v7903 = vpop.f32.mrb[0].mxu0
      %v7904 = vadd.f32 %v7807, %v7903
      %v7905 = vpop.f32.mrb[0].mxu0
      %v7906 = vpop.f32.mrb[0].mxu0
      %v7907 = vadd.f32 %v7807, %v7906
      %v7908 = vpop.f32.mrb[0].mxu0
      %7909 = vmatprep.mubr.bf16.mxu0 0
      %7910 = vmatmul.mubr.bf16.gmra.mrb[0].mxu0 %v7834
      %v7911 = vpop.f32.mrb[0].mxu0
      %v7912 = vadd.f32 %v7807, %v7911
      %v7913 = vpop.f32.mrb[0].mxu0
      %v7914 = vpop.f32.mrb[0].mxu0
      %v7915 = vadd.f32 %v7807, %v7914
      %v7916 = vpop.f32.mrb[0].mxu0
      %7917 = vmatprep.mubr.bf16.mxu0 0
      %7918 = vmatmul.mubr.bf16.gmra.mrb[0].mxu0 %v7837
      %v7919 = vpop.f32.mrb[0].mxu0
      %v7920 = vadd.f32 %v7807, %v7919
      %v7921 = vpop.f32.mrb[0].mxu0
      %v7922 = vpop.f32.mrb[0].mxu0
      %v7923 = vadd.f32 %v7807, %v7922
      %v7924 = vpop.f32.mrb[0].mxu0
      %7925 = vmatprep.mubr.bf16.mxu0 0
      %7926 = vmatmul.mubr.bf16.gmra.mrb[0].mxu0 %v7840
      %v7927 = vpop.f32.mrb[0].mxu0
      %v7928 = vadd.f32 %v7807, %v7927
      %v7929 = vpop.f32.mrb[0].mxu0
      %v7930 = vpop.f32.mrb[0].mxu0
      %v7931 = vadd.f32 %v7807, %v7930
      %v7932 = vpop.f32.mrb[0].mxu0
      %7933 = vmatprep.mubr.bf16.mxu0 0
      %7934 = vmatmul.mubr.bf16.gmra.mrb[0].mxu0 %v7843
      %v7935 = vpop.f32.mrb[0].mxu0
      %v7936 = vadd.f32 %v7807, %v7935
      %v7937 = vpop.f32.mrb[0].mxu0
      %v7938 = vpop.f32.mrb[0].mxu0
      %v7939 = vadd.f32 %v7807, %v7938
      %v7940 = vpop.f32.mrb[0].mxu0
      %7941 = vdwg.mxu0
      %v7942 = vmul.f32 %v7880, 0.5
      %v7943 = vmul.f32 %v7883, 0.5
      %v7944 = vmul.f32 %v7888, 0.5
      %v7945 = vmul.f32 %v7891, 0.5
      %v7946 = vmul.f32 %v7896, 0.5
      %v7947 = vmul.f32 %v7899, 0.5
      %v7948 = vmul.f32 %v7904, 0.5
      %v7949 = vmul.f32 %v7907, 0.5
      %v7950 = vmul.f32 %v7912, 0.5
      %v7951 = vmul.f32 %v7915, 0.5
      %v7952 = vmul.f32 %v7920, 0.5
      %v7953 = vmul.f32 %v7923, 0.5
      %v7954 = vmul.f32 %v7928, 0.5
      %v7955 = vmul.f32 %v7931, 0.5
      %v7956 = vmul.f32 %v7936, 0.5
      %v7957 = vmul.f32 %v7939, 0.5
      %v7958 = vmul.f32 %v7880, 0.70710677
      %v7959 = vmul.f32 %v7883, 0.70710677
      %v7960 = vmul.f32 %v7888, 0.70710677
      %v7961 = vmul.f32 %v7891, 0.70710677
      %v7962 = vmul.f32 %v7896, 0.70710677
      %v7963 = vmul.f32 %v7899, 0.70710677
      %v7964 = vmul.f32 %v7904, 0.70710677
      %v7965 = vmul.f32 %v7907, 0.70710677
      %v7966 = vmul.f32 %v7912, 0.70710677
      %v7967 = vmul.f32 %v7915, 0.70710677
      %v7968 = vmul.f32 %v7920, 0.70710677
      %v7969 = vmul.f32 %v7923, 0.70710677
      %v7970 = vmul.f32 %v7928, 0.70710677
      %v7971 = vmul.f32 %v7931, 0.70710677
      %v7972 = vmul.f32 %v7936, 0.70710677
      %v7973 = vmul.f32 %v7939, 0.70710677
      %v7974 = verf.f32.pop %v7958
      %v7975 = verf.f32.pop %v7959
      %v7976 = verf.f32.pop %v7960
      %v7977 = verf.f32.pop %v7961
      %v7978 = verf.f32.pop %v7962
      %v7979 = verf.f32.pop %v7963
      %v7980 = verf.f32.pop %v7964
      %v7981 = verf.f32.pop %v7965
      %v7982 = verf.f32.pop %v7966
      %v7983 = verf.f32.pop %v7967
      %v7984 = verf.f32.pop %v7968
      %v7985 = verf.f32.pop %v7969
      %v7986 = verf.f32.pop %v7970
      %v7987 = verf.f32.pop %v7971
      %v7988 = verf.f32.pop %v7972
      %v7989 = verf.f32.pop %v7973
      %v7990 = vadd.f32 %v7974, 1.0
      %v7991 = vadd.f32 %v7975, 1.0
      %v7992 = vadd.f32 %v7976, 1.0
      %v7993 = vadd.f32 %v7977, 1.0
      %v7994 = vadd.f32 %v7978, 1.0
      %v7995 = vadd.f32 %v7979, 1.0
      %v7996 = vadd.f32 %v7980, 1.0
      %v7997 = vadd.f32 %v7981, 1.0
      %v7998 = vadd.f32 %v7982, 1.0
      %v7999 = vadd.f32 %v7983, 1.0
      %v8000 = vadd.f32 %v7984, 1.0
      %v8001 = vadd.f32 %v7985, 1.0
      %v8002 = vadd.f32 %v7986, 1.0
      %v8003 = vadd.f32 %v7987, 1.0
      %v8004 = vadd.f32 %v7988, 1.0
      %v8005 = vadd.f32 %v7989, 1.0
      %v8006 = vmul.f32 %v7942, %v7990
      %v8007 = vmul.f32 %v7943, %v7991
      %v8008 = vmul.f32 %v7944, %v7992
      %v8009 = vmul.f32 %v7945, %v7993
      %v8010 = vmul.f32 %v7946, %v7994
      %v8011 = vmul.f32 %v7947, %v7995
      %v8012 = vmul.f32 %v7948, %v7996
      %v8013 = vmul.f32 %v7949, %v7997
      %v8014 = vmul.f32 %v7950, %v7998
      %v8015 = vmul.f32 %v7951, %v7999
      %v8016 = vmul.f32 %v7952, %v8000
      %v8017 = vmul.f32 %v7953, %v8001
      %v8018 = vmul.f32 %v7954, %v8002
      %v8019 = vmul.f32 %v7955, %v8003
      %v8020 = vmul.f32 %v7956, %v8004
      %v8021 = vmul.f32 %v7957, %v8005
      %v8022 = vpack.c.bf16 %v8007, %v8006
      %v8023 = vpack.c.bf16 %v8009, %v8008
      %v8024 = vpack.c.bf16 %v8011, %v8010
      %v8025 = vpack.c.bf16 %v8013, %v8012
      %v8026 = vpack.c.bf16 %v8015, %v8014
      %v8027 = vpack.c.bf16 %v8017, %v8016
      %v8028 = vpack.c.bf16 %v8019, %v8018
      %v8029 = vpack.c.bf16 %v8021, %v8020
      %s8030 = scalar_lea.vmem %s12, 64
      %v8031 = vld [vmem:[%s8030] sm:$0xf]
      %v8032 = vld [vmem:[%s8030 + $0x4] sm:$0xf]
      %v8033 = vld [vmem:[%s8030 + $0x8] sm:$0xf]
      %v8034 = vld [vmem:[%s8030 + $0xc] sm:$0xf]
      %v8035 = vld [vmem:[%s8030 + $0x10] sm:$0xf]
      %v8036 = vld [vmem:[%s8030 + $0x14] sm:$0xf]
      %v8037 = vld [vmem:[%s8030 + $0x18] sm:$0xf]
      %v8038 = vld [vmem:[%s8030 + $0x1c] sm:$0xf]
      %v8039 = vld [vmem:[%s8030 + $0x20] sm:$0xf]
      %v8040 = vld [vmem:[%s8030 + $0x24] sm:$0xf]
      %v8041 = vld [vmem:[%s8030 + $0x28] sm:$0xf]
      %v8042 = vld [vmem:[%s8030 + $0x2c] sm:$0xf]
      %v8043 = vld [vmem:[%s8030 + $0x30] sm:$0xf]
      %v8044 = vld [vmem:[%s8030 + $0x34] sm:$0xf]
      %v8045 = vld [vmem:[%s8030 + $0x38] sm:$0xf]
      %v8046 = vld [vmem:[%s8030 + $0x3c] sm:$0xf]
      %v8063 = vunpack.c.l.b16 %v8031
      %v8064 = vunpack.c.l.b16 %v8032
      %v8065 = vunpack.c.l.b16 %v8033
      %v8066 = vunpack.c.l.b16 %v8034
      %v8067 = vunpack.c.l.b16 %v8035
      %v8068 = vunpack.c.l.b16 %v8036
      %v8069 = vunpack.c.l.b16 %v8037
      %v8070 = vunpack.c.l.b16 %v8038
      %v8071 = vunpack.c.l.b16 %v8039
      %v8072 = vunpack.c.l.b16 %v8040
      %v8073 = vunpack.c.l.b16 %v8041
      %v8074 = vunpack.c.l.b16 %v8042
      %v8075 = vunpack.c.l.b16 %v8043
      %v8076 = vunpack.c.l.b16 %v8044
      %v8077 = vunpack.c.l.b16 %v8045
      %v8078 = vunpack.c.l.b16 %v8046
      %v8079 = vpack.c.b16 %v8064, %v8063
      %v8080 = vpack.c.b16 %v8066, %v8065
      %v8081 = vpack.c.b16 %v8068, %v8067
      %v8082 = vpack.c.b16 %v8070, %v8069
      %v8083 = vpack.c.b16 %v8072, %v8071
      %v8084 = vpack.c.b16 %v8074, %v8073
      %v8085 = vpack.c.b16 %v8076, %v8075
      %v8086 = vpack.c.b16 %v8078, %v8077
      %8095 = vmatprep.subr.bf16.mxu0 0
      %8096 = vmatpush1.bf16.msra.mxu0 %v8079
      %8097 = vmatprep.subr.bf16.mxu0 0
      %8098 = vmatpush1.bf16.msra.mxu0 %v8080
      %8099 = vmatprep.subr.bf16.mxu0 0
      %8100 = vmatpush1.bf16.msra.mxu0 %v8081
      %8101 = vmatprep.subr.bf16.mxu0 0
      %8102 = vmatpush1.bf16.msra.mxu0 %v8082
      %8103 = vmatprep.subr.bf16.mxu0 0
      %8104 = vmatpush1.bf16.msra.mxu0 %v8083
      %8105 = vmatprep.subr.bf16.mxu0 0
      %8106 = vmatpush1.bf16.msra.mxu0 %v8084
      %8107 = vmatprep.subr.bf16.mxu0 0
      %8108 = vmatpush1.bf16.msra.mxu0 %v8085
      %8109 = vmatprep.subr.bf16.mxu0 0
      %8110 = vmatpush1.bf16.msra.mxu0 %v8086
      %8111 = vmatprep.subr.bf16.mxu0 0
      %8112 = vmatpush1.bf16.msra.mxu0 0
      %8113 = vmatprep.subr.bf16.mxu0 0
      %8114 = vmatpush1.bf16.msra.mxu0 0
      %8115 = vmatprep.subr.bf16.mxu0 0
      %8116 = vmatpush1.bf16.msra.mxu0 0
      %8117 = vmatprep.subr.bf16.mxu0 0
      %8118 = vmatpush1.bf16.msra.mxu0 0
      %8119 = vmatprep.subr.bf16.mxu0 0
      %8120 = vmatpush1.bf16.msra.mxu0 0
      %8121 = vmatprep.subr.bf16.mxu0 0
      %8122 = vmatpush1.bf16.msra.mxu0 0
      %8123 = vmatprep.subr.bf16.mxu0 0
      %8124 = vmatpush1.bf16.msra.mxu0 0
      %8125 = vmatprep.subr.bf16.mxu0 0
      %8126 = vmatpush1.bf16.msra.mxu0 0
      %8127 = vmatprep.mubr.bf16.mxu0 0
      %8128 = vmatmul.mubr.bf16.gmra.mrb[0].mxu0 %v8022
      %v8129 = vpop.f32.mrb[0].mxu0
      %v8130 = vadd.f32 0.0, %v8129
      %v8131 = vpop.f32.mrb[0].mxu0
      %v8132 = vpop.f32.mrb[0].mxu0
      %v8133 = vadd.f32 0.0, %v8132
      %v8134 = vpop.f32.mrb[0].mxu0
      %8135 = vmatprep.mubr.bf16.mxu0 0
      %8136 = vmatmul.mubr.bf16.gmra.mrb[0].mxu0 %v8023
      %v8137 = vpop.f32.mrb[0].mxu0
      %v8138 = vadd.f32 0.0, %v8137
      %v8139 = vpop.f32.mrb[0].mxu0
      %v8140 = vpop.f32.mrb[0].mxu0
      %v8141 = vadd.f32 0.0, %v8140
      %v8142 = vpop.f32.mrb[0].mxu0
      %8143 = vmatprep.mubr.bf16.mxu0 0
      %8144 = vmatmul.mubr.bf16.gmra.mrb[0].mxu0 %v8024
      %v8145 = vpop.f32.mrb[0].mxu0
      %v8146 = vadd.f32 0.0, %v8145
      %v8147 = vpop.f32.mrb[0].mxu0
      %v8148 = vpop.f32.mrb[0].mxu0
      %v8149 = vadd.f32 0.0, %v8148
      %v8150 = vpop.f32.mrb[0].mxu0
      %8151 = vmatprep.mubr.bf16.mxu0 0
      %8152 = vmatmul.mubr.bf16.gmra.mrb[0].mxu0 %v8025
      %v8153 = vpop.f32.mrb[0].mxu0
      %v8154 = vadd.f32 0.0, %v8153
      %v8155 = vpop.f32.mrb[0].mxu0
      %v8156 = vpop.f32.mrb[0].mxu0
      %v8157 = vadd.f32 0.0, %v8156
      %v8158 = vpop.f32.mrb[0].mxu0
      %8159 = vmatprep.mubr.bf16.mxu0 0
      %8160 = vmatmul.mubr.bf16.gmra.mrb[0].mxu0 %v8026
      %v8161 = vpop.f32.mrb[0].mxu0
      %v8162 = vadd.f32 0.0, %v8161
      %v8163 = vpop.f32.mrb[0].mxu0
      %v8164 = vpop.f32.mrb[0].mxu0
      %v8165 = vadd.f32 0.0, %v8164
      %v8166 = vpop.f32.mrb[0].mxu0
      %8167 = vmatprep.mubr.bf16.mxu0 0
      %8168 = vmatmul.mubr.bf16.gmra.mrb[0].mxu0 %v8027
      %v8169 = vpop.f32.mrb[0].mxu0
      %v8170 = vadd.f32 0.0, %v8169
      %v8171 = vpop.f32.mrb[0].mxu0
      %v8172 = vpop.f32.mrb[0].mxu0
      %v8173 = vadd.f32 0.0, %v8172
      %v8174 = vpop.f32.mrb[0].mxu0
      %8175 = vmatprep.mubr.bf16.mxu0 0
      %8176 = vmatmul.mubr.bf16.gmra.mrb[0].mxu0 %v8028
      %v8177 = vpop.f32.mrb[0].mxu0
      %v8178 = vadd.f32 0.0, %v8177
      %v8179 = vpop.f32.mrb[0].mxu0
      %v8180 = vpop.f32.mrb[0].mxu0
      %v8181 = vadd.f32 0.0, %v8180
      %v8182 = vpop.f32.mrb[0].mxu0
      %8183 = vmatprep.mubr.bf16.mxu0 0
      %8184 = vmatmul.mubr.bf16.gmra.mrb[0].mxu0 %v8029
      %v8185 = vpop.f32.mrb[0].mxu0
      %v8186 = vadd.f32 0.0, %v8185
      %v8187 = vpop.f32.mrb[0].mxu0
      %v8188 = vpop.f32.mrb[0].mxu0
      %v8189 = vadd.f32 0.0, %v8188
      %v8190 = vpop.f32.mrb[0].mxu0
      %8191 = vdwg.mxu0
      %v8192 = vadd.f32 %v7516, %v8130
      %v8193 = vadd.f32 %v7517, %v8133
      %v8194 = vadd.f32 %v7518, %v8138
      %v8195 = vadd.f32 %v7519, %v8141
      %v8196 = vadd.f32 %v7520, %v8146
      %v8197 = vadd.f32 %v7521, %v8149
      %v8198 = vadd.f32 %v7522, %v8154
      %v8199 = vadd.f32 %v7523, %v8157
      %v8200 = vadd.f32 %v7524, %v8162
      %v8201 = vadd.f32 %v7525, %v8165
      %v8202 = vadd.f32 %v7526, %v8170
      %v8203 = vadd.f32 %v7527, %v8173
      %v8204 = vadd.f32 %v7528, %v8178
      %v8205 = vadd.f32 %v7529, %v8181
      %v8206 = vadd.f32 %v7530, %v8186
      %v8207 = vadd.f32 %v7531, %v8189
      %s8208 = scalar_lea.vmem %s13, 1
      %v8209 = vld [vmem:[%s8208] sm:$0x1]
      %v8211 = vlaneseq
      %v8212 = vshrl.u32 %v8211, 7
      %v8213 = vsub.s32 0, %v8212
      %v8214 = vrot.slane %v8209, %v8213
      %v8216 = vadd.f32 %v8192, %v8214
      %v8217 = vadd.f32 %v8193, %v8214
      %v8218 = vadd.f32 %v8194, %v8214
      %v8219 = vadd.f32 %v8195, %v8214
      %v8220 = vadd.f32 %v8196, %v8214
      %v8221 = vadd.f32 %v8197, %v8214
      %v8222 = vadd.f32 %v8198, %v8214
      %v8223 = vadd.f32 %v8199, %v8214
      %v8224 = vadd.f32 %v8200, %v8214
      %v8225 = vadd.f32 %v8201, %v8214
      %v8226 = vadd.f32 %v8202, %v8214
      %v8227 = vadd.f32 %v8203, %v8214
      %v8228 = vadd.f32 %v8204, %v8214
      %v8229 = vadd.f32 %v8205, %v8214
      %v8230 = vadd.f32 %v8206, %v8214
      %v8231 = vadd.f32 %v8207, %v8214
      %8232 = vst.msk [vmem:[%s474] sm:$0xff] %vm495, %v8216
      %8233 = vst.msk [vmem:[%s474 + $0x8] sm:$0xff] %vm495, %v8217
      %8234 = vst.msk [vmem:[%s474 + $0x10] sm:$0xff] %vm495, %v8218
      %8235 = vst.msk [vmem:[%s474 + $0x18] sm:$0xff] %vm495, %v8219
      %8236 = vst.msk [vmem:[%s474 + $0x20] sm:$0xff] %vm495, %v8220
      %8237 = vst.msk [vmem:[%s474 + $0x28] sm:$0xff] %vm495, %v8221
      %8238 = vst.msk [vmem:[%s474 + $0x30] sm:$0xff] %vm495, %v8222
      %8239 = vst.msk [vmem:[%s474 + $0x38] sm:$0xff] %vm495, %v8223
      %8240 = vst.msk [vmem:[%s474 + $0x40] sm:$0xff] %vm495, %v8224
      %8241 = vst.msk [vmem:[%s474 + $0x48] sm:$0xff] %vm495, %v8225
      %8242 = vst.msk [vmem:[%s474 + $0x50] sm:$0xff] %vm495, %v8226
      %8243 = vst.msk [vmem:[%s474 + $0x58] sm:$0xff] %vm495, %v8227
      %8244 = vst.msk [vmem:[%s474 + $0x60] sm:$0xff] %vm495, %v8228
      %8245 = vst.msk [vmem:[%s474 + $0x68] sm:$0xff] %vm495, %v8229
      %8246 = vst.msk [vmem:[%s474 + $0x70] sm:$0xff] %vm495, %v8230
      %8247 = vst.msk [vmem:[%s474 + $0x78] sm:$0xff] %vm495, %v8231
      %s8248 = smul.u32 2, %s25
      %p8249 = scmp.lt.s32.totalorder %s8248, 3
      %s8250 = scalar_select %p8249, %s8248, 3
      %s8251 = smul.addr %s8250, 8
      %s8252 = smul.addr %s8251, 8
      %s8253 = scalar_lea.vmem %s14, %s8252
      // Predicated region
      $region77: #{basic_layer_forward.1} parent=75 // pred_check
        %p8254 = pneg %p342
      $region78: #{basic_layer_forward.1} parent=75 // pred_check_branch
        %8256 = sbr.rel (%p8254) target = $region80
      $region79: #{basic_layer_forward.1} parent=75 // pred_region
        %s8257 = smul.u32 2, %s25
      $region80: #{basic_layer_forward.1} parent=75 // pred_fallthru
        _
    $region76: #{basic_layer_forward.1} parent=5 // pred_fallthru
      _
    %p8258 = scmp.le.s32.totalorder 2, %s20
    // Predicated region
    $region81: #{basic_layer_forward.1} parent=5 // pred_check
      %p8259 = pneg %p8258
    $region82: #{basic_layer_forward.1} parent=5 // pred_check_branch
      %8261 = sbr.rel (%p8259) target = $region84
    $region83: #{basic_layer_forward.1} parent=5 // pred_region
      %s8262 = ssub.s32 %s20, 2
      // Predicated region
      $region85: #{basic_layer_forward.1} parent=83 // pred_check
        %p8263 = pneg %p348
      $region86: #{basic_layer_forward.1} parent=83 // pred_check_branch
        %8265 = sbr.rel (%p8263) target = $region88
      $region87: #{basic_layer_forward.1} parent=83 // pred_region
        %s8266 = smul.u32 2, %s26
        %p8267 = scmp.lt.s32.totalorder %s8266, 3
        %s8268 = scalar_select %p8267, %s8266, 3
        %s8269 = smul.addr %s8268, 8
        %s8270 = smul.addr %s8269, 8
        %s8271 = scalar_lea.vmem %s14, %s8270
      $region88: #{basic_layer_forward.1} parent=83 // pred_fallthru
        _
    $region84: #{basic_layer_forward.1} parent=5 // pred_fallthru
      _
  $region6: #{basic_layer_forward.1} parent=0 // loop_footer
    %s24 = sadd.s32 1, %s20
  $region7: #{basic_layer_forward.1} parent=0 // loop_footer_branch
    %19 = sbr.rel target = $region3
  $region8: #{basic_layer_forward.1} parent=0 // loop_exit
    _

</llo_original>
